<compile_context>
chip_gen: v7x
topology: tpu7x:2x2x1
jax: 0.10.0
libtpu: 0.0.40
codegen_flags: <defaults>
</compile_context>

<pallas_src>
import functools

import numpy as np
import jax
import jax.numpy as jnp
from jax import lax
from jax.experimental import pallas as pl
from jax.experimental.pallas import tpu as pltpu

BN_EPS = 1e-3


def _round_up(x, m):
    return (x + m - 1) // m * m


def _pair(v):
    return (v, v) if isinstance(v, int) else (int(v[0]), int(v[1]))


# ---------------------------------------------------------------------------
# Pallas kernel: conv (im2col fused in-kernel) + folded-BN bias + ReLU
# ---------------------------------------------------------------------------

def _conv_bn_relu_kernel(x_ref, w_ref, b_ref, o_ref, *,
                         kh, kw, sh, sw, Ho, Wo, relu):
    """One (oc-tile, batch-element) grid step.

    x_ref: (1, Hp, Wp, C)   padded activation, bf16, VMEM-resident per image
    w_ref: (kh*kw, C, tn)   BN-scale-folded weights, bf16
    b_ref: (1, tn)          folded BN bias, f32
    o_ref: (1, Ho, Wo, tn)  output, bf16
    """
    C = x_ref.shape[3]
    tn = w_ref.shape[2]
    acc = jnp.zeros((Ho * Wo, tn), jnp.float32)
    idx = 0
    for ki in range(kh):            # static unroll over window positions:
        for kj in range(kw):        # fused im2col, f32 accumulation on MXU
            win = x_ref[0,
                        ki:ki + sh * (Ho - 1) + 1,
                        kj:kj + sw * (Wo - 1) + 1, :]
            if sh != 1 or sw != 1:
                # TODO(synk): strided conv path (unused by ConvSeq3x3Branch).
                win = win[::sh, ::sw, :]
            a = win.reshape(Ho * Wo, C)
            acc = acc + jnp.dot(a, w_ref[idx],
                                preferred_element_type=jnp.float32)
            idx += 1
    y = acc + b_ref[...]
    if relu:
        y = jnp.maximum(y, 0.0)
    o_ref[...] = y.reshape(1, Ho, Wo, tn).astype(o_ref.dtype)


def conv_bn_relu(params, x):
    """x: (N, H, W, C) bf16 NHWC -> (N, Ho, Wo, out_c) bf16 NHWC."""
    kh, kw = params["kh"], params["kw"]
    sh, sw = params["sh"], params["sw"]
    ph, pw = params["ph"], params["pw"]
    oc = params["oc"]
    w_kkc = params["w_kkc"]          # (kh*kw, C, OCp) bf16, BN scale folded
    bias_row = params["bias_row"]    # (1, OCp) f32
    N, H, W, C = x.shape
    assert C == w_kkc.shape[1]
    Ho = (H + 2 * ph - kh) // sh + 1
    Wo = (W + 2 * pw - kw) // sw + 1
    Hp, Wp = H + 2 * ph, W + 2 * pw
    OCp = w_kkc.shape[2]
    tn = params["tn"]
    J = OCp // tn

    xp = jnp.pad(x, ((0, 0), (ph, ph), (pw, pw), (0, 0)))

    kernel = functools.partial(_conv_bn_relu_kernel, kh=kh, kw=kw, sh=sh,
                               sw=sw, Ho=Ho, Wo=Wo, relu=True)
    flops = 2 * N * Ho * Wo * kh * kw * C * OCp
    bytes_accessed = (N * Hp * Wp * C * 2 + kh * kw * C * OCp * 2
                      + OCp * 4 + N * Ho * Wo * OCp * 2)

    out = pl.pallas_call(
        kernel,
        out_shape=jax.ShapeDtypeStruct((N, Ho, Wo, OCp), jnp.bfloat16),
        grid_spec=pltpu.PrefetchScalarGridSpec(
            num_scalar_prefetch=0,
            # weight-outer / batch-inner: weight tile stays VMEM-resident
            # across the batch; the per-image activation is DMA'd per step.
            grid=(J, N),
            in_specs=[
                pl.BlockSpec((1, Hp, Wp, C), lambda j, n: (n, 0, 0, 0)),
                pl.BlockSpec((kh * kw, C, tn), lambda j, n: (0, 0, j)),
                pl.BlockSpec((1, tn), lambda j, n: (0, j)),
            ],
            out_specs=pl.BlockSpec((1, Ho, Wo, tn),
                                   lambda j, n: (n, 0, 0, j)),
        ),
        compiler_params=pltpu.CompilerParams(
            dimension_semantics=("parallel", "parallel")),
        cost_estimate=pl.CostEstimate(flops=flops, transcendentals=0,
                                      bytes_accessed=bytes_accessed),
    )(xp, w_kkc, bias_row)
    return out[..., :oc]


# ---------------------------------------------------------------------------
# Deterministic parameter construction (mirrors the PyTorch module)
# ---------------------------------------------------------------------------

class KeyGen:
    def __init__(self, seed):
        self._key = jax.random.PRNGKey(seed)
        self._i = 0

    def __call__(self):
        k = jax.random.fold_in(self._key, self._i)
        self._i += 1
        return k


def _finalize_conv(w4_folded, bias, kh, kw, sh, sw, ph, pw):
    """w4_folded: (OC, C, kh, kw) f32 with BN scale already folded in."""
    OC, C = int(w4_folded.shape[0]), int(w4_folded.shape[1])
    OCp = _round_up(OC, 128)                     # lane-dense output tiles
    tn = 256 if OCp % 256 == 0 else 128
    w_hwio = jnp.transpose(w4_folded, (2, 3, 1, 0)).astype(jnp.bfloat16)
    w_kkc = jnp.pad(w_hwio.reshape(kh * kw, C, OC),
                    ((0, 0), (0, 0), (0, OCp - OC)))
    bias_row = jnp.pad(bias.astype(jnp.float32),
                       (0, OCp - OC)).reshape(1, OCp)
    return dict(w_kkc=w_kkc, w_hwio=w_hwio, bias=bias.astype(jnp.float32),
                bias_row=bias_row, w4=w4_folded,
                kh=kh, kw=kw, sh=sh, sw=sw, ph=ph, pw=pw, oc=OC, tn=tn)


def make_incept_conv(kg, in_c, out_c, k, s=1, p=0):
    kh, kw = _pair(k)
    sh, sw = _pair(s)
    ph, pw = _pair(p)
    fan_in = in_c * kh * kw
    w = (jax.random.normal(kg(), (out_c, in_c, kh, kw), jnp.float32)
         * np.sqrt(2.0 / fan_in))
    # BatchNorm (eval): gamma=1, beta=0, running mean=0, running var=1.
    gamma = jnp.ones((out_c,), jnp.float32)
    beta = jnp.zeros((out_c,), jnp.float32)
    mean = jnp.zeros((out_c,), jnp.float32)
    var = jnp.ones((out_c,), jnp.float32)
    scale = gamma / jnp.sqrt(var + BN_EPS)
    w_folded = w * scale[:, None, None, None]   # fold BN scale into weights
    bias = beta - mean * scale                  # exact: bias stays post-scale
    return _finalize_conv(w_folded, bias, kh, kw, sh, sw, ph, pw)


def _fuse_1x3_3x1(p13, p31):
    """Embed 1x3 and 3x1 kernels in a shared 3x3 footprint and concat along
    output channels: one conv whose output == cat([conv1x3(x), conv3x1(x)])."""
    oc, c = int(p13["w4"].shape[0]), int(p13["w4"].shape[1])
    wa = jnp.zeros((oc, c, 3, 3), jnp.float32).at[:, :, 1, :].set(
        p13["w4"][:, :, 0, :])
    wb = jnp.zeros((oc, c, 3, 3), jnp.float32).at[:, :, :, 1].set(
        p31["w4"][:, :, :, 0])
    w4 = jnp.concatenate([wa, wb], axis=0)
    bias = jnp.concatenate([p13["bias"], p31["bias"]], axis=0)
    return _finalize_conv(w4, bias, 3, 3, 1, 1, 1, 1)


def make_convseq3x3_branch(kg, in_channels, out_channels, mid_channels_list,
                           kernel_size_list, strides_list, padding_list):
    convs = []
    c = in_channels
    for mc, k, s, p in zip(mid_channels_list, kernel_size_list,
                           strides_list, padding_list):
        convs.append(make_incept_conv(kg, c, mc, k, s, p))
        c = mc
    conv1x3 = make_incept_conv(kg, c, out_channels, (1, 3), 1, (0, 1))
    conv3x1 = make_incept_conv(kg, c, out_channels, (3, 1), 1, (1, 0))
    fused = _fuse_1x3_3x1(conv1x3, conv3x1)
    return dict(convs=convs, conv1x3=conv1x3, conv3x1=conv3x1, fused=fused)


# ---------------------------------------------------------------------------
# Forward passes
# ---------------------------------------------------------------------------

def convseq3x3_forward(branch, x_nchw):
    """Pallas path. x: (N, C, H, W) f32 -> (N, 2*out_c, Ho, Wo) f32."""
    x = jnp.transpose(x_nchw, (0, 2, 3, 1)).astype(jnp.bfloat16)  # NHWC once
    for p in branch["convs"]:
        x = conv_bn_relu(p, x)
    x = conv_bn_relu(branch["fused"], x)   # == cat([conv1x3, conv3x1], ch)
    return jnp.transpose(x, (0, 3, 1, 2)).astype(jnp.float32)


def _conv_ref(p, x):
    y = lax.conv_general_dilated(
        x, p["w_hwio"], window_strides=(p["sh"], p["sw"]),
        padding=((p["ph"], p["ph"]), (p["pw"], p["pw"])),
        dimension_numbers=("NHWC", "HWIO", "NHWC"),
        preferred_element_type=jnp.float32)
    y = jnp.maximum(y + p["bias"][None, None, None, :], 0.0)
    return y.astype(jnp.bfloat16)


def convseq3x3_reference(branch, x_nchw):
    """Pure-JAX (XLA conv) reference with the unfused 1x3 / 3x1 pair."""
    x = jnp.transpose(x_nchw, (0, 2, 3, 1)).astype(jnp.bfloat16)
    for p in branch["convs"]:
        x = _conv_ref(p, x)
    y = jnp.concatenate([_conv_ref(branch["conv1x3"], x),
                         _conv_ref(branch["conv3x1"], x)], axis=-1)
    return jnp.transpose(y, (0, 3, 1, 2)).astype(jnp.float32)


# ---------------------------------------------------------------------------

if __name__ == "__main__":
    N, C_in, H, W = 2, 32, 16, 16
    out_channels = 48
    x = jax.random.normal(jax.random.PRNGKey(0), (N, C_in, H, W), jnp.float32)

    kg = KeyGen(0)
    # Mirrors the InceptionV4 Inception-C usage pattern at small size:
    # mid convs 1x1 -> 3x1 -> 1x3, then the split conv1x3 / conv3x1 pair.
    branch = make_convseq3x3_branch(
        kg, in_channels=C_in, out_channels=out_channels,
        mid_channels_list=(48, 64, 64),
        kernel_size_list=(1, (3, 1), (1, 3)),
        strides_list=(1, 1, 1),
        padding_list=(0, (1, 0), (0, 1)))

    fwd = jax.jit(functools.partial(convseq3x3_forward, branch))
    out = jax.block_until_ready(fwd(x))

    assert out.shape == (N, 2 * out_channels, H, W), out.shape
    assert bool(jnp.all(jnp.isfinite(out)))

    ref = jax.block_until_ready(
        jax.jit(functools.partial(convseq3x3_reference, branch))(x))
    max_err = float(jnp.max(jnp.abs(out - ref)))
    tol = 0.05 + 0.05 * float(jnp.max(jnp.abs(ref)))
    assert max_err <= tol, (max_err, tol)

    print("KERNEL_OK")
</pallas_src>

<mosaic_0001>
module attributes {stable_mosaic.version = 11 : i64} {
  func.func @_conv_bn_relu_kernel(%arg0: i32, %arg1: i32, %arg2: memref<1x16x16x32xbf16, #tpu.memory_space<vmem>>, %arg3: memref<1x32x128xbf16, #tpu.memory_space<vmem>>, %arg4: memref<1x128xf32, #tpu.memory_space<vmem>>, %arg5: memref<1x16x16x128xbf16, #tpu.memory_space<vmem>>) attributes {dimension_semantics = [#tpu.dimension_semantics<parallel>, #tpu.dimension_semantics<parallel>], iteration_bounds = array<i64: 1, 2>, scalar_prefetch = 0 : i64, scratch_operands = 0 : i64, tpu.core_type = #tpu.core_type<tc>, window_params = [{transform_indices = @transform_0, window_bounds = array<i64: 1, 16, 16, 32>}, {transform_indices = @transform_1, window_bounds = array<i64: 1, 32, 128>}, {transform_indices = @transform_2, window_bounds = array<i64: 1, 128>}, {transform_indices = @transform_3, window_bounds = array<i64: 1, 16, 16, 128>}]} {
    %cst = arith.constant 0.000000e+00 : f32
    %0 = vector.broadcast %cst : f32 to vector<256x128xf32>
    %c0 = arith.constant 0 : index
    %c0_0 = arith.constant 0 : index
    %c0_1 = arith.constant 0 : index
    %c0_2 = arith.constant 0 : index
    %1 = vector.load %arg2[%c0, %c0_0, %c0_1, %c0_2] : memref<1x16x16x32xbf16, #tpu.memory_space<vmem>>, vector<1x16x16x32xbf16>
    %2 = vector.shape_cast %1 : vector<1x16x16x32xbf16> to vector<16x16x32xbf16>
    %3 = vector.shape_cast %2 : vector<16x16x32xbf16> to vector<256x32xbf16>
    %c0_3 = arith.constant 0 : index
    %c0_4 = arith.constant 0 : index
    %c0_5 = arith.constant 0 : index
    %4 = vector.load %arg3[%c0_3, %c0_4, %c0_5] : memref<1x32x128xbf16, #tpu.memory_space<vmem>>, vector<1x32x128xbf16>
    %5 = vector.shape_cast %4 : vector<1x32x128xbf16> to vector<32x128xbf16>
    %cst_6 = arith.constant dense<0.000000e+00> : vector<256x128xf32>
    %6 = tpu.matmul %3, %5, %cst_6 {dimension_numbers = #tpu.dot_dimension_numbers<[1], [0], [0], [1], [0, 0, 1, 1], [], []>} : vector<256x32xbf16>, vector<32x128xbf16>, vector<256x128xf32> -> vector<256x128xf32>
    %7 = arith.addf %0, %6 : vector<256x128xf32>
    %c0_7 = arith.constant 0 : index
    %c0_8 = arith.constant 0 : index
    %8 = vector.load %arg4[%c0_7, %c0_8] : memref<1x128xf32, #tpu.memory_space<vmem>>, vector<1x128xf32>
    %9 = vector.broadcast %8 : vector<1x128xf32> to vector<256x128xf32>
    %10 = arith.addf %7, %9 : vector<256x128xf32>
    %cst_9 = arith.constant 0.000000e+00 : f32
    %11 = vector.broadcast %cst_9 : f32 to vector<256x128xf32>
    %12 = arith.maximumf %10, %11 : vector<256x128xf32>
    %13 = vector.shape_cast %12 : vector<256x128xf32> to vector<1x16x16x128xf32>
    %14 = arith.truncf %13 : vector<1x16x16x128xf32> to vector<1x16x16x128xbf16>
    %c0_10 = arith.constant 0 : index
    %c0_11 = arith.constant 0 : index
    %c0_12 = arith.constant 0 : index
    %c0_13 = arith.constant 0 : index
    %15 = vector.load %arg5[%c0_10, %c0_11, %c0_12, %c0_13] : memref<1x16x16x128xbf16, #tpu.memory_space<vmem>>, vector<1x16x16x128xbf16>
    tpu.vector_store %arg5[%c0_10, %c0_11, %c0_12, %c0_13], %14 {strides = array<i32>} : memref<1x16x16x128xbf16, #tpu.memory_space<vmem>>, vector<1x16x16x128xbf16>,
    return
  }
  func.func @transform_0(%arg0: i32, %arg1: i32) -> (i32, i32, i32, i32) {
    %c0_i32 = arith.constant 0 : i32
    %c0_i32_0 = arith.constant 0 : i32
    %c0_i32_1 = arith.constant 0 : i32
    %c0_i32_2 = arith.constant 0 : i32
    return %arg1, %c0_i32, %c0_i32_0, %c0_i32_1 : i32, i32, i32, i32
  }
  func.func @transform_1(%arg0: i32, %arg1: i32) -> (i32, i32, i32) {
    %c0_i32 = arith.constant 0 : i32
    %c0_i32_0 = arith.constant 0 : i32
    %c0_i32_1 = arith.constant 0 : i32
    return %c0_i32, %c0_i32_0, %arg0 : i32, i32, i32
  }
  func.func @transform_2(%arg0: i32, %arg1: i32) -> (i32, i32) {
    %c0_i32 = arith.constant 0 : i32
    %c0_i32_0 = arith.constant 0 : i32
    return %c0_i32, %arg0 : i32, i32
  }
  func.func @transform_3(%arg0: i32, %arg1: i32) -> (i32, i32, i32, i32) {
    %c0_i32 = arith.constant 0 : i32
    %c0_i32_0 = arith.constant 0 : i32
    %c0_i32_1 = arith.constant 0 : i32
    return %arg1, %c0_i32, %c0_i32_0, %arg0 : i32, i32, i32, i32
  }
}

module attributes {stable_mosaic.version = 11 : i64} {
  func.func @_conv_bn_relu_kernel(%arg0: i32, %arg1: i32, %arg2: memref<1x18x16x48xbf16, #tpu.memory_space<vmem>>, %arg3: memref<3x48x128xbf16, #tpu.memory_space<vmem>>, %arg4: memref<1x128xf32, #tpu.memory_space<vmem>>, %arg5: memref<1x16x16x128xbf16, #tpu.memory_space<vmem>>) attributes {dimension_semantics = [#tpu.dimension_semantics<parallel>, #tpu.dimension_semantics<parallel>], iteration_bounds = array<i64: 1, 2>, scalar_prefetch = 0 : i64, scratch_operands = 0 : i64, tpu.core_type = #tpu.core_type<tc>, window_params = [{transform_indices = @transform_0, window_bounds = array<i64: 1, 18, 16, 48>}, {transform_indices = @transform_1, window_bounds = array<i64: 3, 48, 128>}, {transform_indices = @transform_2, window_bounds = array<i64: 1, 128>}, {transform_indices = @transform_3, window_bounds = array<i64: 1, 16, 16, 128>}]} {
    %cst = arith.constant 0.000000e+00 : f32
    %0 = vector.broadcast %cst : f32 to vector<256x128xf32>
    %c0 = arith.constant 0 : index
    %c0_0 = arith.constant 0 : index
    %c0_1 = arith.constant 0 : index
    %c0_2 = arith.constant 0 : index
    %1 = vector.load %arg2[%c0, %c0_0, %c0_1, %c0_2] : memref<1x18x16x48xbf16, #tpu.memory_space<vmem>>, vector<1x16x16x48xbf16>
    %2 = vector.shape_cast %1 : vector<1x16x16x48xbf16> to vector<16x16x48xbf16>
    %3 = vector.shape_cast %2 : vector<16x16x48xbf16> to vector<256x48xbf16>
    %c0_3 = arith.constant 0 : index
    %c0_4 = arith.constant 0 : index
    %c0_5 = arith.constant 0 : index
    %4 = vector.load %arg3[%c0_3, %c0_4, %c0_5] : memref<3x48x128xbf16, #tpu.memory_space<vmem>>, vector<1x48x128xbf16>
    %5 = vector.shape_cast %4 : vector<1x48x128xbf16> to vector<48x128xbf16>
    %cst_6 = arith.constant dense<0.000000e+00> : vector<256x128xf32>
    %6 = tpu.matmul %3, %5, %cst_6 {dimension_numbers = #tpu.dot_dimension_numbers<[1], [0], [0], [1], [0, 0, 1, 1], [], []>} : vector<256x48xbf16>, vector<48x128xbf16>, vector<256x128xf32> -> vector<256x128xf32>
    %7 = arith.addf %0, %6 : vector<256x128xf32>
    %c0_7 = arith.constant 0 : index
    %c1 = arith.constant 1 : index
    %c0_8 = arith.constant 0 : index
    %c0_9 = arith.constant 0 : index
    %8 = vector.load %arg2[%c0_7, %c1, %c0_8, %c0_9] : memref<1x18x16x48xbf16, #tpu.memory_space<vmem>>, vector<1x16x16x48xbf16>
    %9 = vector.shape_cast %8 : vector<1x16x16x48xbf16> to vector<16x16x48xbf16>
    %10 = vector.shape_cast %9 : vector<16x16x48xbf16> to vector<256x48xbf16>
    %c1_10 = arith.constant 1 : index
    %c0_11 = arith.constant 0 : index
    %c0_12 = arith.constant 0 : index
    %11 = vector.load %arg3[%c1_10, %c0_11, %c0_12] : memref<3x48x128xbf16, #tpu.memory_space<vmem>>, vector<1x48x128xbf16>
    %12 = vector.shape_cast %11 : vector<1x48x128xbf16> to vector<48x128xbf16>
    %cst_13 = arith.constant dense<0.000000e+00> : vector<256x128xf32>
    %13 = tpu.matmul %10, %12, %cst_13 {dimension_numbers = #tpu.dot_dimension_numbers<[1], [0], [0], [1], [0, 0, 1, 1], [], []>} : vector<256x48xbf16>, vector<48x128xbf16>, vector<256x128xf32> -> vector<256x128xf32>
    %14 = arith.addf %7, %13 : vector<256x128xf32>
    %c0_14 = arith.constant 0 : index
    %c2 = arith.constant 2 : index
    %c0_15 = arith.constant 0 : index
    %c0_16 = arith.constant 0 : index
    %15 = vector.load %arg2[%c0_14, %c2, %c0_15, %c0_16] : memref<1x18x16x48xbf16, #tpu.memory_space<vmem>>, vector<1x16x16x48xbf16>
    %16 = vector.shape_cast %15 : vector<1x16x16x48xbf16> to vector<16x16x48xbf16>
    %17 = vector.shape_cast %16 : vector<16x16x48xbf16> to vector<256x48xbf16>
    %c2_17 = arith.constant 2 : index
    %c0_18 = arith.constant 0 : index
    %c0_19 = arith.constant 0 : index
    %18 = vector.load %arg3[%c2_17, %c0_18, %c0_19] : memref<3x48x128xbf16, #tpu.memory_space<vmem>>, vector<1x48x128xbf16>
    %19 = vector.shape_cast %18 : vector<1x48x128xbf16> to vector<48x128xbf16>
    %cst_20 = arith.constant dense<0.000000e+00> : vector<256x128xf32>
    %20 = tpu.matmul %17, %19, %cst_20 {dimension_numbers = #tpu.dot_dimension_numbers<[1], [0], [0], [1], [0, 0, 1, 1], [], []>} : vector<256x48xbf16>, vector<48x128xbf16>, vector<256x128xf32> -> vector<256x128xf32>
    %21 = arith.addf %14, %20 : vector<256x128xf32>
    %c0_21 = arith.constant 0 : index
    %c0_22 = arith.constant 0 : index
    %22 = vector.load %arg4[%c0_21, %c0_22] : memref<1x128xf32, #tpu.memory_space<vmem>>, vector<1x128xf32>
    %23 = vector.broadcast %22 : vector<1x128xf32> to vector<256x128xf32>
    %24 = arith.addf %21, %23 : vector<256x128xf32>
    %cst_23 = arith.constant 0.000000e+00 : f32
    %25 = vector.broadcast %cst_23 : f32 to vector<256x128xf32>
    %26 = arith.maximumf %24, %25 : vector<256x128xf32>
    %27 = vector.shape_cast %26 : vector<256x128xf32> to vector<1x16x16x128xf32>
    %28 = arith.truncf %27 : vector<1x16x16x128xf32> to vector<1x16x16x128xbf16>
    %c0_24 = arith.constant 0 : index
    %c0_25 = arith.constant 0 : index
    %c0_26 = arith.constant 0 : index
    %c0_27 = arith.constant 0 : index
    %29 = vector.load %arg5[%c0_24, %c0_25, %c0_26, %c0_27] : memref<1x16x16x128xbf16, #tpu.memory_space<vmem>>, vector<1x16x16x128xbf16>
    tpu.vector_store %arg5[%c0_24, %c0_25, %c0_26, %c0_27], %28 {strides = array<i32>} : memref<1x16x16x128xbf16, #tpu.memory_space<vmem>>, vector<1x16x16x128xbf16>,
    return
  }
  func.func @transform_0(%arg0: i32, %arg1: i32) -> (i32, i32, i32, i32) {
    %c0_i32 = arith.constant 0 : i32
    %c0_i32_0 = arith.constant 0 : i32
    %c0_i32_1 = arith.constant 0 : i32
    %c0_i32_2 = arith.constant 0 : i32
    return %arg1, %c0_i32, %c0_i32_0, %c0_i32_1 : i32, i32, i32, i32
  }
  func.func @transform_1(%arg0: i32, %arg1: i32) -> (i32, i32, i32) {
    %c0_i32 = arith.constant 0 : i32
    %c0_i32_0 = arith.constant 0 : i32
    %c0_i32_1 = arith.constant 0 : i32
    return %c0_i32, %c0_i32_0, %arg0 : i32, i32, i32
  }
  func.func @transform_2(%arg0: i32, %arg1: i32) -> (i32, i32) {
    %c0_i32 = arith.constant 0 : i32
    %c0_i32_0 = arith.constant 0 : i32
    return %c0_i32, %arg0 : i32, i32
  }
  func.func @transform_3(%arg0: i32, %arg1: i32) -> (i32, i32, i32, i32) {
    %c0_i32 = arith.constant 0 : i32
    %c0_i32_0 = arith.constant 0 : i32
    %c0_i32_1 = arith.constant 0 : i32
    return %arg1, %c0_i32, %c0_i32_0, %arg0 : i32, i32, i32, i32
  }
}

module attributes {stable_mosaic.version = 11 : i64} {
  func.func @_conv_bn_relu_kernel(%arg0: i32, %arg1: i32, %arg2: memref<1x16x18x64xbf16, #tpu.memory_space<vmem>>, %arg3: memref<3x64x128xbf16, #tpu.memory_space<vmem>>, %arg4: memref<1x128xf32, #tpu.memory_space<vmem>>, %arg5: memref<1x16x16x128xbf16, #tpu.memory_space<vmem>>) attributes {dimension_semantics = [#tpu.dimension_semantics<parallel>, #tpu.dimension_semantics<parallel>], iteration_bounds = array<i64: 1, 2>, scalar_prefetch = 0 : i64, scratch_operands = 0 : i64, tpu.core_type = #tpu.core_type<tc>, window_params = [{transform_indices = @transform_0, window_bounds = array<i64: 1, 16, 18, 64>}, {transform_indices = @transform_1, window_bounds = array<i64: 3, 64, 128>}, {transform_indices = @transform_2, window_bounds = array<i64: 1, 128>}, {transform_indices = @transform_3, window_bounds = array<i64: 1, 16, 16, 128>}]} {
    %cst = arith.constant 0.000000e+00 : f32
    %0 = vector.broadcast %cst : f32 to vector<256x128xf32>
    %c0 = arith.constant 0 : index
    %c0_0 = arith.constant 0 : index
    %c0_1 = arith.constant 0 : index
    %c0_2 = arith.constant 0 : index
    %1 = vector.load %arg2[%c0, %c0_0, %c0_1, %c0_2] : memref<1x16x18x64xbf16, #tpu.memory_space<vmem>>, vector<1x16x16x64xbf16>
    %2 = vector.shape_cast %1 : vector<1x16x16x64xbf16> to vector<16x16x64xbf16>
    %3 = vector.shape_cast %2 : vector<16x16x64xbf16> to vector<256x64xbf16>
    %c0_3 = arith.constant 0 : index
    %c0_4 = arith.constant 0 : index
    %c0_5 = arith.constant 0 : index
    %4 = vector.load %arg3[%c0_3, %c0_4, %c0_5] : memref<3x64x128xbf16, #tpu.memory_space<vmem>>, vector<1x64x128xbf16>
    %5 = vector.shape_cast %4 : vector<1x64x128xbf16> to vector<64x128xbf16>
    %cst_6 = arith.constant dense<0.000000e+00> : vector<256x128xf32>
    %6 = tpu.matmul %3, %5, %cst_6 {dimension_numbers = #tpu.dot_dimension_numbers<[1], [0], [0], [1], [0, 0, 1, 1], [], []>} : vector<256x64xbf16>, vector<64x128xbf16>, vector<256x128xf32> -> vector<256x128xf32>
    %7 = arith.addf %0, %6 : vector<256x128xf32>
    %c0_7 = arith.constant 0 : index
    %c0_8 = arith.constant 0 : index
    %c1 = arith.constant 1 : index
    %c0_9 = arith.constant 0 : index
    %8 = vector.load %arg2[%c0_7, %c0_8, %c1, %c0_9] : memref<1x16x18x64xbf16, #tpu.memory_space<vmem>>, vector<1x16x16x64xbf16>
    %9 = vector.shape_cast %8 : vector<1x16x16x64xbf16> to vector<16x16x64xbf16>
    %10 = vector.shape_cast %9 : vector<16x16x64xbf16> to vector<256x64xbf16>
    %c1_10 = arith.constant 1 : index
    %c0_11 = arith.constant 0 : index
    %c0_12 = arith.constant 0 : index
    %11 = vector.load %arg3[%c1_10, %c0_11, %c0_12] : memref<3x64x128xbf16, #tpu.memory_space<vmem>>, vector<1x64x128xbf16>
    %12 = vector.shape_cast %11 : vector<1x64x128xbf16> to vector<64x128xbf16>
    %cst_13 = arith.constant dense<0.000000e+00> : vector<256x128xf32>
    %13 = tpu.matmul %10, %12, %cst_13 {dimension_numbers = #tpu.dot_dimension_numbers<[1], [0], [0], [1], [0, 0, 1, 1], [], []>} : vector<256x64xbf16>, vector<64x128xbf16>, vector<256x128xf32> -> vector<256x128xf32>
    %14 = arith.addf %7, %13 : vector<256x128xf32>
    %c0_14 = arith.constant 0 : index
    %c0_15 = arith.constant 0 : index
    %c2 = arith.constant 2 : index
    %c0_16 = arith.constant 0 : index
    %15 = vector.load %arg2[%c0_14, %c0_15, %c2, %c0_16] : memref<1x16x18x64xbf16, #tpu.memory_space<vmem>>, vector<1x16x16x64xbf16>
    %16 = vector.shape_cast %15 : vector<1x16x16x64xbf16> to vector<16x16x64xbf16>
    %17 = vector.shape_cast %16 : vector<16x16x64xbf16> to vector<256x64xbf16>
    %c2_17 = arith.constant 2 : index
    %c0_18 = arith.constant 0 : index
    %c0_19 = arith.constant 0 : index
    %18 = vector.load %arg3[%c2_17, %c0_18, %c0_19] : memref<3x64x128xbf16, #tpu.memory_space<vmem>>, vector<1x64x128xbf16>
    %19 = vector.shape_cast %18 : vector<1x64x128xbf16> to vector<64x128xbf16>
    %cst_20 = arith.constant dense<0.000000e+00> : vector<256x128xf32>
    %20 = tpu.matmul %17, %19, %cst_20 {dimension_numbers = #tpu.dot_dimension_numbers<[1], [0], [0], [1], [0, 0, 1, 1], [], []>} : vector<256x64xbf16>, vector<64x128xbf16>, vector<256x128xf32> -> vector<256x128xf32>
    %21 = arith.addf %14, %20 : vector<256x128xf32>
    %c0_21 = arith.constant 0 : index
    %c0_22 = arith.constant 0 : index
    %22 = vector.load %arg4[%c0_21, %c0_22] : memref<1x128xf32, #tpu.memory_space<vmem>>, vector<1x128xf32>
    %23 = vector.broadcast %22 : vector<1x128xf32> to vector<256x128xf32>
    %24 = arith.addf %21, %23 : vector<256x128xf32>
    %cst_23 = arith.constant 0.000000e+00 : f32
    %25 = vector.broadcast %cst_23 : f32 to vector<256x128xf32>
    %26 = arith.maximumf %24, %25 : vector<256x128xf32>
    %27 = vector.shape_cast %26 : vector<256x128xf32> to vector<1x16x16x128xf32>
    %28 = arith.truncf %27 : vector<1x16x16x128xf32> to vector<1x16x16x128xbf16>
    %c0_24 = arith.constant 0 : index
    %c0_25 = arith.constant 0 : index
    %c0_26 = arith.constant 0 : index
    %c0_27 = arith.constant 0 : index
    %29 = vector.load %arg5[%c0_24, %c0_25, %c0_26, %c0_27] : memref<1x16x16x128xbf16, #tpu.memory_space<vmem>>, vector<1x16x16x128xbf16>
    tpu.vector_store %arg5[%c0_24, %c0_25, %c0_26, %c0_27], %28 {strides = array<i32>} : memref<1x16x16x128xbf16, #tpu.memory_space<vmem>>, vector<1x16x16x128xbf16>,
    return
  }
  func.func @transform_0(%arg0: i32, %arg1: i32) -> (i32, i32, i32, i32) {
    %c0_i32 = arith.constant 0 : i32
    %c0_i32_0 = arith.constant 0 : i32
    %c0_i32_1 = arith.constant 0 : i32
    %c0_i32_2 = arith.constant 0 : i32
    return %arg1, %c0_i32, %c0_i32_0, %c0_i32_1 : i32, i32, i32, i32
  }
  func.func @transform_1(%arg0: i32, %arg1: i32) -> (i32, i32, i32) {
    %c0_i32 = arith.constant 0 : i32
    %c0_i32_0 = arith.constant 0 : i32
    %c0_i32_1 = arith.constant 0 : i32
    return %c0_i32, %c0_i32_0, %arg0 : i32, i32, i32
  }
  func.func @transform_2(%arg0: i32, %arg1: i32) -> (i32, i32) {
    %c0_i32 = arith.constant 0 : i32
    %c0_i32_0 = arith.constant 0 : i32
    return %c0_i32, %arg0 : i32, i32
  }
  func.func @transform_3(%arg0: i32, %arg1: i32) -> (i32, i32, i32, i32) {
    %c0_i32 = arith.constant 0 : i32
    %c0_i32_0 = arith.constant 0 : i32
    %c0_i32_1 = arith.constant 0 : i32
    return %arg1, %c0_i32, %c0_i32_0, %arg0 : i32, i32, i32, i32
  }
}

module attributes {stable_mosaic.version = 11 : i64} {
  func.func @_conv_bn_relu_kernel(%arg0: i32, %arg1: i32, %arg2: memref<1x18x18x64xbf16, #tpu.memory_space<vmem>>, %arg3: memref<9x64x128xbf16, #tpu.memory_space<vmem>>, %arg4: memref<1x128xf32, #tpu.memory_space<vmem>>, %arg5: memref<1x16x16x128xbf16, #tpu.memory_space<vmem>>) attributes {dimension_semantics = [#tpu.dimension_semantics<parallel>, #tpu.dimension_semantics<parallel>], iteration_bounds = array<i64: 1, 2>, scalar_prefetch = 0 : i64, scratch_operands = 0 : i64, tpu.core_type = #tpu.core_type<tc>, window_params = [{transform_indices = @transform_0, window_bounds = array<i64: 1, 18, 18, 64>}, {transform_indices = @transform_1, window_bounds = array<i64: 9, 64, 128>}, {transform_indices = @transform_2, window_bounds = array<i64: 1, 128>}, {transform_indices = @transform_3, window_bounds = array<i64: 1, 16, 16, 128>}]} {
    %cst = arith.constant 0.000000e+00 : f32
    %0 = vector.broadcast %cst : f32 to vector<256x128xf32>
    %c0 = arith.constant 0 : index
    %c0_0 = arith.constant 0 : index
    %c0_1 = arith.constant 0 : index
    %c0_2 = arith.constant 0 : index
    %1 = vector.load %arg2[%c0, %c0_0, %c0_1, %c0_2] : memref<1x18x18x64xbf16, #tpu.memory_space<vmem>>, vector<1x16x16x64xbf16>
    %2 = vector.shape_cast %1 : vector<1x16x16x64xbf16> to vector<16x16x64xbf16>
    %3 = vector.shape_cast %2 : vector<16x16x64xbf16> to vector<256x64xbf16>
    %c0_3 = arith.constant 0 : index
    %c0_4 = arith.constant 0 : index
    %c0_5 = arith.constant 0 : index
    %4 = vector.load %arg3[%c0_3, %c0_4, %c0_5] : memref<9x64x128xbf16, #tpu.memory_space<vmem>>, vector<1x64x128xbf16>
    %5 = vector.shape_cast %4 : vector<1x64x128xbf16> to vector<64x128xbf16>
    %cst_6 = arith.constant dense<0.000000e+00> : vector<256x128xf32>
    %6 = tpu.matmul %3, %5, %cst_6 {dimension_numbers = #tpu.dot_dimension_numbers<[1], [0], [0], [1], [0, 0, 1, 1], [], []>} : vector<256x64xbf16>, vector<64x128xbf16>, vector<256x128xf32> -> vector<256x128xf32>
    %7 = arith.addf %0, %6 : vector<256x128xf32>
    %c0_7 = arith.constant 0 : index
    %c0_8 = arith.constant 0 : index
    %c1 = arith.constant 1 : index
    %c0_9 = arith.constant 0 : index
    %8 = vector.load %arg2[%c0_7, %c0_8, %c1, %c0_9] : memref<1x18x18x64xbf16, #tpu.memory_space<vmem>>, vector<1x16x16x64xbf16>
    %9 = vector.shape_cast %8 : vector<1x16x16x64xbf16> to vector<16x16x64xbf16>
    %10 = vector.shape_cast %9 : vector<16x16x64xbf16> to vector<256x64xbf16>
    %c1_10 = arith.constant 1 : index
    %c0_11 = arith.constant 0 : index
    %c0_12 = arith.constant 0 : index
    %11 = vector.load %arg3[%c1_10, %c0_11, %c0_12] : memref<9x64x128xbf16, #tpu.memory_space<vmem>>, vector<1x64x128xbf16>
    %12 = vector.shape_cast %11 : vector<1x64x128xbf16> to vector<64x128xbf16>
    %cst_13 = arith.constant dense<0.000000e+00> : vector<256x128xf32>
    %13 = tpu.matmul %10, %12, %cst_13 {dimension_numbers = #tpu.dot_dimension_numbers<[1], [0], [0], [1], [0, 0, 1, 1], [], []>} : vector<256x64xbf16>, vector<64x128xbf16>, vector<256x128xf32> -> vector<256x128xf32>
    %14 = arith.addf %7, %13 : vector<256x128xf32>
    %c0_14 = arith.constant 0 : index
    %c0_15 = arith.constant 0 : index
    %c2 = arith.constant 2 : index
    %c0_16 = arith.constant 0 : index
    %15 = vector.load %arg2[%c0_14, %c0_15, %c2, %c0_16] : memref<1x18x18x64xbf16, #tpu.memory_space<vmem>>, vector<1x16x16x64xbf16>
    %16 = vector.shape_cast %15 : vector<1x16x16x64xbf16> to vector<16x16x64xbf16>
    %17 = vector.shape_cast %16 : vector<16x16x64xbf16> to vector<256x64xbf16>
    %c2_17 = arith.constant 2 : index
    %c0_18 = arith.constant 0 : index
    %c0_19 = arith.constant 0 : index
    %18 = vector.load %arg3[%c2_17, %c0_18, %c0_19] : memref<9x64x128xbf16, #tpu.memory_space<vmem>>, vector<1x64x128xbf16>
    %19 = vector.shape_cast %18 : vector<1x64x128xbf16> to vector<64x128xbf16>
    %cst_20 = arith.constant dense<0.000000e+00> : vector<256x128xf32>
    %20 = tpu.matmul %17, %19, %cst_20 {dimension_numbers = #tpu.dot_dimension_numbers<[1], [0], [0], [1], [0, 0, 1, 1], [], []>} : vector<256x64xbf16>, vector<64x128xbf16>, vector<256x128xf32> -> vector<256x128xf32>
    %21 = arith.addf %14, %20 : vector<256x128xf32>
    %c0_21 = arith.constant 0 : index
    %c1_22 = arith.constant 1 : index
    %c0_23 = arith.constant 0 : index
    %c0_24 = arith.constant 0 : index
    %22 = vector.load %arg2[%c0_21, %c1_22, %c0_23, %c0_24] : memref<1x18x18x64xbf16, #tpu.memory_space<vmem>>, vector<1x16x16x64xbf16>
    %23 = vector.shape_cast %22 : vector<1x16x16x64xbf16> to vector<16x16x64xbf16>
    %24 = vector.shape_cast %23 : vector<16x16x64xbf16> to vector<256x64xbf16>
    %c3 = arith.constant 3 : index
    %c0_25 = arith.constant 0 : index
    %c0_26 = arith.constant 0 : index
    %25 = vector.load %arg3[%c3, %c0_25, %c0_26] : memref<9x64x128xbf16, #tpu.memory_space<vmem>>, vector<1x64x128xbf16>
    %26 = vector.shape_cast %25 : vector<1x64x128xbf16> to vector<64x128xbf16>
    %cst_27 = arith.constant dense<0.000000e+00> : vector<256x128xf32>
    %27 = tpu.matmul %24, %26, %cst_27 {dimension_numbers = #tpu.dot_dimension_numbers<[1], [0], [0], [1], [0, 0, 1, 1], [], []>} : vector<256x64xbf16>, vector<64x128xbf16>, vector<256x128xf32> -> vector<256x128xf32>
    %28 = arith.addf %21, %27 : vector<256x128xf32>
    %c0_28 = arith.constant 0 : index
    %c1_29 = arith.constant 1 : index
    %c1_30 = arith.constant 1 : index
    %c0_31 = arith.constant 0 : index
    %29 = vector.load %arg2[%c0_28, %c1_29, %c1_30, %c0_31] : memref<1x18x18x64xbf16, #tpu.memory_space<vmem>>, vector<1x16x16x64xbf16>
    %30 = vector.shape_cast %29 : vector<1x16x16x64xbf16> to vector<16x16x64xbf16>
    %31 = vector.shape_cast %30 : vector<16x16x64xbf16> to vector<256x64xbf16>
    %c4 = arith.constant 4 : index
    %c0_32 = arith.constant 0 : index
    %c0_33 = arith.constant 0 : index
    %32 = vector.load %arg3[%c4, %c0_32, %c0_33] : memref<9x64x128xbf16, #tpu.memory_space<vmem>>, vector<1x64x128xbf16>
    %33 = vector.shape_cast %32 : vector<1x64x128xbf16> to vector<64x128xbf16>
    %cst_34 = arith.constant dense<0.000000e+00> : vector<256x128xf32>
    %34 = tpu.matmul %31, %33, %cst_34 {dimension_numbers = #tpu.dot_dimension_numbers<[1], [0], [0], [1], [0, 0, 1, 1], [], []>} : vector<256x64xbf16>, vector<64x128xbf16>, vector<256x128xf32> -> vector<256x128xf32>
    %35 = arith.addf %28, %34 : vector<256x128xf32>
    %c0_35 = arith.constant 0 : index
    %c1_36 = arith.constant 1 : index
    %c2_37 = arith.constant 2 : index
    %c0_38 = arith.constant 0 : index
    %36 = vector.load %arg2[%c0_35, %c1_36, %c2_37, %c0_38] : memref<1x18x18x64xbf16, #tpu.memory_space<vmem>>, vector<1x16x16x64xbf16>
    %37 = vector.shape_cast %36 : vector<1x16x16x64xbf16> to vector<16x16x64xbf16>
    %38 = vector.shape_cast %37 : vector<16x16x64xbf16> to vector<256x64xbf16>
    %c5 = arith.constant 5 : index
    %c0_39 = arith.constant 0 : index
    %c0_40 = arith.constant 0 : index
    %39 = vector.load %arg3[%c5, %c0_39, %c0_40] : memref<9x64x128xbf16, #tpu.memory_space<vmem>>, vector<1x64x128xbf16>
    %40 = vector.shape_cast %39 : vector<1x64x128xbf16> to vector<64x128xbf16>
    %cst_41 = arith.constant dense<0.000000e+00> : vector<256x128xf32>
    %41 = tpu.matmul %38, %40, %cst_41 {dimension_numbers = #tpu.dot_dimension_numbers<[1], [0], [0], [1], [0, 0, 1, 1], [], []>} : vector<256x64xbf16>, vector<64x128xbf16>, vector<256x128xf32> -> vector<256x128xf32>
    %42 = arith.addf %35, %41 : vector<256x128xf32>
    %c0_42 = arith.constant 0 : index
    %c2_43 = arith.constant 2 : index
    %c0_44 = arith.constant 0 : index
    %c0_45 = arith.constant 0 : index
    %43 = vector.load %arg2[%c0_42, %c2_43, %c0_44, %c0_45] : memref<1x18x18x64xbf16, #tpu.memory_space<vmem>>, vector<1x16x16x64xbf16>
    %44 = vector.shape_cast %43 : vector<1x16x16x64xbf16> to vector<16x16x64xbf16>
    %45 = vector.shape_cast %44 : vector<16x16x64xbf16> to vector<256x64xbf16>
    %c6 = arith.constant 6 : index
    %c0_46 = arith.constant 0 : index
    %c0_47 = arith.constant 0 : index
    %46 = vector.load %arg3[%c6, %c0_46, %c0_47] : memref<9x64x128xbf16, #tpu.memory_space<vmem>>, vector<1x64x128xbf16>
    %47 = vector.shape_cast %46 : vector<1x64x128xbf16> to vector<64x128xbf16>
    %cst_48 = arith.constant dense<0.000000e+00> : vector<256x128xf32>
    %48 = tpu.matmul %45, %47, %cst_48 {dimension_numbers = #tpu.dot_dimension_numbers<[1], [0], [0], [1], [0, 0, 1, 1], [], []>} : vector<256x64xbf16>, vector<64x128xbf16>, vector<256x128xf32> -> vector<256x128xf32>
    %49 = arith.addf %42, %48 : vector<256x128xf32>
    %c0_49 = arith.constant 0 : index
    %c2_50 = arith.constant 2 : index
    %c1_51 = arith.constant 1 : index
    %c0_52 = arith.constant 0 : index
    %50 = vector.load %arg2[%c0_49, %c2_50, %c1_51, %c0_52] : memref<1x18x18x64xbf16, #tpu.memory_space<vmem>>, vector<1x16x16x64xbf16>
    %51 = vector.shape_cast %50 : vector<1x16x16x64xbf16> to vector<16x16x64xbf16>
    %52 = vector.shape_cast %51 : vector<16x16x64xbf16> to vector<256x64xbf16>
    %c7 = arith.constant 7 : index
    %c0_53 = arith.constant 0 : index
    %c0_54 = arith.constant 0 : index
    %53 = vector.load %arg3[%c7, %c0_53, %c0_54] : memref<9x64x128xbf16, #tpu.memory_space<vmem>>, vector<1x64x128xbf16>
    %54 = vector.shape_cast %53 : vector<1x64x128xbf16> to vector<64x128xbf16>
    %cst_55 = arith.constant dense<0.000000e+00> : vector<256x128xf32>
    %55 = tpu.matmul %52, %54, %cst_55 {dimension_numbers = #tpu.dot_dimension_numbers<[1], [0], [0], [1], [0, 0, 1, 1], [], []>} : vector<256x64xbf16>, vector<64x128xbf16>, vector<256x128xf32> -> vector<256x128xf32>
    %56 = arith.addf %49, %55 : vector<256x128xf32>
    %c0_56 = arith.constant 0 : index
    %c2_57 = arith.constant 2 : index
    %c2_58 = arith.constant 2 : index
    %c0_59 = arith.constant 0 : index
    %57 = vector.load %arg2[%c0_56, %c2_57, %c2_58, %c0_59] : memref<1x18x18x64xbf16, #tpu.memory_space<vmem>>, vector<1x16x16x64xbf16>
    %58 = vector.shape_cast %57 : vector<1x16x16x64xbf16> to vector<16x16x64xbf16>
    %59 = vector.shape_cast %58 : vector<16x16x64xbf16> to vector<256x64xbf16>
    %c8 = arith.constant 8 : index
    %c0_60 = arith.constant 0 : index
    %c0_61 = arith.constant 0 : index
    %60 = vector.load %arg3[%c8, %c0_60, %c0_61] : memref<9x64x128xbf16, #tpu.memory_space<vmem>>, vector<1x64x128xbf16>
    %61 = vector.shape_cast %60 : vector<1x64x128xbf16> to vector<64x128xbf16>
    %cst_62 = arith.constant dense<0.000000e+00> : vector<256x128xf32>
    %62 = tpu.matmul %59, %61, %cst_62 {dimension_numbers = #tpu.dot_dimension_numbers<[1], [0], [0], [1], [0, 0, 1, 1], [], []>} : vector<256x64xbf16>, vector<64x128xbf16>, vector<256x128xf32> -> vector<256x128xf32>
    %63 = arith.addf %56, %62 : vector<256x128xf32>
    %c0_63 = arith.constant 0 : index
    %c0_64 = arith.constant 0 : index
    %64 = vector.load %arg4[%c0_63, %c0_64] : memref<1x128xf32, #tpu.memory_space<vmem>>, vector<1x128xf32>
    %65 = vector.broadcast %64 : vector<1x128xf32> to vector<256x128xf32>
    %66 = arith.addf %63, %65 : vector<256x128xf32>
    %cst_65 = arith.constant 0.000000e+00 : f32
    %67 = vector.broadcast %cst_65 : f32 to vector<256x128xf32>
    %68 = arith.maximumf %66, %67 : vector<256x128xf32>
    %69 = vector.shape_cast %68 : vector<256x128xf32> to vector<1x16x16x128xf32>
    %70 = arith.truncf %69 : vector<1x16x16x128xf32> to vector<1x16x16x128xbf16>
    %c0_66 = arith.constant 0 : index
    %c0_67 = arith.constant 0 : index
    %c0_68 = arith.constant 0 : index
    %c0_69 = arith.constant 0 : index
    %71 = vector.load %arg5[%c0_66, %c0_67, %c0_68, %c0_69] : memref<1x16x16x128xbf16, #tpu.memory_space<vmem>>, vector<1x16x16x128xbf16>
    tpu.vector_store %arg5[%c0_66, %c0_67, %c0_68, %c0_69], %70 {strides = array<i32>} : memref<1x16x16x128xbf16, #tpu.memory_space<vmem>>, vector<1x16x16x128xbf16>,
    return
  }
  func.func @transform_0(%arg0: i32, %arg1: i32) -> (i32, i32, i32, i32) {
    %c0_i32 = arith.constant 0 : i32
    %c0_i32_0 = arith.constant 0 : i32
    %c0_i32_1 = arith.constant 0 : i32
    %c0_i32_2 = arith.constant 0 : i32
    return %arg1, %c0_i32, %c0_i32_0, %c0_i32_1 : i32, i32, i32, i32
  }
  func.func @transform_1(%arg0: i32, %arg1: i32) -> (i32, i32, i32) {
    %c0_i32 = arith.constant 0 : i32
    %c0_i32_0 = arith.constant 0 : i32
    %c0_i32_1 = arith.constant 0 : i32
    return %c0_i32, %c0_i32_0, %arg0 : i32, i32, i32
  }
  func.func @transform_2(%arg0: i32, %arg1: i32) -> (i32, i32) {
    %c0_i32 = arith.constant 0 : i32
    %c0_i32_0 = arith.constant 0 : i32
    return %c0_i32, %arg0 : i32, i32
  }
  func.func @transform_3(%arg0: i32, %arg1: i32) -> (i32, i32, i32, i32) {
    %c0_i32 = arith.constant 0 : i32
    %c0_i32_0 = arith.constant 0 : i32
    %c0_i32_1 = arith.constant 0 : i32
    return %arg1, %c0_i32, %c0_i32_0, %arg0 : i32, i32, i32, i32
  }
}

</mosaic_0001>

<llo_original>
// kernel: convseq3x3_forward.4
$region0: #{convseq3x3_forward.4}
  #allocation0 [shape = 'u32[]', space=smem, size = 0x4, offset = 0x4, fixed_abs, tag = 'smem constant byte address 0x4 - core index']
  #allocation1 [shape = 'u32[144,128]{1,0:T(1,128)}', space=vmem, size = 0x12000, scoped, tag = 'internal scratch']
  %s0 = inlined_call_operand.vmem [shape: bf16[2,16,16,32], index: 0, kind: input, shape index: {}]
  %s1 = inlined_call_operand.vmem [shape: bf16[1,32,128], index: 1, kind: input, shape index: {}]
  %s2 = inlined_call_operand.vmem [shape: f32[1,128], index: 2, kind: input, shape index: {}]
  %s3 = inlined_call_operand.vmem [shape: bf16[2,16,16,128], index: 3, kind: output, shape index: {}]
  %s4 = sld [smem:[#allocation0]]
  $region45: #{convseq3x3_forward.4} parent=0
    _
  %s6 = ssub.s32 1, %s4
  %s7 = scalar_select 0, %s6, %s4
  loop: start=0, step=1, limit=4
  $region2: #{convseq3x3_forward.4} parent=0 // loop_pre_header
    _
  $region3: #{convseq3x3_forward.4} parent=0 // loop_header
    %s9 = sphi 0, %s13
    %p10 = scmp.ge.s32.totalorder %s9, 4
    %s16 = sphi 0, %s28
    %s17 = sphi 0, %s24
    %s18 = sphi 0, %s16
    %s19 = sphi 0, %s17
    %s20 = sphi 0, %s18
    %s21 = sphi 0, %s19
    %s31 = sphi 0, %s33
    %s34 = sphi 0, %s31
    %s35 = sphi 0, %s34
    %s51 = sphi 0, %s35
    %s57 = sphi 0, %s59
    %s60 = sphi 0, %s57
    %s61 = sphi 0, %s60
    %s77 = sphi 0, %s61
    %s83 = sphi 0, %s85
    %s86 = sphi 0, %s83
    %s87 = sphi 0, %s86
    %s103 = sphi 0, %s87
    %s111 = sphi 0, %s113
    %s114 = sphi 0, %s111
    %s115 = sphi 0, %s114
    %s131 = sphi 0, %s115
  $region4: #{convseq3x3_forward.4} parent=0 // loop_header_branch
    %12 = sbr.rel (%p10) target = $region8
  $region5: #{convseq3x3_forward.4} parent=0 // loop_body
    %s14 = ssub.s32 %s9, 1
    %s15 = ssub.s32 %s9, 2
    %s22 = sadd.s32 1, %s17
    %p23 = scmp.ge.s32.totalorder %s22, 2
    %s24 = scalar_select %p23, 0, %s22
    %s25 = sadd.s32 1, %s16
    %s26 = scalar_select %p23, %s25, %s16
    %p27 = scmp.ge.s32.totalorder %s26, 1
    %s28 = scalar_select %p27, 0, %s26
    %s29 = ssub.s32 %s17, %s24
    %p30 = scmp.eq.s32.totalorder %s29, 0
    %s32 = sadd.s32 %s31, 1
    %s33 = scalar_select %p30, %s31, %s32
    %p36 = pneg %p30
    %p37 = scmp.eq.s32.totalorder %s9, 1
    %p38 = por %p36, %p37
    %p39 = scmp.ne.s32.totalorder %s31, %s34
    %p40 = scmp.eq.s32.totalorder %s9, 0
    %p41 = por %p39, %p40
    %p42 = scmp.ne.s32.totalorder %s31, %s34
    %p43 = scmp.eq.s32.totalorder %s14, 1
    %p44 = por %p42, %p43
    %p45 = scmp.ne.s32.totalorder %s34, %s35
    %p46 = scmp.eq.s32.totalorder %s14, 0
    %p47 = por %p45, %p46
    %p48 = scmp.ne.s32.totalorder %s34, %s35
    %p49 = scmp.eq.s32.totalorder %s15, 1
    %p50 = por %p48, %p49
    %p52 = scmp.ne.s32.totalorder %s35, %s51
    %p53 = scmp.eq.s32.totalorder %s15, 0
    %p54 = por %p52, %p53
    %s55 = ssub.s32 %s16, %s28
    %p56 = scmp.eq.s32.totalorder %s55, 0
    %s58 = sadd.s32 %s57, 1
    %s59 = scalar_select %p56, %s57, %s58
    %p62 = pneg %p56
    %p63 = scmp.eq.s32.totalorder %s9, 1
    %p64 = por %p62, %p63
    %p65 = scmp.ne.s32.totalorder %s57, %s60
    %p66 = scmp.eq.s32.totalorder %s9, 0
    %p67 = por %p65, %p66
    %p68 = scmp.ne.s32.totalorder %s57, %s60
    %p69 = scmp.eq.s32.totalorder %s14, 1
    %p70 = por %p68, %p69
    %p71 = scmp.ne.s32.totalorder %s60, %s61
    %p72 = scmp.eq.s32.totalorder %s14, 0
    %p73 = por %p71, %p72
    %p74 = scmp.ne.s32.totalorder %s60, %s61
    %p75 = scmp.eq.s32.totalorder %s15, 1
    %p76 = por %p74, %p75
    %p78 = scmp.ne.s32.totalorder %s61, %s77
    %p79 = scmp.eq.s32.totalorder %s15, 0
    %p80 = por %p78, %p79
    %s81 = ssub.s32 %s16, %s28
    %p82 = scmp.eq.s32.totalorder %s81, 0
    %s84 = sadd.s32 %s83, 1
    %s85 = scalar_select %p82, %s83, %s84
    %p88 = pneg %p82
    %p89 = scmp.eq.s32.totalorder %s9, 1
    %p90 = por %p88, %p89
    %p91 = scmp.ne.s32.totalorder %s83, %s86
    %p92 = scmp.eq.s32.totalorder %s9, 0
    %p93 = por %p91, %p92
    %p94 = scmp.ne.s32.totalorder %s83, %s86
    %p95 = scmp.eq.s32.totalorder %s14, 1
    %p96 = por %p94, %p95
    %p97 = scmp.ne.s32.totalorder %s86, %s87
    %p98 = scmp.eq.s32.totalorder %s14, 0
    %p99 = por %p97, %p98
    %p100 = scmp.ne.s32.totalorder %s86, %s87
    %p101 = scmp.eq.s32.totalorder %s15, 1
    %p102 = por %p100, %p101
    %p104 = scmp.ne.s32.totalorder %s87, %s103
    %p105 = scmp.eq.s32.totalorder %s15, 0
    %p106 = por %p104, %p105
    %s107 = ssub.s32 %s17, %s24
    %s108 = ssub.s32 %s16, %s28
    %s109 = sor.u32 %s107, %s108
    %p110 = scmp.eq.s32.totalorder %s109, 0
    %s112 = sadd.s32 %s111, 1
    %s113 = scalar_select %p110, %s111, %s112
    %p116 = pneg %p110
    %p117 = scmp.eq.s32.totalorder %s9, 1
    %p118 = por %p116, %p117
    %p119 = scmp.ne.s32.totalorder %s111, %s114
    %p120 = scmp.eq.s32.totalorder %s9, 0
    %p121 = por %p119, %p120
    %p122 = scmp.ne.s32.totalorder %s111, %s114
    %p123 = scmp.eq.s32.totalorder %s14, 1
    %p124 = por %p122, %p123
    %p125 = scmp.ne.s32.totalorder %s114, %s115
    %p126 = scmp.eq.s32.totalorder %s14, 0
    %p127 = por %p125, %p126
    %p128 = scmp.ne.s32.totalorder %s114, %s115
    %p129 = scmp.eq.s32.totalorder %s15, 1
    %p130 = por %p128, %p129
    %p132 = scmp.ne.s32.totalorder %s115, %s131
    %p133 = scmp.eq.s32.totalorder %s15, 0
    %p134 = por %p132, %p133
    %p135 = scmp.le.s32.totalorder 1, %s9
    %p136 = scmp.lt.s32.totalorder %s9, 3
    %p137 = pnand %p135, %p136
    %p138 = pneg %p137
    // Predicated region
    $region9: #{convseq3x3_forward.4} parent=5 // pred_check
      _
    $region10: #{convseq3x3_forward.4} parent=5 // pred_check_branch
      %140 = sbr.rel (%p137) target = $region12
    $region11: #{convseq3x3_forward.4} parent=5 // pred_region
      %s141 = ssub.s32 %s9, 1
      // Predicated region
      $region13: #{convseq3x3_forward.4} parent=11 // pred_check
        %p142 = pneg %p73
      $region14: #{convseq3x3_forward.4} parent=11 // pred_check_branch
        %144 = sbr.rel (%p142) target = $region16
      $region15: #{convseq3x3_forward.4} parent=11 // pred_region
        %p145 = scmp.lt.s32.totalorder %s18, 0
        %s146 = scalar_select %p145, %s18, 0
        %s147 = smul.addr %s146, 4
        %s148 = scalar_lea.vmem %s1, %s147
      $region16: #{convseq3x3_forward.4} parent=11 // pred_fallthru
        _
      // Predicated region
      $region17: #{convseq3x3_forward.4} parent=11 // pred_check
        %p149 = pneg %p99
      $region18: #{convseq3x3_forward.4} parent=11 // pred_check_branch
        %151 = sbr.rel (%p149) target = $region20
      $region19: #{convseq3x3_forward.4} parent=11 // pred_region
        %p152 = scmp.lt.s32.totalorder %s18, 0
        %s153 = scalar_select %p152, %s18, 0
        %s154 = scalar_lea.vmem %s2, %s153
      $region20: #{convseq3x3_forward.4} parent=11 // pred_fallthru
        _
    $region12: #{convseq3x3_forward.4} parent=5 // pred_fallthru
      _
    %p155 = scmp.lt.s32.totalorder %s9, 2
    // Predicated region
    $region21: #{convseq3x3_forward.4} parent=5 // pred_check
      %p156 = pneg %p155
    $region22: #{convseq3x3_forward.4} parent=5 // pred_check_branch
      %158 = sbr.rel (%p156) target = $region24
    $region23: #{convseq3x3_forward.4} parent=5 // pred_region
      // Predicated region
      $region25: #{convseq3x3_forward.4} parent=23 // pred_check
        %p159 = pneg %p41
      $region26: #{convseq3x3_forward.4} parent=23 // pred_check_branch
        %161 = sbr.rel (%p159) target = $region28
      $region27: #{convseq3x3_forward.4} parent=23 // pred_region
        %p162 = scmp.lt.s32.totalorder %s17, 1
        %s163 = scalar_select %p162, %s17, 1
        %s164 = smul.addr %s163, 32
        %s165 = smul.addr %s164, 4
        %s166 = scalar_lea.vmem %s0, %s165
      $region28: #{convseq3x3_forward.4} parent=23 // pred_fallthru
        _
    $region24: #{convseq3x3_forward.4} parent=5 // pred_fallthru
      _
    %p167 = scmp.le.s32.totalorder 1, %s9
    %p168 = scmp.lt.s32.totalorder %s9, 3
    %p169 = pnand %p167, %p168
    %p170 = pneg %p169
    // Predicated region
    $region29: #{convseq3x3_forward.4} parent=5 // pred_check
      _
    $region30: #{convseq3x3_forward.4} parent=5 // pred_check_branch
      %172 = sbr.rel (%p169) target = $region32
    $region31: #{convseq3x3_forward.4} parent=5 // pred_region
      %s173 = ssub.s32 %s9, 1
      %p174 = scmp.lt.s32.totalorder %s19, 1
      %s175 = scalar_select %p174, %s19, 1
      %s176 = smul.addr %s175, 32
      %s177 = smul.addr %s176, 4
      %s178 = scalar_lea.vmem %s0, %s177
      %p179 = pneg %p47
      %p180 = pneg %p44
      %p181 = scmp.lt.s32.totalorder %s18, 0
      %s182 = scalar_select %p181, %s18, 0
      %s183 = smul.addr %s182, 4
      %s184 = scalar_lea.vmem %s1, %s183
      %p185 = pneg %p73
      %p186 = pneg %p70
      %p187 = scmp.lt.s32.totalorder %s18, 0
      %s188 = scalar_select %p187, %s18, 0
      %s189 = scalar_lea.vmem %s2, %s188
      %p190 = pneg %p99
      %p191 = pneg %p96
      %p192 = pneg %p127
      %p193 = pneg %p124
      %p194 = scmp.lt.s32.totalorder %s19, 1
      %s195 = scalar_select %p194, %s19, 1
      %p196 = scmp.lt.s32.totalorder %s18, 0
      %s197 = scalar_select %p196, %s18, 0
      %s198 = smul.addr %s195, 32
      %s199 = sadd.s32 %s197, %s198
      %s200 = smul.addr %s199, 4
      %s201 = scalar_lea.vmem %s3, %s200
      %p202 = scmp.lt.s32.totalorder %s19, 1
      %s203 = scalar_select %p202, %s19, 1
      %s204 = smul.addr %s203, 32
      %s205 = smul.addr %s204, 4
      %s206 = scalar_lea.vmem %s0, %s205
      %p207 = scmp.lt.s32.totalorder %s18, 0
      %s208 = scalar_select %p207, %s18, 0
      %s209 = smul.addr %s208, 4
      %s210 = scalar_lea.vmem %s1, %s209
      %p211 = scmp.lt.s32.totalorder %s18, 0
      %s212 = scalar_select %p211, %s18, 0
      %s213 = scalar_lea.vmem %s2, %s212
      %p214 = scmp.lt.s32.totalorder %s19, 1
      %s215 = scalar_select %p214, %s19, 1
      %p216 = scmp.lt.s32.totalorder %s18, 0
      %s217 = scalar_select %p216, %s18, 0
      %s218 = smul.addr %s215, 32
      %s219 = sadd.s32 %s217, %s218
      %s220 = smul.addr %s219, 4
      %s221 = scalar_lea.vmem %s3, %s220
      %v223 = vld [vmem:[%s206] sm:$0xf]
      %v224 = vld [vmem:[%s206 + $0x4] sm:$0xf]
      %v225 = vld [vmem:[%s206 + $0x8] sm:$0xf]
      %v226 = vld [vmem:[%s206 + $0xc] sm:$0xf]
      %v227 = vld [vmem:[%s206 + $0x10] sm:$0xf]
      %v228 = vld [vmem:[%s206 + $0x14] sm:$0xf]
      %v229 = vld [vmem:[%s206 + $0x18] sm:$0xf]
      %v230 = vld [vmem:[%s206 + $0x1c] sm:$0xf]
      %v231 = vld [vmem:[%s206 + $0x20] sm:$0xf]
      %v232 = vld [vmem:[%s206 + $0x24] sm:$0xf]
      %v233 = vld [vmem:[%s206 + $0x28] sm:$0xf]
      %v234 = vld [vmem:[%s206 + $0x2c] sm:$0xf]
      %v235 = vld [vmem:[%s206 + $0x30] sm:$0xf]
      %v236 = vld [vmem:[%s206 + $0x34] sm:$0xf]
      %v237 = vld [vmem:[%s206 + $0x38] sm:$0xf]
      %v238 = vld [vmem:[%s206 + $0x3c] sm:$0xf]
      %v239 = vld [vmem:[%s206 + $0x40] sm:$0xf]
      %v240 = vld [vmem:[%s206 + $0x44] sm:$0xf]
      %v241 = vld [vmem:[%s206 + $0x48] sm:$0xf]
      %v242 = vld [vmem:[%s206 + $0x4c] sm:$0xf]
      %v243 = vld [vmem:[%s206 + $0x50] sm:$0xf]
      %v244 = vld [vmem:[%s206 + $0x54] sm:$0xf]
      %v245 = vld [vmem:[%s206 + $0x58] sm:$0xf]
      %v246 = vld [vmem:[%s206 + $0x5c] sm:$0xf]
      %v247 = vld [vmem:[%s206 + $0x60] sm:$0xf]
      %v248 = vld [vmem:[%s206 + $0x64] sm:$0xf]
      %v249 = vld [vmem:[%s206 + $0x68] sm:$0xf]
      %v250 = vld [vmem:[%s206 + $0x6c] sm:$0xf]
      %v251 = vld [vmem:[%s206 + $0x70] sm:$0xf]
      %v252 = vld [vmem:[%s206 + $0x74] sm:$0xf]
      %v253 = vld [vmem:[%s206 + $0x78] sm:$0xf]
      %v254 = vld [vmem:[%s206 + $0x7c] sm:$0xf]
      %v255 = vld [vmem:[%s210] sm:$0xf]
      %v256 = vld [vmem:[%s210 + $0x4] sm:$0xf]
      %v257 = vld [vmem:[%s210 + $0x8] sm:$0xf]
      %v258 = vld [vmem:[%s210 + $0xc] sm:$0xf]
      %v259 = vld [vmem:[%s213] sm:$0x1]
      %v261 = vlaneseq
      %v262 = vshrl.u32 %v261, 7
      %v263 = vsub.s32 0, %v262
      %v264 = vrot.slane %v259, %v263
      %v298 = vunpack.c.l.b16 %v223
      %v299 = vunpack.c.l.b16 %v224
      %v300 = vunpack.c.l.b16 %v225
      %v301 = vunpack.c.l.b16 %v226
      %v302 = vunpack.c.l.b16 %v227
      %v303 = vunpack.c.l.b16 %v228
      %v304 = vunpack.c.l.b16 %v229
      %v305 = vunpack.c.l.b16 %v230
      %v306 = vunpack.c.l.b16 %v231
      %v307 = vunpack.c.l.b16 %v232
      %v308 = vunpack.c.l.b16 %v233
      %v309 = vunpack.c.l.b16 %v234
      %v310 = vunpack.c.l.b16 %v235
      %v311 = vunpack.c.l.b16 %v236
      %v312 = vunpack.c.l.b16 %v237
      %v313 = vunpack.c.l.b16 %v238
      %v314 = vunpack.c.l.b16 %v239
      %v315 = vunpack.c.l.b16 %v240
      %v316 = vunpack.c.l.b16 %v241
      %v317 = vunpack.c.l.b16 %v242
      %v318 = vunpack.c.l.b16 %v243
      %v319 = vunpack.c.l.b16 %v244
      %v320 = vunpack.c.l.b16 %v245
      %v321 = vunpack.c.l.b16 %v246
      %v322 = vunpack.c.l.b16 %v247
      %v323 = vunpack.c.l.b16 %v248
      %v324 = vunpack.c.l.b16 %v249
      %v325 = vunpack.c.l.b16 %v250
      %v326 = vunpack.c.l.b16 %v251
      %v327 = vunpack.c.l.b16 %v252
      %v328 = vunpack.c.l.b16 %v253
      %v329 = vunpack.c.l.b16 %v254
      %v330 = vpack.c.b16 %v299, %v298
      %v331 = vpack.c.b16 %v301, %v300
      %v332 = vpack.c.b16 %v303, %v302
      %v333 = vpack.c.b16 %v305, %v304
      %v334 = vpack.c.b16 %v307, %v306
      %v335 = vpack.c.b16 %v309, %v308
      %v336 = vpack.c.b16 %v311, %v310
      %v337 = vpack.c.b16 %v313, %v312
      %v338 = vpack.c.b16 %v315, %v314
      %v339 = vpack.c.b16 %v317, %v316
      %v340 = vpack.c.b16 %v319, %v318
      %v341 = vpack.c.b16 %v321, %v320
      %v342 = vpack.c.b16 %v323, %v322
      %v343 = vpack.c.b16 %v325, %v324
      %v344 = vpack.c.b16 %v327, %v326
      %v345 = vpack.c.b16 %v329, %v328
      %v350 = vunpack.c.l.b16 %v255
      %v351 = vunpack.c.l.b16 %v256
      %v352 = vunpack.c.l.b16 %v257
      %v353 = vunpack.c.l.b16 %v258
      %v354 = vpack.c.b16 %v351, %v350
      %v355 = vpack.c.b16 %v353, %v352
      %vm358 = vcmask 261120
      %v360 = vsel %vm358, %v330, 0
      %v363 = vsel %vm358, %v331, 0
      %v366 = vsel %vm358, %v332, 0
      %v369 = vsel %vm358, %v333, 0
      %v372 = vsel %vm358, %v334, 0
      %v375 = vsel %vm358, %v335, 0
      %v378 = vsel %vm358, %v336, 0
      %v381 = vsel %vm358, %v337, 0
      %v384 = vsel %vm358, %v338, 0
      %v387 = vsel %vm358, %v339, 0
      %v390 = vsel %vm358, %v340, 0
      %v393 = vsel %vm358, %v341, 0
      %v396 = vsel %vm358, %v342, 0
      %v399 = vsel %vm358, %v343, 0
      %v402 = vsel %vm358, %v344, 0
      %v405 = vsel %vm358, %v345, 0
      %407 = vmatprep.subr.bf16.mxu0 0
      %408 = vmatpush1.bf16.msra.mxu0 %v354
      %409 = vmatprep.subr.bf16.mxu0 0
      %410 = vmatpush1.bf16.msra.mxu0 %v355
      %411 = vmatprep.subr.bf16.mxu0 0
      %412 = vmatpush1.bf16.msra.mxu0 0
      %413 = vmatprep.subr.bf16.mxu0 0
      %414 = vmatpush1.bf16.msra.mxu0 0
      %415 = vmatprep.subr.bf16.mxu0 0
      %416 = vmatpush1.bf16.msra.mxu0 0
      %417 = vmatprep.subr.bf16.mxu0 0
      %418 = vmatpush1.bf16.msra.mxu0 0
      %419 = vmatprep.subr.bf16.mxu0 0
      %420 = vmatpush1.bf16.msra.mxu0 0
      %421 = vmatprep.subr.bf16.mxu0 0
      %422 = vmatpush1.bf16.msra.mxu0 0
      %423 = vmatprep.subr.bf16.mxu0 0
      %424 = vmatpush1.bf16.msra.mxu0 0
      %425 = vmatprep.subr.bf16.mxu0 0
      %426 = vmatpush1.bf16.msra.mxu0 0
      %427 = vmatprep.subr.bf16.mxu0 0
      %428 = vmatpush1.bf16.msra.mxu0 0
      %429 = vmatprep.subr.bf16.mxu0 0
      %430 = vmatpush1.bf16.msra.mxu0 0
      %431 = vmatprep.subr.bf16.mxu0 0
      %432 = vmatpush1.bf16.msra.mxu0 0
      %433 = vmatprep.subr.bf16.mxu0 0
      %434 = vmatpush1.bf16.msra.mxu0 0
      %435 = vmatprep.subr.bf16.mxu0 0
      %436 = vmatpush1.bf16.msra.mxu0 0
      %437 = vmatprep.subr.bf16.mxu0 0
      %438 = vmatpush1.bf16.msra.mxu0 0
      %439 = vmatprep.mubr.bf16.mxu0 0
      %440 = vmatmul.mubr.bf16.gmra.mrb[0].mxu0 %v360
      %v441 = vpop.f32.mrb[0].mxu0
      %v442 = vadd.f32 %v264, %v441
      %v443 = vpop.f32.mrb[0].mxu0
      %v444 = vpop.f32.mrb[0].mxu0
      %v445 = vadd.f32 %v264, %v444
      %v446 = vpop.f32.mrb[0].mxu0
      %447 = vmatprep.mubr.bf16.mxu0 0
      %448 = vmatmul.mubr.bf16.gmra.mrb[0].mxu0 %v363
      %v449 = vpop.f32.mrb[0].mxu0
      %v450 = vadd.f32 %v264, %v449
      %v451 = vpop.f32.mrb[0].mxu0
      %v452 = vpop.f32.mrb[0].mxu0
      %v453 = vadd.f32 %v264, %v452
      %v454 = vpop.f32.mrb[0].mxu0
      %455 = vmatprep.mubr.bf16.mxu0 0
      %456 = vmatmul.mubr.bf16.gmra.mrb[0].mxu0 %v366
      %v457 = vpop.f32.mrb[0].mxu0
      %v458 = vadd.f32 %v264, %v457
      %v459 = vpop.f32.mrb[0].mxu0
      %v460 = vpop.f32.mrb[0].mxu0
      %v461 = vadd.f32 %v264, %v460
      %v462 = vpop.f32.mrb[0].mxu0
      %463 = vmatprep.mubr.bf16.mxu0 0
      %464 = vmatmul.mubr.bf16.gmra.mrb[0].mxu0 %v369
      %v465 = vpop.f32.mrb[0].mxu0
      %v466 = vadd.f32 %v264, %v465
      %v467 = vpop.f32.mrb[0].mxu0
      %v468 = vpop.f32.mrb[0].mxu0
      %v469 = vadd.f32 %v264, %v468
      %v470 = vpop.f32.mrb[0].mxu0
      %471 = vmatprep.mubr.bf16.mxu0 0
      %472 = vmatmul.mubr.bf16.gmra.mrb[0].mxu0 %v372
      %v473 = vpop.f32.mrb[0].mxu0
      %v474 = vadd.f32 %v264, %v473
      %v475 = vpop.f32.mrb[0].mxu0
      %v476 = vpop.f32.mrb[0].mxu0
      %v477 = vadd.f32 %v264, %v476
      %v478 = vpop.f32.mrb[0].mxu0
      %479 = vmatprep.mubr.bf16.mxu0 0
      %480 = vmatmul.mubr.bf16.gmra.mrb[0].mxu0 %v375
      %v481 = vpop.f32.mrb[0].mxu0
      %v482 = vadd.f32 %v264, %v481
      %v483 = vpop.f32.mrb[0].mxu0
      %v484 = vpop.f32.mrb[0].mxu0
      %v485 = vadd.f32 %v264, %v484
      %v486 = vpop.f32.mrb[0].mxu0
      %487 = vmatprep.mubr.bf16.mxu0 0
      %488 = vmatmul.mubr.bf16.gmra.mrb[0].mxu0 %v378
      %v489 = vpop.f32.mrb[0].mxu0
      %v490 = vadd.f32 %v264, %v489
      %v491 = vpop.f32.mrb[0].mxu0
      %v492 = vpop.f32.mrb[0].mxu0
      %v493 = vadd.f32 %v264, %v492
      %v494 = vpop.f32.mrb[0].mxu0
      %495 = vmatprep.mubr.bf16.mxu0 0
      %496 = vmatmul.mubr.bf16.gmra.mrb[0].mxu0 %v381
      %v497 = vpop.f32.mrb[0].mxu0
      %v498 = vadd.f32 %v264, %v497
      %v499 = vpop.f32.mrb[0].mxu0
      %v500 = vpop.f32.mrb[0].mxu0
      %v501 = vadd.f32 %v264, %v500
      %v502 = vpop.f32.mrb[0].mxu0
      %503 = vmatprep.mubr.bf16.mxu0 0
      %504 = vmatmul.mubr.bf16.gmra.mrb[0].mxu0 %v384
      %v505 = vpop.f32.mrb[0].mxu0
      %v506 = vadd.f32 %v264, %v505
      %v507 = vpop.f32.mrb[0].mxu0
      %v508 = vpop.f32.mrb[0].mxu0
      %v509 = vadd.f32 %v264, %v508
      %v510 = vpop.f32.mrb[0].mxu0
      %511 = vmatprep.mubr.bf16.mxu0 0
      %512 = vmatmul.mubr.bf16.gmra.mrb[0].mxu0 %v387
      %v513 = vpop.f32.mrb[0].mxu0
      %v514 = vadd.f32 %v264, %v513
      %v515 = vpop.f32.mrb[0].mxu0
      %v516 = vpop.f32.mrb[0].mxu0
      %v517 = vadd.f32 %v264, %v516
      %v518 = vpop.f32.mrb[0].mxu0
      %519 = vmatprep.mubr.bf16.mxu0 0
      %520 = vmatmul.mubr.bf16.gmra.mrb[0].mxu0 %v390
      %v521 = vpop.f32.mrb[0].mxu0
      %v522 = vadd.f32 %v264, %v521
      %v523 = vpop.f32.mrb[0].mxu0
      %v524 = vpop.f32.mrb[0].mxu0
      %v525 = vadd.f32 %v264, %v524
      %v526 = vpop.f32.mrb[0].mxu0
      %527 = vmatprep.mubr.bf16.mxu0 0
      %528 = vmatmul.mubr.bf16.gmra.mrb[0].mxu0 %v393
      %v529 = vpop.f32.mrb[0].mxu0
      %v530 = vadd.f32 %v264, %v529
      %v531 = vpop.f32.mrb[0].mxu0
      %v532 = vpop.f32.mrb[0].mxu0
      %v533 = vadd.f32 %v264, %v532
      %v534 = vpop.f32.mrb[0].mxu0
      %535 = vmatprep.mubr.bf16.mxu0 0
      %536 = vmatmul.mubr.bf16.gmra.mrb[0].mxu0 %v396
      %v537 = vpop.f32.mrb[0].mxu0
      %v538 = vadd.f32 %v264, %v537
      %v539 = vpop.f32.mrb[0].mxu0
      %v540 = vpop.f32.mrb[0].mxu0
      %v541 = vadd.f32 %v264, %v540
      %v542 = vpop.f32.mrb[0].mxu0
      %543 = vmatprep.mubr.bf16.mxu0 0
      %544 = vmatmul.mubr.bf16.gmra.mrb[0].mxu0 %v399
      %v545 = vpop.f32.mrb[0].mxu0
      %v546 = vadd.f32 %v264, %v545
      %v547 = vpop.f32.mrb[0].mxu0
      %v548 = vpop.f32.mrb[0].mxu0
      %v549 = vadd.f32 %v264, %v548
      %v550 = vpop.f32.mrb[0].mxu0
      %551 = vmatprep.mubr.bf16.mxu0 0
      %552 = vmatmul.mubr.bf16.gmra.mrb[0].mxu0 %v402
      %v553 = vpop.f32.mrb[0].mxu0
      %v554 = vadd.f32 %v264, %v553
      %v555 = vpop.f32.mrb[0].mxu0
      %v556 = vpop.f32.mrb[0].mxu0
      %v557 = vadd.f32 %v264, %v556
      %v558 = vpop.f32.mrb[0].mxu0
      %559 = vmatprep.mubr.bf16.mxu0 0
      %560 = vmatmul.mubr.bf16.gmra.mrb[0].mxu0 %v405
      %v561 = vpop.f32.mrb[0].mxu0
      %v562 = vadd.f32 %v264, %v561
      %v563 = vpop.f32.mrb[0].mxu0
      %v564 = vpop.f32.mrb[0].mxu0
      %v565 = vadd.f32 %v264, %v564
      %v566 = vpop.f32.mrb[0].mxu0
      %567 = vdwg.mxu0
      %v568 = vmax.f32 %v442, 0.0
      %v569 = vmax.f32 %v445, 0.0
      %v570 = vmax.f32 %v450, 0.0
      %v571 = vmax.f32 %v453, 0.0
      %v572 = vmax.f32 %v458, 0.0
      %v573 = vmax.f32 %v461, 0.0
      %v574 = vmax.f32 %v466, 0.0
      %v575 = vmax.f32 %v469, 0.0
      %v576 = vmax.f32 %v474, 0.0
      %v577 = vmax.f32 %v477, 0.0
      %v578 = vmax.f32 %v482, 0.0
      %v579 = vmax.f32 %v485, 0.0
      %v580 = vmax.f32 %v490, 0.0
      %v581 = vmax.f32 %v493, 0.0
      %v582 = vmax.f32 %v498, 0.0
      %v583 = vmax.f32 %v501, 0.0
      %v584 = vmax.f32 %v506, 0.0
      %v585 = vmax.f32 %v509, 0.0
      %v586 = vmax.f32 %v514, 0.0
      %v587 = vmax.f32 %v517, 0.0
      %v588 = vmax.f32 %v522, 0.0
      %v589 = vmax.f32 %v525, 0.0
      %v590 = vmax.f32 %v530, 0.0
      %v591 = vmax.f32 %v533, 0.0
      %v592 = vmax.f32 %v538, 0.0
      %v593 = vmax.f32 %v541, 0.0
      %v594 = vmax.f32 %v546, 0.0
      %v595 = vmax.f32 %v549, 0.0
      %v596 = vmax.f32 %v554, 0.0
      %v597 = vmax.f32 %v557, 0.0
      %v598 = vmax.f32 %v562, 0.0
      %v599 = vmax.f32 %v565, 0.0
      %v600 = vpack.c.bf16 %v569, %v568
      %v601 = vpack.c.bf16 %v571, %v570
      %v602 = vpack.c.bf16 %v573, %v572
      %v603 = vpack.c.bf16 %v575, %v574
      %v604 = vpack.c.bf16 %v577, %v576
      %v605 = vpack.c.bf16 %v579, %v578
      %v606 = vpack.c.bf16 %v581, %v580
      %v607 = vpack.c.bf16 %v583, %v582
      %v608 = vpack.c.bf16 %v585, %v584
      %v609 = vpack.c.bf16 %v587, %v586
      %v610 = vpack.c.bf16 %v589, %v588
      %v611 = vpack.c.bf16 %v591, %v590
      %v612 = vpack.c.bf16 %v593, %v592
      %v613 = vpack.c.bf16 %v595, %v594
      %v614 = vpack.c.bf16 %v597, %v596
      %v615 = vpack.c.bf16 %v599, %v598
      %v632 = vunpack.c.l.b16 %v600
      %v633 = vunpack.c.h.b16 %v600
      %v634 = vunpack.c.l.b16 %v601
      %v635 = vunpack.c.h.b16 %v601
      %v636 = vunpack.c.l.b16 %v602
      %v637 = vunpack.c.h.b16 %v602
      %v638 = vunpack.c.l.b16 %v603
      %v639 = vunpack.c.h.b16 %v603
      %v640 = vunpack.c.l.b16 %v604
      %v641 = vunpack.c.h.b16 %v604
      %v642 = vunpack.c.l.b16 %v605
      %v643 = vunpack.c.h.b16 %v605
      %v644 = vunpack.c.l.b16 %v606
      %v645 = vunpack.c.h.b16 %v606
      %v646 = vunpack.c.l.b16 %v607
      %v647 = vunpack.c.h.b16 %v607
      %v648 = vunpack.c.l.b16 %v608
      %v649 = vunpack.c.h.b16 %v608
      %v650 = vunpack.c.l.b16 %v609
      %v651 = vunpack.c.h.b16 %v609
      %v652 = vunpack.c.l.b16 %v610
      %v653 = vunpack.c.h.b16 %v610
      %v654 = vunpack.c.l.b16 %v611
      %v655 = vunpack.c.h.b16 %v611
      %v656 = vunpack.c.l.b16 %v612
      %v657 = vunpack.c.h.b16 %v612
      %v658 = vunpack.c.l.b16 %v613
      %v659 = vunpack.c.h.b16 %v613
      %v660 = vunpack.c.l.b16 %v614
      %v661 = vunpack.c.h.b16 %v614
      %v662 = vunpack.c.l.b16 %v615
      %v663 = vunpack.c.h.b16 %v615
      %v664 = vpack.c.b16 %v632, %v632
      %v665 = vpack.c.b16 %v633, %v633
      %v666 = vpack.c.b16 %v634, %v634
      %v667 = vpack.c.b16 %v635, %v635
      %v668 = vpack.c.b16 %v636, %v636
      %v669 = vpack.c.b16 %v637, %v637
      %v670 = vpack.c.b16 %v638, %v638
      %v671 = vpack.c.b16 %v639, %v639
      %v672 = vpack.c.b16 %v640, %v640
      %v673 = vpack.c.b16 %v641, %v641
      %v674 = vpack.c.b16 %v642, %v642
      %v675 = vpack.c.b16 %v643, %v643
      %v676 = vpack.c.b16 %v644, %v644
      %v677 = vpack.c.b16 %v645, %v645
      %v678 = vpack.c.b16 %v646, %v646
      %v679 = vpack.c.b16 %v647, %v647
      %v680 = vpack.c.b16 %v648, %v648
      %v681 = vpack.c.b16 %v649, %v649
      %v682 = vpack.c.b16 %v650, %v650
      %v683 = vpack.c.b16 %v651, %v651
      %v684 = vpack.c.b16 %v652, %v652
      %v685 = vpack.c.b16 %v653, %v653
      %v686 = vpack.c.b16 %v654, %v654
      %v687 = vpack.c.b16 %v655, %v655
      %v688 = vpack.c.b16 %v656, %v656
      %v689 = vpack.c.b16 %v657, %v657
      %v690 = vpack.c.b16 %v658, %v658
      %v691 = vpack.c.b16 %v659, %v659
      %v692 = vpack.c.b16 %v660, %v660
      %v693 = vpack.c.b16 %v661, %v661
      %v694 = vpack.c.b16 %v662, %v662
      %v695 = vpack.c.b16 %v663, %v663
      %728 = vst [vmem:[%s221] sm:$0xf] %v664
      %729 = vst [vmem:[%s221 + $0x4] sm:$0xf] %v665
      %730 = vst [vmem:[%s221 + $0x8] sm:$0xf] %v666
      %731 = vst [vmem:[%s221 + $0xc] sm:$0xf] %v667
      %732 = vst [vmem:[%s221 + $0x10] sm:$0xf] %v668
      %733 = vst [vmem:[%s221 + $0x14] sm:$0xf] %v669
      %734 = vst [vmem:[%s221 + $0x18] sm:$0xf] %v670
      %735 = vst [vmem:[%s221 + $0x1c] sm:$0xf] %v671
      %736 = vst [vmem:[%s221 + $0x20] sm:$0xf] %v672
      %737 = vst [vmem:[%s221 + $0x24] sm:$0xf] %v673
      %738 = vst [vmem:[%s221 + $0x28] sm:$0xf] %v674
      %739 = vst [vmem:[%s221 + $0x2c] sm:$0xf] %v675
      %740 = vst [vmem:[%s221 + $0x30] sm:$0xf] %v676
      %741 = vst [vmem:[%s221 + $0x34] sm:$0xf] %v677
      %742 = vst [vmem:[%s221 + $0x38] sm:$0xf] %v678
      %743 = vst [vmem:[%s221 + $0x3c] sm:$0xf] %v679
      %744 = vst [vmem:[%s221 + $0x40] sm:$0xf] %v680
      %745 = vst [vmem:[%s221 + $0x44] sm:$0xf] %v681
      %746 = vst [vmem:[%s221 + $0x48] sm:$0xf] %v682
      %747 = vst [vmem:[%s221 + $0x4c] sm:$0xf] %v683
      %748 = vst [vmem:[%s221 + $0x50] sm:$0xf] %v684
      %749 = vst [vmem:[%s221 + $0x54] sm:$0xf] %v685
      %750 = vst [vmem:[%s221 + $0x58] sm:$0xf] %v686
      %751 = vst [vmem:[%s221 + $0x5c] sm:$0xf] %v687
      %752 = vst [vmem:[%s221 + $0x60] sm:$0xf] %v688
      %753 = vst [vmem:[%s221 + $0x64] sm:$0xf] %v689
      %754 = vst [vmem:[%s221 + $0x68] sm:$0xf] %v690
      %755 = vst [vmem:[%s221 + $0x6c] sm:$0xf] %v691
      %756 = vst [vmem:[%s221 + $0x70] sm:$0xf] %v692
      %757 = vst [vmem:[%s221 + $0x74] sm:$0xf] %v693
      %758 = vst [vmem:[%s221 + $0x78] sm:$0xf] %v694
      %759 = vst [vmem:[%s221 + $0x7c] sm:$0xf] %v695
      %p760 = scmp.lt.s32.totalorder %s19, 1
      %s761 = scalar_select %p760, %s19, 1
      %p762 = scmp.lt.s32.totalorder %s18, 0
      %s763 = scalar_select %p762, %s18, 0
      %s764 = smul.addr %s761, 32
      %s765 = sadd.s32 %s763, %s764
      %s766 = smul.addr %s765, 4
      %s767 = scalar_lea.vmem %s3, %s766
      // Predicated region
      $region33: #{convseq3x3_forward.4} parent=31 // pred_check
        %p768 = pneg %p124
      $region34: #{convseq3x3_forward.4} parent=31 // pred_check_branch
        %770 = sbr.rel (%p768) target = $region36
      $region35: #{convseq3x3_forward.4} parent=31 // pred_region
        _
      $region36: #{convseq3x3_forward.4} parent=31 // pred_fallthru
        _
    $region32: #{convseq3x3_forward.4} parent=5 // pred_fallthru
      _
    %p771 = scmp.le.s32.totalorder 2, %s9
    // Predicated region
    $region37: #{convseq3x3_forward.4} parent=5 // pred_check
      %p772 = pneg %p771
    $region38: #{convseq3x3_forward.4} parent=5 // pred_check_branch
      %774 = sbr.rel (%p772) target = $region40
    $region39: #{convseq3x3_forward.4} parent=5 // pred_region
      %s775 = ssub.s32 %s9, 2
      // Predicated region
      $region41: #{convseq3x3_forward.4} parent=39 // pred_check
        %p776 = pneg %p130
      $region42: #{convseq3x3_forward.4} parent=39 // pred_check_branch
        %778 = sbr.rel (%p776) target = $region44
      $region43: #{convseq3x3_forward.4} parent=39 // pred_region
        %p779 = scmp.lt.s32.totalorder %s21, 1
        %s780 = scalar_select %p779, %s21, 1
        %p781 = scmp.lt.s32.totalorder %s20, 0
        %s782 = scalar_select %p781, %s20, 0
        %s783 = smul.addr %s780, 32
        %s784 = sadd.s32 %s782, %s783
        %s785 = smul.addr %s784, 4
        %s786 = scalar_lea.vmem %s3, %s785
      $region44: #{convseq3x3_forward.4} parent=39 // pred_fallthru
        _
    $region40: #{convseq3x3_forward.4} parent=5 // pred_fallthru
      _
  $region6: #{convseq3x3_forward.4} parent=0 // loop_footer
    %s13 = sadd.s32 1, %s9
  $region7: #{convseq3x3_forward.4} parent=0 // loop_footer_branch
    %8 = sbr.rel target = $region3
  $region8: #{convseq3x3_forward.4} parent=0 // loop_exit
    _

// kernel: convseq3x3_forward.5
$region0: #{convseq3x3_forward.5}
  #allocation0 [shape = 'u32[]', space=smem, size = 0x4, offset = 0x4, fixed_abs, tag = 'smem constant byte address 0x4 - core index']
  #allocation1 [shape = 'u32[144,128]{1,0:T(1,128)}', space=vmem, size = 0x12000, scoped, tag = 'internal scratch']
  %s0 = inlined_call_operand.vmem [shape: bf16[2,18,16,48], index: 0, kind: input, shape index: {}]
  %s1 = inlined_call_operand.vmem [shape: bf16[3,48,128], index: 1, kind: input, shape index: {}]
  %s2 = inlined_call_operand.vmem [shape: f32[1,128], index: 2, kind: input, shape index: {}]
  %s3 = inlined_call_operand.vmem [shape: bf16[2,16,16,128], index: 3, kind: output, shape index: {}]
  %s4 = sld [smem:[#allocation0]]
  $region45: #{convseq3x3_forward.5} parent=0
    _
  %s6 = ssub.s32 1, %s4
  %s7 = scalar_select 0, %s6, %s4
  loop: start=0, step=1, limit=4
  $region2: #{convseq3x3_forward.5} parent=0 // loop_pre_header
    _
  $region3: #{convseq3x3_forward.5} parent=0 // loop_header
    %s9 = sphi 0, %s13
    %p10 = scmp.ge.s32.totalorder %s9, 4
    %s16 = sphi 0, %s28
    %s17 = sphi 0, %s24
    %s18 = sphi 0, %s16
    %s19 = sphi 0, %s17
    %s20 = sphi 0, %s18
    %s21 = sphi 0, %s19
    %s31 = sphi 0, %s33
    %s34 = sphi 0, %s31
    %s35 = sphi 0, %s34
    %s51 = sphi 0, %s35
    %s57 = sphi 0, %s59
    %s60 = sphi 0, %s57
    %s61 = sphi 0, %s60
    %s77 = sphi 0, %s61
    %s83 = sphi 0, %s85
    %s86 = sphi 0, %s83
    %s87 = sphi 0, %s86
    %s103 = sphi 0, %s87
    %s111 = sphi 0, %s113
    %s114 = sphi 0, %s111
    %s115 = sphi 0, %s114
    %s131 = sphi 0, %s115
  $region4: #{convseq3x3_forward.5} parent=0 // loop_header_branch
    %12 = sbr.rel (%p10) target = $region8
  $region5: #{convseq3x3_forward.5} parent=0 // loop_body
    %s14 = ssub.s32 %s9, 1
    %s15 = ssub.s32 %s9, 2
    %s22 = sadd.s32 1, %s17
    %p23 = scmp.ge.s32.totalorder %s22, 2
    %s24 = scalar_select %p23, 0, %s22
    %s25 = sadd.s32 1, %s16
    %s26 = scalar_select %p23, %s25, %s16
    %p27 = scmp.ge.s32.totalorder %s26, 1
    %s28 = scalar_select %p27, 0, %s26
    %s29 = ssub.s32 %s17, %s24
    %p30 = scmp.eq.s32.totalorder %s29, 0
    %s32 = sadd.s32 %s31, 1
    %s33 = scalar_select %p30, %s31, %s32
    %p36 = pneg %p30
    %p37 = scmp.eq.s32.totalorder %s9, 1
    %p38 = por %p36, %p37
    %p39 = scmp.ne.s32.totalorder %s31, %s34
    %p40 = scmp.eq.s32.totalorder %s9, 0
    %p41 = por %p39, %p40
    %p42 = scmp.ne.s32.totalorder %s31, %s34
    %p43 = scmp.eq.s32.totalorder %s14, 1
    %p44 = por %p42, %p43
    %p45 = scmp.ne.s32.totalorder %s34, %s35
    %p46 = scmp.eq.s32.totalorder %s14, 0
    %p47 = por %p45, %p46
    %p48 = scmp.ne.s32.totalorder %s34, %s35
    %p49 = scmp.eq.s32.totalorder %s15, 1
    %p50 = por %p48, %p49
    %p52 = scmp.ne.s32.totalorder %s35, %s51
    %p53 = scmp.eq.s32.totalorder %s15, 0
    %p54 = por %p52, %p53
    %s55 = ssub.s32 %s16, %s28
    %p56 = scmp.eq.s32.totalorder %s55, 0
    %s58 = sadd.s32 %s57, 1
    %s59 = scalar_select %p56, %s57, %s58
    %p62 = pneg %p56
    %p63 = scmp.eq.s32.totalorder %s9, 1
    %p64 = por %p62, %p63
    %p65 = scmp.ne.s32.totalorder %s57, %s60
    %p66 = scmp.eq.s32.totalorder %s9, 0
    %p67 = por %p65, %p66
    %p68 = scmp.ne.s32.totalorder %s57, %s60
    %p69 = scmp.eq.s32.totalorder %s14, 1
    %p70 = por %p68, %p69
    %p71 = scmp.ne.s32.totalorder %s60, %s61
    %p72 = scmp.eq.s32.totalorder %s14, 0
    %p73 = por %p71, %p72
    %p74 = scmp.ne.s32.totalorder %s60, %s61
    %p75 = scmp.eq.s32.totalorder %s15, 1
    %p76 = por %p74, %p75
    %p78 = scmp.ne.s32.totalorder %s61, %s77
    %p79 = scmp.eq.s32.totalorder %s15, 0
    %p80 = por %p78, %p79
    %s81 = ssub.s32 %s16, %s28
    %p82 = scmp.eq.s32.totalorder %s81, 0
    %s84 = sadd.s32 %s83, 1
    %s85 = scalar_select %p82, %s83, %s84
    %p88 = pneg %p82
    %p89 = scmp.eq.s32.totalorder %s9, 1
    %p90 = por %p88, %p89
    %p91 = scmp.ne.s32.totalorder %s83, %s86
    %p92 = scmp.eq.s32.totalorder %s9, 0
    %p93 = por %p91, %p92
    %p94 = scmp.ne.s32.totalorder %s83, %s86
    %p95 = scmp.eq.s32.totalorder %s14, 1
    %p96 = por %p94, %p95
    %p97 = scmp.ne.s32.totalorder %s86, %s87
    %p98 = scmp.eq.s32.totalorder %s14, 0
    %p99 = por %p97, %p98
    %p100 = scmp.ne.s32.totalorder %s86, %s87
    %p101 = scmp.eq.s32.totalorder %s15, 1
    %p102 = por %p100, %p101
    %p104 = scmp.ne.s32.totalorder %s87, %s103
    %p105 = scmp.eq.s32.totalorder %s15, 0
    %p106 = por %p104, %p105
    %s107 = ssub.s32 %s17, %s24
    %s108 = ssub.s32 %s16, %s28
    %s109 = sor.u32 %s107, %s108
    %p110 = scmp.eq.s32.totalorder %s109, 0
    %s112 = sadd.s32 %s111, 1
    %s113 = scalar_select %p110, %s111, %s112
    %p116 = pneg %p110
    %p117 = scmp.eq.s32.totalorder %s9, 1
    %p118 = por %p116, %p117
    %p119 = scmp.ne.s32.totalorder %s111, %s114
    %p120 = scmp.eq.s32.totalorder %s9, 0
    %p121 = por %p119, %p120
    %p122 = scmp.ne.s32.totalorder %s111, %s114
    %p123 = scmp.eq.s32.totalorder %s14, 1
    %p124 = por %p122, %p123
    %p125 = scmp.ne.s32.totalorder %s114, %s115
    %p126 = scmp.eq.s32.totalorder %s14, 0
    %p127 = por %p125, %p126
    %p128 = scmp.ne.s32.totalorder %s114, %s115
    %p129 = scmp.eq.s32.totalorder %s15, 1
    %p130 = por %p128, %p129
    %p132 = scmp.ne.s32.totalorder %s115, %s131
    %p133 = scmp.eq.s32.totalorder %s15, 0
    %p134 = por %p132, %p133
    %p135 = scmp.le.s32.totalorder 1, %s9
    %p136 = scmp.lt.s32.totalorder %s9, 3
    %p137 = pnand %p135, %p136
    %p138 = pneg %p137
    // Predicated region
    $region9: #{convseq3x3_forward.5} parent=5 // pred_check
      _
    $region10: #{convseq3x3_forward.5} parent=5 // pred_check_branch
      %140 = sbr.rel (%p137) target = $region12
    $region11: #{convseq3x3_forward.5} parent=5 // pred_region
      %s141 = ssub.s32 %s9, 1
      // Predicated region
      $region13: #{convseq3x3_forward.5} parent=11 // pred_check
        %p142 = pneg %p73
      $region14: #{convseq3x3_forward.5} parent=11 // pred_check_branch
        %144 = sbr.rel (%p142) target = $region16
      $region15: #{convseq3x3_forward.5} parent=11 // pred_region
        %p145 = scmp.lt.s32.totalorder %s18, 0
        %s146 = scalar_select %p145, %s18, 0
        %s147 = smul.addr %s146, 4
        %s148 = scalar_lea.vmem %s1, %s147
      $region16: #{convseq3x3_forward.5} parent=11 // pred_fallthru
        _
      // Predicated region
      $region17: #{convseq3x3_forward.5} parent=11 // pred_check
        %p149 = pneg %p99
      $region18: #{convseq3x3_forward.5} parent=11 // pred_check_branch
        %151 = sbr.rel (%p149) target = $region20
      $region19: #{convseq3x3_forward.5} parent=11 // pred_region
        %p152 = scmp.lt.s32.totalorder %s18, 0
        %s153 = scalar_select %p152, %s18, 0
        %s154 = scalar_lea.vmem %s2, %s153
      $region20: #{convseq3x3_forward.5} parent=11 // pred_fallthru
        _
    $region12: #{convseq3x3_forward.5} parent=5 // pred_fallthru
      _
    %p155 = scmp.lt.s32.totalorder %s9, 2
    // Predicated region
    $region21: #{convseq3x3_forward.5} parent=5 // pred_check
      %p156 = pneg %p155
    $region22: #{convseq3x3_forward.5} parent=5 // pred_check_branch
      %158 = sbr.rel (%p156) target = $region24
    $region23: #{convseq3x3_forward.5} parent=5 // pred_region
      // Predicated region
      $region25: #{convseq3x3_forward.5} parent=23 // pred_check
        %p159 = pneg %p41
      $region26: #{convseq3x3_forward.5} parent=23 // pred_check_branch
        %161 = sbr.rel (%p159) target = $region28
      $region27: #{convseq3x3_forward.5} parent=23 // pred_region
        %p162 = scmp.lt.s32.totalorder %s17, 1
        %s163 = scalar_select %p162, %s17, 1
        %s164 = smul.addr %s163, 36
        %s165 = smul.addr %s164, 4
        %s166 = scalar_lea.vmem %s0, %s165
      $region28: #{convseq3x3_forward.5} parent=23 // pred_fallthru
        _
    $region24: #{convseq3x3_forward.5} parent=5 // pred_fallthru
      _
    %p167 = scmp.le.s32.totalorder 1, %s9
    %p168 = scmp.lt.s32.totalorder %s9, 3
    %p169 = pnand %p167, %p168
    %p170 = pneg %p169
    // Predicated region
    $region29: #{convseq3x3_forward.5} parent=5 // pred_check
      _
    $region30: #{convseq3x3_forward.5} parent=5 // pred_check_branch
      %172 = sbr.rel (%p169) target = $region32
    $region31: #{convseq3x3_forward.5} parent=5 // pred_region
      %s173 = ssub.s32 %s9, 1
      %p174 = scmp.lt.s32.totalorder %s19, 1
      %s175 = scalar_select %p174, %s19, 1
      %s176 = smul.addr %s175, 36
      %s177 = smul.addr %s176, 4
      %s178 = scalar_lea.vmem %s0, %s177
      %p179 = pneg %p47
      %p180 = pneg %p44
      %p181 = scmp.lt.s32.totalorder %s18, 0
      %s182 = scalar_select %p181, %s18, 0
      %s183 = smul.addr %s182, 4
      %s184 = scalar_lea.vmem %s1, %s183
      %p185 = pneg %p73
      %p186 = pneg %p70
      %p187 = scmp.lt.s32.totalorder %s18, 0
      %s188 = scalar_select %p187, %s18, 0
      %s189 = scalar_lea.vmem %s2, %s188
      %p190 = pneg %p99
      %p191 = pneg %p96
      %p192 = pneg %p127
      %p193 = pneg %p124
      %p194 = scmp.lt.s32.totalorder %s19, 1
      %s195 = scalar_select %p194, %s19, 1
      %p196 = scmp.lt.s32.totalorder %s18, 0
      %s197 = scalar_select %p196, %s18, 0
      %s198 = smul.addr %s195, 32
      %s199 = sadd.s32 %s197, %s198
      %s200 = smul.addr %s199, 4
      %s201 = scalar_lea.vmem %s3, %s200
      %p202 = scmp.lt.s32.totalorder %s19, 1
      %s203 = scalar_select %p202, %s19, 1
      %s204 = smul.addr %s203, 36
      %s205 = smul.addr %s204, 4
      %s206 = scalar_lea.vmem %s0, %s205
      %p207 = scmp.lt.s32.totalorder %s18, 0
      %s208 = scalar_select %p207, %s18, 0
      %s209 = smul.addr %s208, 4
      %s210 = scalar_lea.vmem %s1, %s209
      %p211 = scmp.lt.s32.totalorder %s18, 0
      %s212 = scalar_select %p211, %s18, 0
      %s213 = scalar_lea.vmem %s2, %s212
      %p214 = scmp.lt.s32.totalorder %s19, 1
      %s215 = scalar_select %p214, %s19, 1
      %p216 = scmp.lt.s32.totalorder %s18, 0
      %s217 = scalar_select %p216, %s18, 0
      %s218 = smul.addr %s215, 32
      %s219 = sadd.s32 %s217, %s218
      %s220 = smul.addr %s219, 4
      %s221 = scalar_lea.vmem %s3, %s220
      %v223 = vld [vmem:[%s206] sm:$0xf]
      %v224 = vld [vmem:[%s206 + $0x4] sm:$0xf]
      %v225 = vld [vmem:[%s206 + $0x8] sm:$0xf]
      %v226 = vld [vmem:[%s206 + $0xc] sm:$0xf]
      %v227 = vld [vmem:[%s206 + $0x10] sm:$0xf]
      %v228 = vld [vmem:[%s206 + $0x14] sm:$0xf]
      %v229 = vld [vmem:[%s206 + $0x18] sm:$0xf]
      %v230 = vld [vmem:[%s206 + $0x1c] sm:$0xf]
      %v231 = vld [vmem:[%s206 + $0x20] sm:$0xf]
      %v232 = vld [vmem:[%s206 + $0x24] sm:$0xf]
      %v233 = vld [vmem:[%s206 + $0x28] sm:$0xf]
      %v234 = vld [vmem:[%s206 + $0x2c] sm:$0xf]
      %v235 = vld [vmem:[%s206 + $0x30] sm:$0xf]
      %v236 = vld [vmem:[%s206 + $0x34] sm:$0xf]
      %v237 = vld [vmem:[%s206 + $0x38] sm:$0xf]
      %v238 = vld [vmem:[%s206 + $0x3c] sm:$0xf]
      %v239 = vld [vmem:[%s206 + $0x40] sm:$0xf]
      %v240 = vld [vmem:[%s206 + $0x44] sm:$0xf]
      %v241 = vld [vmem:[%s206 + $0x48] sm:$0xf]
      %v242 = vld [vmem:[%s206 + $0x4c] sm:$0xf]
      %v243 = vld [vmem:[%s206 + $0x50] sm:$0xf]
      %v244 = vld [vmem:[%s206 + $0x54] sm:$0xf]
      %v245 = vld [vmem:[%s206 + $0x58] sm:$0xf]
      %v246 = vld [vmem:[%s206 + $0x5c] sm:$0xf]
      %v247 = vld [vmem:[%s206 + $0x60] sm:$0xf]
      %v248 = vld [vmem:[%s206 + $0x64] sm:$0xf]
      %v249 = vld [vmem:[%s206 + $0x68] sm:$0xf]
      %v250 = vld [vmem:[%s206 + $0x6c] sm:$0xf]
      %v251 = vld [vmem:[%s206 + $0x70] sm:$0xf]
      %v252 = vld [vmem:[%s206 + $0x74] sm:$0xf]
      %v253 = vld [vmem:[%s206 + $0x78] sm:$0xf]
      %v254 = vld [vmem:[%s206 + $0x7c] sm:$0xf]
      %v255 = vld [vmem:[%s210] sm:$0xf]
      %v256 = vld [vmem:[%s210 + $0x4] sm:$0xf]
      %v257 = vld [vmem:[%s210 + $0x8] sm:$0xf]
      %v258 = vld [vmem:[%s210 + $0xc] sm:$0xf]
      %v259 = vld [vmem:[%s210 + $0x10] sm:$0xf]
      %v260 = vld [vmem:[%s210 + $0x14] sm:$0xf]
      %s261 = scalar_lea.vmem %s206, 8
      %v262 = vld [vmem:[%s261] sm:$0xf]
      %v263 = vld [vmem:[%s261 + $0x4] sm:$0xf]
      %v264 = vld [vmem:[%s261 + $0x8] sm:$0xf]
      %v265 = vld [vmem:[%s261 + $0xc] sm:$0xf]
      %v266 = vld [vmem:[%s261 + $0x10] sm:$0xf]
      %v267 = vld [vmem:[%s261 + $0x14] sm:$0xf]
      %v268 = vld [vmem:[%s261 + $0x18] sm:$0xf]
      %v269 = vld [vmem:[%s261 + $0x1c] sm:$0xf]
      %v270 = vld [vmem:[%s261 + $0x20] sm:$0xf]
      %v271 = vld [vmem:[%s261 + $0x24] sm:$0xf]
      %v272 = vld [vmem:[%s261 + $0x28] sm:$0xf]
      %v273 = vld [vmem:[%s261 + $0x2c] sm:$0xf]
      %v274 = vld [vmem:[%s261 + $0x30] sm:$0xf]
      %v275 = vld [vmem:[%s261 + $0x34] sm:$0xf]
      %v276 = vld [vmem:[%s261 + $0x38] sm:$0xf]
      %v277 = vld [vmem:[%s261 + $0x3c] sm:$0xf]
      %v278 = vld [vmem:[%s261 + $0x40] sm:$0xf]
      %v279 = vld [vmem:[%s261 + $0x44] sm:$0xf]
      %v280 = vld [vmem:[%s261 + $0x48] sm:$0xf]
      %v281 = vld [vmem:[%s261 + $0x4c] sm:$0xf]
      %v282 = vld [vmem:[%s261 + $0x50] sm:$0xf]
      %v283 = vld [vmem:[%s261 + $0x54] sm:$0xf]
      %v284 = vld [vmem:[%s261 + $0x58] sm:$0xf]
      %v285 = vld [vmem:[%s261 + $0x5c] sm:$0xf]
      %v286 = vld [vmem:[%s261 + $0x60] sm:$0xf]
      %v287 = vld [vmem:[%s261 + $0x64] sm:$0xf]
      %v288 = vld [vmem:[%s261 + $0x68] sm:$0xf]
      %v289 = vld [vmem:[%s261 + $0x6c] sm:$0xf]
      %v290 = vld [vmem:[%s261 + $0x70] sm:$0xf]
      %v291 = vld [vmem:[%s261 + $0x74] sm:$0xf]
      %v292 = vld [vmem:[%s261 + $0x78] sm:$0xf]
      %v293 = vld [vmem:[%s261 + $0x7c] sm:$0xf]
      %s294 = scalar_lea.vmem %s210, 24
      %v295 = vld [vmem:[%s294] sm:$0xf]
      %v296 = vld [vmem:[%s294 + $0x4] sm:$0xf]
      %v297 = vld [vmem:[%s294 + $0x8] sm:$0xf]
      %v298 = vld [vmem:[%s294 + $0xc] sm:$0xf]
      %v299 = vld [vmem:[%s294 + $0x10] sm:$0xf]
      %v300 = vld [vmem:[%s294 + $0x14] sm:$0xf]
      %v333 = vunpack.c.l.b16 %v262
      %v334 = vunpack.c.l.b16 %v263
      %v335 = vunpack.c.l.b16 %v264
      %v336 = vunpack.c.l.b16 %v265
      %v337 = vunpack.c.l.b16 %v266
      %v338 = vunpack.c.l.b16 %v267
      %v339 = vunpack.c.l.b16 %v268
      %v340 = vunpack.c.l.b16 %v269
      %v341 = vunpack.c.l.b16 %v270
      %v342 = vunpack.c.l.b16 %v271
      %v343 = vunpack.c.l.b16 %v272
      %v344 = vunpack.c.l.b16 %v273
      %v345 = vunpack.c.l.b16 %v274
      %v346 = vunpack.c.l.b16 %v275
      %v347 = vunpack.c.l.b16 %v276
      %v348 = vunpack.c.l.b16 %v277
      %v349 = vunpack.c.l.b16 %v278
      %v350 = vunpack.c.l.b16 %v279
      %v351 = vunpack.c.l.b16 %v280
      %v352 = vunpack.c.l.b16 %v281
      %v353 = vunpack.c.l.b16 %v282
      %v354 = vunpack.c.l.b16 %v283
      %v355 = vunpack.c.l.b16 %v284
      %v356 = vunpack.c.l.b16 %v285
      %v357 = vunpack.c.l.b16 %v286
      %v358 = vunpack.c.l.b16 %v287
      %v359 = vunpack.c.l.b16 %v288
      %v360 = vunpack.c.l.b16 %v289
      %v361 = vunpack.c.l.b16 %v290
      %v362 = vunpack.c.l.b16 %v291
      %v363 = vunpack.c.l.b16 %v292
      %v364 = vunpack.c.l.b16 %v293
      %v365 = vpack.c.b16 %v334, %v333
      %v366 = vpack.c.b16 %v336, %v335
      %v367 = vpack.c.b16 %v338, %v337
      %v368 = vpack.c.b16 %v340, %v339
      %v369 = vpack.c.b16 %v342, %v341
      %v370 = vpack.c.b16 %v344, %v343
      %v371 = vpack.c.b16 %v346, %v345
      %v372 = vpack.c.b16 %v348, %v347
      %v373 = vpack.c.b16 %v350, %v349
      %v374 = vpack.c.b16 %v352, %v351
      %v375 = vpack.c.b16 %v354, %v353
      %v376 = vpack.c.b16 %v356, %v355
      %v377 = vpack.c.b16 %v358, %v357
      %v378 = vpack.c.b16 %v360, %v359
      %v379 = vpack.c.b16 %v362, %v361
      %v380 = vpack.c.b16 %v364, %v363
      %v387 = vunpack.c.l.b16 %v295
      %v388 = vunpack.c.l.b16 %v296
      %v389 = vunpack.c.l.b16 %v297
      %v390 = vunpack.c.l.b16 %v298
      %v391 = vunpack.c.l.b16 %v299
      %v392 = vunpack.c.l.b16 %v300
      %v393 = vpack.c.b16 %v388, %v387
      %v394 = vpack.c.b16 %v390, %v389
      %v395 = vpack.c.b16 %v392, %v391
      %vm399 = vcmask 392192
      %v401 = vsel %vm399, %v365, 0
      %v404 = vsel %vm399, %v366, 0
      %v407 = vsel %vm399, %v367, 0
      %v410 = vsel %vm399, %v368, 0
      %v413 = vsel %vm399, %v369, 0
      %v416 = vsel %vm399, %v370, 0
      %v419 = vsel %vm399, %v371, 0
      %v422 = vsel %vm399, %v372, 0
      %v425 = vsel %vm399, %v373, 0
      %v428 = vsel %vm399, %v374, 0
      %v431 = vsel %vm399, %v375, 0
      %v434 = vsel %vm399, %v376, 0
      %v437 = vsel %vm399, %v377, 0
      %v440 = vsel %vm399, %v378, 0
      %v443 = vsel %vm399, %v379, 0
      %v446 = vsel %vm399, %v380, 0
      %448 = vmatprep.subr.bf16.mxu0 0
      %449 = vmatpush1.bf16.msra.mxu0 %v393
      %450 = vmatprep.subr.bf16.mxu0 0
      %451 = vmatpush1.bf16.msra.mxu0 %v394
      %452 = vmatprep.subr.bf16.mxu0 0
      %453 = vmatpush1.bf16.msra.mxu0 %v395
      %454 = vmatprep.subr.bf16.mxu0 0
      %455 = vmatpush1.bf16.msra.mxu0 0
      %456 = vmatprep.subr.bf16.mxu0 0
      %457 = vmatpush1.bf16.msra.mxu0 0
      %458 = vmatprep.subr.bf16.mxu0 0
      %459 = vmatpush1.bf16.msra.mxu0 0
      %460 = vmatprep.subr.bf16.mxu0 0
      %461 = vmatpush1.bf16.msra.mxu0 0
      %462 = vmatprep.subr.bf16.mxu0 0
      %463 = vmatpush1.bf16.msra.mxu0 0
      %464 = vmatprep.subr.bf16.mxu0 0
      %465 = vmatpush1.bf16.msra.mxu0 0
      %466 = vmatprep.subr.bf16.mxu0 0
      %467 = vmatpush1.bf16.msra.mxu0 0
      %468 = vmatprep.subr.bf16.mxu0 0
      %469 = vmatpush1.bf16.msra.mxu0 0
      %470 = vmatprep.subr.bf16.mxu0 0
      %471 = vmatpush1.bf16.msra.mxu0 0
      %472 = vmatprep.subr.bf16.mxu0 0
      %473 = vmatpush1.bf16.msra.mxu0 0
      %474 = vmatprep.subr.bf16.mxu0 0
      %475 = vmatpush1.bf16.msra.mxu0 0
      %476 = vmatprep.subr.bf16.mxu0 0
      %477 = vmatpush1.bf16.msra.mxu0 0
      %478 = vmatprep.subr.bf16.mxu0 0
      %479 = vmatpush1.bf16.msra.mxu0 0
      %480 = vmatprep.mubr.bf16.mxu0 0
      %481 = vmatmul.mubr.bf16.gmra.mrb[0].mxu0 %v401
      %v482 = vpop.f32.mrb[0].mxu0
      %v483 = vadd.f32 0.0, %v482
      %v484 = vpop.f32.mrb[0].mxu0
      %v485 = vpop.f32.mrb[0].mxu0
      %v486 = vadd.f32 0.0, %v485
      %v487 = vpop.f32.mrb[0].mxu0
      %488 = vmatprep.mubr.bf16.mxu0 0
      %489 = vmatmul.mubr.bf16.gmra.mrb[0].mxu0 %v404
      %v490 = vpop.f32.mrb[0].mxu0
      %v491 = vadd.f32 0.0, %v490
      %v492 = vpop.f32.mrb[0].mxu0
      %v493 = vpop.f32.mrb[0].mxu0
      %v494 = vadd.f32 0.0, %v493
      %v495 = vpop.f32.mrb[0].mxu0
      %496 = vmatprep.mubr.bf16.mxu0 0
      %497 = vmatmul.mubr.bf16.gmra.mrb[0].mxu0 %v407
      %v498 = vpop.f32.mrb[0].mxu0
      %v499 = vadd.f32 0.0, %v498
      %v500 = vpop.f32.mrb[0].mxu0
      %v501 = vpop.f32.mrb[0].mxu0
      %v502 = vadd.f32 0.0, %v501
      %v503 = vpop.f32.mrb[0].mxu0
      %504 = vmatprep.mubr.bf16.mxu0 0
      %505 = vmatmul.mubr.bf16.gmra.mrb[0].mxu0 %v410
      %v506 = vpop.f32.mrb[0].mxu0
      %v507 = vadd.f32 0.0, %v506
      %v508 = vpop.f32.mrb[0].mxu0
      %v509 = vpop.f32.mrb[0].mxu0
      %v510 = vadd.f32 0.0, %v509
      %v511 = vpop.f32.mrb[0].mxu0
      %512 = vmatprep.mubr.bf16.mxu0 0
      %513 = vmatmul.mubr.bf16.gmra.mrb[0].mxu0 %v413
      %v514 = vpop.f32.mrb[0].mxu0
      %v515 = vadd.f32 0.0, %v514
      %v516 = vpop.f32.mrb[0].mxu0
      %v517 = vpop.f32.mrb[0].mxu0
      %v518 = vadd.f32 0.0, %v517
      %v519 = vpop.f32.mrb[0].mxu0
      %520 = vmatprep.mubr.bf16.mxu0 0
      %521 = vmatmul.mubr.bf16.gmra.mrb[0].mxu0 %v416
      %v522 = vpop.f32.mrb[0].mxu0
      %v523 = vadd.f32 0.0, %v522
      %v524 = vpop.f32.mrb[0].mxu0
      %v525 = vpop.f32.mrb[0].mxu0
      %v526 = vadd.f32 0.0, %v525
      %v527 = vpop.f32.mrb[0].mxu0
      %528 = vmatprep.mubr.bf16.mxu0 0
      %529 = vmatmul.mubr.bf16.gmra.mrb[0].mxu0 %v419
      %v530 = vpop.f32.mrb[0].mxu0
      %v531 = vadd.f32 0.0, %v530
      %v532 = vpop.f32.mrb[0].mxu0
      %v533 = vpop.f32.mrb[0].mxu0
      %v534 = vadd.f32 0.0, %v533
      %v535 = vpop.f32.mrb[0].mxu0
      %536 = vmatprep.mubr.bf16.mxu0 0
      %537 = vmatmul.mubr.bf16.gmra.mrb[0].mxu0 %v422
      %v538 = vpop.f32.mrb[0].mxu0
      %v539 = vadd.f32 0.0, %v538
      %v540 = vpop.f32.mrb[0].mxu0
      %v541 = vpop.f32.mrb[0].mxu0
      %v542 = vadd.f32 0.0, %v541
      %v543 = vpop.f32.mrb[0].mxu0
      %544 = vmatprep.mubr.bf16.mxu0 0
      %545 = vmatmul.mubr.bf16.gmra.mrb[0].mxu0 %v425
      %v546 = vpop.f32.mrb[0].mxu0
      %v547 = vadd.f32 0.0, %v546
      %v548 = vpop.f32.mrb[0].mxu0
      %v549 = vpop.f32.mrb[0].mxu0
      %v550 = vadd.f32 0.0, %v549
      %v551 = vpop.f32.mrb[0].mxu0
      %552 = vmatprep.mubr.bf16.mxu0 0
      %553 = vmatmul.mubr.bf16.gmra.mrb[0].mxu0 %v428
      %v554 = vpop.f32.mrb[0].mxu0
      %v555 = vadd.f32 0.0, %v554
      %v556 = vpop.f32.mrb[0].mxu0
      %v557 = vpop.f32.mrb[0].mxu0
      %v558 = vadd.f32 0.0, %v557
      %v559 = vpop.f32.mrb[0].mxu0
      %560 = vmatprep.mubr.bf16.mxu0 0
      %561 = vmatmul.mubr.bf16.gmra.mrb[0].mxu0 %v431
      %v562 = vpop.f32.mrb[0].mxu0
      %v563 = vadd.f32 0.0, %v562
      %v564 = vpop.f32.mrb[0].mxu0
      %v565 = vpop.f32.mrb[0].mxu0
      %v566 = vadd.f32 0.0, %v565
      %v567 = vpop.f32.mrb[0].mxu0
      %568 = vmatprep.mubr.bf16.mxu0 0
      %569 = vmatmul.mubr.bf16.gmra.mrb[0].mxu0 %v434
      %v570 = vpop.f32.mrb[0].mxu0
      %v571 = vadd.f32 0.0, %v570
      %v572 = vpop.f32.mrb[0].mxu0
      %v573 = vpop.f32.mrb[0].mxu0
      %v574 = vadd.f32 0.0, %v573
      %v575 = vpop.f32.mrb[0].mxu0
      %576 = vmatprep.mubr.bf16.mxu0 0
      %577 = vmatmul.mubr.bf16.gmra.mrb[0].mxu0 %v437
      %v578 = vpop.f32.mrb[0].mxu0
      %v579 = vadd.f32 0.0, %v578
      %v580 = vpop.f32.mrb[0].mxu0
      %v581 = vpop.f32.mrb[0].mxu0
      %v582 = vadd.f32 0.0, %v581
      %v583 = vpop.f32.mrb[0].mxu0
      %584 = vmatprep.mubr.bf16.mxu0 0
      %585 = vmatmul.mubr.bf16.gmra.mrb[0].mxu0 %v440
      %v586 = vpop.f32.mrb[0].mxu0
      %v587 = vadd.f32 0.0, %v586
      %v588 = vpop.f32.mrb[0].mxu0
      %v589 = vpop.f32.mrb[0].mxu0
      %v590 = vadd.f32 0.0, %v589
      %v591 = vpop.f32.mrb[0].mxu0
      %592 = vmatprep.mubr.bf16.mxu0 0
      %593 = vmatmul.mubr.bf16.gmra.mrb[0].mxu0 %v443
      %v594 = vpop.f32.mrb[0].mxu0
      %v595 = vadd.f32 0.0, %v594
      %v596 = vpop.f32.mrb[0].mxu0
      %v597 = vpop.f32.mrb[0].mxu0
      %v598 = vadd.f32 0.0, %v597
      %v599 = vpop.f32.mrb[0].mxu0
      %600 = vmatprep.mubr.bf16.mxu0 0
      %601 = vmatmul.mubr.bf16.gmra.mrb[0].mxu0 %v446
      %v602 = vpop.f32.mrb[0].mxu0
      %v603 = vadd.f32 0.0, %v602
      %v604 = vpop.f32.mrb[0].mxu0
      %v605 = vpop.f32.mrb[0].mxu0
      %v606 = vadd.f32 0.0, %v605
      %v607 = vpop.f32.mrb[0].mxu0
      %608 = vdwg.mxu0
      %v641 = vunpack.c.l.b16 %v223
      %v642 = vunpack.c.l.b16 %v224
      %v643 = vunpack.c.l.b16 %v225
      %v644 = vunpack.c.l.b16 %v226
      %v645 = vunpack.c.l.b16 %v227
      %v646 = vunpack.c.l.b16 %v228
      %v647 = vunpack.c.l.b16 %v229
      %v648 = vunpack.c.l.b16 %v230
      %v649 = vunpack.c.l.b16 %v231
      %v650 = vunpack.c.l.b16 %v232
      %v651 = vunpack.c.l.b16 %v233
      %v652 = vunpack.c.l.b16 %v234
      %v653 = vunpack.c.l.b16 %v235
      %v654 = vunpack.c.l.b16 %v236
      %v655 = vunpack.c.l.b16 %v237
      %v656 = vunpack.c.l.b16 %v238
      %v657 = vunpack.c.l.b16 %v239
      %v658 = vunpack.c.l.b16 %v240
      %v659 = vunpack.c.l.b16 %v241
      %v660 = vunpack.c.l.b16 %v242
      %v661 = vunpack.c.l.b16 %v243
      %v662 = vunpack.c.l.b16 %v244
      %v663 = vunpack.c.l.b16 %v245
      %v664 = vunpack.c.l.b16 %v246
      %v665 = vunpack.c.l.b16 %v247
      %v666 = vunpack.c.l.b16 %v248
      %v667 = vunpack.c.l.b16 %v249
      %v668 = vunpack.c.l.b16 %v250
      %v669 = vunpack.c.l.b16 %v251
      %v670 = vunpack.c.l.b16 %v252
      %v671 = vunpack.c.l.b16 %v253
      %v672 = vunpack.c.l.b16 %v254
      %v673 = vpack.c.b16 %v642, %v641
      %v674 = vpack.c.b16 %v644, %v643
      %v675 = vpack.c.b16 %v646, %v645
      %v676 = vpack.c.b16 %v648, %v647
      %v677 = vpack.c.b16 %v650, %v649
      %v678 = vpack.c.b16 %v652, %v651
      %v679 = vpack.c.b16 %v654, %v653
      %v680 = vpack.c.b16 %v656, %v655
      %v681 = vpack.c.b16 %v658, %v657
      %v682 = vpack.c.b16 %v660, %v659
      %v683 = vpack.c.b16 %v662, %v661
      %v684 = vpack.c.b16 %v664, %v663
      %v685 = vpack.c.b16 %v666, %v665
      %v686 = vpack.c.b16 %v668, %v667
      %v687 = vpack.c.b16 %v670, %v669
      %v688 = vpack.c.b16 %v672, %v671
      %v695 = vunpack.c.l.b16 %v255
      %v696 = vunpack.c.l.b16 %v256
      %v697 = vunpack.c.l.b16 %v257
      %v698 = vunpack.c.l.b16 %v258
      %v699 = vunpack.c.l.b16 %v259
      %v700 = vunpack.c.l.b16 %v260
      %v701 = vpack.c.b16 %v696, %v695
      %v702 = vpack.c.b16 %v698, %v697
      %v703 = vpack.c.b16 %v700, %v699
      %v708 = vsel %vm399, %v673, 0
      %v711 = vsel %vm399, %v674, 0
      %v714 = vsel %vm399, %v675, 0
      %v717 = vsel %vm399, %v676, 0
      %v720 = vsel %vm399, %v677, 0
      %v723 = vsel %vm399, %v678, 0
      %v726 = vsel %vm399, %v679, 0
      %v729 = vsel %vm399, %v680, 0
      %v732 = vsel %vm399, %v681, 0
      %v735 = vsel %vm399, %v682, 0
      %v738 = vsel %vm399, %v683, 0
      %v741 = vsel %vm399, %v684, 0
      %v744 = vsel %vm399, %v685, 0
      %v747 = vsel %vm399, %v686, 0
      %v750 = vsel %vm399, %v687, 0
      %v753 = vsel %vm399, %v688, 0
      %755 = vmatprep.subr.bf16.mxu0 0
      %756 = vmatpush1.bf16.msra.mxu0 %v701
      %757 = vmatprep.subr.bf16.mxu0 0
      %758 = vmatpush1.bf16.msra.mxu0 %v702
      %759 = vmatprep.subr.bf16.mxu0 0
      %760 = vmatpush1.bf16.msra.mxu0 %v703
      %761 = vmatprep.subr.bf16.mxu0 0
      %762 = vmatpush1.bf16.msra.mxu0 0
      %763 = vmatprep.subr.bf16.mxu0 0
      %764 = vmatpush1.bf16.msra.mxu0 0
      %765 = vmatprep.subr.bf16.mxu0 0
      %766 = vmatpush1.bf16.msra.mxu0 0
      %767 = vmatprep.subr.bf16.mxu0 0
      %768 = vmatpush1.bf16.msra.mxu0 0
      %769 = vmatprep.subr.bf16.mxu0 0
      %770 = vmatpush1.bf16.msra.mxu0 0
      %771 = vmatprep.subr.bf16.mxu0 0
      %772 = vmatpush1.bf16.msra.mxu0 0
      %773 = vmatprep.subr.bf16.mxu0 0
      %774 = vmatpush1.bf16.msra.mxu0 0
      %775 = vmatprep.subr.bf16.mxu0 0
      %776 = vmatpush1.bf16.msra.mxu0 0
      %777 = vmatprep.subr.bf16.mxu0 0
      %778 = vmatpush1.bf16.msra.mxu0 0
      %779 = vmatprep.subr.bf16.mxu0 0
      %780 = vmatpush1.bf16.msra.mxu0 0
      %781 = vmatprep.subr.bf16.mxu0 0
      %782 = vmatpush1.bf16.msra.mxu0 0
      %783 = vmatprep.subr.bf16.mxu0 0
      %784 = vmatpush1.bf16.msra.mxu0 0
      %785 = vmatprep.subr.bf16.mxu0 0
      %786 = vmatpush1.bf16.msra.mxu0 0
      %787 = vmatprep.mubr.bf16.mxu0 0
      %788 = vmatmul.mubr.bf16.gmra.mrb[0].mxu0 %v708
      %v789 = vpop.f32.mrb[0].mxu0
      %v790 = vadd.f32 %v483, %v789
      %v791 = vpop.f32.mrb[0].mxu0
      %v792 = vpop.f32.mrb[0].mxu0
      %v793 = vadd.f32 %v486, %v792
      %v794 = vpop.f32.mrb[0].mxu0
      %795 = vmatprep.mubr.bf16.mxu0 0
      %796 = vmatmul.mubr.bf16.gmra.mrb[0].mxu0 %v711
      %v797 = vpop.f32.mrb[0].mxu0
      %v798 = vadd.f32 %v491, %v797
      %v799 = vpop.f32.mrb[0].mxu0
      %v800 = vpop.f32.mrb[0].mxu0
      %v801 = vadd.f32 %v494, %v800
      %v802 = vpop.f32.mrb[0].mxu0
      %803 = vmatprep.mubr.bf16.mxu0 0
      %804 = vmatmul.mubr.bf16.gmra.mrb[0].mxu0 %v714
      %v805 = vpop.f32.mrb[0].mxu0
      %v806 = vadd.f32 %v499, %v805
      %v807 = vpop.f32.mrb[0].mxu0
      %v808 = vpop.f32.mrb[0].mxu0
      %v809 = vadd.f32 %v502, %v808
      %v810 = vpop.f32.mrb[0].mxu0
      %811 = vmatprep.mubr.bf16.mxu0 0
      %812 = vmatmul.mubr.bf16.gmra.mrb[0].mxu0 %v717
      %v813 = vpop.f32.mrb[0].mxu0
      %v814 = vadd.f32 %v507, %v813
      %v815 = vpop.f32.mrb[0].mxu0
      %v816 = vpop.f32.mrb[0].mxu0
      %v817 = vadd.f32 %v510, %v816
      %v818 = vpop.f32.mrb[0].mxu0
      %819 = vmatprep.mubr.bf16.mxu0 0
      %820 = vmatmul.mubr.bf16.gmra.mrb[0].mxu0 %v720
      %v821 = vpop.f32.mrb[0].mxu0
      %v822 = vadd.f32 %v515, %v821
      %v823 = vpop.f32.mrb[0].mxu0
      %v824 = vpop.f32.mrb[0].mxu0
      %v825 = vadd.f32 %v518, %v824
      %v826 = vpop.f32.mrb[0].mxu0
      %827 = vmatprep.mubr.bf16.mxu0 0
      %828 = vmatmul.mubr.bf16.gmra.mrb[0].mxu0 %v723
      %v829 = vpop.f32.mrb[0].mxu0
      %v830 = vadd.f32 %v523, %v829
      %v831 = vpop.f32.mrb[0].mxu0
      %v832 = vpop.f32.mrb[0].mxu0
      %v833 = vadd.f32 %v526, %v832
      %v834 = vpop.f32.mrb[0].mxu0
      %835 = vmatprep.mubr.bf16.mxu0 0
      %836 = vmatmul.mubr.bf16.gmra.mrb[0].mxu0 %v726
      %v837 = vpop.f32.mrb[0].mxu0
      %v838 = vadd.f32 %v531, %v837
      %v839 = vpop.f32.mrb[0].mxu0
      %v840 = vpop.f32.mrb[0].mxu0
      %v841 = vadd.f32 %v534, %v840
      %v842 = vpop.f32.mrb[0].mxu0
      %843 = vmatprep.mubr.bf16.mxu0 0
      %844 = vmatmul.mubr.bf16.gmra.mrb[0].mxu0 %v729
      %v845 = vpop.f32.mrb[0].mxu0
      %v846 = vadd.f32 %v539, %v845
      %v847 = vpop.f32.mrb[0].mxu0
      %v848 = vpop.f32.mrb[0].mxu0
      %v849 = vadd.f32 %v542, %v848
      %v850 = vpop.f32.mrb[0].mxu0
      %851 = vmatprep.mubr.bf16.mxu0 0
      %852 = vmatmul.mubr.bf16.gmra.mrb[0].mxu0 %v732
      %v853 = vpop.f32.mrb[0].mxu0
      %v854 = vadd.f32 %v547, %v853
      %v855 = vpop.f32.mrb[0].mxu0
      %v856 = vpop.f32.mrb[0].mxu0
      %v857 = vadd.f32 %v550, %v856
      %v858 = vpop.f32.mrb[0].mxu0
      %859 = vmatprep.mubr.bf16.mxu0 0
      %860 = vmatmul.mubr.bf16.gmra.mrb[0].mxu0 %v735
      %v861 = vpop.f32.mrb[0].mxu0
      %v862 = vadd.f32 %v555, %v861
      %v863 = vpop.f32.mrb[0].mxu0
      %v864 = vpop.f32.mrb[0].mxu0
      %v865 = vadd.f32 %v558, %v864
      %v866 = vpop.f32.mrb[0].mxu0
      %867 = vmatprep.mubr.bf16.mxu0 0
      %868 = vmatmul.mubr.bf16.gmra.mrb[0].mxu0 %v738
      %v869 = vpop.f32.mrb[0].mxu0
      %v870 = vadd.f32 %v563, %v869
      %v871 = vpop.f32.mrb[0].mxu0
      %v872 = vpop.f32.mrb[0].mxu0
      %v873 = vadd.f32 %v566, %v872
      %v874 = vpop.f32.mrb[0].mxu0
      %875 = vmatprep.mubr.bf16.mxu0 0
      %876 = vmatmul.mubr.bf16.gmra.mrb[0].mxu0 %v741
      %v877 = vpop.f32.mrb[0].mxu0
      %v878 = vadd.f32 %v571, %v877
      %v879 = vpop.f32.mrb[0].mxu0
      %v880 = vpop.f32.mrb[0].mxu0
      %v881 = vadd.f32 %v574, %v880
      %v882 = vpop.f32.mrb[0].mxu0
      %883 = vmatprep.mubr.bf16.mxu0 0
      %884 = vmatmul.mubr.bf16.gmra.mrb[0].mxu0 %v744
      %v885 = vpop.f32.mrb[0].mxu0
      %v886 = vadd.f32 %v579, %v885
      %v887 = vpop.f32.mrb[0].mxu0
      %v888 = vpop.f32.mrb[0].mxu0
      %v889 = vadd.f32 %v582, %v888
      %v890 = vpop.f32.mrb[0].mxu0
      %891 = vmatprep.mubr.bf16.mxu0 0
      %892 = vmatmul.mubr.bf16.gmra.mrb[0].mxu0 %v747
      %v893 = vpop.f32.mrb[0].mxu0
      %v894 = vadd.f32 %v587, %v893
      %v895 = vpop.f32.mrb[0].mxu0
      %v896 = vpop.f32.mrb[0].mxu0
      %v897 = vadd.f32 %v590, %v896
      %v898 = vpop.f32.mrb[0].mxu0
      %899 = vmatprep.mubr.bf16.mxu0 0
      %900 = vmatmul.mubr.bf16.gmra.mrb[0].mxu0 %v750
      %v901 = vpop.f32.mrb[0].mxu0
      %v902 = vadd.f32 %v595, %v901
      %v903 = vpop.f32.mrb[0].mxu0
      %v904 = vpop.f32.mrb[0].mxu0
      %v905 = vadd.f32 %v598, %v904
      %v906 = vpop.f32.mrb[0].mxu0
      %907 = vmatprep.mubr.bf16.mxu0 0
      %908 = vmatmul.mubr.bf16.gmra.mrb[0].mxu0 %v753
      %v909 = vpop.f32.mrb[0].mxu0
      %v910 = vadd.f32 %v603, %v909
      %v911 = vpop.f32.mrb[0].mxu0
      %v912 = vpop.f32.mrb[0].mxu0
      %v913 = vadd.f32 %v606, %v912
      %v914 = vpop.f32.mrb[0].mxu0
      %915 = vdwg.mxu0
      %s916 = scalar_lea.vmem %s206, 16
      %v917 = vld [vmem:[%s916] sm:$0xf]
      %v918 = vld [vmem:[%s916 + $0x4] sm:$0xf]
      %v919 = vld [vmem:[%s916 + $0x8] sm:$0xf]
      %v920 = vld [vmem:[%s916 + $0xc] sm:$0xf]
      %v921 = vld [vmem:[%s916 + $0x10] sm:$0xf]
      %v922 = vld [vmem:[%s916 + $0x14] sm:$0xf]
      %v923 = vld [vmem:[%s916 + $0x18] sm:$0xf]
      %v924 = vld [vmem:[%s916 + $0x1c] sm:$0xf]
      %v925 = vld [vmem:[%s916 + $0x20] sm:$0xf]
      %v926 = vld [vmem:[%s916 + $0x24] sm:$0xf]
      %v927 = vld [vmem:[%s916 + $0x28] sm:$0xf]
      %v928 = vld [vmem:[%s916 + $0x2c] sm:$0xf]
      %v929 = vld [vmem:[%s916 + $0x30] sm:$0xf]
      %v930 = vld [vmem:[%s916 + $0x34] sm:$0xf]
      %v931 = vld [vmem:[%s916 + $0x38] sm:$0xf]
      %v932 = vld [vmem:[%s916 + $0x3c] sm:$0xf]
      %v933 = vld [vmem:[%s916 + $0x40] sm:$0xf]
      %v934 = vld [vmem:[%s916 + $0x44] sm:$0xf]
      %v935 = vld [vmem:[%s916 + $0x48] sm:$0xf]
      %v936 = vld [vmem:[%s916 + $0x4c] sm:$0xf]
      %v937 = vld [vmem:[%s916 + $0x50] sm:$0xf]
      %v938 = vld [vmem:[%s916 + $0x54] sm:$0xf]
      %v939 = vld [vmem:[%s916 + $0x58] sm:$0xf]
      %v940 = vld [vmem:[%s916 + $0x5c] sm:$0xf]
      %v941 = vld [vmem:[%s916 + $0x60] sm:$0xf]
      %v942 = vld [vmem:[%s916 + $0x64] sm:$0xf]
      %v943 = vld [vmem:[%s916 + $0x68] sm:$0xf]
      %v944 = vld [vmem:[%s916 + $0x6c] sm:$0xf]
      %v945 = vld [vmem:[%s916 + $0x70] sm:$0xf]
      %v946 = vld [vmem:[%s916 + $0x74] sm:$0xf]
      %v947 = vld [vmem:[%s916 + $0x78] sm:$0xf]
      %v948 = vld [vmem:[%s916 + $0x7c] sm:$0xf]
      %s949 = scalar_lea.vmem %s210, 48
      %v950 = vld [vmem:[%s949] sm:$0xf]
      %v951 = vld [vmem:[%s949 + $0x4] sm:$0xf]
      %v952 = vld [vmem:[%s949 + $0x8] sm:$0xf]
      %v953 = vld [vmem:[%s949 + $0xc] sm:$0xf]
      %v954 = vld [vmem:[%s949 + $0x10] sm:$0xf]
      %v955 = vld [vmem:[%s949 + $0x14] sm:$0xf]
      %v988 = vunpack.c.l.b16 %v917
      %v989 = vunpack.c.l.b16 %v918
      %v990 = vunpack.c.l.b16 %v919
      %v991 = vunpack.c.l.b16 %v920
      %v992 = vunpack.c.l.b16 %v921
      %v993 = vunpack.c.l.b16 %v922
      %v994 = vunpack.c.l.b16 %v923
      %v995 = vunpack.c.l.b16 %v924
      %v996 = vunpack.c.l.b16 %v925
      %v997 = vunpack.c.l.b16 %v926
      %v998 = vunpack.c.l.b16 %v927
      %v999 = vunpack.c.l.b16 %v928
      %v1000 = vunpack.c.l.b16 %v929
      %v1001 = vunpack.c.l.b16 %v930
      %v1002 = vunpack.c.l.b16 %v931
      %v1003 = vunpack.c.l.b16 %v932
      %v1004 = vunpack.c.l.b16 %v933
      %v1005 = vunpack.c.l.b16 %v934
      %v1006 = vunpack.c.l.b16 %v935
      %v1007 = vunpack.c.l.b16 %v936
      %v1008 = vunpack.c.l.b16 %v937
      %v1009 = vunpack.c.l.b16 %v938
      %v1010 = vunpack.c.l.b16 %v939
      %v1011 = vunpack.c.l.b16 %v940
      %v1012 = vunpack.c.l.b16 %v941
      %v1013 = vunpack.c.l.b16 %v942
      %v1014 = vunpack.c.l.b16 %v943
      %v1015 = vunpack.c.l.b16 %v944
      %v1016 = vunpack.c.l.b16 %v945
      %v1017 = vunpack.c.l.b16 %v946
      %v1018 = vunpack.c.l.b16 %v947
      %v1019 = vunpack.c.l.b16 %v948
      %v1020 = vpack.c.b16 %v989, %v988
      %v1021 = vpack.c.b16 %v991, %v990
      %v1022 = vpack.c.b16 %v993, %v992
      %v1023 = vpack.c.b16 %v995, %v994
      %v1024 = vpack.c.b16 %v997, %v996
      %v1025 = vpack.c.b16 %v999, %v998
      %v1026 = vpack.c.b16 %v1001, %v1000
      %v1027 = vpack.c.b16 %v1003, %v1002
      %v1028 = vpack.c.b16 %v1005, %v1004
      %v1029 = vpack.c.b16 %v1007, %v1006
      %v1030 = vpack.c.b16 %v1009, %v1008
      %v1031 = vpack.c.b16 %v1011, %v1010
      %v1032 = vpack.c.b16 %v1013, %v1012
      %v1033 = vpack.c.b16 %v1015, %v1014
      %v1034 = vpack.c.b16 %v1017, %v1016
      %v1035 = vpack.c.b16 %v1019, %v1018
      %v1042 = vunpack.c.l.b16 %v950
      %v1043 = vunpack.c.l.b16 %v951
      %v1044 = vunpack.c.l.b16 %v952
      %v1045 = vunpack.c.l.b16 %v953
      %v1046 = vunpack.c.l.b16 %v954
      %v1047 = vunpack.c.l.b16 %v955
      %v1048 = vpack.c.b16 %v1043, %v1042
      %v1049 = vpack.c.b16 %v1045, %v1044
      %v1050 = vpack.c.b16 %v1047, %v1046
      %v1055 = vsel %vm399, %v1020, 0
      %v1058 = vsel %vm399, %v1021, 0
      %v1061 = vsel %vm399, %v1022, 0
      %v1064 = vsel %vm399, %v1023, 0
      %v1067 = vsel %vm399, %v1024, 0
      %v1070 = vsel %vm399, %v1025, 0
      %v1073 = vsel %vm399, %v1026, 0
      %v1076 = vsel %vm399, %v1027, 0
      %v1079 = vsel %vm399, %v1028, 0
      %v1082 = vsel %vm399, %v1029, 0
      %v1085 = vsel %vm399, %v1030, 0
      %v1088 = vsel %vm399, %v1031, 0
      %v1091 = vsel %vm399, %v1032, 0
      %v1094 = vsel %vm399, %v1033, 0
      %v1097 = vsel %vm399, %v1034, 0
      %v1100 = vsel %vm399, %v1035, 0
      %1102 = vmatprep.subr.bf16.mxu0 0
      %1103 = vmatpush1.bf16.msra.mxu0 %v1048
      %1104 = vmatprep.subr.bf16.mxu0 0
      %1105 = vmatpush1.bf16.msra.mxu0 %v1049
      %1106 = vmatprep.subr.bf16.mxu0 0
      %1107 = vmatpush1.bf16.msra.mxu0 %v1050
      %1108 = vmatprep.subr.bf16.mxu0 0
      %1109 = vmatpush1.bf16.msra.mxu0 0
      %1110 = vmatprep.subr.bf16.mxu0 0
      %1111 = vmatpush1.bf16.msra.mxu0 0
      %1112 = vmatprep.subr.bf16.mxu0 0
      %1113 = vmatpush1.bf16.msra.mxu0 0
      %1114 = vmatprep.subr.bf16.mxu0 0
      %1115 = vmatpush1.bf16.msra.mxu0 0
      %1116 = vmatprep.subr.bf16.mxu0 0
      %1117 = vmatpush1.bf16.msra.mxu0 0
      %1118 = vmatprep.subr.bf16.mxu0 0
      %1119 = vmatpush1.bf16.msra.mxu0 0
      %1120 = vmatprep.subr.bf16.mxu0 0
      %1121 = vmatpush1.bf16.msra.mxu0 0
      %1122 = vmatprep.subr.bf16.mxu0 0
      %1123 = vmatpush1.bf16.msra.mxu0 0
      %1124 = vmatprep.subr.bf16.mxu0 0
      %1125 = vmatpush1.bf16.msra.mxu0 0
      %1126 = vmatprep.subr.bf16.mxu0 0
      %1127 = vmatpush1.bf16.msra.mxu0 0
      %1128 = vmatprep.subr.bf16.mxu0 0
      %1129 = vmatpush1.bf16.msra.mxu0 0
      %1130 = vmatprep.subr.bf16.mxu0 0
      %1131 = vmatpush1.bf16.msra.mxu0 0
      %1132 = vmatprep.subr.bf16.mxu0 0
      %1133 = vmatpush1.bf16.msra.mxu0 0
      %1134 = vmatprep.mubr.bf16.mxu0 0
      %1135 = vmatmul.mubr.bf16.gmra.mrb[0].mxu0 %v1055
      %v1136 = vpop.f32.mrb[0].mxu0
      %v1137 = vadd.f32 0.0, %v1136
      %v1138 = vpop.f32.mrb[0].mxu0
      %v1139 = vpop.f32.mrb[0].mxu0
      %v1140 = vadd.f32 0.0, %v1139
      %v1141 = vpop.f32.mrb[0].mxu0
      %1142 = vmatprep.mubr.bf16.mxu0 0
      %1143 = vmatmul.mubr.bf16.gmra.mrb[0].mxu0 %v1058
      %v1144 = vpop.f32.mrb[0].mxu0
      %v1145 = vadd.f32 0.0, %v1144
      %v1146 = vpop.f32.mrb[0].mxu0
      %v1147 = vpop.f32.mrb[0].mxu0
      %v1148 = vadd.f32 0.0, %v1147
      %v1149 = vpop.f32.mrb[0].mxu0
      %1150 = vmatprep.mubr.bf16.mxu0 0
      %1151 = vmatmul.mubr.bf16.gmra.mrb[0].mxu0 %v1061
      %v1152 = vpop.f32.mrb[0].mxu0
      %v1153 = vadd.f32 0.0, %v1152
      %v1154 = vpop.f32.mrb[0].mxu0
      %v1155 = vpop.f32.mrb[0].mxu0
      %v1156 = vadd.f32 0.0, %v1155
      %v1157 = vpop.f32.mrb[0].mxu0
      %1158 = vmatprep.mubr.bf16.mxu0 0
      %1159 = vmatmul.mubr.bf16.gmra.mrb[0].mxu0 %v1064
      %v1160 = vpop.f32.mrb[0].mxu0
      %v1161 = vadd.f32 0.0, %v1160
      %v1162 = vpop.f32.mrb[0].mxu0
      %v1163 = vpop.f32.mrb[0].mxu0
      %v1164 = vadd.f32 0.0, %v1163
      %v1165 = vpop.f32.mrb[0].mxu0
      %1166 = vmatprep.mubr.bf16.mxu0 0
      %1167 = vmatmul.mubr.bf16.gmra.mrb[0].mxu0 %v1067
      %v1168 = vpop.f32.mrb[0].mxu0
      %v1169 = vadd.f32 0.0, %v1168
      %v1170 = vpop.f32.mrb[0].mxu0
      %v1171 = vpop.f32.mrb[0].mxu0
      %v1172 = vadd.f32 0.0, %v1171
      %v1173 = vpop.f32.mrb[0].mxu0
      %1174 = vmatprep.mubr.bf16.mxu0 0
      %1175 = vmatmul.mubr.bf16.gmra.mrb[0].mxu0 %v1070
      %v1176 = vpop.f32.mrb[0].mxu0
      %v1177 = vadd.f32 0.0, %v1176
      %v1178 = vpop.f32.mrb[0].mxu0
      %v1179 = vpop.f32.mrb[0].mxu0
      %v1180 = vadd.f32 0.0, %v1179
      %v1181 = vpop.f32.mrb[0].mxu0
      %1182 = vmatprep.mubr.bf16.mxu0 0
      %1183 = vmatmul.mubr.bf16.gmra.mrb[0].mxu0 %v1073
      %v1184 = vpop.f32.mrb[0].mxu0
      %v1185 = vadd.f32 0.0, %v1184
      %v1186 = vpop.f32.mrb[0].mxu0
      %v1187 = vpop.f32.mrb[0].mxu0
      %v1188 = vadd.f32 0.0, %v1187
      %v1189 = vpop.f32.mrb[0].mxu0
      %1190 = vmatprep.mubr.bf16.mxu0 0
      %1191 = vmatmul.mubr.bf16.gmra.mrb[0].mxu0 %v1076
      %v1192 = vpop.f32.mrb[0].mxu0
      %v1193 = vadd.f32 0.0, %v1192
      %v1194 = vpop.f32.mrb[0].mxu0
      %v1195 = vpop.f32.mrb[0].mxu0
      %v1196 = vadd.f32 0.0, %v1195
      %v1197 = vpop.f32.mrb[0].mxu0
      %1198 = vmatprep.mubr.bf16.mxu0 0
      %1199 = vmatmul.mubr.bf16.gmra.mrb[0].mxu0 %v1079
      %v1200 = vpop.f32.mrb[0].mxu0
      %v1201 = vadd.f32 0.0, %v1200
      %v1202 = vpop.f32.mrb[0].mxu0
      %v1203 = vpop.f32.mrb[0].mxu0
      %v1204 = vadd.f32 0.0, %v1203
      %v1205 = vpop.f32.mrb[0].mxu0
      %1206 = vmatprep.mubr.bf16.mxu0 0
      %1207 = vmatmul.mubr.bf16.gmra.mrb[0].mxu0 %v1082
      %v1208 = vpop.f32.mrb[0].mxu0
      %v1209 = vadd.f32 0.0, %v1208
      %v1210 = vpop.f32.mrb[0].mxu0
      %v1211 = vpop.f32.mrb[0].mxu0
      %v1212 = vadd.f32 0.0, %v1211
      %v1213 = vpop.f32.mrb[0].mxu0
      %1214 = vmatprep.mubr.bf16.mxu0 0
      %1215 = vmatmul.mubr.bf16.gmra.mrb[0].mxu0 %v1085
      %v1216 = vpop.f32.mrb[0].mxu0
      %v1217 = vadd.f32 0.0, %v1216
      %v1218 = vpop.f32.mrb[0].mxu0
      %v1219 = vpop.f32.mrb[0].mxu0
      %v1220 = vadd.f32 0.0, %v1219
      %v1221 = vpop.f32.mrb[0].mxu0
      %1222 = vmatprep.mubr.bf16.mxu0 0
      %1223 = vmatmul.mubr.bf16.gmra.mrb[0].mxu0 %v1088
      %v1224 = vpop.f32.mrb[0].mxu0
      %v1225 = vadd.f32 0.0, %v1224
      %v1226 = vpop.f32.mrb[0].mxu0
      %v1227 = vpop.f32.mrb[0].mxu0
      %v1228 = vadd.f32 0.0, %v1227
      %v1229 = vpop.f32.mrb[0].mxu0
      %1230 = vmatprep.mubr.bf16.mxu0 0
      %1231 = vmatmul.mubr.bf16.gmra.mrb[0].mxu0 %v1091
      %v1232 = vpop.f32.mrb[0].mxu0
      %v1233 = vadd.f32 0.0, %v1232
      %v1234 = vpop.f32.mrb[0].mxu0
      %v1235 = vpop.f32.mrb[0].mxu0
      %v1236 = vadd.f32 0.0, %v1235
      %v1237 = vpop.f32.mrb[0].mxu0
      %1238 = vmatprep.mubr.bf16.mxu0 0
      %1239 = vmatmul.mubr.bf16.gmra.mrb[0].mxu0 %v1094
      %v1240 = vpop.f32.mrb[0].mxu0
      %v1241 = vadd.f32 0.0, %v1240
      %v1242 = vpop.f32.mrb[0].mxu0
      %v1243 = vpop.f32.mrb[0].mxu0
      %v1244 = vadd.f32 0.0, %v1243
      %v1245 = vpop.f32.mrb[0].mxu0
      %1246 = vmatprep.mubr.bf16.mxu0 0
      %1247 = vmatmul.mubr.bf16.gmra.mrb[0].mxu0 %v1097
      %v1248 = vpop.f32.mrb[0].mxu0
      %v1249 = vadd.f32 0.0, %v1248
      %v1250 = vpop.f32.mrb[0].mxu0
      %v1251 = vpop.f32.mrb[0].mxu0
      %v1252 = vadd.f32 0.0, %v1251
      %v1253 = vpop.f32.mrb[0].mxu0
      %1254 = vmatprep.mubr.bf16.mxu0 0
      %1255 = vmatmul.mubr.bf16.gmra.mrb[0].mxu0 %v1100
      %v1256 = vpop.f32.mrb[0].mxu0
      %v1257 = vadd.f32 0.0, %v1256
      %v1258 = vpop.f32.mrb[0].mxu0
      %v1259 = vpop.f32.mrb[0].mxu0
      %v1260 = vadd.f32 0.0, %v1259
      %v1261 = vpop.f32.mrb[0].mxu0
      %1262 = vdwg.mxu0
      %v1263 = vadd.f32 %v790, %v1137
      %v1264 = vadd.f32 %v793, %v1140
      %v1265 = vadd.f32 %v798, %v1145
      %v1266 = vadd.f32 %v801, %v1148
      %v1267 = vadd.f32 %v806, %v1153
      %v1268 = vadd.f32 %v809, %v1156
      %v1269 = vadd.f32 %v814, %v1161
      %v1270 = vadd.f32 %v817, %v1164
      %v1271 = vadd.f32 %v822, %v1169
      %v1272 = vadd.f32 %v825, %v1172
      %v1273 = vadd.f32 %v830, %v1177
      %v1274 = vadd.f32 %v833, %v1180
      %v1275 = vadd.f32 %v838, %v1185
      %v1276 = vadd.f32 %v841, %v1188
      %v1277 = vadd.f32 %v846, %v1193
      %v1278 = vadd.f32 %v849, %v1196
      %v1279 = vadd.f32 %v854, %v1201
      %v1280 = vadd.f32 %v857, %v1204
      %v1281 = vadd.f32 %v862, %v1209
      %v1282 = vadd.f32 %v865, %v1212
      %v1283 = vadd.f32 %v870, %v1217
      %v1284 = vadd.f32 %v873, %v1220
      %v1285 = vadd.f32 %v878, %v1225
      %v1286 = vadd.f32 %v881, %v1228
      %v1287 = vadd.f32 %v886, %v1233
      %v1288 = vadd.f32 %v889, %v1236
      %v1289 = vadd.f32 %v894, %v1241
      %v1290 = vadd.f32 %v897, %v1244
      %v1291 = vadd.f32 %v902, %v1249
      %v1292 = vadd.f32 %v905, %v1252
      %v1293 = vadd.f32 %v910, %v1257
      %v1294 = vadd.f32 %v913, %v1260
      %v1295 = vld [vmem:[%s213] sm:$0x1]
      %v1297 = vlaneseq
      %v1298 = vshrl.u32 %v1297, 7
      %v1299 = vsub.s32 0, %v1298
      %v1300 = vrot.slane %v1295, %v1299
      %v1302 = vadd.f32 %v1263, %v1300
      %v1303 = vadd.f32 %v1264, %v1300
      %v1304 = vadd.f32 %v1265, %v1300
      %v1305 = vadd.f32 %v1266, %v1300
      %v1306 = vadd.f32 %v1267, %v1300
      %v1307 = vadd.f32 %v1268, %v1300
      %v1308 = vadd.f32 %v1269, %v1300
      %v1309 = vadd.f32 %v1270, %v1300
      %v1310 = vadd.f32 %v1271, %v1300
      %v1311 = vadd.f32 %v1272, %v1300
      %v1312 = vadd.f32 %v1273, %v1300
      %v1313 = vadd.f32 %v1274, %v1300
      %v1314 = vadd.f32 %v1275, %v1300
      %v1315 = vadd.f32 %v1276, %v1300
      %v1316 = vadd.f32 %v1277, %v1300
      %v1317 = vadd.f32 %v1278, %v1300
      %v1318 = vadd.f32 %v1279, %v1300
      %v1319 = vadd.f32 %v1280, %v1300
      %v1320 = vadd.f32 %v1281, %v1300
      %v1321 = vadd.f32 %v1282, %v1300
      %v1322 = vadd.f32 %v1283, %v1300
      %v1323 = vadd.f32 %v1284, %v1300
      %v1324 = vadd.f32 %v1285, %v1300
      %v1325 = vadd.f32 %v1286, %v1300
      %v1326 = vadd.f32 %v1287, %v1300
      %v1327 = vadd.f32 %v1288, %v1300
      %v1328 = vadd.f32 %v1289, %v1300
      %v1329 = vadd.f32 %v1290, %v1300
      %v1330 = vadd.f32 %v1291, %v1300
      %v1331 = vadd.f32 %v1292, %v1300
      %v1332 = vadd.f32 %v1293, %v1300
      %v1333 = vadd.f32 %v1294, %v1300
      %v1334 = vmax.f32 %v1302, 0.0
      %v1335 = vmax.f32 %v1303, 0.0
      %v1336 = vmax.f32 %v1304, 0.0
      %v1337 = vmax.f32 %v1305, 0.0
      %v1338 = vmax.f32 %v1306, 0.0
      %v1339 = vmax.f32 %v1307, 0.0
      %v1340 = vmax.f32 %v1308, 0.0
      %v1341 = vmax.f32 %v1309, 0.0
      %v1342 = vmax.f32 %v1310, 0.0
      %v1343 = vmax.f32 %v1311, 0.0
      %v1344 = vmax.f32 %v1312, 0.0
      %v1345 = vmax.f32 %v1313, 0.0
      %v1346 = vmax.f32 %v1314, 0.0
      %v1347 = vmax.f32 %v1315, 0.0
      %v1348 = vmax.f32 %v1316, 0.0
      %v1349 = vmax.f32 %v1317, 0.0
      %v1350 = vmax.f32 %v1318, 0.0
      %v1351 = vmax.f32 %v1319, 0.0
      %v1352 = vmax.f32 %v1320, 0.0
      %v1353 = vmax.f32 %v1321, 0.0
      %v1354 = vmax.f32 %v1322, 0.0
      %v1355 = vmax.f32 %v1323, 0.0
      %v1356 = vmax.f32 %v1324, 0.0
      %v1357 = vmax.f32 %v1325, 0.0
      %v1358 = vmax.f32 %v1326, 0.0
      %v1359 = vmax.f32 %v1327, 0.0
      %v1360 = vmax.f32 %v1328, 0.0
      %v1361 = vmax.f32 %v1329, 0.0
      %v1362 = vmax.f32 %v1330, 0.0
      %v1363 = vmax.f32 %v1331, 0.0
      %v1364 = vmax.f32 %v1332, 0.0
      %v1365 = vmax.f32 %v1333, 0.0
      %v1366 = vpack.c.bf16 %v1335, %v1334
      %v1367 = vpack.c.bf16 %v1337, %v1336
      %v1368 = vpack.c.bf16 %v1339, %v1338
      %v1369 = vpack.c.bf16 %v1341, %v1340
      %v1370 = vpack.c.bf16 %v1343, %v1342
      %v1371 = vpack.c.bf16 %v1345, %v1344
      %v1372 = vpack.c.bf16 %v1347, %v1346
      %v1373 = vpack.c.bf16 %v1349, %v1348
      %v1374 = vpack.c.bf16 %v1351, %v1350
      %v1375 = vpack.c.bf16 %v1353, %v1352
      %v1376 = vpack.c.bf16 %v1355, %v1354
      %v1377 = vpack.c.bf16 %v1357, %v1356
      %v1378 = vpack.c.bf16 %v1359, %v1358
      %v1379 = vpack.c.bf16 %v1361, %v1360
      %v1380 = vpack.c.bf16 %v1363, %v1362
      %v1381 = vpack.c.bf16 %v1365, %v1364
      %v1398 = vunpack.c.l.b16 %v1366
      %v1399 = vunpack.c.h.b16 %v1366
      %v1400 = vunpack.c.l.b16 %v1367
      %v1401 = vunpack.c.h.b16 %v1367
      %v1402 = vunpack.c.l.b16 %v1368
      %v1403 = vunpack.c.h.b16 %v1368
      %v1404 = vunpack.c.l.b16 %v1369
      %v1405 = vunpack.c.h.b16 %v1369
      %v1406 = vunpack.c.l.b16 %v1370
      %v1407 = vunpack.c.h.b16 %v1370
      %v1408 = vunpack.c.l.b16 %v1371
      %v1409 = vunpack.c.h.b16 %v1371
      %v1410 = vunpack.c.l.b16 %v1372
      %v1411 = vunpack.c.h.b16 %v1372
      %v1412 = vunpack.c.l.b16 %v1373
      %v1413 = vunpack.c.h.b16 %v1373
      %v1414 = vunpack.c.l.b16 %v1374
      %v1415 = vunpack.c.h.b16 %v1374
      %v1416 = vunpack.c.l.b16 %v1375
      %v1417 = vunpack.c.h.b16 %v1375
      %v1418 = vunpack.c.l.b16 %v1376
      %v1419 = vunpack.c.h.b16 %v1376
      %v1420 = vunpack.c.l.b16 %v1377
      %v1421 = vunpack.c.h.b16 %v1377
      %v1422 = vunpack.c.l.b16 %v1378
      %v1423 = vunpack.c.h.b16 %v1378
      %v1424 = vunpack.c.l.b16 %v1379
      %v1425 = vunpack.c.h.b16 %v1379
      %v1426 = vunpack.c.l.b16 %v1380
      %v1427 = vunpack.c.h.b16 %v1380
      %v1428 = vunpack.c.l.b16 %v1381
      %v1429 = vunpack.c.h.b16 %v1381
      %v1430 = vpack.c.b16 %v1398, %v1398
      %v1431 = vpack.c.b16 %v1399, %v1399
      %v1432 = vpack.c.b16 %v1400, %v1400
      %v1433 = vpack.c.b16 %v1401, %v1401
      %v1434 = vpack.c.b16 %v1402, %v1402
      %v1435 = vpack.c.b16 %v1403, %v1403
      %v1436 = vpack.c.b16 %v1404, %v1404
      %v1437 = vpack.c.b16 %v1405, %v1405
      %v1438 = vpack.c.b16 %v1406, %v1406
      %v1439 = vpack.c.b16 %v1407, %v1407
      %v1440 = vpack.c.b16 %v1408, %v1408
      %v1441 = vpack.c.b16 %v1409, %v1409
      %v1442 = vpack.c.b16 %v1410, %v1410
      %v1443 = vpack.c.b16 %v1411, %v1411
      %v1444 = vpack.c.b16 %v1412, %v1412
      %v1445 = vpack.c.b16 %v1413, %v1413
      %v1446 = vpack.c.b16 %v1414, %v1414
      %v1447 = vpack.c.b16 %v1415, %v1415
      %v1448 = vpack.c.b16 %v1416, %v1416
      %v1449 = vpack.c.b16 %v1417, %v1417
      %v1450 = vpack.c.b16 %v1418, %v1418
      %v1451 = vpack.c.b16 %v1419, %v1419
      %v1452 = vpack.c.b16 %v1420, %v1420
      %v1453 = vpack.c.b16 %v1421, %v1421
      %v1454 = vpack.c.b16 %v1422, %v1422
      %v1455 = vpack.c.b16 %v1423, %v1423
      %v1456 = vpack.c.b16 %v1424, %v1424
      %v1457 = vpack.c.b16 %v1425, %v1425
      %v1458 = vpack.c.b16 %v1426, %v1426
      %v1459 = vpack.c.b16 %v1427, %v1427
      %v1460 = vpack.c.b16 %v1428, %v1428
      %v1461 = vpack.c.b16 %v1429, %v1429
      %1494 = vst [vmem:[%s221] sm:$0xf] %v1430
      %1495 = vst [vmem:[%s221 + $0x4] sm:$0xf] %v1431
      %1496 = vst [vmem:[%s221 + $0x8] sm:$0xf] %v1432
      %1497 = vst [vmem:[%s221 + $0xc] sm:$0xf] %v1433
      %1498 = vst [vmem:[%s221 + $0x10] sm:$0xf] %v1434
      %1499 = vst [vmem:[%s221 + $0x14] sm:$0xf] %v1435
      %1500 = vst [vmem:[%s221 + $0x18] sm:$0xf] %v1436
      %1501 = vst [vmem:[%s221 + $0x1c] sm:$0xf] %v1437
      %1502 = vst [vmem:[%s221 + $0x20] sm:$0xf] %v1438
      %1503 = vst [vmem:[%s221 + $0x24] sm:$0xf] %v1439
      %1504 = vst [vmem:[%s221 + $0x28] sm:$0xf] %v1440
      %1505 = vst [vmem:[%s221 + $0x2c] sm:$0xf] %v1441
      %1506 = vst [vmem:[%s221 + $0x30] sm:$0xf] %v1442
      %1507 = vst [vmem:[%s221 + $0x34] sm:$0xf] %v1443
      %1508 = vst [vmem:[%s221 + $0x38] sm:$0xf] %v1444
      %1509 = vst [vmem:[%s221 + $0x3c] sm:$0xf] %v1445
      %1510 = vst [vmem:[%s221 + $0x40] sm:$0xf] %v1446
      %1511 = vst [vmem:[%s221 + $0x44] sm:$0xf] %v1447
      %1512 = vst [vmem:[%s221 + $0x48] sm:$0xf] %v1448
      %1513 = vst [vmem:[%s221 + $0x4c] sm:$0xf] %v1449
      %1514 = vst [vmem:[%s221 + $0x50] sm:$0xf] %v1450
      %1515 = vst [vmem:[%s221 + $0x54] sm:$0xf] %v1451
      %1516 = vst [vmem:[%s221 + $0x58] sm:$0xf] %v1452
      %1517 = vst [vmem:[%s221 + $0x5c] sm:$0xf] %v1453
      %1518 = vst [vmem:[%s221 + $0x60] sm:$0xf] %v1454
      %1519 = vst [vmem:[%s221 + $0x64] sm:$0xf] %v1455
      %1520 = vst [vmem:[%s221 + $0x68] sm:$0xf] %v1456
      %1521 = vst [vmem:[%s221 + $0x6c] sm:$0xf] %v1457
      %1522 = vst [vmem:[%s221 + $0x70] sm:$0xf] %v1458
      %1523 = vst [vmem:[%s221 + $0x74] sm:$0xf] %v1459
      %1524 = vst [vmem:[%s221 + $0x78] sm:$0xf] %v1460
      %1525 = vst [vmem:[%s221 + $0x7c] sm:$0xf] %v1461
      %p1526 = scmp.lt.s32.totalorder %s19, 1
      %s1527 = scalar_select %p1526, %s19, 1
      %p1528 = scmp.lt.s32.totalorder %s18, 0
      %s1529 = scalar_select %p1528, %s18, 0
      %s1530 = smul.addr %s1527, 32
      %s1531 = sadd.s32 %s1529, %s1530
      %s1532 = smul.addr %s1531, 4
      %s1533 = scalar_lea.vmem %s3, %s1532
      // Predicated region
      $region33: #{convseq3x3_forward.5} parent=31 // pred_check
        %p1534 = pneg %p124
      $region34: #{convseq3x3_forward.5} parent=31 // pred_check_branch
        %1536 = sbr.rel (%p1534) target = $region36
      $region35: #{convseq3x3_forward.5} parent=31 // pred_region
        _
      $region36: #{convseq3x3_forward.5} parent=31 // pred_fallthru
        _
    $region32: #{convseq3x3_forward.5} parent=5 // pred_fallthru
      _
    %p1537 = scmp.le.s32.totalorder 2, %s9
    // Predicated region
    $region37: #{convseq3x3_forward.5} parent=5 // pred_check
      %p1538 = pneg %p1537
    $region38: #{convseq3x3_forward.5} parent=5 // pred_check_branch
      %1540 = sbr.rel (%p1538) target = $region40
    $region39: #{convseq3x3_forward.5} parent=5 // pred_region
      %s1541 = ssub.s32 %s9, 2
      // Predicated region
      $region41: #{convseq3x3_forward.5} parent=39 // pred_check
        %p1542 = pneg %p130
      $region42: #{convseq3x3_forward.5} parent=39 // pred_check_branch
        %1544 = sbr.rel (%p1542) target = $region44
      $region43: #{convseq3x3_forward.5} parent=39 // pred_region
        %p1545 = scmp.lt.s32.totalorder %s21, 1
        %s1546 = scalar_select %p1545, %s21, 1
        %p1547 = scmp.lt.s32.totalorder %s20, 0
        %s1548 = scalar_select %p1547, %s20, 0
        %s1549 = smul.addr %s1546, 32
        %s1550 = sadd.s32 %s1548, %s1549
        %s1551 = smul.addr %s1550, 4
        %s1552 = scalar_lea.vmem %s3, %s1551
      $region44: #{convseq3x3_forward.5} parent=39 // pred_fallthru
        _
    $region40: #{convseq3x3_forward.5} parent=5 // pred_fallthru
      _
  $region6: #{convseq3x3_forward.5} parent=0 // loop_footer
    %s13 = sadd.s32 1, %s9
  $region7: #{convseq3x3_forward.5} parent=0 // loop_footer_branch
    %8 = sbr.rel target = $region3
  $region8: #{convseq3x3_forward.5} parent=0 // loop_exit
    _

// kernel: convseq3x3_forward.6
$region0: #{convseq3x3_forward.6}
  #allocation0 [shape = 'u32[]', space=smem, size = 0x4, offset = 0x4, fixed_abs, tag = 'smem constant byte address 0x4 - core index']
  #allocation1 [shape = 'u32[144,128]{1,0:T(1,128)}', space=vmem, size = 0x12000, scoped, tag = 'internal scratch']
  %s0 = inlined_call_operand.vmem [shape: bf16[2,16,18,64], index: 0, kind: input, shape index: {}]
  %s1 = inlined_call_operand.vmem [shape: bf16[3,64,128], index: 1, kind: input, shape index: {}]
  %s2 = inlined_call_operand.vmem [shape: f32[1,128], index: 2, kind: input, shape index: {}]
  %s3 = inlined_call_operand.vmem [shape: bf16[2,16,16,128], index: 3, kind: output, shape index: {}]
  %s4 = sld [smem:[#allocation0]]
  $region45: #{convseq3x3_forward.6} parent=0
    _
  %s6 = ssub.s32 1, %s4
  %s7 = scalar_select 0, %s6, %s4
  loop: start=0, step=1, limit=4
  $region2: #{convseq3x3_forward.6} parent=0 // loop_pre_header
    _
  $region3: #{convseq3x3_forward.6} parent=0 // loop_header
    %s9 = sphi 0, %s13
    %p10 = scmp.ge.s32.totalorder %s9, 4
    %s16 = sphi 0, %s28
    %s17 = sphi 0, %s24
    %s18 = sphi 0, %s16
    %s19 = sphi 0, %s17
    %s20 = sphi 0, %s18
    %s21 = sphi 0, %s19
    %s31 = sphi 0, %s33
    %s34 = sphi 0, %s31
    %s35 = sphi 0, %s34
    %s51 = sphi 0, %s35
    %s57 = sphi 0, %s59
    %s60 = sphi 0, %s57
    %s61 = sphi 0, %s60
    %s77 = sphi 0, %s61
    %s83 = sphi 0, %s85
    %s86 = sphi 0, %s83
    %s87 = sphi 0, %s86
    %s103 = sphi 0, %s87
    %s111 = sphi 0, %s113
    %s114 = sphi 0, %s111
    %s115 = sphi 0, %s114
    %s131 = sphi 0, %s115
  $region4: #{convseq3x3_forward.6} parent=0 // loop_header_branch
    %12 = sbr.rel (%p10) target = $region8
  $region5: #{convseq3x3_forward.6} parent=0 // loop_body
    %s14 = ssub.s32 %s9, 1
    %s15 = ssub.s32 %s9, 2
    %s22 = sadd.s32 1, %s17
    %p23 = scmp.ge.s32.totalorder %s22, 2
    %s24 = scalar_select %p23, 0, %s22
    %s25 = sadd.s32 1, %s16
    %s26 = scalar_select %p23, %s25, %s16
    %p27 = scmp.ge.s32.totalorder %s26, 1
    %s28 = scalar_select %p27, 0, %s26
    %s29 = ssub.s32 %s17, %s24
    %p30 = scmp.eq.s32.totalorder %s29, 0
    %s32 = sadd.s32 %s31, 1
    %s33 = scalar_select %p30, %s31, %s32
    %p36 = pneg %p30
    %p37 = scmp.eq.s32.totalorder %s9, 1
    %p38 = por %p36, %p37
    %p39 = scmp.ne.s32.totalorder %s31, %s34
    %p40 = scmp.eq.s32.totalorder %s9, 0
    %p41 = por %p39, %p40
    %p42 = scmp.ne.s32.totalorder %s31, %s34
    %p43 = scmp.eq.s32.totalorder %s14, 1
    %p44 = por %p42, %p43
    %p45 = scmp.ne.s32.totalorder %s34, %s35
    %p46 = scmp.eq.s32.totalorder %s14, 0
    %p47 = por %p45, %p46
    %p48 = scmp.ne.s32.totalorder %s34, %s35
    %p49 = scmp.eq.s32.totalorder %s15, 1
    %p50 = por %p48, %p49
    %p52 = scmp.ne.s32.totalorder %s35, %s51
    %p53 = scmp.eq.s32.totalorder %s15, 0
    %p54 = por %p52, %p53
    %s55 = ssub.s32 %s16, %s28
    %p56 = scmp.eq.s32.totalorder %s55, 0
    %s58 = sadd.s32 %s57, 1
    %s59 = scalar_select %p56, %s57, %s58
    %p62 = pneg %p56
    %p63 = scmp.eq.s32.totalorder %s9, 1
    %p64 = por %p62, %p63
    %p65 = scmp.ne.s32.totalorder %s57, %s60
    %p66 = scmp.eq.s32.totalorder %s9, 0
    %p67 = por %p65, %p66
    %p68 = scmp.ne.s32.totalorder %s57, %s60
    %p69 = scmp.eq.s32.totalorder %s14, 1
    %p70 = por %p68, %p69
    %p71 = scmp.ne.s32.totalorder %s60, %s61
    %p72 = scmp.eq.s32.totalorder %s14, 0
    %p73 = por %p71, %p72
    %p74 = scmp.ne.s32.totalorder %s60, %s61
    %p75 = scmp.eq.s32.totalorder %s15, 1
    %p76 = por %p74, %p75
    %p78 = scmp.ne.s32.totalorder %s61, %s77
    %p79 = scmp.eq.s32.totalorder %s15, 0
    %p80 = por %p78, %p79
    %s81 = ssub.s32 %s16, %s28
    %p82 = scmp.eq.s32.totalorder %s81, 0
    %s84 = sadd.s32 %s83, 1
    %s85 = scalar_select %p82, %s83, %s84
    %p88 = pneg %p82
    %p89 = scmp.eq.s32.totalorder %s9, 1
    %p90 = por %p88, %p89
    %p91 = scmp.ne.s32.totalorder %s83, %s86
    %p92 = scmp.eq.s32.totalorder %s9, 0
    %p93 = por %p91, %p92
    %p94 = scmp.ne.s32.totalorder %s83, %s86
    %p95 = scmp.eq.s32.totalorder %s14, 1
    %p96 = por %p94, %p95
    %p97 = scmp.ne.s32.totalorder %s86, %s87
    %p98 = scmp.eq.s32.totalorder %s14, 0
    %p99 = por %p97, %p98
    %p100 = scmp.ne.s32.totalorder %s86, %s87
    %p101 = scmp.eq.s32.totalorder %s15, 1
    %p102 = por %p100, %p101
    %p104 = scmp.ne.s32.totalorder %s87, %s103
    %p105 = scmp.eq.s32.totalorder %s15, 0
    %p106 = por %p104, %p105
    %s107 = ssub.s32 %s17, %s24
    %s108 = ssub.s32 %s16, %s28
    %s109 = sor.u32 %s107, %s108
    %p110 = scmp.eq.s32.totalorder %s109, 0
    %s112 = sadd.s32 %s111, 1
    %s113 = scalar_select %p110, %s111, %s112
    %p116 = pneg %p110
    %p117 = scmp.eq.s32.totalorder %s9, 1
    %p118 = por %p116, %p117
    %p119 = scmp.ne.s32.totalorder %s111, %s114
    %p120 = scmp.eq.s32.totalorder %s9, 0
    %p121 = por %p119, %p120
    %p122 = scmp.ne.s32.totalorder %s111, %s114
    %p123 = scmp.eq.s32.totalorder %s14, 1
    %p124 = por %p122, %p123
    %p125 = scmp.ne.s32.totalorder %s114, %s115
    %p126 = scmp.eq.s32.totalorder %s14, 0
    %p127 = por %p125, %p126
    %p128 = scmp.ne.s32.totalorder %s114, %s115
    %p129 = scmp.eq.s32.totalorder %s15, 1
    %p130 = por %p128, %p129
    %p132 = scmp.ne.s32.totalorder %s115, %s131
    %p133 = scmp.eq.s32.totalorder %s15, 0
    %p134 = por %p132, %p133
    %p135 = scmp.le.s32.totalorder 1, %s9
    %p136 = scmp.lt.s32.totalorder %s9, 3
    %p137 = pnand %p135, %p136
    %p138 = pneg %p137
    // Predicated region
    $region9: #{convseq3x3_forward.6} parent=5 // pred_check
      _
    $region10: #{convseq3x3_forward.6} parent=5 // pred_check_branch
      %140 = sbr.rel (%p137) target = $region12
    $region11: #{convseq3x3_forward.6} parent=5 // pred_region
      %s141 = ssub.s32 %s9, 1
      // Predicated region
      $region13: #{convseq3x3_forward.6} parent=11 // pred_check
        %p142 = pneg %p73
      $region14: #{convseq3x3_forward.6} parent=11 // pred_check_branch
        %144 = sbr.rel (%p142) target = $region16
      $region15: #{convseq3x3_forward.6} parent=11 // pred_region
        %p145 = scmp.lt.s32.totalorder %s18, 0
        %s146 = scalar_select %p145, %s18, 0
        %s147 = smul.addr %s146, 4
        %s148 = scalar_lea.vmem %s1, %s147
      $region16: #{convseq3x3_forward.6} parent=11 // pred_fallthru
        _
      // Predicated region
      $region17: #{convseq3x3_forward.6} parent=11 // pred_check
        %p149 = pneg %p99
      $region18: #{convseq3x3_forward.6} parent=11 // pred_check_branch
        %151 = sbr.rel (%p149) target = $region20
      $region19: #{convseq3x3_forward.6} parent=11 // pred_region
        %p152 = scmp.lt.s32.totalorder %s18, 0
        %s153 = scalar_select %p152, %s18, 0
        %s154 = scalar_lea.vmem %s2, %s153
      $region20: #{convseq3x3_forward.6} parent=11 // pred_fallthru
        _
    $region12: #{convseq3x3_forward.6} parent=5 // pred_fallthru
      _
    %p155 = scmp.lt.s32.totalorder %s9, 2
    // Predicated region
    $region21: #{convseq3x3_forward.6} parent=5 // pred_check
      %p156 = pneg %p155
    $region22: #{convseq3x3_forward.6} parent=5 // pred_check_branch
      %158 = sbr.rel (%p156) target = $region24
    $region23: #{convseq3x3_forward.6} parent=5 // pred_region
      // Predicated region
      $region25: #{convseq3x3_forward.6} parent=23 // pred_check
        %p159 = pneg %p41
      $region26: #{convseq3x3_forward.6} parent=23 // pred_check_branch
        %161 = sbr.rel (%p159) target = $region28
      $region27: #{convseq3x3_forward.6} parent=23 // pred_region
        %p162 = scmp.lt.s32.totalorder %s17, 1
        %s163 = scalar_select %p162, %s17, 1
        %s164 = smul.addr %s163, 48
        %s165 = smul.addr %s164, 4
        %s166 = scalar_lea.vmem %s0, %s165
      $region28: #{convseq3x3_forward.6} parent=23 // pred_fallthru
        _
    $region24: #{convseq3x3_forward.6} parent=5 // pred_fallthru
      _
    %p167 = scmp.le.s32.totalorder 1, %s9
    %p168 = scmp.lt.s32.totalorder %s9, 3
    %p169 = pnand %p167, %p168
    %p170 = pneg %p169
    // Predicated region
    $region29: #{convseq3x3_forward.6} parent=5 // pred_check
      _
    $region30: #{convseq3x3_forward.6} parent=5 // pred_check_branch
      %172 = sbr.rel (%p169) target = $region32
    $region31: #{convseq3x3_forward.6} parent=5 // pred_region
      %s173 = ssub.s32 %s9, 1
      %p174 = scmp.lt.s32.totalorder %s19, 1
      %s175 = scalar_select %p174, %s19, 1
      %s176 = smul.addr %s175, 48
      %s177 = smul.addr %s176, 4
      %s178 = scalar_lea.vmem %s0, %s177
      %p179 = pneg %p47
      %p180 = pneg %p44
      %p181 = scmp.lt.s32.totalorder %s18, 0
      %s182 = scalar_select %p181, %s18, 0
      %s183 = smul.addr %s182, 4
      %s184 = scalar_lea.vmem %s1, %s183
      %p185 = pneg %p73
      %p186 = pneg %p70
      %p187 = scmp.lt.s32.totalorder %s18, 0
      %s188 = scalar_select %p187, %s18, 0
      %s189 = scalar_lea.vmem %s2, %s188
      %p190 = pneg %p99
      %p191 = pneg %p96
      %p192 = pneg %p127
      %p193 = pneg %p124
      %p194 = scmp.lt.s32.totalorder %s19, 1
      %s195 = scalar_select %p194, %s19, 1
      %p196 = scmp.lt.s32.totalorder %s18, 0
      %s197 = scalar_select %p196, %s18, 0
      %s198 = smul.addr %s195, 32
      %s199 = sadd.s32 %s197, %s198
      %s200 = smul.addr %s199, 4
      %s201 = scalar_lea.vmem %s3, %s200
      %p202 = scmp.lt.s32.totalorder %s19, 1
      %s203 = scalar_select %p202, %s19, 1
      %s204 = smul.addr %s203, 48
      %s205 = smul.addr %s204, 4
      %s206 = scalar_lea.vmem %s0, %s205
      %p207 = scmp.lt.s32.totalorder %s18, 0
      %s208 = scalar_select %p207, %s18, 0
      %s209 = smul.addr %s208, 4
      %s210 = scalar_lea.vmem %s1, %s209
      %p211 = scmp.lt.s32.totalorder %s18, 0
      %s212 = scalar_select %p211, %s18, 0
      %s213 = scalar_lea.vmem %s2, %s212
      %p214 = scmp.lt.s32.totalorder %s19, 1
      %s215 = scalar_select %p214, %s19, 1
      %p216 = scmp.lt.s32.totalorder %s18, 0
      %s217 = scalar_select %p216, %s18, 0
      %s218 = smul.addr %s215, 32
      %s219 = sadd.s32 %s217, %s218
      %s220 = smul.addr %s219, 4
      %s221 = scalar_lea.vmem %s3, %s220
      %v223 = vld [vmem:[%s206] sm:$0xf]
      %v224 = vld [vmem:[%s206 + $0x4] sm:$0xf]
      %v225 = vld [vmem:[%s206 + $0xc] sm:$0xf]
      %v226 = vld [vmem:[%s206 + $0x10] sm:$0xf]
      %v227 = vld [vmem:[%s206 + $0x18] sm:$0xf]
      %v228 = vld [vmem:[%s206 + $0x1c] sm:$0xf]
      %v229 = vld [vmem:[%s206 + $0x24] sm:$0xf]
      %v230 = vld [vmem:[%s206 + $0x28] sm:$0xf]
      %v231 = vld [vmem:[%s206 + $0x30] sm:$0xf]
      %v232 = vld [vmem:[%s206 + $0x34] sm:$0xf]
      %v233 = vld [vmem:[%s206 + $0x3c] sm:$0xf]
      %v234 = vld [vmem:[%s206 + $0x40] sm:$0xf]
      %v235 = vld [vmem:[%s206 + $0x48] sm:$0xf]
      %v236 = vld [vmem:[%s206 + $0x4c] sm:$0xf]
      %v237 = vld [vmem:[%s206 + $0x54] sm:$0xf]
      %v238 = vld [vmem:[%s206 + $0x58] sm:$0xf]
      %v239 = vld [vmem:[%s206 + $0x60] sm:$0xf]
      %v240 = vld [vmem:[%s206 + $0x64] sm:$0xf]
      %v241 = vld [vmem:[%s206 + $0x6c] sm:$0xf]
      %v242 = vld [vmem:[%s206 + $0x70] sm:$0xf]
      %v243 = vld [vmem:[%s206 + $0x78] sm:$0xf]
      %v244 = vld [vmem:[%s206 + $0x7c] sm:$0xf]
      %v245 = vld [vmem:[%s206 + $0x84] sm:$0xf]
      %v246 = vld [vmem:[%s206 + $0x88] sm:$0xf]
      %v247 = vld [vmem:[%s206 + $0x90] sm:$0xf]
      %v248 = vld [vmem:[%s206 + $0x94] sm:$0xf]
      %v249 = vld [vmem:[%s206 + $0x9c] sm:$0xf]
      %v250 = vld [vmem:[%s206 + $0xa0] sm:$0xf]
      %v251 = vld [vmem:[%s206 + $0xa8] sm:$0xf]
      %v252 = vld [vmem:[%s206 + $0xac] sm:$0xf]
      %v253 = vld [vmem:[%s206 + $0xb4] sm:$0xf]
      %v254 = vld [vmem:[%s206 + $0xb8] sm:$0xf]
      %v255 = vld [vmem:[%s210] sm:$0xf]
      %v256 = vld [vmem:[%s210 + $0x4] sm:$0xf]
      %v257 = vld [vmem:[%s210 + $0x8] sm:$0xf]
      %v258 = vld [vmem:[%s210 + $0xc] sm:$0xf]
      %v259 = vld [vmem:[%s210 + $0x10] sm:$0xf]
      %v260 = vld [vmem:[%s210 + $0x14] sm:$0xf]
      %v261 = vld [vmem:[%s210 + $0x18] sm:$0xf]
      %v262 = vld [vmem:[%s210 + $0x1c] sm:$0xf]
      %v263 = vld [vmem:[%s206 + $0x8] sm:$0x1]
      %v264 = vld [vmem:[%s206 + $0x14] sm:$0x1]
      %v265 = vld [vmem:[%s206 + $0x20] sm:$0x1]
      %v266 = vld [vmem:[%s206 + $0x2c] sm:$0x1]
      %v267 = vld [vmem:[%s206 + $0x38] sm:$0x1]
      %v268 = vld [vmem:[%s206 + $0x44] sm:$0x1]
      %v269 = vld [vmem:[%s206 + $0x50] sm:$0x1]
      %v270 = vld [vmem:[%s206 + $0x5c] sm:$0x1]
      %v271 = vld [vmem:[%s206 + $0x68] sm:$0x1]
      %v272 = vld [vmem:[%s206 + $0x74] sm:$0x1]
      %v273 = vld [vmem:[%s206 + $0x80] sm:$0x1]
      %v274 = vld [vmem:[%s206 + $0x8c] sm:$0x1]
      %v275 = vld [vmem:[%s206 + $0x98] sm:$0x1]
      %v276 = vld [vmem:[%s206 + $0xa4] sm:$0x1]
      %v277 = vld [vmem:[%s206 + $0xb0] sm:$0x1]
      %v278 = vld [vmem:[%s206 + $0xbc] sm:$0x1]
      %vm279 = vsmask.f32 3328
      %vm280 = vsmask.f32 7440
      %vm281 = vmor %vm279, %vm280
      %v283 = vshrl.u32 %v223, 16
      %v285 = vrot.slane %v283, 4
      %v286 = vshll.u32 %v223, 16
      %v288 = vrot.slane %v286, 5
      %v289 = vor.u32 %v285, %v288
      %v290 = vrot.slane %v289, 4
      %v292 = vshll.u32 %v224, 16
      %v294 = vrot.slane %v292, 5
      %v295 = vsel %vm281, %v290, %v294
      %v296 = vshrl.u32 %v224, 16
      %v298 = vrot.slane %v296, 4
      %v299 = vor.u32 %v298, %v294
      %v300 = vrot.slane %v299, 4
      %v302 = vshll.u32 %v263, 16
      %v304 = vrot.slane %v302, 5
      %v305 = vsel %vm281, %v300, %v304
      %v307 = vshrl.u32 %v225, 16
      %v309 = vrot.slane %v307, 4
      %v310 = vshll.u32 %v225, 16
      %v312 = vrot.slane %v310, 5
      %v313 = vor.u32 %v309, %v312
      %v314 = vrot.slane %v313, 4
      %v316 = vshll.u32 %v226, 16
      %v318 = vrot.slane %v316, 5
      %v319 = vsel %vm281, %v314, %v318
      %v320 = vshrl.u32 %v226, 16
      %v322 = vrot.slane %v320, 4
      %v323 = vor.u32 %v322, %v318
      %v324 = vrot.slane %v323, 4
      %v326 = vshll.u32 %v264, 16
      %v328 = vrot.slane %v326, 5
      %v329 = vsel %vm281, %v324, %v328
      %v331 = vshrl.u32 %v227, 16
      %v333 = vrot.slane %v331, 4
      %v334 = vshll.u32 %v227, 16
      %v336 = vrot.slane %v334, 5
      %v337 = vor.u32 %v333, %v336
      %v338 = vrot.slane %v337, 4
      %v340 = vshll.u32 %v228, 16
      %v342 = vrot.slane %v340, 5
      %v343 = vsel %vm281, %v338, %v342
      %v344 = vshrl.u32 %v228, 16
      %v346 = vrot.slane %v344, 4
      %v347 = vor.u32 %v346, %v342
      %v348 = vrot.slane %v347, 4
      %v350 = vshll.u32 %v265, 16
      %v352 = vrot.slane %v350, 5
      %v353 = vsel %vm281, %v348, %v352
      %v355 = vshrl.u32 %v229, 16
      %v357 = vrot.slane %v355, 4
      %v358 = vshll.u32 %v229, 16
      %v360 = vrot.slane %v358, 5
      %v361 = vor.u32 %v357, %v360
      %v362 = vrot.slane %v361, 4
      %v364 = vshll.u32 %v230, 16
      %v366 = vrot.slane %v364, 5
      %v367 = vsel %vm281, %v362, %v366
      %v368 = vshrl.u32 %v230, 16
      %v370 = vrot.slane %v368, 4
      %v371 = vor.u32 %v370, %v366
      %v372 = vrot.slane %v371, 4
      %v374 = vshll.u32 %v266, 16
      %v376 = vrot.slane %v374, 5
      %v377 = vsel %vm281, %v372, %v376
      %v379 = vshrl.u32 %v231, 16
      %v381 = vrot.slane %v379, 4
      %v382 = vshll.u32 %v231, 16
      %v384 = vrot.slane %v382, 5
      %v385 = vor.u32 %v381, %v384
      %v386 = vrot.slane %v385, 4
      %v388 = vshll.u32 %v232, 16
      %v390 = vrot.slane %v388, 5
      %v391 = vsel %vm281, %v386, %v390
      %v392 = vshrl.u32 %v232, 16
      %v394 = vrot.slane %v392, 4
      %v395 = vor.u32 %v394, %v390
      %v396 = vrot.slane %v395, 4
      %v398 = vshll.u32 %v267, 16
      %v400 = vrot.slane %v398, 5
      %v401 = vsel %vm281, %v396, %v400
      %v403 = vshrl.u32 %v233, 16
      %v405 = vrot.slane %v403, 4
      %v406 = vshll.u32 %v233, 16
      %v408 = vrot.slane %v406, 5
      %v409 = vor.u32 %v405, %v408
      %v410 = vrot.slane %v409, 4
      %v412 = vshll.u32 %v234, 16
      %v414 = vrot.slane %v412, 5
      %v415 = vsel %vm281, %v410, %v414
      %v416 = vshrl.u32 %v234, 16
      %v418 = vrot.slane %v416, 4
      %v419 = vor.u32 %v418, %v414
      %v420 = vrot.slane %v419, 4
      %v422 = vshll.u32 %v268, 16
      %v424 = vrot.slane %v422, 5
      %v425 = vsel %vm281, %v420, %v424
      %v427 = vshrl.u32 %v235, 16
      %v429 = vrot.slane %v427, 4
      %v430 = vshll.u32 %v235, 16
      %v432 = vrot.slane %v430, 5
      %v433 = vor.u32 %v429, %v432
      %v434 = vrot.slane %v433, 4
      %v436 = vshll.u32 %v236, 16
      %v438 = vrot.slane %v436, 5
      %v439 = vsel %vm281, %v434, %v438
      %v440 = vshrl.u32 %v236, 16
      %v442 = vrot.slane %v440, 4
      %v443 = vor.u32 %v442, %v438
      %v444 = vrot.slane %v443, 4
      %v446 = vshll.u32 %v269, 16
      %v448 = vrot.slane %v446, 5
      %v449 = vsel %vm281, %v444, %v448
      %v451 = vshrl.u32 %v237, 16
      %v453 = vrot.slane %v451, 4
      %v454 = vshll.u32 %v237, 16
      %v456 = vrot.slane %v454, 5
      %v457 = vor.u32 %v453, %v456
      %v458 = vrot.slane %v457, 4
      %v460 = vshll.u32 %v238, 16
      %v462 = vrot.slane %v460, 5
      %v463 = vsel %vm281, %v458, %v462
      %v464 = vshrl.u32 %v238, 16
      %v466 = vrot.slane %v464, 4
      %v467 = vor.u32 %v466, %v462
      %v468 = vrot.slane %v467, 4
      %v470 = vshll.u32 %v270, 16
      %v472 = vrot.slane %v470, 5
      %v473 = vsel %vm281, %v468, %v472
      %v475 = vshrl.u32 %v239, 16
      %v477 = vrot.slane %v475, 4
      %v478 = vshll.u32 %v239, 16
      %v480 = vrot.slane %v478, 5
      %v481 = vor.u32 %v477, %v480
      %v482 = vrot.slane %v481, 4
      %v484 = vshll.u32 %v240, 16
      %v486 = vrot.slane %v484, 5
      %v487 = vsel %vm281, %v482, %v486
      %v488 = vshrl.u32 %v240, 16
      %v490 = vrot.slane %v488, 4
      %v491 = vor.u32 %v490, %v486
      %v492 = vrot.slane %v491, 4
      %v494 = vshll.u32 %v271, 16
      %v496 = vrot.slane %v494, 5
      %v497 = vsel %vm281, %v492, %v496
      %v499 = vshrl.u32 %v241, 16
      %v501 = vrot.slane %v499, 4
      %v502 = vshll.u32 %v241, 16
      %v504 = vrot.slane %v502, 5
      %v505 = vor.u32 %v501, %v504
      %v506 = vrot.slane %v505, 4
      %v508 = vshll.u32 %v242, 16
      %v510 = vrot.slane %v508, 5
      %v511 = vsel %vm281, %v506, %v510
      %v512 = vshrl.u32 %v242, 16
      %v514 = vrot.slane %v512, 4
      %v515 = vor.u32 %v514, %v510
      %v516 = vrot.slane %v515, 4
      %v518 = vshll.u32 %v272, 16
      %v520 = vrot.slane %v518, 5
      %v521 = vsel %vm281, %v516, %v520
      %v523 = vshrl.u32 %v243, 16
      %v525 = vrot.slane %v523, 4
      %v526 = vshll.u32 %v243, 16
      %v528 = vrot.slane %v526, 5
      %v529 = vor.u32 %v525, %v528
      %v530 = vrot.slane %v529, 4
      %v532 = vshll.u32 %v244, 16
      %v534 = vrot.slane %v532, 5
      %v535 = vsel %vm281, %v530, %v534
      %v536 = vshrl.u32 %v244, 16
      %v538 = vrot.slane %v536, 4
      %v539 = vor.u32 %v538, %v534
      %v540 = vrot.slane %v539, 4
      %v542 = vshll.u32 %v273, 16
      %v544 = vrot.slane %v542, 5
      %v545 = vsel %vm281, %v540, %v544
      %v547 = vshrl.u32 %v245, 16
      %v549 = vrot.slane %v547, 4
      %v550 = vshll.u32 %v245, 16
      %v552 = vrot.slane %v550, 5
      %v553 = vor.u32 %v549, %v552
      %v554 = vrot.slane %v553, 4
      %v556 = vshll.u32 %v246, 16
      %v558 = vrot.slane %v556, 5
      %v559 = vsel %vm281, %v554, %v558
      %v560 = vshrl.u32 %v246, 16
      %v562 = vrot.slane %v560, 4
      %v563 = vor.u32 %v562, %v558
      %v564 = vrot.slane %v563, 4
      %v566 = vshll.u32 %v274, 16
      %v568 = vrot.slane %v566, 5
      %v569 = vsel %vm281, %v564, %v568
      %v571 = vshrl.u32 %v247, 16
      %v573 = vrot.slane %v571, 4
      %v574 = vshll.u32 %v247, 16
      %v576 = vrot.slane %v574, 5
      %v577 = vor.u32 %v573, %v576
      %v578 = vrot.slane %v577, 4
      %v580 = vshll.u32 %v248, 16
      %v582 = vrot.slane %v580, 5
      %v583 = vsel %vm281, %v578, %v582
      %v584 = vshrl.u32 %v248, 16
      %v586 = vrot.slane %v584, 4
      %v587 = vor.u32 %v586, %v582
      %v588 = vrot.slane %v587, 4
      %v590 = vshll.u32 %v275, 16
      %v592 = vrot.slane %v590, 5
      %v593 = vsel %vm281, %v588, %v592
      %v595 = vshrl.u32 %v249, 16
      %v597 = vrot.slane %v595, 4
      %v598 = vshll.u32 %v249, 16
      %v600 = vrot.slane %v598, 5
      %v601 = vor.u32 %v597, %v600
      %v602 = vrot.slane %v601, 4
      %v604 = vshll.u32 %v250, 16
      %v606 = vrot.slane %v604, 5
      %v607 = vsel %vm281, %v602, %v606
      %v608 = vshrl.u32 %v250, 16
      %v610 = vrot.slane %v608, 4
      %v611 = vor.u32 %v610, %v606
      %v612 = vrot.slane %v611, 4
      %v614 = vshll.u32 %v276, 16
      %v616 = vrot.slane %v614, 5
      %v617 = vsel %vm281, %v612, %v616
      %v619 = vshrl.u32 %v251, 16
      %v621 = vrot.slane %v619, 4
      %v622 = vshll.u32 %v251, 16
      %v624 = vrot.slane %v622, 5
      %v625 = vor.u32 %v621, %v624
      %v626 = vrot.slane %v625, 4
      %v628 = vshll.u32 %v252, 16
      %v630 = vrot.slane %v628, 5
      %v631 = vsel %vm281, %v626, %v630
      %v632 = vshrl.u32 %v252, 16
      %v634 = vrot.slane %v632, 4
      %v635 = vor.u32 %v634, %v630
      %v636 = vrot.slane %v635, 4
      %v638 = vshll.u32 %v277, 16
      %v640 = vrot.slane %v638, 5
      %v641 = vsel %vm281, %v636, %v640
      %v643 = vshrl.u32 %v253, 16
      %v645 = vrot.slane %v643, 4
      %v646 = vshll.u32 %v253, 16
      %v648 = vrot.slane %v646, 5
      %v649 = vor.u32 %v645, %v648
      %v650 = vrot.slane %v649, 4
      %v652 = vshll.u32 %v254, 16
      %v654 = vrot.slane %v652, 5
      %v655 = vsel %vm281, %v650, %v654
      %v656 = vshrl.u32 %v254, 16
      %v658 = vrot.slane %v656, 4
      %v659 = vor.u32 %v658, %v654
      %v660 = vrot.slane %v659, 4
      %v662 = vshll.u32 %v278, 16
      %v664 = vrot.slane %v662, 5
      %v665 = vsel %vm281, %v660, %v664
      %s666 = scalar_lea.vmem %s210, 32
      %v667 = vld [vmem:[%s666] sm:$0xf]
      %v668 = vld [vmem:[%s666 + $0x4] sm:$0xf]
      %v669 = vld [vmem:[%s666 + $0x8] sm:$0xf]
      %v670 = vld [vmem:[%s666 + $0xc] sm:$0xf]
      %v671 = vld [vmem:[%s666 + $0x10] sm:$0xf]
      %v672 = vld [vmem:[%s666 + $0x14] sm:$0xf]
      %v673 = vld [vmem:[%s666 + $0x18] sm:$0xf]
      %v674 = vld [vmem:[%s666 + $0x1c] sm:$0xf]
      %v675 = vunpack.c.l.b16 %v295
      %v676 = vunpack.c.l.b16 %v305
      %v677 = vunpack.c.l.b16 %v319
      %v678 = vunpack.c.l.b16 %v329
      %v679 = vunpack.c.l.b16 %v343
      %v680 = vunpack.c.l.b16 %v353
      %v681 = vunpack.c.l.b16 %v367
      %v682 = vunpack.c.l.b16 %v377
      %v683 = vunpack.c.l.b16 %v391
      %v684 = vunpack.c.l.b16 %v401
      %v685 = vunpack.c.l.b16 %v415
      %v686 = vunpack.c.l.b16 %v425
      %v687 = vunpack.c.l.b16 %v439
      %v688 = vunpack.c.l.b16 %v449
      %v689 = vunpack.c.l.b16 %v463
      %v690 = vunpack.c.l.b16 %v473
      %v691 = vunpack.c.l.b16 %v487
      %v692 = vunpack.c.l.b16 %v497
      %v693 = vunpack.c.l.b16 %v511
      %v694 = vunpack.c.l.b16 %v521
      %v695 = vunpack.c.l.b16 %v535
      %v696 = vunpack.c.l.b16 %v545
      %v697 = vunpack.c.l.b16 %v559
      %v698 = vunpack.c.l.b16 %v569
      %v699 = vunpack.c.l.b16 %v583
      %v700 = vunpack.c.l.b16 %v593
      %v701 = vunpack.c.l.b16 %v607
      %v702 = vunpack.c.l.b16 %v617
      %v703 = vunpack.c.l.b16 %v631
      %v704 = vunpack.c.l.b16 %v641
      %v705 = vunpack.c.l.b16 %v655
      %v706 = vunpack.c.l.b16 %v665
      %v707 = vpack.c.b16 %v676, %v675
      %v708 = vpack.c.b16 %v678, %v677
      %v709 = vpack.c.b16 %v680, %v679
      %v710 = vpack.c.b16 %v682, %v681
      %v711 = vpack.c.b16 %v684, %v683
      %v712 = vpack.c.b16 %v686, %v685
      %v713 = vpack.c.b16 %v688, %v687
      %v714 = vpack.c.b16 %v690, %v689
      %v715 = vpack.c.b16 %v692, %v691
      %v716 = vpack.c.b16 %v694, %v693
      %v717 = vpack.c.b16 %v696, %v695
      %v718 = vpack.c.b16 %v698, %v697
      %v719 = vpack.c.b16 %v700, %v699
      %v720 = vpack.c.b16 %v702, %v701
      %v721 = vpack.c.b16 %v704, %v703
      %v722 = vpack.c.b16 %v706, %v705
      %v731 = vunpack.c.l.b16 %v667
      %v732 = vunpack.c.l.b16 %v668
      %v733 = vunpack.c.l.b16 %v669
      %v734 = vunpack.c.l.b16 %v670
      %v735 = vunpack.c.l.b16 %v671
      %v736 = vunpack.c.l.b16 %v672
      %v737 = vunpack.c.l.b16 %v673
      %v738 = vunpack.c.l.b16 %v674
      %v739 = vpack.c.b16 %v732, %v731
      %v740 = vpack.c.b16 %v734, %v733
      %v741 = vpack.c.b16 %v736, %v735
      %v742 = vpack.c.b16 %v738, %v737
      %vm747 = vcmask 523264
      %v749 = vsel %vm747, %v707, 0
      %v752 = vsel %vm747, %v708, 0
      %v755 = vsel %vm747, %v709, 0
      %v758 = vsel %vm747, %v710, 0
      %v761 = vsel %vm747, %v711, 0
      %v764 = vsel %vm747, %v712, 0
      %v767 = vsel %vm747, %v713, 0
      %v770 = vsel %vm747, %v714, 0
      %v773 = vsel %vm747, %v715, 0
      %v776 = vsel %vm747, %v716, 0
      %v779 = vsel %vm747, %v717, 0
      %v782 = vsel %vm747, %v718, 0
      %v785 = vsel %vm747, %v719, 0
      %v788 = vsel %vm747, %v720, 0
      %v791 = vsel %vm747, %v721, 0
      %v794 = vsel %vm747, %v722, 0
      %796 = vmatprep.subr.bf16.mxu0 0
      %797 = vmatpush1.bf16.msra.mxu0 %v739
      %798 = vmatprep.subr.bf16.mxu0 0
      %799 = vmatpush1.bf16.msra.mxu0 %v740
      %800 = vmatprep.subr.bf16.mxu0 0
      %801 = vmatpush1.bf16.msra.mxu0 %v741
      %802 = vmatprep.subr.bf16.mxu0 0
      %803 = vmatpush1.bf16.msra.mxu0 %v742
      %804 = vmatprep.subr.bf16.mxu0 0
      %805 = vmatpush1.bf16.msra.mxu0 0
      %806 = vmatprep.subr.bf16.mxu0 0
      %807 = vmatpush1.bf16.msra.mxu0 0
      %808 = vmatprep.subr.bf16.mxu0 0
      %809 = vmatpush1.bf16.msra.mxu0 0
      %810 = vmatprep.subr.bf16.mxu0 0
      %811 = vmatpush1.bf16.msra.mxu0 0
      %812 = vmatprep.subr.bf16.mxu0 0
      %813 = vmatpush1.bf16.msra.mxu0 0
      %814 = vmatprep.subr.bf16.mxu0 0
      %815 = vmatpush1.bf16.msra.mxu0 0
      %816 = vmatprep.subr.bf16.mxu0 0
      %817 = vmatpush1.bf16.msra.mxu0 0
      %818 = vmatprep.subr.bf16.mxu0 0
      %819 = vmatpush1.bf16.msra.mxu0 0
      %820 = vmatprep.subr.bf16.mxu0 0
      %821 = vmatpush1.bf16.msra.mxu0 0
      %822 = vmatprep.subr.bf16.mxu0 0
      %823 = vmatpush1.bf16.msra.mxu0 0
      %824 = vmatprep.subr.bf16.mxu0 0
      %825 = vmatpush1.bf16.msra.mxu0 0
      %826 = vmatprep.subr.bf16.mxu0 0
      %827 = vmatpush1.bf16.msra.mxu0 0
      %828 = vmatprep.mubr.bf16.mxu0 0
      %829 = vmatmul.mubr.bf16.gmra.mrb[0].mxu0 %v749
      %v830 = vpop.f32.mrb[0].mxu0
      %v831 = vadd.f32 0.0, %v830
      %v832 = vpop.f32.mrb[0].mxu0
      %v833 = vpop.f32.mrb[0].mxu0
      %v834 = vadd.f32 0.0, %v833
      %v835 = vpop.f32.mrb[0].mxu0
      %836 = vmatprep.mubr.bf16.mxu0 0
      %837 = vmatmul.mubr.bf16.gmra.mrb[0].mxu0 %v752
      %v838 = vpop.f32.mrb[0].mxu0
      %v839 = vadd.f32 0.0, %v838
      %v840 = vpop.f32.mrb[0].mxu0
      %v841 = vpop.f32.mrb[0].mxu0
      %v842 = vadd.f32 0.0, %v841
      %v843 = vpop.f32.mrb[0].mxu0
      %844 = vmatprep.mubr.bf16.mxu0 0
      %845 = vmatmul.mubr.bf16.gmra.mrb[0].mxu0 %v755
      %v846 = vpop.f32.mrb[0].mxu0
      %v847 = vadd.f32 0.0, %v846
      %v848 = vpop.f32.mrb[0].mxu0
      %v849 = vpop.f32.mrb[0].mxu0
      %v850 = vadd.f32 0.0, %v849
      %v851 = vpop.f32.mrb[0].mxu0
      %852 = vmatprep.mubr.bf16.mxu0 0
      %853 = vmatmul.mubr.bf16.gmra.mrb[0].mxu0 %v758
      %v854 = vpop.f32.mrb[0].mxu0
      %v855 = vadd.f32 0.0, %v854
      %v856 = vpop.f32.mrb[0].mxu0
      %v857 = vpop.f32.mrb[0].mxu0
      %v858 = vadd.f32 0.0, %v857
      %v859 = vpop.f32.mrb[0].mxu0
      %860 = vmatprep.mubr.bf16.mxu0 0
      %861 = vmatmul.mubr.bf16.gmra.mrb[0].mxu0 %v761
      %v862 = vpop.f32.mrb[0].mxu0
      %v863 = vadd.f32 0.0, %v862
      %v864 = vpop.f32.mrb[0].mxu0
      %v865 = vpop.f32.mrb[0].mxu0
      %v866 = vadd.f32 0.0, %v865
      %v867 = vpop.f32.mrb[0].mxu0
      %868 = vmatprep.mubr.bf16.mxu0 0
      %869 = vmatmul.mubr.bf16.gmra.mrb[0].mxu0 %v764
      %v870 = vpop.f32.mrb[0].mxu0
      %v871 = vadd.f32 0.0, %v870
      %v872 = vpop.f32.mrb[0].mxu0
      %v873 = vpop.f32.mrb[0].mxu0
      %v874 = vadd.f32 0.0, %v873
      %v875 = vpop.f32.mrb[0].mxu0
      %876 = vmatprep.mubr.bf16.mxu0 0
      %877 = vmatmul.mubr.bf16.gmra.mrb[0].mxu0 %v767
      %v878 = vpop.f32.mrb[0].mxu0
      %v879 = vadd.f32 0.0, %v878
      %v880 = vpop.f32.mrb[0].mxu0
      %v881 = vpop.f32.mrb[0].mxu0
      %v882 = vadd.f32 0.0, %v881
      %v883 = vpop.f32.mrb[0].mxu0
      %884 = vmatprep.mubr.bf16.mxu0 0
      %885 = vmatmul.mubr.bf16.gmra.mrb[0].mxu0 %v770
      %v886 = vpop.f32.mrb[0].mxu0
      %v887 = vadd.f32 0.0, %v886
      %v888 = vpop.f32.mrb[0].mxu0
      %v889 = vpop.f32.mrb[0].mxu0
      %v890 = vadd.f32 0.0, %v889
      %v891 = vpop.f32.mrb[0].mxu0
      %892 = vmatprep.mubr.bf16.mxu0 0
      %893 = vmatmul.mubr.bf16.gmra.mrb[0].mxu0 %v773
      %v894 = vpop.f32.mrb[0].mxu0
      %v895 = vadd.f32 0.0, %v894
      %v896 = vpop.f32.mrb[0].mxu0
      %v897 = vpop.f32.mrb[0].mxu0
      %v898 = vadd.f32 0.0, %v897
      %v899 = vpop.f32.mrb[0].mxu0
      %900 = vmatprep.mubr.bf16.mxu0 0
      %901 = vmatmul.mubr.bf16.gmra.mrb[0].mxu0 %v776
      %v902 = vpop.f32.mrb[0].mxu0
      %v903 = vadd.f32 0.0, %v902
      %v904 = vpop.f32.mrb[0].mxu0
      %v905 = vpop.f32.mrb[0].mxu0
      %v906 = vadd.f32 0.0, %v905
      %v907 = vpop.f32.mrb[0].mxu0
      %908 = vmatprep.mubr.bf16.mxu0 0
      %909 = vmatmul.mubr.bf16.gmra.mrb[0].mxu0 %v779
      %v910 = vpop.f32.mrb[0].mxu0
      %v911 = vadd.f32 0.0, %v910
      %v912 = vpop.f32.mrb[0].mxu0
      %v913 = vpop.f32.mrb[0].mxu0
      %v914 = vadd.f32 0.0, %v913
      %v915 = vpop.f32.mrb[0].mxu0
      %916 = vmatprep.mubr.bf16.mxu0 0
      %917 = vmatmul.mubr.bf16.gmra.mrb[0].mxu0 %v782
      %v918 = vpop.f32.mrb[0].mxu0
      %v919 = vadd.f32 0.0, %v918
      %v920 = vpop.f32.mrb[0].mxu0
      %v921 = vpop.f32.mrb[0].mxu0
      %v922 = vadd.f32 0.0, %v921
      %v923 = vpop.f32.mrb[0].mxu0
      %924 = vmatprep.mubr.bf16.mxu0 0
      %925 = vmatmul.mubr.bf16.gmra.mrb[0].mxu0 %v785
      %v926 = vpop.f32.mrb[0].mxu0
      %v927 = vadd.f32 0.0, %v926
      %v928 = vpop.f32.mrb[0].mxu0
      %v929 = vpop.f32.mrb[0].mxu0
      %v930 = vadd.f32 0.0, %v929
      %v931 = vpop.f32.mrb[0].mxu0
      %932 = vmatprep.mubr.bf16.mxu0 0
      %933 = vmatmul.mubr.bf16.gmra.mrb[0].mxu0 %v788
      %v934 = vpop.f32.mrb[0].mxu0
      %v935 = vadd.f32 0.0, %v934
      %v936 = vpop.f32.mrb[0].mxu0
      %v937 = vpop.f32.mrb[0].mxu0
      %v938 = vadd.f32 0.0, %v937
      %v939 = vpop.f32.mrb[0].mxu0
      %940 = vmatprep.mubr.bf16.mxu0 0
      %941 = vmatmul.mubr.bf16.gmra.mrb[0].mxu0 %v791
      %v942 = vpop.f32.mrb[0].mxu0
      %v943 = vadd.f32 0.0, %v942
      %v944 = vpop.f32.mrb[0].mxu0
      %v945 = vpop.f32.mrb[0].mxu0
      %v946 = vadd.f32 0.0, %v945
      %v947 = vpop.f32.mrb[0].mxu0
      %948 = vmatprep.mubr.bf16.mxu0 0
      %949 = vmatmul.mubr.bf16.gmra.mrb[0].mxu0 %v794
      %v950 = vpop.f32.mrb[0].mxu0
      %v951 = vadd.f32 0.0, %v950
      %v952 = vpop.f32.mrb[0].mxu0
      %v953 = vpop.f32.mrb[0].mxu0
      %v954 = vadd.f32 0.0, %v953
      %v955 = vpop.f32.mrb[0].mxu0
      %956 = vdwg.mxu0
      %v989 = vunpack.c.l.b16 %v223
      %v990 = vunpack.c.l.b16 %v224
      %v991 = vunpack.c.l.b16 %v225
      %v992 = vunpack.c.l.b16 %v226
      %v993 = vunpack.c.l.b16 %v227
      %v994 = vunpack.c.l.b16 %v228
      %v995 = vunpack.c.l.b16 %v229
      %v996 = vunpack.c.l.b16 %v230
      %v997 = vunpack.c.l.b16 %v231
      %v998 = vunpack.c.l.b16 %v232
      %v999 = vunpack.c.l.b16 %v233
      %v1000 = vunpack.c.l.b16 %v234
      %v1001 = vunpack.c.l.b16 %v235
      %v1002 = vunpack.c.l.b16 %v236
      %v1003 = vunpack.c.l.b16 %v237
      %v1004 = vunpack.c.l.b16 %v238
      %v1005 = vunpack.c.l.b16 %v239
      %v1006 = vunpack.c.l.b16 %v240
      %v1007 = vunpack.c.l.b16 %v241
      %v1008 = vunpack.c.l.b16 %v242
      %v1009 = vunpack.c.l.b16 %v243
      %v1010 = vunpack.c.l.b16 %v244
      %v1011 = vunpack.c.l.b16 %v245
      %v1012 = vunpack.c.l.b16 %v246
      %v1013 = vunpack.c.l.b16 %v247
      %v1014 = vunpack.c.l.b16 %v248
      %v1015 = vunpack.c.l.b16 %v249
      %v1016 = vunpack.c.l.b16 %v250
      %v1017 = vunpack.c.l.b16 %v251
      %v1018 = vunpack.c.l.b16 %v252
      %v1019 = vunpack.c.l.b16 %v253
      %v1020 = vunpack.c.l.b16 %v254
      %v1021 = vpack.c.b16 %v990, %v989
      %v1022 = vpack.c.b16 %v992, %v991
      %v1023 = vpack.c.b16 %v994, %v993
      %v1024 = vpack.c.b16 %v996, %v995
      %v1025 = vpack.c.b16 %v998, %v997
      %v1026 = vpack.c.b16 %v1000, %v999
      %v1027 = vpack.c.b16 %v1002, %v1001
      %v1028 = vpack.c.b16 %v1004, %v1003
      %v1029 = vpack.c.b16 %v1006, %v1005
      %v1030 = vpack.c.b16 %v1008, %v1007
      %v1031 = vpack.c.b16 %v1010, %v1009
      %v1032 = vpack.c.b16 %v1012, %v1011
      %v1033 = vpack.c.b16 %v1014, %v1013
      %v1034 = vpack.c.b16 %v1016, %v1015
      %v1035 = vpack.c.b16 %v1018, %v1017
      %v1036 = vpack.c.b16 %v1020, %v1019
      %v1045 = vunpack.c.l.b16 %v255
      %v1046 = vunpack.c.l.b16 %v256
      %v1047 = vunpack.c.l.b16 %v257
      %v1048 = vunpack.c.l.b16 %v258
      %v1049 = vunpack.c.l.b16 %v259
      %v1050 = vunpack.c.l.b16 %v260
      %v1051 = vunpack.c.l.b16 %v261
      %v1052 = vunpack.c.l.b16 %v262
      %v1053 = vpack.c.b16 %v1046, %v1045
      %v1054 = vpack.c.b16 %v1048, %v1047
      %v1055 = vpack.c.b16 %v1050, %v1049
      %v1056 = vpack.c.b16 %v1052, %v1051
      %v1062 = vsel %vm747, %v1021, 0
      %v1065 = vsel %vm747, %v1022, 0
      %v1068 = vsel %vm747, %v1023, 0
      %v1071 = vsel %vm747, %v1024, 0
      %v1074 = vsel %vm747, %v1025, 0
      %v1077 = vsel %vm747, %v1026, 0
      %v1080 = vsel %vm747, %v1027, 0
      %v1083 = vsel %vm747, %v1028, 0
      %v1086 = vsel %vm747, %v1029, 0
      %v1089 = vsel %vm747, %v1030, 0
      %v1092 = vsel %vm747, %v1031, 0
      %v1095 = vsel %vm747, %v1032, 0
      %v1098 = vsel %vm747, %v1033, 0
      %v1101 = vsel %vm747, %v1034, 0
      %v1104 = vsel %vm747, %v1035, 0
      %v1107 = vsel %vm747, %v1036, 0
      %1109 = vmatprep.subr.bf16.mxu0 0
      %1110 = vmatpush1.bf16.msra.mxu0 %v1053
      %1111 = vmatprep.subr.bf16.mxu0 0
      %1112 = vmatpush1.bf16.msra.mxu0 %v1054
      %1113 = vmatprep.subr.bf16.mxu0 0
      %1114 = vmatpush1.bf16.msra.mxu0 %v1055
      %1115 = vmatprep.subr.bf16.mxu0 0
      %1116 = vmatpush1.bf16.msra.mxu0 %v1056
      %1117 = vmatprep.subr.bf16.mxu0 0
      %1118 = vmatpush1.bf16.msra.mxu0 0
      %1119 = vmatprep.subr.bf16.mxu0 0
      %1120 = vmatpush1.bf16.msra.mxu0 0
      %1121 = vmatprep.subr.bf16.mxu0 0
      %1122 = vmatpush1.bf16.msra.mxu0 0
      %1123 = vmatprep.subr.bf16.mxu0 0
      %1124 = vmatpush1.bf16.msra.mxu0 0
      %1125 = vmatprep.subr.bf16.mxu0 0
      %1126 = vmatpush1.bf16.msra.mxu0 0
      %1127 = vmatprep.subr.bf16.mxu0 0
      %1128 = vmatpush1.bf16.msra.mxu0 0
      %1129 = vmatprep.subr.bf16.mxu0 0
      %1130 = vmatpush1.bf16.msra.mxu0 0
      %1131 = vmatprep.subr.bf16.mxu0 0
      %1132 = vmatpush1.bf16.msra.mxu0 0
      %1133 = vmatprep.subr.bf16.mxu0 0
      %1134 = vmatpush1.bf16.msra.mxu0 0
      %1135 = vmatprep.subr.bf16.mxu0 0
      %1136 = vmatpush1.bf16.msra.mxu0 0
      %1137 = vmatprep.subr.bf16.mxu0 0
      %1138 = vmatpush1.bf16.msra.mxu0 0
      %1139 = vmatprep.subr.bf16.mxu0 0
      %1140 = vmatpush1.bf16.msra.mxu0 0
      %1141 = vmatprep.mubr.bf16.mxu0 0
      %1142 = vmatmul.mubr.bf16.gmra.mrb[0].mxu0 %v1062
      %v1143 = vpop.f32.mrb[0].mxu0
      %v1144 = vadd.f32 %v831, %v1143
      %v1145 = vpop.f32.mrb[0].mxu0
      %v1146 = vpop.f32.mrb[0].mxu0
      %v1147 = vadd.f32 %v834, %v1146
      %v1148 = vpop.f32.mrb[0].mxu0
      %1149 = vmatprep.mubr.bf16.mxu0 0
      %1150 = vmatmul.mubr.bf16.gmra.mrb[0].mxu0 %v1065
      %v1151 = vpop.f32.mrb[0].mxu0
      %v1152 = vadd.f32 %v839, %v1151
      %v1153 = vpop.f32.mrb[0].mxu0
      %v1154 = vpop.f32.mrb[0].mxu0
      %v1155 = vadd.f32 %v842, %v1154
      %v1156 = vpop.f32.mrb[0].mxu0
      %1157 = vmatprep.mubr.bf16.mxu0 0
      %1158 = vmatmul.mubr.bf16.gmra.mrb[0].mxu0 %v1068
      %v1159 = vpop.f32.mrb[0].mxu0
      %v1160 = vadd.f32 %v847, %v1159
      %v1161 = vpop.f32.mrb[0].mxu0
      %v1162 = vpop.f32.mrb[0].mxu0
      %v1163 = vadd.f32 %v850, %v1162
      %v1164 = vpop.f32.mrb[0].mxu0
      %1165 = vmatprep.mubr.bf16.mxu0 0
      %1166 = vmatmul.mubr.bf16.gmra.mrb[0].mxu0 %v1071
      %v1167 = vpop.f32.mrb[0].mxu0
      %v1168 = vadd.f32 %v855, %v1167
      %v1169 = vpop.f32.mrb[0].mxu0
      %v1170 = vpop.f32.mrb[0].mxu0
      %v1171 = vadd.f32 %v858, %v1170
      %v1172 = vpop.f32.mrb[0].mxu0
      %1173 = vmatprep.mubr.bf16.mxu0 0
      %1174 = vmatmul.mubr.bf16.gmra.mrb[0].mxu0 %v1074
      %v1175 = vpop.f32.mrb[0].mxu0
      %v1176 = vadd.f32 %v863, %v1175
      %v1177 = vpop.f32.mrb[0].mxu0
      %v1178 = vpop.f32.mrb[0].mxu0
      %v1179 = vadd.f32 %v866, %v1178
      %v1180 = vpop.f32.mrb[0].mxu0
      %1181 = vmatprep.mubr.bf16.mxu0 0
      %1182 = vmatmul.mubr.bf16.gmra.mrb[0].mxu0 %v1077
      %v1183 = vpop.f32.mrb[0].mxu0
      %v1184 = vadd.f32 %v871, %v1183
      %v1185 = vpop.f32.mrb[0].mxu0
      %v1186 = vpop.f32.mrb[0].mxu0
      %v1187 = vadd.f32 %v874, %v1186
      %v1188 = vpop.f32.mrb[0].mxu0
      %1189 = vmatprep.mubr.bf16.mxu0 0
      %1190 = vmatmul.mubr.bf16.gmra.mrb[0].mxu0 %v1080
      %v1191 = vpop.f32.mrb[0].mxu0
      %v1192 = vadd.f32 %v879, %v1191
      %v1193 = vpop.f32.mrb[0].mxu0
      %v1194 = vpop.f32.mrb[0].mxu0
      %v1195 = vadd.f32 %v882, %v1194
      %v1196 = vpop.f32.mrb[0].mxu0
      %1197 = vmatprep.mubr.bf16.mxu0 0
      %1198 = vmatmul.mubr.bf16.gmra.mrb[0].mxu0 %v1083
      %v1199 = vpop.f32.mrb[0].mxu0
      %v1200 = vadd.f32 %v887, %v1199
      %v1201 = vpop.f32.mrb[0].mxu0
      %v1202 = vpop.f32.mrb[0].mxu0
      %v1203 = vadd.f32 %v890, %v1202
      %v1204 = vpop.f32.mrb[0].mxu0
      %1205 = vmatprep.mubr.bf16.mxu0 0
      %1206 = vmatmul.mubr.bf16.gmra.mrb[0].mxu0 %v1086
      %v1207 = vpop.f32.mrb[0].mxu0
      %v1208 = vadd.f32 %v895, %v1207
      %v1209 = vpop.f32.mrb[0].mxu0
      %v1210 = vpop.f32.mrb[0].mxu0
      %v1211 = vadd.f32 %v898, %v1210
      %v1212 = vpop.f32.mrb[0].mxu0
      %1213 = vmatprep.mubr.bf16.mxu0 0
      %1214 = vmatmul.mubr.bf16.gmra.mrb[0].mxu0 %v1089
      %v1215 = vpop.f32.mrb[0].mxu0
      %v1216 = vadd.f32 %v903, %v1215
      %v1217 = vpop.f32.mrb[0].mxu0
      %v1218 = vpop.f32.mrb[0].mxu0
      %v1219 = vadd.f32 %v906, %v1218
      %v1220 = vpop.f32.mrb[0].mxu0
      %1221 = vmatprep.mubr.bf16.mxu0 0
      %1222 = vmatmul.mubr.bf16.gmra.mrb[0].mxu0 %v1092
      %v1223 = vpop.f32.mrb[0].mxu0
      %v1224 = vadd.f32 %v911, %v1223
      %v1225 = vpop.f32.mrb[0].mxu0
      %v1226 = vpop.f32.mrb[0].mxu0
      %v1227 = vadd.f32 %v914, %v1226
      %v1228 = vpop.f32.mrb[0].mxu0
      %1229 = vmatprep.mubr.bf16.mxu0 0
      %1230 = vmatmul.mubr.bf16.gmra.mrb[0].mxu0 %v1095
      %v1231 = vpop.f32.mrb[0].mxu0
      %v1232 = vadd.f32 %v919, %v1231
      %v1233 = vpop.f32.mrb[0].mxu0
      %v1234 = vpop.f32.mrb[0].mxu0
      %v1235 = vadd.f32 %v922, %v1234
      %v1236 = vpop.f32.mrb[0].mxu0
      %1237 = vmatprep.mubr.bf16.mxu0 0
      %1238 = vmatmul.mubr.bf16.gmra.mrb[0].mxu0 %v1098
      %v1239 = vpop.f32.mrb[0].mxu0
      %v1240 = vadd.f32 %v927, %v1239
      %v1241 = vpop.f32.mrb[0].mxu0
      %v1242 = vpop.f32.mrb[0].mxu0
      %v1243 = vadd.f32 %v930, %v1242
      %v1244 = vpop.f32.mrb[0].mxu0
      %1245 = vmatprep.mubr.bf16.mxu0 0
      %1246 = vmatmul.mubr.bf16.gmra.mrb[0].mxu0 %v1101
      %v1247 = vpop.f32.mrb[0].mxu0
      %v1248 = vadd.f32 %v935, %v1247
      %v1249 = vpop.f32.mrb[0].mxu0
      %v1250 = vpop.f32.mrb[0].mxu0
      %v1251 = vadd.f32 %v938, %v1250
      %v1252 = vpop.f32.mrb[0].mxu0
      %1253 = vmatprep.mubr.bf16.mxu0 0
      %1254 = vmatmul.mubr.bf16.gmra.mrb[0].mxu0 %v1104
      %v1255 = vpop.f32.mrb[0].mxu0
      %v1256 = vadd.f32 %v943, %v1255
      %v1257 = vpop.f32.mrb[0].mxu0
      %v1258 = vpop.f32.mrb[0].mxu0
      %v1259 = vadd.f32 %v946, %v1258
      %v1260 = vpop.f32.mrb[0].mxu0
      %1261 = vmatprep.mubr.bf16.mxu0 0
      %1262 = vmatmul.mubr.bf16.gmra.mrb[0].mxu0 %v1107
      %v1263 = vpop.f32.mrb[0].mxu0
      %v1264 = vadd.f32 %v951, %v1263
      %v1265 = vpop.f32.mrb[0].mxu0
      %v1266 = vpop.f32.mrb[0].mxu0
      %v1267 = vadd.f32 %v954, %v1266
      %v1268 = vpop.f32.mrb[0].mxu0
      %1269 = vdwg.mxu0
      %v1270 = vld [vmem:[%s206] sm:$0xe]
      %v1271 = vld [vmem:[%s206 + $0xc] sm:$0xe]
      %v1272 = vld [vmem:[%s206 + $0x18] sm:$0xe]
      %v1273 = vld [vmem:[%s206 + $0x24] sm:$0xe]
      %v1274 = vld [vmem:[%s206 + $0x30] sm:$0xe]
      %v1275 = vld [vmem:[%s206 + $0x3c] sm:$0xe]
      %v1276 = vld [vmem:[%s206 + $0x48] sm:$0xe]
      %v1277 = vld [vmem:[%s206 + $0x54] sm:$0xe]
      %v1278 = vld [vmem:[%s206 + $0x60] sm:$0xe]
      %v1279 = vld [vmem:[%s206 + $0x6c] sm:$0xe]
      %v1280 = vld [vmem:[%s206 + $0x78] sm:$0xe]
      %v1281 = vld [vmem:[%s206 + $0x84] sm:$0xe]
      %v1282 = vld [vmem:[%s206 + $0x90] sm:$0xe]
      %v1283 = vld [vmem:[%s206 + $0x9c] sm:$0xe]
      %v1284 = vld [vmem:[%s206 + $0xa8] sm:$0xe]
      %v1285 = vld [vmem:[%s206 + $0xb4] sm:$0xe]
      %vm1318 = vcmask 1042432
      %vm1319 = vcmask 1046532
      %vm1320 = vmor %vm1318, %vm1319
      %v1321 = vrot.slane %v1270, 5
      %v1322 = vrot.slane %v1321, 4
      %v1323 = vrot.slane %v224, 5
      %v1324 = vsel %vm1320, %v1322, %v1323
      %v1325 = vrot.slane %v1323, 4
      %v1326 = vrot.slane %v263, 5
      %v1327 = vsel %vm1320, %v1325, %v1326
      %v1328 = vrot.slane %v1271, 5
      %v1329 = vrot.slane %v1328, 4
      %v1330 = vrot.slane %v226, 5
      %v1331 = vsel %vm1320, %v1329, %v1330
      %v1332 = vrot.slane %v1330, 4
      %v1333 = vrot.slane %v264, 5
      %v1334 = vsel %vm1320, %v1332, %v1333
      %v1335 = vrot.slane %v1272, 5
      %v1336 = vrot.slane %v1335, 4
      %v1337 = vrot.slane %v228, 5
      %v1338 = vsel %vm1320, %v1336, %v1337
      %v1339 = vrot.slane %v1337, 4
      %v1340 = vrot.slane %v265, 5
      %v1341 = vsel %vm1320, %v1339, %v1340
      %v1342 = vrot.slane %v1273, 5
      %v1343 = vrot.slane %v1342, 4
      %v1344 = vrot.slane %v230, 5
      %v1345 = vsel %vm1320, %v1343, %v1344
      %v1346 = vrot.slane %v1344, 4
      %v1347 = vrot.slane %v266, 5
      %v1348 = vsel %vm1320, %v1346, %v1347
      %v1349 = vrot.slane %v1274, 5
      %v1350 = vrot.slane %v1349, 4
      %v1351 = vrot.slane %v232, 5
      %v1352 = vsel %vm1320, %v1350, %v1351
      %v1353 = vrot.slane %v1351, 4
      %v1354 = vrot.slane %v267, 5
      %v1355 = vsel %vm1320, %v1353, %v1354
      %v1356 = vrot.slane %v1275, 5
      %v1357 = vrot.slane %v1356, 4
      %v1358 = vrot.slane %v234, 5
      %v1359 = vsel %vm1320, %v1357, %v1358
      %v1360 = vrot.slane %v1358, 4
      %v1361 = vrot.slane %v268, 5
      %v1362 = vsel %vm1320, %v1360, %v1361
      %v1363 = vrot.slane %v1276, 5
      %v1364 = vrot.slane %v1363, 4
      %v1365 = vrot.slane %v236, 5
      %v1366 = vsel %vm1320, %v1364, %v1365
      %v1367 = vrot.slane %v1365, 4
      %v1368 = vrot.slane %v269, 5
      %v1369 = vsel %vm1320, %v1367, %v1368
      %v1370 = vrot.slane %v1277, 5
      %v1371 = vrot.slane %v1370, 4
      %v1372 = vrot.slane %v238, 5
      %v1373 = vsel %vm1320, %v1371, %v1372
      %v1374 = vrot.slane %v1372, 4
      %v1375 = vrot.slane %v270, 5
      %v1376 = vsel %vm1320, %v1374, %v1375
      %v1377 = vrot.slane %v1278, 5
      %v1378 = vrot.slane %v1377, 4
      %v1379 = vrot.slane %v240, 5
      %v1380 = vsel %vm1320, %v1378, %v1379
      %v1381 = vrot.slane %v1379, 4
      %v1382 = vrot.slane %v271, 5
      %v1383 = vsel %vm1320, %v1381, %v1382
      %v1384 = vrot.slane %v1279, 5
      %v1385 = vrot.slane %v1384, 4
      %v1386 = vrot.slane %v242, 5
      %v1387 = vsel %vm1320, %v1385, %v1386
      %v1388 = vrot.slane %v1386, 4
      %v1389 = vrot.slane %v272, 5
      %v1390 = vsel %vm1320, %v1388, %v1389
      %v1391 = vrot.slane %v1280, 5
      %v1392 = vrot.slane %v1391, 4
      %v1393 = vrot.slane %v244, 5
      %v1394 = vsel %vm1320, %v1392, %v1393
      %v1395 = vrot.slane %v1393, 4
      %v1396 = vrot.slane %v273, 5
      %v1397 = vsel %vm1320, %v1395, %v1396
      %v1398 = vrot.slane %v1281, 5
      %v1399 = vrot.slane %v1398, 4
      %v1400 = vrot.slane %v246, 5
      %v1401 = vsel %vm1320, %v1399, %v1400
      %v1402 = vrot.slane %v1400, 4
      %v1403 = vrot.slane %v274, 5
      %v1404 = vsel %vm1320, %v1402, %v1403
      %v1405 = vrot.slane %v1282, 5
      %v1406 = vrot.slane %v1405, 4
      %v1407 = vrot.slane %v248, 5
      %v1408 = vsel %vm1320, %v1406, %v1407
      %v1409 = vrot.slane %v1407, 4
      %v1410 = vrot.slane %v275, 5
      %v1411 = vsel %vm1320, %v1409, %v1410
      %v1412 = vrot.slane %v1283, 5
      %v1413 = vrot.slane %v1412, 4
      %v1414 = vrot.slane %v250, 5
      %v1415 = vsel %vm1320, %v1413, %v1414
      %v1416 = vrot.slane %v1414, 4
      %v1417 = vrot.slane %v276, 5
      %v1418 = vsel %vm1320, %v1416, %v1417
      %v1419 = vrot.slane %v1284, 5
      %v1420 = vrot.slane %v1419, 4
      %v1421 = vrot.slane %v252, 5
      %v1422 = vsel %vm1320, %v1420, %v1421
      %v1423 = vrot.slane %v1421, 4
      %v1424 = vrot.slane %v277, 5
      %v1425 = vsel %vm1320, %v1423, %v1424
      %v1426 = vrot.slane %v1285, 5
      %v1427 = vrot.slane %v1426, 4
      %v1428 = vrot.slane %v254, 5
      %v1429 = vsel %vm1320, %v1427, %v1428
      %v1430 = vrot.slane %v1428, 4
      %v1431 = vrot.slane %v278, 5
      %v1432 = vsel %vm1320, %v1430, %v1431
      %s1433 = scalar_lea.vmem %s210, 64
      %v1434 = vld [vmem:[%s1433] sm:$0xf]
      %v1435 = vld [vmem:[%s1433 + $0x4] sm:$0xf]
      %v1436 = vld [vmem:[%s1433 + $0x8] sm:$0xf]
      %v1437 = vld [vmem:[%s1433 + $0xc] sm:$0xf]
      %v1438 = vld [vmem:[%s1433 + $0x10] sm:$0xf]
      %v1439 = vld [vmem:[%s1433 + $0x14] sm:$0xf]
      %v1440 = vld [vmem:[%s1433 + $0x18] sm:$0xf]
      %v1441 = vld [vmem:[%s1433 + $0x1c] sm:$0xf]
      %v1442 = vunpack.c.l.b16 %v1324
      %v1443 = vunpack.c.l.b16 %v1327
      %v1444 = vunpack.c.l.b16 %v1331
      %v1445 = vunpack.c.l.b16 %v1334
      %v1446 = vunpack.c.l.b16 %v1338
      %v1447 = vunpack.c.l.b16 %v1341
      %v1448 = vunpack.c.l.b16 %v1345
      %v1449 = vunpack.c.l.b16 %v1348
      %v1450 = vunpack.c.l.b16 %v1352
      %v1451 = vunpack.c.l.b16 %v1355
      %v1452 = vunpack.c.l.b16 %v1359
      %v1453 = vunpack.c.l.b16 %v1362
      %v1454 = vunpack.c.l.b16 %v1366
      %v1455 = vunpack.c.l.b16 %v1369
      %v1456 = vunpack.c.l.b16 %v1373
      %v1457 = vunpack.c.l.b16 %v1376
      %v1458 = vunpack.c.l.b16 %v1380
      %v1459 = vunpack.c.l.b16 %v1383
      %v1460 = vunpack.c.l.b16 %v1387
      %v1461 = vunpack.c.l.b16 %v1390
      %v1462 = vunpack.c.l.b16 %v1394
      %v1463 = vunpack.c.l.b16 %v1397
      %v1464 = vunpack.c.l.b16 %v1401
      %v1465 = vunpack.c.l.b16 %v1404
      %v1466 = vunpack.c.l.b16 %v1408
      %v1467 = vunpack.c.l.b16 %v1411
      %v1468 = vunpack.c.l.b16 %v1415
      %v1469 = vunpack.c.l.b16 %v1418
      %v1470 = vunpack.c.l.b16 %v1422
      %v1471 = vunpack.c.l.b16 %v1425
      %v1472 = vunpack.c.l.b16 %v1429
      %v1473 = vunpack.c.l.b16 %v1432
      %v1474 = vpack.c.b16 %v1443, %v1442
      %v1475 = vpack.c.b16 %v1445, %v1444
      %v1476 = vpack.c.b16 %v1447, %v1446
      %v1477 = vpack.c.b16 %v1449, %v1448
      %v1478 = vpack.c.b16 %v1451, %v1450
      %v1479 = vpack.c.b16 %v1453, %v1452
      %v1480 = vpack.c.b16 %v1455, %v1454
      %v1481 = vpack.c.b16 %v1457, %v1456
      %v1482 = vpack.c.b16 %v1459, %v1458
      %v1483 = vpack.c.b16 %v1461, %v1460
      %v1484 = vpack.c.b16 %v1463, %v1462
      %v1485 = vpack.c.b16 %v1465, %v1464
      %v1486 = vpack.c.b16 %v1467, %v1466
      %v1487 = vpack.c.b16 %v1469, %v1468
      %v1488 = vpack.c.b16 %v1471, %v1470
      %v1489 = vpack.c.b16 %v1473, %v1472
      %v1498 = vunpack.c.l.b16 %v1434
      %v1499 = vunpack.c.l.b16 %v1435
      %v1500 = vunpack.c.l.b16 %v1436
      %v1501 = vunpack.c.l.b16 %v1437
      %v1502 = vunpack.c.l.b16 %v1438
      %v1503 = vunpack.c.l.b16 %v1439
      %v1504 = vunpack.c.l.b16 %v1440
      %v1505 = vunpack.c.l.b16 %v1441
      %v1506 = vpack.c.b16 %v1499, %v1498
      %v1507 = vpack.c.b16 %v1501, %v1500
      %v1508 = vpack.c.b16 %v1503, %v1502
      %v1509 = vpack.c.b16 %v1505, %v1504
      %v1515 = vsel %vm747, %v1474, 0
      %v1518 = vsel %vm747, %v1475, 0
      %v1521 = vsel %vm747, %v1476, 0
      %v1524 = vsel %vm747, %v1477, 0
      %v1527 = vsel %vm747, %v1478, 0
      %v1530 = vsel %vm747, %v1479, 0
      %v1533 = vsel %vm747, %v1480, 0
      %v1536 = vsel %vm747, %v1481, 0
      %v1539 = vsel %vm747, %v1482, 0
      %v1542 = vsel %vm747, %v1483, 0
      %v1545 = vsel %vm747, %v1484, 0
      %v1548 = vsel %vm747, %v1485, 0
      %v1551 = vsel %vm747, %v1486, 0
      %v1554 = vsel %vm747, %v1487, 0
      %v1557 = vsel %vm747, %v1488, 0
      %v1560 = vsel %vm747, %v1489, 0
      %1562 = vmatprep.subr.bf16.mxu0 0
      %1563 = vmatpush1.bf16.msra.mxu0 %v1506
      %1564 = vmatprep.subr.bf16.mxu0 0
      %1565 = vmatpush1.bf16.msra.mxu0 %v1507
      %1566 = vmatprep.subr.bf16.mxu0 0
      %1567 = vmatpush1.bf16.msra.mxu0 %v1508
      %1568 = vmatprep.subr.bf16.mxu0 0
      %1569 = vmatpush1.bf16.msra.mxu0 %v1509
      %1570 = vmatprep.subr.bf16.mxu0 0
      %1571 = vmatpush1.bf16.msra.mxu0 0
      %1572 = vmatprep.subr.bf16.mxu0 0
      %1573 = vmatpush1.bf16.msra.mxu0 0
      %1574 = vmatprep.subr.bf16.mxu0 0
      %1575 = vmatpush1.bf16.msra.mxu0 0
      %1576 = vmatprep.subr.bf16.mxu0 0
      %1577 = vmatpush1.bf16.msra.mxu0 0
      %1578 = vmatprep.subr.bf16.mxu0 0
      %1579 = vmatpush1.bf16.msra.mxu0 0
      %1580 = vmatprep.subr.bf16.mxu0 0
      %1581 = vmatpush1.bf16.msra.mxu0 0
      %1582 = vmatprep.subr.bf16.mxu0 0
      %1583 = vmatpush1.bf16.msra.mxu0 0
      %1584 = vmatprep.subr.bf16.mxu0 0
      %1585 = vmatpush1.bf16.msra.mxu0 0
      %1586 = vmatprep.subr.bf16.mxu0 0
      %1587 = vmatpush1.bf16.msra.mxu0 0
      %1588 = vmatprep.subr.bf16.mxu0 0
      %1589 = vmatpush1.bf16.msra.mxu0 0
      %1590 = vmatprep.subr.bf16.mxu0 0
      %1591 = vmatpush1.bf16.msra.mxu0 0
      %1592 = vmatprep.subr.bf16.mxu0 0
      %1593 = vmatpush1.bf16.msra.mxu0 0
      %1594 = vmatprep.mubr.bf16.mxu0 0
      %1595 = vmatmul.mubr.bf16.gmra.mrb[0].mxu0 %v1515
      %v1596 = vpop.f32.mrb[0].mxu0
      %v1597 = vadd.f32 0.0, %v1596
      %v1598 = vpop.f32.mrb[0].mxu0
      %v1599 = vpop.f32.mrb[0].mxu0
      %v1600 = vadd.f32 0.0, %v1599
      %v1601 = vpop.f32.mrb[0].mxu0
      %1602 = vmatprep.mubr.bf16.mxu0 0
      %1603 = vmatmul.mubr.bf16.gmra.mrb[0].mxu0 %v1518
      %v1604 = vpop.f32.mrb[0].mxu0
      %v1605 = vadd.f32 0.0, %v1604
      %v1606 = vpop.f32.mrb[0].mxu0
      %v1607 = vpop.f32.mrb[0].mxu0
      %v1608 = vadd.f32 0.0, %v1607
      %v1609 = vpop.f32.mrb[0].mxu0
      %1610 = vmatprep.mubr.bf16.mxu0 0
      %1611 = vmatmul.mubr.bf16.gmra.mrb[0].mxu0 %v1521
      %v1612 = vpop.f32.mrb[0].mxu0
      %v1613 = vadd.f32 0.0, %v1612
      %v1614 = vpop.f32.mrb[0].mxu0
      %v1615 = vpop.f32.mrb[0].mxu0
      %v1616 = vadd.f32 0.0, %v1615
      %v1617 = vpop.f32.mrb[0].mxu0
      %1618 = vmatprep.mubr.bf16.mxu0 0
      %1619 = vmatmul.mubr.bf16.gmra.mrb[0].mxu0 %v1524
      %v1620 = vpop.f32.mrb[0].mxu0
      %v1621 = vadd.f32 0.0, %v1620
      %v1622 = vpop.f32.mrb[0].mxu0
      %v1623 = vpop.f32.mrb[0].mxu0
      %v1624 = vadd.f32 0.0, %v1623
      %v1625 = vpop.f32.mrb[0].mxu0
      %1626 = vmatprep.mubr.bf16.mxu0 0
      %1627 = vmatmul.mubr.bf16.gmra.mrb[0].mxu0 %v1527
      %v1628 = vpop.f32.mrb[0].mxu0
      %v1629 = vadd.f32 0.0, %v1628
      %v1630 = vpop.f32.mrb[0].mxu0
      %v1631 = vpop.f32.mrb[0].mxu0
      %v1632 = vadd.f32 0.0, %v1631
      %v1633 = vpop.f32.mrb[0].mxu0
      %1634 = vmatprep.mubr.bf16.mxu0 0
      %1635 = vmatmul.mubr.bf16.gmra.mrb[0].mxu0 %v1530
      %v1636 = vpop.f32.mrb[0].mxu0
      %v1637 = vadd.f32 0.0, %v1636
      %v1638 = vpop.f32.mrb[0].mxu0
      %v1639 = vpop.f32.mrb[0].mxu0
      %v1640 = vadd.f32 0.0, %v1639
      %v1641 = vpop.f32.mrb[0].mxu0
      %1642 = vmatprep.mubr.bf16.mxu0 0
      %1643 = vmatmul.mubr.bf16.gmra.mrb[0].mxu0 %v1533
      %v1644 = vpop.f32.mrb[0].mxu0
      %v1645 = vadd.f32 0.0, %v1644
      %v1646 = vpop.f32.mrb[0].mxu0
      %v1647 = vpop.f32.mrb[0].mxu0
      %v1648 = vadd.f32 0.0, %v1647
      %v1649 = vpop.f32.mrb[0].mxu0
      %1650 = vmatprep.mubr.bf16.mxu0 0
      %1651 = vmatmul.mubr.bf16.gmra.mrb[0].mxu0 %v1536
      %v1652 = vpop.f32.mrb[0].mxu0
      %v1653 = vadd.f32 0.0, %v1652
      %v1654 = vpop.f32.mrb[0].mxu0
      %v1655 = vpop.f32.mrb[0].mxu0
      %v1656 = vadd.f32 0.0, %v1655
      %v1657 = vpop.f32.mrb[0].mxu0
      %1658 = vmatprep.mubr.bf16.mxu0 0
      %1659 = vmatmul.mubr.bf16.gmra.mrb[0].mxu0 %v1539
      %v1660 = vpop.f32.mrb[0].mxu0
      %v1661 = vadd.f32 0.0, %v1660
      %v1662 = vpop.f32.mrb[0].mxu0
      %v1663 = vpop.f32.mrb[0].mxu0
      %v1664 = vadd.f32 0.0, %v1663
      %v1665 = vpop.f32.mrb[0].mxu0
      %1666 = vmatprep.mubr.bf16.mxu0 0
      %1667 = vmatmul.mubr.bf16.gmra.mrb[0].mxu0 %v1542
      %v1668 = vpop.f32.mrb[0].mxu0
      %v1669 = vadd.f32 0.0, %v1668
      %v1670 = vpop.f32.mrb[0].mxu0
      %v1671 = vpop.f32.mrb[0].mxu0
      %v1672 = vadd.f32 0.0, %v1671
      %v1673 = vpop.f32.mrb[0].mxu0
      %1674 = vmatprep.mubr.bf16.mxu0 0
      %1675 = vmatmul.mubr.bf16.gmra.mrb[0].mxu0 %v1545
      %v1676 = vpop.f32.mrb[0].mxu0
      %v1677 = vadd.f32 0.0, %v1676
      %v1678 = vpop.f32.mrb[0].mxu0
      %v1679 = vpop.f32.mrb[0].mxu0
      %v1680 = vadd.f32 0.0, %v1679
      %v1681 = vpop.f32.mrb[0].mxu0
      %1682 = vmatprep.mubr.bf16.mxu0 0
      %1683 = vmatmul.mubr.bf16.gmra.mrb[0].mxu0 %v1548
      %v1684 = vpop.f32.mrb[0].mxu0
      %v1685 = vadd.f32 0.0, %v1684
      %v1686 = vpop.f32.mrb[0].mxu0
      %v1687 = vpop.f32.mrb[0].mxu0
      %v1688 = vadd.f32 0.0, %v1687
      %v1689 = vpop.f32.mrb[0].mxu0
      %1690 = vmatprep.mubr.bf16.mxu0 0
      %1691 = vmatmul.mubr.bf16.gmra.mrb[0].mxu0 %v1551
      %v1692 = vpop.f32.mrb[0].mxu0
      %v1693 = vadd.f32 0.0, %v1692
      %v1694 = vpop.f32.mrb[0].mxu0
      %v1695 = vpop.f32.mrb[0].mxu0
      %v1696 = vadd.f32 0.0, %v1695
      %v1697 = vpop.f32.mrb[0].mxu0
      %1698 = vmatprep.mubr.bf16.mxu0 0
      %1699 = vmatmul.mubr.bf16.gmra.mrb[0].mxu0 %v1554
      %v1700 = vpop.f32.mrb[0].mxu0
      %v1701 = vadd.f32 0.0, %v1700
      %v1702 = vpop.f32.mrb[0].mxu0
      %v1703 = vpop.f32.mrb[0].mxu0
      %v1704 = vadd.f32 0.0, %v1703
      %v1705 = vpop.f32.mrb[0].mxu0
      %1706 = vmatprep.mubr.bf16.mxu0 0
      %1707 = vmatmul.mubr.bf16.gmra.mrb[0].mxu0 %v1557
      %v1708 = vpop.f32.mrb[0].mxu0
      %v1709 = vadd.f32 0.0, %v1708
      %v1710 = vpop.f32.mrb[0].mxu0
      %v1711 = vpop.f32.mrb[0].mxu0
      %v1712 = vadd.f32 0.0, %v1711
      %v1713 = vpop.f32.mrb[0].mxu0
      %1714 = vmatprep.mubr.bf16.mxu0 0
      %1715 = vmatmul.mubr.bf16.gmra.mrb[0].mxu0 %v1560
      %v1716 = vpop.f32.mrb[0].mxu0
      %v1717 = vadd.f32 0.0, %v1716
      %v1718 = vpop.f32.mrb[0].mxu0
      %v1719 = vpop.f32.mrb[0].mxu0
      %v1720 = vadd.f32 0.0, %v1719
      %v1721 = vpop.f32.mrb[0].mxu0
      %1722 = vdwg.mxu0
      %v1723 = vadd.f32 %v1144, %v1597
      %v1724 = vadd.f32 %v1147, %v1600
      %v1725 = vadd.f32 %v1152, %v1605
      %v1726 = vadd.f32 %v1155, %v1608
      %v1727 = vadd.f32 %v1160, %v1613
      %v1728 = vadd.f32 %v1163, %v1616
      %v1729 = vadd.f32 %v1168, %v1621
      %v1730 = vadd.f32 %v1171, %v1624
      %v1731 = vadd.f32 %v1176, %v1629
      %v1732 = vadd.f32 %v1179, %v1632
      %v1733 = vadd.f32 %v1184, %v1637
      %v1734 = vadd.f32 %v1187, %v1640
      %v1735 = vadd.f32 %v1192, %v1645
      %v1736 = vadd.f32 %v1195, %v1648
      %v1737 = vadd.f32 %v1200, %v1653
      %v1738 = vadd.f32 %v1203, %v1656
      %v1739 = vadd.f32 %v1208, %v1661
      %v1740 = vadd.f32 %v1211, %v1664
      %v1741 = vadd.f32 %v1216, %v1669
      %v1742 = vadd.f32 %v1219, %v1672
      %v1743 = vadd.f32 %v1224, %v1677
      %v1744 = vadd.f32 %v1227, %v1680
      %v1745 = vadd.f32 %v1232, %v1685
      %v1746 = vadd.f32 %v1235, %v1688
      %v1747 = vadd.f32 %v1240, %v1693
      %v1748 = vadd.f32 %v1243, %v1696
      %v1749 = vadd.f32 %v1248, %v1701
      %v1750 = vadd.f32 %v1251, %v1704
      %v1751 = vadd.f32 %v1256, %v1709
      %v1752 = vadd.f32 %v1259, %v1712
      %v1753 = vadd.f32 %v1264, %v1717
      %v1754 = vadd.f32 %v1267, %v1720
      %v1755 = vld [vmem:[%s213] sm:$0x1]
      %v1757 = vlaneseq
      %v1758 = vshrl.u32 %v1757, 7
      %v1759 = vsub.s32 0, %v1758
      %v1760 = vrot.slane %v1755, %v1759
      %v1762 = vadd.f32 %v1723, %v1760
      %v1763 = vadd.f32 %v1724, %v1760
      %v1764 = vadd.f32 %v1725, %v1760
      %v1765 = vadd.f32 %v1726, %v1760
      %v1766 = vadd.f32 %v1727, %v1760
      %v1767 = vadd.f32 %v1728, %v1760
      %v1768 = vadd.f32 %v1729, %v1760
      %v1769 = vadd.f32 %v1730, %v1760
      %v1770 = vadd.f32 %v1731, %v1760
      %v1771 = vadd.f32 %v1732, %v1760
      %v1772 = vadd.f32 %v1733, %v1760
      %v1773 = vadd.f32 %v1734, %v1760
      %v1774 = vadd.f32 %v1735, %v1760
      %v1775 = vadd.f32 %v1736, %v1760
      %v1776 = vadd.f32 %v1737, %v1760
      %v1777 = vadd.f32 %v1738, %v1760
      %v1778 = vadd.f32 %v1739, %v1760
      %v1779 = vadd.f32 %v1740, %v1760
      %v1780 = vadd.f32 %v1741, %v1760
      %v1781 = vadd.f32 %v1742, %v1760
      %v1782 = vadd.f32 %v1743, %v1760
      %v1783 = vadd.f32 %v1744, %v1760
      %v1784 = vadd.f32 %v1745, %v1760
      %v1785 = vadd.f32 %v1746, %v1760
      %v1786 = vadd.f32 %v1747, %v1760
      %v1787 = vadd.f32 %v1748, %v1760
      %v1788 = vadd.f32 %v1749, %v1760
      %v1789 = vadd.f32 %v1750, %v1760
      %v1790 = vadd.f32 %v1751, %v1760
      %v1791 = vadd.f32 %v1752, %v1760
      %v1792 = vadd.f32 %v1753, %v1760
      %v1793 = vadd.f32 %v1754, %v1760
      %v1794 = vmax.f32 %v1762, 0.0
      %v1795 = vmax.f32 %v1763, 0.0
      %v1796 = vmax.f32 %v1764, 0.0
      %v1797 = vmax.f32 %v1765, 0.0
      %v1798 = vmax.f32 %v1766, 0.0
      %v1799 = vmax.f32 %v1767, 0.0
      %v1800 = vmax.f32 %v1768, 0.0
      %v1801 = vmax.f32 %v1769, 0.0
      %v1802 = vmax.f32 %v1770, 0.0
      %v1803 = vmax.f32 %v1771, 0.0
      %v1804 = vmax.f32 %v1772, 0.0
      %v1805 = vmax.f32 %v1773, 0.0
      %v1806 = vmax.f32 %v1774, 0.0
      %v1807 = vmax.f32 %v1775, 0.0
      %v1808 = vmax.f32 %v1776, 0.0
      %v1809 = vmax.f32 %v1777, 0.0
      %v1810 = vmax.f32 %v1778, 0.0
      %v1811 = vmax.f32 %v1779, 0.0
      %v1812 = vmax.f32 %v1780, 0.0
      %v1813 = vmax.f32 %v1781, 0.0
      %v1814 = vmax.f32 %v1782, 0.0
      %v1815 = vmax.f32 %v1783, 0.0
      %v1816 = vmax.f32 %v1784, 0.0
      %v1817 = vmax.f32 %v1785, 0.0
      %v1818 = vmax.f32 %v1786, 0.0
      %v1819 = vmax.f32 %v1787, 0.0
      %v1820 = vmax.f32 %v1788, 0.0
      %v1821 = vmax.f32 %v1789, 0.0
      %v1822 = vmax.f32 %v1790, 0.0
      %v1823 = vmax.f32 %v1791, 0.0
      %v1824 = vmax.f32 %v1792, 0.0
      %v1825 = vmax.f32 %v1793, 0.0
      %v1826 = vpack.c.bf16 %v1795, %v1794
      %v1827 = vpack.c.bf16 %v1797, %v1796
      %v1828 = vpack.c.bf16 %v1799, %v1798
      %v1829 = vpack.c.bf16 %v1801, %v1800
      %v1830 = vpack.c.bf16 %v1803, %v1802
      %v1831 = vpack.c.bf16 %v1805, %v1804
      %v1832 = vpack.c.bf16 %v1807, %v1806
      %v1833 = vpack.c.bf16 %v1809, %v1808
      %v1834 = vpack.c.bf16 %v1811, %v1810
      %v1835 = vpack.c.bf16 %v1813, %v1812
      %v1836 = vpack.c.bf16 %v1815, %v1814
      %v1837 = vpack.c.bf16 %v1817, %v1816
      %v1838 = vpack.c.bf16 %v1819, %v1818
      %v1839 = vpack.c.bf16 %v1821, %v1820
      %v1840 = vpack.c.bf16 %v1823, %v1822
      %v1841 = vpack.c.bf16 %v1825, %v1824
      %v1858 = vunpack.c.l.b16 %v1826
      %v1859 = vunpack.c.h.b16 %v1826
      %v1860 = vunpack.c.l.b16 %v1827
      %v1861 = vunpack.c.h.b16 %v1827
      %v1862 = vunpack.c.l.b16 %v1828
      %v1863 = vunpack.c.h.b16 %v1828
      %v1864 = vunpack.c.l.b16 %v1829
      %v1865 = vunpack.c.h.b16 %v1829
      %v1866 = vunpack.c.l.b16 %v1830
      %v1867 = vunpack.c.h.b16 %v1830
      %v1868 = vunpack.c.l.b16 %v1831
      %v1869 = vunpack.c.h.b16 %v1831
      %v1870 = vunpack.c.l.b16 %v1832
      %v1871 = vunpack.c.h.b16 %v1832
      %v1872 = vunpack.c.l.b16 %v1833
      %v1873 = vunpack.c.h.b16 %v1833
      %v1874 = vunpack.c.l.b16 %v1834
      %v1875 = vunpack.c.h.b16 %v1834
      %v1876 = vunpack.c.l.b16 %v1835
      %v1877 = vunpack.c.h.b16 %v1835
      %v1878 = vunpack.c.l.b16 %v1836
      %v1879 = vunpack.c.h.b16 %v1836
      %v1880 = vunpack.c.l.b16 %v1837
      %v1881 = vunpack.c.h.b16 %v1837
      %v1882 = vunpack.c.l.b16 %v1838
      %v1883 = vunpack.c.h.b16 %v1838
      %v1884 = vunpack.c.l.b16 %v1839
      %v1885 = vunpack.c.h.b16 %v1839
      %v1886 = vunpack.c.l.b16 %v1840
      %v1887 = vunpack.c.h.b16 %v1840
      %v1888 = vunpack.c.l.b16 %v1841
      %v1889 = vunpack.c.h.b16 %v1841
      %v1890 = vpack.c.b16 %v1858, %v1858
      %v1891 = vpack.c.b16 %v1859, %v1859
      %v1892 = vpack.c.b16 %v1860, %v1860
      %v1893 = vpack.c.b16 %v1861, %v1861
      %v1894 = vpack.c.b16 %v1862, %v1862
      %v1895 = vpack.c.b16 %v1863, %v1863
      %v1896 = vpack.c.b16 %v1864, %v1864
      %v1897 = vpack.c.b16 %v1865, %v1865
      %v1898 = vpack.c.b16 %v1866, %v1866
      %v1899 = vpack.c.b16 %v1867, %v1867
      %v1900 = vpack.c.b16 %v1868, %v1868
      %v1901 = vpack.c.b16 %v1869, %v1869
      %v1902 = vpack.c.b16 %v1870, %v1870
      %v1903 = vpack.c.b16 %v1871, %v1871
      %v1904 = vpack.c.b16 %v1872, %v1872
      %v1905 = vpack.c.b16 %v1873, %v1873
      %v1906 = vpack.c.b16 %v1874, %v1874
      %v1907 = vpack.c.b16 %v1875, %v1875
      %v1908 = vpack.c.b16 %v1876, %v1876
      %v1909 = vpack.c.b16 %v1877, %v1877
      %v1910 = vpack.c.b16 %v1878, %v1878
      %v1911 = vpack.c.b16 %v1879, %v1879
      %v1912 = vpack.c.b16 %v1880, %v1880
      %v1913 = vpack.c.b16 %v1881, %v1881
      %v1914 = vpack.c.b16 %v1882, %v1882
      %v1915 = vpack.c.b16 %v1883, %v1883
      %v1916 = vpack.c.b16 %v1884, %v1884
      %v1917 = vpack.c.b16 %v1885, %v1885
      %v1918 = vpack.c.b16 %v1886, %v1886
      %v1919 = vpack.c.b16 %v1887, %v1887
      %v1920 = vpack.c.b16 %v1888, %v1888
      %v1921 = vpack.c.b16 %v1889, %v1889
      %1954 = vst [vmem:[%s221] sm:$0xf] %v1890
      %1955 = vst [vmem:[%s221 + $0x4] sm:$0xf] %v1891
      %1956 = vst [vmem:[%s221 + $0x8] sm:$0xf] %v1892
      %1957 = vst [vmem:[%s221 + $0xc] sm:$0xf] %v1893
      %1958 = vst [vmem:[%s221 + $0x10] sm:$0xf] %v1894
      %1959 = vst [vmem:[%s221 + $0x14] sm:$0xf] %v1895
      %1960 = vst [vmem:[%s221 + $0x18] sm:$0xf] %v1896
      %1961 = vst [vmem:[%s221 + $0x1c] sm:$0xf] %v1897
      %1962 = vst [vmem:[%s221 + $0x20] sm:$0xf] %v1898
      %1963 = vst [vmem:[%s221 + $0x24] sm:$0xf] %v1899
      %1964 = vst [vmem:[%s221 + $0x28] sm:$0xf] %v1900
      %1965 = vst [vmem:[%s221 + $0x2c] sm:$0xf] %v1901
      %1966 = vst [vmem:[%s221 + $0x30] sm:$0xf] %v1902
      %1967 = vst [vmem:[%s221 + $0x34] sm:$0xf] %v1903
      %1968 = vst [vmem:[%s221 + $0x38] sm:$0xf] %v1904
      %1969 = vst [vmem:[%s221 + $0x3c] sm:$0xf] %v1905
      %1970 = vst [vmem:[%s221 + $0x40] sm:$0xf] %v1906
      %1971 = vst [vmem:[%s221 + $0x44] sm:$0xf] %v1907
      %1972 = vst [vmem:[%s221 + $0x48] sm:$0xf] %v1908
      %1973 = vst [vmem:[%s221 + $0x4c] sm:$0xf] %v1909
      %1974 = vst [vmem:[%s221 + $0x50] sm:$0xf] %v1910
      %1975 = vst [vmem:[%s221 + $0x54] sm:$0xf] %v1911
      %1976 = vst [vmem:[%s221 + $0x58] sm:$0xf] %v1912
      %1977 = vst [vmem:[%s221 + $0x5c] sm:$0xf] %v1913
      %1978 = vst [vmem:[%s221 + $0x60] sm:$0xf] %v1914
      %1979 = vst [vmem:[%s221 + $0x64] sm:$0xf] %v1915
      %1980 = vst [vmem:[%s221 + $0x68] sm:$0xf] %v1916
      %1981 = vst [vmem:[%s221 + $0x6c] sm:$0xf] %v1917
      %1982 = vst [vmem:[%s221 + $0x70] sm:$0xf] %v1918
      %1983 = vst [vmem:[%s221 + $0x74] sm:$0xf] %v1919
      %1984 = vst [vmem:[%s221 + $0x78] sm:$0xf] %v1920
      %1985 = vst [vmem:[%s221 + $0x7c] sm:$0xf] %v1921
      %p1986 = scmp.lt.s32.totalorder %s19, 1
      %s1987 = scalar_select %p1986, %s19, 1
      %p1988 = scmp.lt.s32.totalorder %s18, 0
      %s1989 = scalar_select %p1988, %s18, 0
      %s1990 = smul.addr %s1987, 32
      %s1991 = sadd.s32 %s1989, %s1990
      %s1992 = smul.addr %s1991, 4
      %s1993 = scalar_lea.vmem %s3, %s1992
      // Predicated region
      $region33: #{convseq3x3_forward.6} parent=31 // pred_check
        %p1994 = pneg %p124
      $region34: #{convseq3x3_forward.6} parent=31 // pred_check_branch
        %1996 = sbr.rel (%p1994) target = $region36
      $region35: #{convseq3x3_forward.6} parent=31 // pred_region
        _
      $region36: #{convseq3x3_forward.6} parent=31 // pred_fallthru
        _
    $region32: #{convseq3x3_forward.6} parent=5 // pred_fallthru
      _
    %p1997 = scmp.le.s32.totalorder 2, %s9
    // Predicated region
    $region37: #{convseq3x3_forward.6} parent=5 // pred_check
      %p1998 = pneg %p1997
    $region38: #{convseq3x3_forward.6} parent=5 // pred_check_branch
      %2000 = sbr.rel (%p1998) target = $region40
    $region39: #{convseq3x3_forward.6} parent=5 // pred_region
      %s2001 = ssub.s32 %s9, 2
      // Predicated region
      $region41: #{convseq3x3_forward.6} parent=39 // pred_check
        %p2002 = pneg %p130
      $region42: #{convseq3x3_forward.6} parent=39 // pred_check_branch
        %2004 = sbr.rel (%p2002) target = $region44
      $region43: #{convseq3x3_forward.6} parent=39 // pred_region
        %p2005 = scmp.lt.s32.totalorder %s21, 1
        %s2006 = scalar_select %p2005, %s21, 1
        %p2007 = scmp.lt.s32.totalorder %s20, 0
        %s2008 = scalar_select %p2007, %s20, 0
        %s2009 = smul.addr %s2006, 32
        %s2010 = sadd.s32 %s2008, %s2009
        %s2011 = smul.addr %s2010, 4
        %s2012 = scalar_lea.vmem %s3, %s2011
      $region44: #{convseq3x3_forward.6} parent=39 // pred_fallthru
        _
    $region40: #{convseq3x3_forward.6} parent=5 // pred_fallthru
      _
  $region6: #{convseq3x3_forward.6} parent=0 // loop_footer
    %s13 = sadd.s32 1, %s9
  $region7: #{convseq3x3_forward.6} parent=0 // loop_footer_branch
    %8 = sbr.rel target = $region3
  $region8: #{convseq3x3_forward.6} parent=0 // loop_exit
    _

// kernel: convseq3x3_forward.7
$region0: #{convseq3x3_forward.7}
  #allocation0 [shape = 'u32[]', space=smem, size = 0x4, offset = 0x4, fixed_abs, tag = 'smem constant byte address 0x4 - core index']
  #allocation1 [shape = 'u32[144,128]{1,0:T(1,128)}', space=vmem, size = 0x12000, scoped, tag = 'internal scratch']
  %s0 = inlined_call_operand.vmem [shape: bf16[2,18,18,64], index: 0, kind: input, shape index: {}]
  %s1 = inlined_call_operand.vmem [shape: bf16[9,64,128], index: 1, kind: input, shape index: {}]
  %s2 = inlined_call_operand.vmem [shape: f32[1,128], index: 2, kind: input, shape index: {}]
  %s3 = inlined_call_operand.vmem [shape: bf16[2,16,16,128], index: 3, kind: output, shape index: {}]
  %s4 = sld [smem:[#allocation0]]
  $region45: #{convseq3x3_forward.7} parent=0
    _
  %s6 = ssub.s32 1, %s4
  %s7 = scalar_select 0, %s6, %s4
  loop: start=0, step=1, limit=4
  $region2: #{convseq3x3_forward.7} parent=0 // loop_pre_header
    _
  $region3: #{convseq3x3_forward.7} parent=0 // loop_header
    %s9 = sphi 0, %s13
    %p10 = scmp.ge.s32.totalorder %s9, 4
    %s16 = sphi 0, %s28
    %s17 = sphi 0, %s24
    %s18 = sphi 0, %s16
    %s19 = sphi 0, %s17
    %s20 = sphi 0, %s18
    %s21 = sphi 0, %s19
    %s31 = sphi 0, %s33
    %s34 = sphi 0, %s31
    %s35 = sphi 0, %s34
    %s51 = sphi 0, %s35
    %s57 = sphi 0, %s59
    %s60 = sphi 0, %s57
    %s61 = sphi 0, %s60
    %s77 = sphi 0, %s61
    %s83 = sphi 0, %s85
    %s86 = sphi 0, %s83
    %s87 = sphi 0, %s86
    %s103 = sphi 0, %s87
    %s111 = sphi 0, %s113
    %s114 = sphi 0, %s111
    %s115 = sphi 0, %s114
    %s131 = sphi 0, %s115
  $region4: #{convseq3x3_forward.7} parent=0 // loop_header_branch
    %12 = sbr.rel (%p10) target = $region8
  $region5: #{convseq3x3_forward.7} parent=0 // loop_body
    %s14 = ssub.s32 %s9, 1
    %s15 = ssub.s32 %s9, 2
    %s22 = sadd.s32 1, %s17
    %p23 = scmp.ge.s32.totalorder %s22, 2
    %s24 = scalar_select %p23, 0, %s22
    %s25 = sadd.s32 1, %s16
    %s26 = scalar_select %p23, %s25, %s16
    %p27 = scmp.ge.s32.totalorder %s26, 1
    %s28 = scalar_select %p27, 0, %s26
    %s29 = ssub.s32 %s17, %s24
    %p30 = scmp.eq.s32.totalorder %s29, 0
    %s32 = sadd.s32 %s31, 1
    %s33 = scalar_select %p30, %s31, %s32
    %p36 = pneg %p30
    %p37 = scmp.eq.s32.totalorder %s9, 1
    %p38 = por %p36, %p37
    %p39 = scmp.ne.s32.totalorder %s31, %s34
    %p40 = scmp.eq.s32.totalorder %s9, 0
    %p41 = por %p39, %p40
    %p42 = scmp.ne.s32.totalorder %s31, %s34
    %p43 = scmp.eq.s32.totalorder %s14, 1
    %p44 = por %p42, %p43
    %p45 = scmp.ne.s32.totalorder %s34, %s35
    %p46 = scmp.eq.s32.totalorder %s14, 0
    %p47 = por %p45, %p46
    %p48 = scmp.ne.s32.totalorder %s34, %s35
    %p49 = scmp.eq.s32.totalorder %s15, 1
    %p50 = por %p48, %p49
    %p52 = scmp.ne.s32.totalorder %s35, %s51
    %p53 = scmp.eq.s32.totalorder %s15, 0
    %p54 = por %p52, %p53
    %s55 = ssub.s32 %s16, %s28
    %p56 = scmp.eq.s32.totalorder %s55, 0
    %s58 = sadd.s32 %s57, 1
    %s59 = scalar_select %p56, %s57, %s58
    %p62 = pneg %p56
    %p63 = scmp.eq.s32.totalorder %s9, 1
    %p64 = por %p62, %p63
    %p65 = scmp.ne.s32.totalorder %s57, %s60
    %p66 = scmp.eq.s32.totalorder %s9, 0
    %p67 = por %p65, %p66
    %p68 = scmp.ne.s32.totalorder %s57, %s60
    %p69 = scmp.eq.s32.totalorder %s14, 1
    %p70 = por %p68, %p69
    %p71 = scmp.ne.s32.totalorder %s60, %s61
    %p72 = scmp.eq.s32.totalorder %s14, 0
    %p73 = por %p71, %p72
    %p74 = scmp.ne.s32.totalorder %s60, %s61
    %p75 = scmp.eq.s32.totalorder %s15, 1
    %p76 = por %p74, %p75
    %p78 = scmp.ne.s32.totalorder %s61, %s77
    %p79 = scmp.eq.s32.totalorder %s15, 0
    %p80 = por %p78, %p79
    %s81 = ssub.s32 %s16, %s28
    %p82 = scmp.eq.s32.totalorder %s81, 0
    %s84 = sadd.s32 %s83, 1
    %s85 = scalar_select %p82, %s83, %s84
    %p88 = pneg %p82
    %p89 = scmp.eq.s32.totalorder %s9, 1
    %p90 = por %p88, %p89
    %p91 = scmp.ne.s32.totalorder %s83, %s86
    %p92 = scmp.eq.s32.totalorder %s9, 0
    %p93 = por %p91, %p92
    %p94 = scmp.ne.s32.totalorder %s83, %s86
    %p95 = scmp.eq.s32.totalorder %s14, 1
    %p96 = por %p94, %p95
    %p97 = scmp.ne.s32.totalorder %s86, %s87
    %p98 = scmp.eq.s32.totalorder %s14, 0
    %p99 = por %p97, %p98
    %p100 = scmp.ne.s32.totalorder %s86, %s87
    %p101 = scmp.eq.s32.totalorder %s15, 1
    %p102 = por %p100, %p101
    %p104 = scmp.ne.s32.totalorder %s87, %s103
    %p105 = scmp.eq.s32.totalorder %s15, 0
    %p106 = por %p104, %p105
    %s107 = ssub.s32 %s17, %s24
    %s108 = ssub.s32 %s16, %s28
    %s109 = sor.u32 %s107, %s108
    %p110 = scmp.eq.s32.totalorder %s109, 0
    %s112 = sadd.s32 %s111, 1
    %s113 = scalar_select %p110, %s111, %s112
    %p116 = pneg %p110
    %p117 = scmp.eq.s32.totalorder %s9, 1
    %p118 = por %p116, %p117
    %p119 = scmp.ne.s32.totalorder %s111, %s114
    %p120 = scmp.eq.s32.totalorder %s9, 0
    %p121 = por %p119, %p120
    %p122 = scmp.ne.s32.totalorder %s111, %s114
    %p123 = scmp.eq.s32.totalorder %s14, 1
    %p124 = por %p122, %p123
    %p125 = scmp.ne.s32.totalorder %s114, %s115
    %p126 = scmp.eq.s32.totalorder %s14, 0
    %p127 = por %p125, %p126
    %p128 = scmp.ne.s32.totalorder %s114, %s115
    %p129 = scmp.eq.s32.totalorder %s15, 1
    %p130 = por %p128, %p129
    %p132 = scmp.ne.s32.totalorder %s115, %s131
    %p133 = scmp.eq.s32.totalorder %s15, 0
    %p134 = por %p132, %p133
    %p135 = scmp.le.s32.totalorder 1, %s9
    %p136 = scmp.lt.s32.totalorder %s9, 3
    %p137 = pnand %p135, %p136
    %p138 = pneg %p137
    // Predicated region
    $region9: #{convseq3x3_forward.7} parent=5 // pred_check
      _
    $region10: #{convseq3x3_forward.7} parent=5 // pred_check_branch
      %140 = sbr.rel (%p137) target = $region12
    $region11: #{convseq3x3_forward.7} parent=5 // pred_region
      %s141 = ssub.s32 %s9, 1
      // Predicated region
      $region13: #{convseq3x3_forward.7} parent=11 // pred_check
        %p142 = pneg %p73
      $region14: #{convseq3x3_forward.7} parent=11 // pred_check_branch
        %144 = sbr.rel (%p142) target = $region16
      $region15: #{convseq3x3_forward.7} parent=11 // pred_region
        %p145 = scmp.lt.s32.totalorder %s18, 0
        %s146 = scalar_select %p145, %s18, 0
        %s147 = smul.addr %s146, 4
        %s148 = scalar_lea.vmem %s1, %s147
      $region16: #{convseq3x3_forward.7} parent=11 // pred_fallthru
        _
      // Predicated region
      $region17: #{convseq3x3_forward.7} parent=11 // pred_check
        %p149 = pneg %p99
      $region18: #{convseq3x3_forward.7} parent=11 // pred_check_branch
        %151 = sbr.rel (%p149) target = $region20
      $region19: #{convseq3x3_forward.7} parent=11 // pred_region
        %p152 = scmp.lt.s32.totalorder %s18, 0
        %s153 = scalar_select %p152, %s18, 0
        %s154 = scalar_lea.vmem %s2, %s153
      $region20: #{convseq3x3_forward.7} parent=11 // pred_fallthru
        _
    $region12: #{convseq3x3_forward.7} parent=5 // pred_fallthru
      _
    %p155 = scmp.lt.s32.totalorder %s9, 2
    // Predicated region
    $region21: #{convseq3x3_forward.7} parent=5 // pred_check
      %p156 = pneg %p155
    $region22: #{convseq3x3_forward.7} parent=5 // pred_check_branch
      %158 = sbr.rel (%p156) target = $region24
    $region23: #{convseq3x3_forward.7} parent=5 // pred_region
      // Predicated region
      $region25: #{convseq3x3_forward.7} parent=23 // pred_check
        %p159 = pneg %p41
      $region26: #{convseq3x3_forward.7} parent=23 // pred_check_branch
        %161 = sbr.rel (%p159) target = $region28
      $region27: #{convseq3x3_forward.7} parent=23 // pred_region
        %p162 = scmp.lt.s32.totalorder %s17, 1
        %s163 = scalar_select %p162, %s17, 1
        %s164 = smul.addr %s163, 54
        %s165 = smul.addr %s164, 4
        %s166 = scalar_lea.vmem %s0, %s165
      $region28: #{convseq3x3_forward.7} parent=23 // pred_fallthru
        _
    $region24: #{convseq3x3_forward.7} parent=5 // pred_fallthru
      _
    %p167 = scmp.le.s32.totalorder 1, %s9
    %p168 = scmp.lt.s32.totalorder %s9, 3
    %p169 = pnand %p167, %p168
    %p170 = pneg %p169
    // Predicated region
    $region29: #{convseq3x3_forward.7} parent=5 // pred_check
      _
    $region30: #{convseq3x3_forward.7} parent=5 // pred_check_branch
      %172 = sbr.rel (%p169) target = $region32
    $region31: #{convseq3x3_forward.7} parent=5 // pred_region
      %s173 = ssub.s32 %s9, 1
      %p174 = scmp.lt.s32.totalorder %s19, 1
      %s175 = scalar_select %p174, %s19, 1
      %s176 = smul.addr %s175, 54
      %s177 = smul.addr %s176, 4
      %s178 = scalar_lea.vmem %s0, %s177
      %p179 = pneg %p47
      %p180 = pneg %p44
      %p181 = scmp.lt.s32.totalorder %s18, 0
      %s182 = scalar_select %p181, %s18, 0
      %s183 = smul.addr %s182, 4
      %s184 = scalar_lea.vmem %s1, %s183
      %p185 = pneg %p73
      %p186 = pneg %p70
      %p187 = scmp.lt.s32.totalorder %s18, 0
      %s188 = scalar_select %p187, %s18, 0
      %s189 = scalar_lea.vmem %s2, %s188
      %p190 = pneg %p99
      %p191 = pneg %p96
      %p192 = pneg %p127
      %p193 = pneg %p124
      %p194 = scmp.lt.s32.totalorder %s19, 1
      %s195 = scalar_select %p194, %s19, 1
      %p196 = scmp.lt.s32.totalorder %s18, 0
      %s197 = scalar_select %p196, %s18, 0
      %s198 = smul.addr %s195, 32
      %s199 = sadd.s32 %s197, %s198
      %s200 = smul.addr %s199, 4
      %s201 = scalar_lea.vmem %s3, %s200
      %p202 = scmp.lt.s32.totalorder %s19, 1
      %s203 = scalar_select %p202, %s19, 1
      %s204 = smul.addr %s203, 54
      %s205 = smul.addr %s204, 4
      %s206 = scalar_lea.vmem %s0, %s205
      %p207 = scmp.lt.s32.totalorder %s18, 0
      %s208 = scalar_select %p207, %s18, 0
      %s209 = smul.addr %s208, 4
      %s210 = scalar_lea.vmem %s1, %s209
      %p211 = scmp.lt.s32.totalorder %s18, 0
      %s212 = scalar_select %p211, %s18, 0
      %s213 = scalar_lea.vmem %s2, %s212
      %p214 = scmp.lt.s32.totalorder %s19, 1
      %s215 = scalar_select %p214, %s19, 1
      %p216 = scmp.lt.s32.totalorder %s18, 0
      %s217 = scalar_select %p216, %s18, 0
      %s218 = smul.addr %s215, 32
      %s219 = sadd.s32 %s217, %s218
      %s220 = smul.addr %s219, 4
      %s221 = scalar_lea.vmem %s3, %s220
      %v223 = vld [vmem:[%s206] sm:$0xf]
      %v224 = vld [vmem:[%s206 + $0x4] sm:$0xf]
      %v225 = vld [vmem:[%s206 + $0xc] sm:$0xf]
      %v226 = vld [vmem:[%s206 + $0x10] sm:$0xf]
      %v227 = vld [vmem:[%s206 + $0x18] sm:$0xf]
      %v228 = vld [vmem:[%s206 + $0x1c] sm:$0xf]
      %v229 = vld [vmem:[%s206 + $0x24] sm:$0xf]
      %v230 = vld [vmem:[%s206 + $0x28] sm:$0xf]
      %v231 = vld [vmem:[%s206 + $0x30] sm:$0xf]
      %v232 = vld [vmem:[%s206 + $0x34] sm:$0xf]
      %v233 = vld [vmem:[%s206 + $0x3c] sm:$0xf]
      %v234 = vld [vmem:[%s206 + $0x40] sm:$0xf]
      %v235 = vld [vmem:[%s206 + $0x48] sm:$0xf]
      %v236 = vld [vmem:[%s206 + $0x4c] sm:$0xf]
      %v237 = vld [vmem:[%s206 + $0x54] sm:$0xf]
      %v238 = vld [vmem:[%s206 + $0x58] sm:$0xf]
      %v239 = vld [vmem:[%s206 + $0x60] sm:$0xf]
      %v240 = vld [vmem:[%s206 + $0x64] sm:$0xf]
      %v241 = vld [vmem:[%s206 + $0x6c] sm:$0xf]
      %v242 = vld [vmem:[%s206 + $0x70] sm:$0xf]
      %v243 = vld [vmem:[%s206 + $0x78] sm:$0xf]
      %v244 = vld [vmem:[%s206 + $0x7c] sm:$0xf]
      %v245 = vld [vmem:[%s206 + $0x84] sm:$0xf]
      %v246 = vld [vmem:[%s206 + $0x88] sm:$0xf]
      %v247 = vld [vmem:[%s206 + $0x90] sm:$0xf]
      %v248 = vld [vmem:[%s206 + $0x94] sm:$0xf]
      %v249 = vld [vmem:[%s206 + $0x9c] sm:$0xf]
      %v250 = vld [vmem:[%s206 + $0xa0] sm:$0xf]
      %v251 = vld [vmem:[%s206 + $0xa8] sm:$0xf]
      %v252 = vld [vmem:[%s206 + $0xac] sm:$0xf]
      %v253 = vld [vmem:[%s206 + $0xb4] sm:$0xf]
      %v254 = vld [vmem:[%s206 + $0xb8] sm:$0xf]
      %v255 = vld [vmem:[%s210] sm:$0xf]
      %v256 = vld [vmem:[%s210 + $0x4] sm:$0xf]
      %v257 = vld [vmem:[%s210 + $0x8] sm:$0xf]
      %v258 = vld [vmem:[%s210 + $0xc] sm:$0xf]
      %v259 = vld [vmem:[%s210 + $0x10] sm:$0xf]
      %v260 = vld [vmem:[%s210 + $0x14] sm:$0xf]
      %v261 = vld [vmem:[%s210 + $0x18] sm:$0xf]
      %v262 = vld [vmem:[%s210 + $0x1c] sm:$0xf]
      %v263 = vld [vmem:[%s206 + $0x8] sm:$0x1]
      %v264 = vld [vmem:[%s206 + $0x14] sm:$0x1]
      %v265 = vld [vmem:[%s206 + $0x20] sm:$0x1]
      %v266 = vld [vmem:[%s206 + $0x2c] sm:$0x1]
      %v267 = vld [vmem:[%s206 + $0x38] sm:$0x1]
      %v268 = vld [vmem:[%s206 + $0x44] sm:$0x1]
      %v269 = vld [vmem:[%s206 + $0x50] sm:$0x1]
      %v270 = vld [vmem:[%s206 + $0x5c] sm:$0x1]
      %v271 = vld [vmem:[%s206 + $0x68] sm:$0x1]
      %v272 = vld [vmem:[%s206 + $0x74] sm:$0x1]
      %v273 = vld [vmem:[%s206 + $0x80] sm:$0x1]
      %v274 = vld [vmem:[%s206 + $0x8c] sm:$0x1]
      %v275 = vld [vmem:[%s206 + $0x98] sm:$0x1]
      %v276 = vld [vmem:[%s206 + $0xa4] sm:$0x1]
      %v277 = vld [vmem:[%s206 + $0xb0] sm:$0x1]
      %v278 = vld [vmem:[%s206 + $0xbc] sm:$0x1]
      %vm279 = vsmask.f32 3328
      %vm280 = vsmask.f32 7440
      %vm281 = vmor %vm279, %vm280
      %v283 = vshrl.u32 %v223, 16
      %v285 = vrot.slane %v283, 4
      %v286 = vshll.u32 %v223, 16
      %v288 = vrot.slane %v286, 5
      %v289 = vor.u32 %v285, %v288
      %v290 = vrot.slane %v289, 4
      %v292 = vshll.u32 %v224, 16
      %v294 = vrot.slane %v292, 5
      %v295 = vsel %vm281, %v290, %v294
      %v296 = vshrl.u32 %v224, 16
      %v298 = vrot.slane %v296, 4
      %v299 = vor.u32 %v298, %v294
      %v300 = vrot.slane %v299, 4
      %v302 = vshll.u32 %v263, 16
      %v304 = vrot.slane %v302, 5
      %v305 = vsel %vm281, %v300, %v304
      %v307 = vshrl.u32 %v225, 16
      %v309 = vrot.slane %v307, 4
      %v310 = vshll.u32 %v225, 16
      %v312 = vrot.slane %v310, 5
      %v313 = vor.u32 %v309, %v312
      %v314 = vrot.slane %v313, 4
      %v316 = vshll.u32 %v226, 16
      %v318 = vrot.slane %v316, 5
      %v319 = vsel %vm281, %v314, %v318
      %v320 = vshrl.u32 %v226, 16
      %v322 = vrot.slane %v320, 4
      %v323 = vor.u32 %v322, %v318
      %v324 = vrot.slane %v323, 4
      %v326 = vshll.u32 %v264, 16
      %v328 = vrot.slane %v326, 5
      %v329 = vsel %vm281, %v324, %v328
      %v331 = vshrl.u32 %v227, 16
      %v333 = vrot.slane %v331, 4
      %v334 = vshll.u32 %v227, 16
      %v336 = vrot.slane %v334, 5
      %v337 = vor.u32 %v333, %v336
      %v338 = vrot.slane %v337, 4
      %v340 = vshll.u32 %v228, 16
      %v342 = vrot.slane %v340, 5
      %v343 = vsel %vm281, %v338, %v342
      %v344 = vshrl.u32 %v228, 16
      %v346 = vrot.slane %v344, 4
      %v347 = vor.u32 %v346, %v342
      %v348 = vrot.slane %v347, 4
      %v350 = vshll.u32 %v265, 16
      %v352 = vrot.slane %v350, 5
      %v353 = vsel %vm281, %v348, %v352
      %v355 = vshrl.u32 %v229, 16
      %v357 = vrot.slane %v355, 4
      %v358 = vshll.u32 %v229, 16
      %v360 = vrot.slane %v358, 5
      %v361 = vor.u32 %v357, %v360
      %v362 = vrot.slane %v361, 4
      %v364 = vshll.u32 %v230, 16
      %v366 = vrot.slane %v364, 5
      %v367 = vsel %vm281, %v362, %v366
      %v368 = vshrl.u32 %v230, 16
      %v370 = vrot.slane %v368, 4
      %v371 = vor.u32 %v370, %v366
      %v372 = vrot.slane %v371, 4
      %v374 = vshll.u32 %v266, 16
      %v376 = vrot.slane %v374, 5
      %v377 = vsel %vm281, %v372, %v376
      %v379 = vshrl.u32 %v231, 16
      %v381 = vrot.slane %v379, 4
      %v382 = vshll.u32 %v231, 16
      %v384 = vrot.slane %v382, 5
      %v385 = vor.u32 %v381, %v384
      %v386 = vrot.slane %v385, 4
      %v388 = vshll.u32 %v232, 16
      %v390 = vrot.slane %v388, 5
      %v391 = vsel %vm281, %v386, %v390
      %v392 = vshrl.u32 %v232, 16
      %v394 = vrot.slane %v392, 4
      %v395 = vor.u32 %v394, %v390
      %v396 = vrot.slane %v395, 4
      %v398 = vshll.u32 %v267, 16
      %v400 = vrot.slane %v398, 5
      %v401 = vsel %vm281, %v396, %v400
      %v403 = vshrl.u32 %v233, 16
      %v405 = vrot.slane %v403, 4
      %v406 = vshll.u32 %v233, 16
      %v408 = vrot.slane %v406, 5
      %v409 = vor.u32 %v405, %v408
      %v410 = vrot.slane %v409, 4
      %v412 = vshll.u32 %v234, 16
      %v414 = vrot.slane %v412, 5
      %v415 = vsel %vm281, %v410, %v414
      %v416 = vshrl.u32 %v234, 16
      %v418 = vrot.slane %v416, 4
      %v419 = vor.u32 %v418, %v414
      %v420 = vrot.slane %v419, 4
      %v422 = vshll.u32 %v268, 16
      %v424 = vrot.slane %v422, 5
      %v425 = vsel %vm281, %v420, %v424
      %v427 = vshrl.u32 %v235, 16
      %v429 = vrot.slane %v427, 4
      %v430 = vshll.u32 %v235, 16
      %v432 = vrot.slane %v430, 5
      %v433 = vor.u32 %v429, %v432
      %v434 = vrot.slane %v433, 4
      %v436 = vshll.u32 %v236, 16
      %v438 = vrot.slane %v436, 5
      %v439 = vsel %vm281, %v434, %v438
      %v440 = vshrl.u32 %v236, 16
      %v442 = vrot.slane %v440, 4
      %v443 = vor.u32 %v442, %v438
      %v444 = vrot.slane %v443, 4
      %v446 = vshll.u32 %v269, 16
      %v448 = vrot.slane %v446, 5
      %v449 = vsel %vm281, %v444, %v448
      %v451 = vshrl.u32 %v237, 16
      %v453 = vrot.slane %v451, 4
      %v454 = vshll.u32 %v237, 16
      %v456 = vrot.slane %v454, 5
      %v457 = vor.u32 %v453, %v456
      %v458 = vrot.slane %v457, 4
      %v460 = vshll.u32 %v238, 16
      %v462 = vrot.slane %v460, 5
      %v463 = vsel %vm281, %v458, %v462
      %v464 = vshrl.u32 %v238, 16
      %v466 = vrot.slane %v464, 4
      %v467 = vor.u32 %v466, %v462
      %v468 = vrot.slane %v467, 4
      %v470 = vshll.u32 %v270, 16
      %v472 = vrot.slane %v470, 5
      %v473 = vsel %vm281, %v468, %v472
      %v475 = vshrl.u32 %v239, 16
      %v477 = vrot.slane %v475, 4
      %v478 = vshll.u32 %v239, 16
      %v480 = vrot.slane %v478, 5
      %v481 = vor.u32 %v477, %v480
      %v482 = vrot.slane %v481, 4
      %v484 = vshll.u32 %v240, 16
      %v486 = vrot.slane %v484, 5
      %v487 = vsel %vm281, %v482, %v486
      %v488 = vshrl.u32 %v240, 16
      %v490 = vrot.slane %v488, 4
      %v491 = vor.u32 %v490, %v486
      %v492 = vrot.slane %v491, 4
      %v494 = vshll.u32 %v271, 16
      %v496 = vrot.slane %v494, 5
      %v497 = vsel %vm281, %v492, %v496
      %v499 = vshrl.u32 %v241, 16
      %v501 = vrot.slane %v499, 4
      %v502 = vshll.u32 %v241, 16
      %v504 = vrot.slane %v502, 5
      %v505 = vor.u32 %v501, %v504
      %v506 = vrot.slane %v505, 4
      %v508 = vshll.u32 %v242, 16
      %v510 = vrot.slane %v508, 5
      %v511 = vsel %vm281, %v506, %v510
      %v512 = vshrl.u32 %v242, 16
      %v514 = vrot.slane %v512, 4
      %v515 = vor.u32 %v514, %v510
      %v516 = vrot.slane %v515, 4
      %v518 = vshll.u32 %v272, 16
      %v520 = vrot.slane %v518, 5
      %v521 = vsel %vm281, %v516, %v520
      %v523 = vshrl.u32 %v243, 16
      %v525 = vrot.slane %v523, 4
      %v526 = vshll.u32 %v243, 16
      %v528 = vrot.slane %v526, 5
      %v529 = vor.u32 %v525, %v528
      %v530 = vrot.slane %v529, 4
      %v532 = vshll.u32 %v244, 16
      %v534 = vrot.slane %v532, 5
      %v535 = vsel %vm281, %v530, %v534
      %v536 = vshrl.u32 %v244, 16
      %v538 = vrot.slane %v536, 4
      %v539 = vor.u32 %v538, %v534
      %v540 = vrot.slane %v539, 4
      %v542 = vshll.u32 %v273, 16
      %v544 = vrot.slane %v542, 5
      %v545 = vsel %vm281, %v540, %v544
      %v547 = vshrl.u32 %v245, 16
      %v549 = vrot.slane %v547, 4
      %v550 = vshll.u32 %v245, 16
      %v552 = vrot.slane %v550, 5
      %v553 = vor.u32 %v549, %v552
      %v554 = vrot.slane %v553, 4
      %v556 = vshll.u32 %v246, 16
      %v558 = vrot.slane %v556, 5
      %v559 = vsel %vm281, %v554, %v558
      %v560 = vshrl.u32 %v246, 16
      %v562 = vrot.slane %v560, 4
      %v563 = vor.u32 %v562, %v558
      %v564 = vrot.slane %v563, 4
      %v566 = vshll.u32 %v274, 16
      %v568 = vrot.slane %v566, 5
      %v569 = vsel %vm281, %v564, %v568
      %v571 = vshrl.u32 %v247, 16
      %v573 = vrot.slane %v571, 4
      %v574 = vshll.u32 %v247, 16
      %v576 = vrot.slane %v574, 5
      %v577 = vor.u32 %v573, %v576
      %v578 = vrot.slane %v577, 4
      %v580 = vshll.u32 %v248, 16
      %v582 = vrot.slane %v580, 5
      %v583 = vsel %vm281, %v578, %v582
      %v584 = vshrl.u32 %v248, 16
      %v586 = vrot.slane %v584, 4
      %v587 = vor.u32 %v586, %v582
      %v588 = vrot.slane %v587, 4
      %v590 = vshll.u32 %v275, 16
      %v592 = vrot.slane %v590, 5
      %v593 = vsel %vm281, %v588, %v592
      %v595 = vshrl.u32 %v249, 16
      %v597 = vrot.slane %v595, 4
      %v598 = vshll.u32 %v249, 16
      %v600 = vrot.slane %v598, 5
      %v601 = vor.u32 %v597, %v600
      %v602 = vrot.slane %v601, 4
      %v604 = vshll.u32 %v250, 16
      %v606 = vrot.slane %v604, 5
      %v607 = vsel %vm281, %v602, %v606
      %v608 = vshrl.u32 %v250, 16
      %v610 = vrot.slane %v608, 4
      %v611 = vor.u32 %v610, %v606
      %v612 = vrot.slane %v611, 4
      %v614 = vshll.u32 %v276, 16
      %v616 = vrot.slane %v614, 5
      %v617 = vsel %vm281, %v612, %v616
      %v619 = vshrl.u32 %v251, 16
      %v621 = vrot.slane %v619, 4
      %v622 = vshll.u32 %v251, 16
      %v624 = vrot.slane %v622, 5
      %v625 = vor.u32 %v621, %v624
      %v626 = vrot.slane %v625, 4
      %v628 = vshll.u32 %v252, 16
      %v630 = vrot.slane %v628, 5
      %v631 = vsel %vm281, %v626, %v630
      %v632 = vshrl.u32 %v252, 16
      %v634 = vrot.slane %v632, 4
      %v635 = vor.u32 %v634, %v630
      %v636 = vrot.slane %v635, 4
      %v638 = vshll.u32 %v277, 16
      %v640 = vrot.slane %v638, 5
      %v641 = vsel %vm281, %v636, %v640
      %v643 = vshrl.u32 %v253, 16
      %v645 = vrot.slane %v643, 4
      %v646 = vshll.u32 %v253, 16
      %v648 = vrot.slane %v646, 5
      %v649 = vor.u32 %v645, %v648
      %v650 = vrot.slane %v649, 4
      %v652 = vshll.u32 %v254, 16
      %v654 = vrot.slane %v652, 5
      %v655 = vsel %vm281, %v650, %v654
      %v656 = vshrl.u32 %v254, 16
      %v658 = vrot.slane %v656, 4
      %v659 = vor.u32 %v658, %v654
      %v660 = vrot.slane %v659, 4
      %v662 = vshll.u32 %v278, 16
      %v664 = vrot.slane %v662, 5
      %v665 = vsel %vm281, %v660, %v664
      %s666 = scalar_lea.vmem %s210, 32
      %v667 = vld [vmem:[%s666] sm:$0xf]
      %v668 = vld [vmem:[%s666 + $0x4] sm:$0xf]
      %v669 = vld [vmem:[%s666 + $0x8] sm:$0xf]
      %v670 = vld [vmem:[%s666 + $0xc] sm:$0xf]
      %v671 = vld [vmem:[%s666 + $0x10] sm:$0xf]
      %v672 = vld [vmem:[%s666 + $0x14] sm:$0xf]
      %v673 = vld [vmem:[%s666 + $0x18] sm:$0xf]
      %v674 = vld [vmem:[%s666 + $0x1c] sm:$0xf]
      %v675 = vunpack.c.l.b16 %v295
      %v676 = vunpack.c.l.b16 %v305
      %v677 = vunpack.c.l.b16 %v319
      %v678 = vunpack.c.l.b16 %v329
      %v679 = vunpack.c.l.b16 %v343
      %v680 = vunpack.c.l.b16 %v353
      %v681 = vunpack.c.l.b16 %v367
      %v682 = vunpack.c.l.b16 %v377
      %v683 = vunpack.c.l.b16 %v391
      %v684 = vunpack.c.l.b16 %v401
      %v685 = vunpack.c.l.b16 %v415
      %v686 = vunpack.c.l.b16 %v425
      %v687 = vunpack.c.l.b16 %v439
      %v688 = vunpack.c.l.b16 %v449
      %v689 = vunpack.c.l.b16 %v463
      %v690 = vunpack.c.l.b16 %v473
      %v691 = vunpack.c.l.b16 %v487
      %v692 = vunpack.c.l.b16 %v497
      %v693 = vunpack.c.l.b16 %v511
      %v694 = vunpack.c.l.b16 %v521
      %v695 = vunpack.c.l.b16 %v535
      %v696 = vunpack.c.l.b16 %v545
      %v697 = vunpack.c.l.b16 %v559
      %v698 = vunpack.c.l.b16 %v569
      %v699 = vunpack.c.l.b16 %v583
      %v700 = vunpack.c.l.b16 %v593
      %v701 = vunpack.c.l.b16 %v607
      %v702 = vunpack.c.l.b16 %v617
      %v703 = vunpack.c.l.b16 %v631
      %v704 = vunpack.c.l.b16 %v641
      %v705 = vunpack.c.l.b16 %v655
      %v706 = vunpack.c.l.b16 %v665
      %v707 = vpack.c.b16 %v676, %v675
      %v708 = vpack.c.b16 %v678, %v677
      %v709 = vpack.c.b16 %v680, %v679
      %v710 = vpack.c.b16 %v682, %v681
      %v711 = vpack.c.b16 %v684, %v683
      %v712 = vpack.c.b16 %v686, %v685
      %v713 = vpack.c.b16 %v688, %v687
      %v714 = vpack.c.b16 %v690, %v689
      %v715 = vpack.c.b16 %v692, %v691
      %v716 = vpack.c.b16 %v694, %v693
      %v717 = vpack.c.b16 %v696, %v695
      %v718 = vpack.c.b16 %v698, %v697
      %v719 = vpack.c.b16 %v700, %v699
      %v720 = vpack.c.b16 %v702, %v701
      %v721 = vpack.c.b16 %v704, %v703
      %v722 = vpack.c.b16 %v706, %v705
      %v731 = vunpack.c.l.b16 %v667
      %v732 = vunpack.c.l.b16 %v668
      %v733 = vunpack.c.l.b16 %v669
      %v734 = vunpack.c.l.b16 %v670
      %v735 = vunpack.c.l.b16 %v671
      %v736 = vunpack.c.l.b16 %v672
      %v737 = vunpack.c.l.b16 %v673
      %v738 = vunpack.c.l.b16 %v674
      %v739 = vpack.c.b16 %v732, %v731
      %v740 = vpack.c.b16 %v734, %v733
      %v741 = vpack.c.b16 %v736, %v735
      %v742 = vpack.c.b16 %v738, %v737
      %vm747 = vcmask 523264
      %v749 = vsel %vm747, %v707, 0
      %v752 = vsel %vm747, %v708, 0
      %v755 = vsel %vm747, %v709, 0
      %v758 = vsel %vm747, %v710, 0
      %v761 = vsel %vm747, %v711, 0
      %v764 = vsel %vm747, %v712, 0
      %v767 = vsel %vm747, %v713, 0
      %v770 = vsel %vm747, %v714, 0
      %v773 = vsel %vm747, %v715, 0
      %v776 = vsel %vm747, %v716, 0
      %v779 = vsel %vm747, %v717, 0
      %v782 = vsel %vm747, %v718, 0
      %v785 = vsel %vm747, %v719, 0
      %v788 = vsel %vm747, %v720, 0
      %v791 = vsel %vm747, %v721, 0
      %v794 = vsel %vm747, %v722, 0
      %796 = vmatprep.subr.bf16.mxu0 0
      %797 = vmatpush1.bf16.msra.mxu0 %v739
      %798 = vmatprep.subr.bf16.mxu0 0
      %799 = vmatpush1.bf16.msra.mxu0 %v740
      %800 = vmatprep.subr.bf16.mxu0 0
      %801 = vmatpush1.bf16.msra.mxu0 %v741
      %802 = vmatprep.subr.bf16.mxu0 0
      %803 = vmatpush1.bf16.msra.mxu0 %v742
      %804 = vmatprep.subr.bf16.mxu0 0
      %805 = vmatpush1.bf16.msra.mxu0 0
      %806 = vmatprep.subr.bf16.mxu0 0
      %807 = vmatpush1.bf16.msra.mxu0 0
      %808 = vmatprep.subr.bf16.mxu0 0
      %809 = vmatpush1.bf16.msra.mxu0 0
      %810 = vmatprep.subr.bf16.mxu0 0
      %811 = vmatpush1.bf16.msra.mxu0 0
      %812 = vmatprep.subr.bf16.mxu0 0
      %813 = vmatpush1.bf16.msra.mxu0 0
      %814 = vmatprep.subr.bf16.mxu0 0
      %815 = vmatpush1.bf16.msra.mxu0 0
      %816 = vmatprep.subr.bf16.mxu0 0
      %817 = vmatpush1.bf16.msra.mxu0 0
      %818 = vmatprep.subr.bf16.mxu0 0
      %819 = vmatpush1.bf16.msra.mxu0 0
      %820 = vmatprep.subr.bf16.mxu0 0
      %821 = vmatpush1.bf16.msra.mxu0 0
      %822 = vmatprep.subr.bf16.mxu0 0
      %823 = vmatpush1.bf16.msra.mxu0 0
      %824 = vmatprep.subr.bf16.mxu0 0
      %825 = vmatpush1.bf16.msra.mxu0 0
      %826 = vmatprep.subr.bf16.mxu0 0
      %827 = vmatpush1.bf16.msra.mxu0 0
      %828 = vmatprep.mubr.bf16.mxu0 0
      %829 = vmatmul.mubr.bf16.gmra.mrb[0].mxu0 %v749
      %v830 = vpop.f32.mrb[0].mxu0
      %v831 = vadd.f32 0.0, %v830
      %v832 = vpop.f32.mrb[0].mxu0
      %v833 = vpop.f32.mrb[0].mxu0
      %v834 = vadd.f32 0.0, %v833
      %v835 = vpop.f32.mrb[0].mxu0
      %836 = vmatprep.mubr.bf16.mxu0 0
      %837 = vmatmul.mubr.bf16.gmra.mrb[0].mxu0 %v752
      %v838 = vpop.f32.mrb[0].mxu0
      %v839 = vadd.f32 0.0, %v838
      %v840 = vpop.f32.mrb[0].mxu0
      %v841 = vpop.f32.mrb[0].mxu0
      %v842 = vadd.f32 0.0, %v841
      %v843 = vpop.f32.mrb[0].mxu0
      %844 = vmatprep.mubr.bf16.mxu0 0
      %845 = vmatmul.mubr.bf16.gmra.mrb[0].mxu0 %v755
      %v846 = vpop.f32.mrb[0].mxu0
      %v847 = vadd.f32 0.0, %v846
      %v848 = vpop.f32.mrb[0].mxu0
      %v849 = vpop.f32.mrb[0].mxu0
      %v850 = vadd.f32 0.0, %v849
      %v851 = vpop.f32.mrb[0].mxu0
      %852 = vmatprep.mubr.bf16.mxu0 0
      %853 = vmatmul.mubr.bf16.gmra.mrb[0].mxu0 %v758
      %v854 = vpop.f32.mrb[0].mxu0
      %v855 = vadd.f32 0.0, %v854
      %v856 = vpop.f32.mrb[0].mxu0
      %v857 = vpop.f32.mrb[0].mxu0
      %v858 = vadd.f32 0.0, %v857
      %v859 = vpop.f32.mrb[0].mxu0
      %860 = vmatprep.mubr.bf16.mxu0 0
      %861 = vmatmul.mubr.bf16.gmra.mrb[0].mxu0 %v761
      %v862 = vpop.f32.mrb[0].mxu0
      %v863 = vadd.f32 0.0, %v862
      %v864 = vpop.f32.mrb[0].mxu0
      %v865 = vpop.f32.mrb[0].mxu0
      %v866 = vadd.f32 0.0, %v865
      %v867 = vpop.f32.mrb[0].mxu0
      %868 = vmatprep.mubr.bf16.mxu0 0
      %869 = vmatmul.mubr.bf16.gmra.mrb[0].mxu0 %v764
      %v870 = vpop.f32.mrb[0].mxu0
      %v871 = vadd.f32 0.0, %v870
      %v872 = vpop.f32.mrb[0].mxu0
      %v873 = vpop.f32.mrb[0].mxu0
      %v874 = vadd.f32 0.0, %v873
      %v875 = vpop.f32.mrb[0].mxu0
      %876 = vmatprep.mubr.bf16.mxu0 0
      %877 = vmatmul.mubr.bf16.gmra.mrb[0].mxu0 %v767
      %v878 = vpop.f32.mrb[0].mxu0
      %v879 = vadd.f32 0.0, %v878
      %v880 = vpop.f32.mrb[0].mxu0
      %v881 = vpop.f32.mrb[0].mxu0
      %v882 = vadd.f32 0.0, %v881
      %v883 = vpop.f32.mrb[0].mxu0
      %884 = vmatprep.mubr.bf16.mxu0 0
      %885 = vmatmul.mubr.bf16.gmra.mrb[0].mxu0 %v770
      %v886 = vpop.f32.mrb[0].mxu0
      %v887 = vadd.f32 0.0, %v886
      %v888 = vpop.f32.mrb[0].mxu0
      %v889 = vpop.f32.mrb[0].mxu0
      %v890 = vadd.f32 0.0, %v889
      %v891 = vpop.f32.mrb[0].mxu0
      %892 = vmatprep.mubr.bf16.mxu0 0
      %893 = vmatmul.mubr.bf16.gmra.mrb[0].mxu0 %v773
      %v894 = vpop.f32.mrb[0].mxu0
      %v895 = vadd.f32 0.0, %v894
      %v896 = vpop.f32.mrb[0].mxu0
      %v897 = vpop.f32.mrb[0].mxu0
      %v898 = vadd.f32 0.0, %v897
      %v899 = vpop.f32.mrb[0].mxu0
      %900 = vmatprep.mubr.bf16.mxu0 0
      %901 = vmatmul.mubr.bf16.gmra.mrb[0].mxu0 %v776
      %v902 = vpop.f32.mrb[0].mxu0
      %v903 = vadd.f32 0.0, %v902
      %v904 = vpop.f32.mrb[0].mxu0
      %v905 = vpop.f32.mrb[0].mxu0
      %v906 = vadd.f32 0.0, %v905
      %v907 = vpop.f32.mrb[0].mxu0
      %908 = vmatprep.mubr.bf16.mxu0 0
      %909 = vmatmul.mubr.bf16.gmra.mrb[0].mxu0 %v779
      %v910 = vpop.f32.mrb[0].mxu0
      %v911 = vadd.f32 0.0, %v910
      %v912 = vpop.f32.mrb[0].mxu0
      %v913 = vpop.f32.mrb[0].mxu0
      %v914 = vadd.f32 0.0, %v913
      %v915 = vpop.f32.mrb[0].mxu0
      %916 = vmatprep.mubr.bf16.mxu0 0
      %917 = vmatmul.mubr.bf16.gmra.mrb[0].mxu0 %v782
      %v918 = vpop.f32.mrb[0].mxu0
      %v919 = vadd.f32 0.0, %v918
      %v920 = vpop.f32.mrb[0].mxu0
      %v921 = vpop.f32.mrb[0].mxu0
      %v922 = vadd.f32 0.0, %v921
      %v923 = vpop.f32.mrb[0].mxu0
      %924 = vmatprep.mubr.bf16.mxu0 0
      %925 = vmatmul.mubr.bf16.gmra.mrb[0].mxu0 %v785
      %v926 = vpop.f32.mrb[0].mxu0
      %v927 = vadd.f32 0.0, %v926
      %v928 = vpop.f32.mrb[0].mxu0
      %v929 = vpop.f32.mrb[0].mxu0
      %v930 = vadd.f32 0.0, %v929
      %v931 = vpop.f32.mrb[0].mxu0
      %932 = vmatprep.mubr.bf16.mxu0 0
      %933 = vmatmul.mubr.bf16.gmra.mrb[0].mxu0 %v788
      %v934 = vpop.f32.mrb[0].mxu0
      %v935 = vadd.f32 0.0, %v934
      %v936 = vpop.f32.mrb[0].mxu0
      %v937 = vpop.f32.mrb[0].mxu0
      %v938 = vadd.f32 0.0, %v937
      %v939 = vpop.f32.mrb[0].mxu0
      %940 = vmatprep.mubr.bf16.mxu0 0
      %941 = vmatmul.mubr.bf16.gmra.mrb[0].mxu0 %v791
      %v942 = vpop.f32.mrb[0].mxu0
      %v943 = vadd.f32 0.0, %v942
      %v944 = vpop.f32.mrb[0].mxu0
      %v945 = vpop.f32.mrb[0].mxu0
      %v946 = vadd.f32 0.0, %v945
      %v947 = vpop.f32.mrb[0].mxu0
      %948 = vmatprep.mubr.bf16.mxu0 0
      %949 = vmatmul.mubr.bf16.gmra.mrb[0].mxu0 %v794
      %v950 = vpop.f32.mrb[0].mxu0
      %v951 = vadd.f32 0.0, %v950
      %v952 = vpop.f32.mrb[0].mxu0
      %v953 = vpop.f32.mrb[0].mxu0
      %v954 = vadd.f32 0.0, %v953
      %v955 = vpop.f32.mrb[0].mxu0
      %956 = vdwg.mxu0
      %v989 = vunpack.c.l.b16 %v223
      %v990 = vunpack.c.l.b16 %v224
      %v991 = vunpack.c.l.b16 %v225
      %v992 = vunpack.c.l.b16 %v226
      %v993 = vunpack.c.l.b16 %v227
      %v994 = vunpack.c.l.b16 %v228
      %v995 = vunpack.c.l.b16 %v229
      %v996 = vunpack.c.l.b16 %v230
      %v997 = vunpack.c.l.b16 %v231
      %v998 = vunpack.c.l.b16 %v232
      %v999 = vunpack.c.l.b16 %v233
      %v1000 = vunpack.c.l.b16 %v234
      %v1001 = vunpack.c.l.b16 %v235
      %v1002 = vunpack.c.l.b16 %v236
      %v1003 = vunpack.c.l.b16 %v237
      %v1004 = vunpack.c.l.b16 %v238
      %v1005 = vunpack.c.l.b16 %v239
      %v1006 = vunpack.c.l.b16 %v240
      %v1007 = vunpack.c.l.b16 %v241
      %v1008 = vunpack.c.l.b16 %v242
      %v1009 = vunpack.c.l.b16 %v243
      %v1010 = vunpack.c.l.b16 %v244
      %v1011 = vunpack.c.l.b16 %v245
      %v1012 = vunpack.c.l.b16 %v246
      %v1013 = vunpack.c.l.b16 %v247
      %v1014 = vunpack.c.l.b16 %v248
      %v1015 = vunpack.c.l.b16 %v249
      %v1016 = vunpack.c.l.b16 %v250
      %v1017 = vunpack.c.l.b16 %v251
      %v1018 = vunpack.c.l.b16 %v252
      %v1019 = vunpack.c.l.b16 %v253
      %v1020 = vunpack.c.l.b16 %v254
      %v1021 = vpack.c.b16 %v990, %v989
      %v1022 = vpack.c.b16 %v992, %v991
      %v1023 = vpack.c.b16 %v994, %v993
      %v1024 = vpack.c.b16 %v996, %v995
      %v1025 = vpack.c.b16 %v998, %v997
      %v1026 = vpack.c.b16 %v1000, %v999
      %v1027 = vpack.c.b16 %v1002, %v1001
      %v1028 = vpack.c.b16 %v1004, %v1003
      %v1029 = vpack.c.b16 %v1006, %v1005
      %v1030 = vpack.c.b16 %v1008, %v1007
      %v1031 = vpack.c.b16 %v1010, %v1009
      %v1032 = vpack.c.b16 %v1012, %v1011
      %v1033 = vpack.c.b16 %v1014, %v1013
      %v1034 = vpack.c.b16 %v1016, %v1015
      %v1035 = vpack.c.b16 %v1018, %v1017
      %v1036 = vpack.c.b16 %v1020, %v1019
      %v1045 = vunpack.c.l.b16 %v255
      %v1046 = vunpack.c.l.b16 %v256
      %v1047 = vunpack.c.l.b16 %v257
      %v1048 = vunpack.c.l.b16 %v258
      %v1049 = vunpack.c.l.b16 %v259
      %v1050 = vunpack.c.l.b16 %v260
      %v1051 = vunpack.c.l.b16 %v261
      %v1052 = vunpack.c.l.b16 %v262
      %v1053 = vpack.c.b16 %v1046, %v1045
      %v1054 = vpack.c.b16 %v1048, %v1047
      %v1055 = vpack.c.b16 %v1050, %v1049
      %v1056 = vpack.c.b16 %v1052, %v1051
      %v1062 = vsel %vm747, %v1021, 0
      %v1065 = vsel %vm747, %v1022, 0
      %v1068 = vsel %vm747, %v1023, 0
      %v1071 = vsel %vm747, %v1024, 0
      %v1074 = vsel %vm747, %v1025, 0
      %v1077 = vsel %vm747, %v1026, 0
      %v1080 = vsel %vm747, %v1027, 0
      %v1083 = vsel %vm747, %v1028, 0
      %v1086 = vsel %vm747, %v1029, 0
      %v1089 = vsel %vm747, %v1030, 0
      %v1092 = vsel %vm747, %v1031, 0
      %v1095 = vsel %vm747, %v1032, 0
      %v1098 = vsel %vm747, %v1033, 0
      %v1101 = vsel %vm747, %v1034, 0
      %v1104 = vsel %vm747, %v1035, 0
      %v1107 = vsel %vm747, %v1036, 0
      %1109 = vmatprep.subr.bf16.mxu0 0
      %1110 = vmatpush1.bf16.msra.mxu0 %v1053
      %1111 = vmatprep.subr.bf16.mxu0 0
      %1112 = vmatpush1.bf16.msra.mxu0 %v1054
      %1113 = vmatprep.subr.bf16.mxu0 0
      %1114 = vmatpush1.bf16.msra.mxu0 %v1055
      %1115 = vmatprep.subr.bf16.mxu0 0
      %1116 = vmatpush1.bf16.msra.mxu0 %v1056
      %1117 = vmatprep.subr.bf16.mxu0 0
      %1118 = vmatpush1.bf16.msra.mxu0 0
      %1119 = vmatprep.subr.bf16.mxu0 0
      %1120 = vmatpush1.bf16.msra.mxu0 0
      %1121 = vmatprep.subr.bf16.mxu0 0
      %1122 = vmatpush1.bf16.msra.mxu0 0
      %1123 = vmatprep.subr.bf16.mxu0 0
      %1124 = vmatpush1.bf16.msra.mxu0 0
      %1125 = vmatprep.subr.bf16.mxu0 0
      %1126 = vmatpush1.bf16.msra.mxu0 0
      %1127 = vmatprep.subr.bf16.mxu0 0
      %1128 = vmatpush1.bf16.msra.mxu0 0
      %1129 = vmatprep.subr.bf16.mxu0 0
      %1130 = vmatpush1.bf16.msra.mxu0 0
      %1131 = vmatprep.subr.bf16.mxu0 0
      %1132 = vmatpush1.bf16.msra.mxu0 0
      %1133 = vmatprep.subr.bf16.mxu0 0
      %1134 = vmatpush1.bf16.msra.mxu0 0
      %1135 = vmatprep.subr.bf16.mxu0 0
      %1136 = vmatpush1.bf16.msra.mxu0 0
      %1137 = vmatprep.subr.bf16.mxu0 0
      %1138 = vmatpush1.bf16.msra.mxu0 0
      %1139 = vmatprep.subr.bf16.mxu0 0
      %1140 = vmatpush1.bf16.msra.mxu0 0
      %1141 = vmatprep.mubr.bf16.mxu0 0
      %1142 = vmatmul.mubr.bf16.gmra.mrb[0].mxu0 %v1062
      %v1143 = vpop.f32.mrb[0].mxu0
      %v1144 = vadd.f32 %v831, %v1143
      %v1145 = vpop.f32.mrb[0].mxu0
      %v1146 = vpop.f32.mrb[0].mxu0
      %v1147 = vadd.f32 %v834, %v1146
      %v1148 = vpop.f32.mrb[0].mxu0
      %1149 = vmatprep.mubr.bf16.mxu0 0
      %1150 = vmatmul.mubr.bf16.gmra.mrb[0].mxu0 %v1065
      %v1151 = vpop.f32.mrb[0].mxu0
      %v1152 = vadd.f32 %v839, %v1151
      %v1153 = vpop.f32.mrb[0].mxu0
      %v1154 = vpop.f32.mrb[0].mxu0
      %v1155 = vadd.f32 %v842, %v1154
      %v1156 = vpop.f32.mrb[0].mxu0
      %1157 = vmatprep.mubr.bf16.mxu0 0
      %1158 = vmatmul.mubr.bf16.gmra.mrb[0].mxu0 %v1068
      %v1159 = vpop.f32.mrb[0].mxu0
      %v1160 = vadd.f32 %v847, %v1159
      %v1161 = vpop.f32.mrb[0].mxu0
      %v1162 = vpop.f32.mrb[0].mxu0
      %v1163 = vadd.f32 %v850, %v1162
      %v1164 = vpop.f32.mrb[0].mxu0
      %1165 = vmatprep.mubr.bf16.mxu0 0
      %1166 = vmatmul.mubr.bf16.gmra.mrb[0].mxu0 %v1071
      %v1167 = vpop.f32.mrb[0].mxu0
      %v1168 = vadd.f32 %v855, %v1167
      %v1169 = vpop.f32.mrb[0].mxu0
      %v1170 = vpop.f32.mrb[0].mxu0
      %v1171 = vadd.f32 %v858, %v1170
      %v1172 = vpop.f32.mrb[0].mxu0
      %1173 = vmatprep.mubr.bf16.mxu0 0
      %1174 = vmatmul.mubr.bf16.gmra.mrb[0].mxu0 %v1074
      %v1175 = vpop.f32.mrb[0].mxu0
      %v1176 = vadd.f32 %v863, %v1175
      %v1177 = vpop.f32.mrb[0].mxu0
      %v1178 = vpop.f32.mrb[0].mxu0
      %v1179 = vadd.f32 %v866, %v1178
      %v1180 = vpop.f32.mrb[0].mxu0
      %1181 = vmatprep.mubr.bf16.mxu0 0
      %1182 = vmatmul.mubr.bf16.gmra.mrb[0].mxu0 %v1077
      %v1183 = vpop.f32.mrb[0].mxu0
      %v1184 = vadd.f32 %v871, %v1183
      %v1185 = vpop.f32.mrb[0].mxu0
      %v1186 = vpop.f32.mrb[0].mxu0
      %v1187 = vadd.f32 %v874, %v1186
      %v1188 = vpop.f32.mrb[0].mxu0
      %1189 = vmatprep.mubr.bf16.mxu0 0
      %1190 = vmatmul.mubr.bf16.gmra.mrb[0].mxu0 %v1080
      %v1191 = vpop.f32.mrb[0].mxu0
      %v1192 = vadd.f32 %v879, %v1191
      %v1193 = vpop.f32.mrb[0].mxu0
      %v1194 = vpop.f32.mrb[0].mxu0
      %v1195 = vadd.f32 %v882, %v1194
      %v1196 = vpop.f32.mrb[0].mxu0
      %1197 = vmatprep.mubr.bf16.mxu0 0
      %1198 = vmatmul.mubr.bf16.gmra.mrb[0].mxu0 %v1083
      %v1199 = vpop.f32.mrb[0].mxu0
      %v1200 = vadd.f32 %v887, %v1199
      %v1201 = vpop.f32.mrb[0].mxu0
      %v1202 = vpop.f32.mrb[0].mxu0
      %v1203 = vadd.f32 %v890, %v1202
      %v1204 = vpop.f32.mrb[0].mxu0
      %1205 = vmatprep.mubr.bf16.mxu0 0
      %1206 = vmatmul.mubr.bf16.gmra.mrb[0].mxu0 %v1086
      %v1207 = vpop.f32.mrb[0].mxu0
      %v1208 = vadd.f32 %v895, %v1207
      %v1209 = vpop.f32.mrb[0].mxu0
      %v1210 = vpop.f32.mrb[0].mxu0
      %v1211 = vadd.f32 %v898, %v1210
      %v1212 = vpop.f32.mrb[0].mxu0
      %1213 = vmatprep.mubr.bf16.mxu0 0
      %1214 = vmatmul.mubr.bf16.gmra.mrb[0].mxu0 %v1089
      %v1215 = vpop.f32.mrb[0].mxu0
      %v1216 = vadd.f32 %v903, %v1215
      %v1217 = vpop.f32.mrb[0].mxu0
      %v1218 = vpop.f32.mrb[0].mxu0
      %v1219 = vadd.f32 %v906, %v1218
      %v1220 = vpop.f32.mrb[0].mxu0
      %1221 = vmatprep.mubr.bf16.mxu0 0
      %1222 = vmatmul.mubr.bf16.gmra.mrb[0].mxu0 %v1092
      %v1223 = vpop.f32.mrb[0].mxu0
      %v1224 = vadd.f32 %v911, %v1223
      %v1225 = vpop.f32.mrb[0].mxu0
      %v1226 = vpop.f32.mrb[0].mxu0
      %v1227 = vadd.f32 %v914, %v1226
      %v1228 = vpop.f32.mrb[0].mxu0
      %1229 = vmatprep.mubr.bf16.mxu0 0
      %1230 = vmatmul.mubr.bf16.gmra.mrb[0].mxu0 %v1095
      %v1231 = vpop.f32.mrb[0].mxu0
      %v1232 = vadd.f32 %v919, %v1231
      %v1233 = vpop.f32.mrb[0].mxu0
      %v1234 = vpop.f32.mrb[0].mxu0
      %v1235 = vadd.f32 %v922, %v1234
      %v1236 = vpop.f32.mrb[0].mxu0
      %1237 = vmatprep.mubr.bf16.mxu0 0
      %1238 = vmatmul.mubr.bf16.gmra.mrb[0].mxu0 %v1098
      %v1239 = vpop.f32.mrb[0].mxu0
      %v1240 = vadd.f32 %v927, %v1239
      %v1241 = vpop.f32.mrb[0].mxu0
      %v1242 = vpop.f32.mrb[0].mxu0
      %v1243 = vadd.f32 %v930, %v1242
      %v1244 = vpop.f32.mrb[0].mxu0
      %1245 = vmatprep.mubr.bf16.mxu0 0
      %1246 = vmatmul.mubr.bf16.gmra.mrb[0].mxu0 %v1101
      %v1247 = vpop.f32.mrb[0].mxu0
      %v1248 = vadd.f32 %v935, %v1247
      %v1249 = vpop.f32.mrb[0].mxu0
      %v1250 = vpop.f32.mrb[0].mxu0
      %v1251 = vadd.f32 %v938, %v1250
      %v1252 = vpop.f32.mrb[0].mxu0
      %1253 = vmatprep.mubr.bf16.mxu0 0
      %1254 = vmatmul.mubr.bf16.gmra.mrb[0].mxu0 %v1104
      %v1255 = vpop.f32.mrb[0].mxu0
      %v1256 = vadd.f32 %v943, %v1255
      %v1257 = vpop.f32.mrb[0].mxu0
      %v1258 = vpop.f32.mrb[0].mxu0
      %v1259 = vadd.f32 %v946, %v1258
      %v1260 = vpop.f32.mrb[0].mxu0
      %1261 = vmatprep.mubr.bf16.mxu0 0
      %1262 = vmatmul.mubr.bf16.gmra.mrb[0].mxu0 %v1107
      %v1263 = vpop.f32.mrb[0].mxu0
      %v1264 = vadd.f32 %v951, %v1263
      %v1265 = vpop.f32.mrb[0].mxu0
      %v1266 = vpop.f32.mrb[0].mxu0
      %v1267 = vadd.f32 %v954, %v1266
      %v1268 = vpop.f32.mrb[0].mxu0
      %1269 = vdwg.mxu0
      %v1270 = vld [vmem:[%s206] sm:$0xe]
      %v1271 = vld [vmem:[%s206 + $0xc] sm:$0xe]
      %v1272 = vld [vmem:[%s206 + $0x18] sm:$0xe]
      %v1273 = vld [vmem:[%s206 + $0x24] sm:$0xe]
      %v1274 = vld [vmem:[%s206 + $0x30] sm:$0xe]
      %v1275 = vld [vmem:[%s206 + $0x3c] sm:$0xe]
      %v1276 = vld [vmem:[%s206 + $0x48] sm:$0xe]
      %v1277 = vld [vmem:[%s206 + $0x54] sm:$0xe]
      %v1278 = vld [vmem:[%s206 + $0x60] sm:$0xe]
      %v1279 = vld [vmem:[%s206 + $0x6c] sm:$0xe]
      %v1280 = vld [vmem:[%s206 + $0x78] sm:$0xe]
      %v1281 = vld [vmem:[%s206 + $0x84] sm:$0xe]
      %v1282 = vld [vmem:[%s206 + $0x90] sm:$0xe]
      %v1283 = vld [vmem:[%s206 + $0x9c] sm:$0xe]
      %v1284 = vld [vmem:[%s206 + $0xa8] sm:$0xe]
      %v1285 = vld [vmem:[%s206 + $0xb4] sm:$0xe]
      %vm1318 = vcmask 1042432
      %vm1319 = vcmask 1046532
      %vm1320 = vmor %vm1318, %vm1319
      %v1321 = vrot.slane %v1270, 5
      %v1322 = vrot.slane %v1321, 4
      %v1323 = vrot.slane %v224, 5
      %v1324 = vsel %vm1320, %v1322, %v1323
      %v1325 = vrot.slane %v1323, 4
      %v1326 = vrot.slane %v263, 5
      %v1327 = vsel %vm1320, %v1325, %v1326
      %v1328 = vrot.slane %v1271, 5
      %v1329 = vrot.slane %v1328, 4
      %v1330 = vrot.slane %v226, 5
      %v1331 = vsel %vm1320, %v1329, %v1330
      %v1332 = vrot.slane %v1330, 4
      %v1333 = vrot.slane %v264, 5
      %v1334 = vsel %vm1320, %v1332, %v1333
      %v1335 = vrot.slane %v1272, 5
      %v1336 = vrot.slane %v1335, 4
      %v1337 = vrot.slane %v228, 5
      %v1338 = vsel %vm1320, %v1336, %v1337
      %v1339 = vrot.slane %v1337, 4
      %v1340 = vrot.slane %v265, 5
      %v1341 = vsel %vm1320, %v1339, %v1340
      %v1342 = vrot.slane %v1273, 5
      %v1343 = vrot.slane %v1342, 4
      %v1344 = vrot.slane %v230, 5
      %v1345 = vsel %vm1320, %v1343, %v1344
      %v1346 = vrot.slane %v1344, 4
      %v1347 = vrot.slane %v266, 5
      %v1348 = vsel %vm1320, %v1346, %v1347
      %v1349 = vrot.slane %v1274, 5
      %v1350 = vrot.slane %v1349, 4
      %v1351 = vrot.slane %v232, 5
      %v1352 = vsel %vm1320, %v1350, %v1351
      %v1353 = vrot.slane %v1351, 4
      %v1354 = vrot.slane %v267, 5
      %v1355 = vsel %vm1320, %v1353, %v1354
      %v1356 = vrot.slane %v1275, 5
      %v1357 = vrot.slane %v1356, 4
      %v1358 = vrot.slane %v234, 5
      %v1359 = vsel %vm1320, %v1357, %v1358
      %v1360 = vrot.slane %v1358, 4
      %v1361 = vrot.slane %v268, 5
      %v1362 = vsel %vm1320, %v1360, %v1361
      %v1363 = vrot.slane %v1276, 5
      %v1364 = vrot.slane %v1363, 4
      %v1365 = vrot.slane %v236, 5
      %v1366 = vsel %vm1320, %v1364, %v1365
      %v1367 = vrot.slane %v1365, 4
      %v1368 = vrot.slane %v269, 5
      %v1369 = vsel %vm1320, %v1367, %v1368
      %v1370 = vrot.slane %v1277, 5
      %v1371 = vrot.slane %v1370, 4
      %v1372 = vrot.slane %v238, 5
      %v1373 = vsel %vm1320, %v1371, %v1372
      %v1374 = vrot.slane %v1372, 4
      %v1375 = vrot.slane %v270, 5
      %v1376 = vsel %vm1320, %v1374, %v1375
      %v1377 = vrot.slane %v1278, 5
      %v1378 = vrot.slane %v1377, 4
      %v1379 = vrot.slane %v240, 5
      %v1380 = vsel %vm1320, %v1378, %v1379
      %v1381 = vrot.slane %v1379, 4
      %v1382 = vrot.slane %v271, 5
      %v1383 = vsel %vm1320, %v1381, %v1382
      %v1384 = vrot.slane %v1279, 5
      %v1385 = vrot.slane %v1384, 4
      %v1386 = vrot.slane %v242, 5
      %v1387 = vsel %vm1320, %v1385, %v1386
      %v1388 = vrot.slane %v1386, 4
      %v1389 = vrot.slane %v272, 5
      %v1390 = vsel %vm1320, %v1388, %v1389
      %v1391 = vrot.slane %v1280, 5
      %v1392 = vrot.slane %v1391, 4
      %v1393 = vrot.slane %v244, 5
      %v1394 = vsel %vm1320, %v1392, %v1393
      %v1395 = vrot.slane %v1393, 4
      %v1396 = vrot.slane %v273, 5
      %v1397 = vsel %vm1320, %v1395, %v1396
      %v1398 = vrot.slane %v1281, 5
      %v1399 = vrot.slane %v1398, 4
      %v1400 = vrot.slane %v246, 5
      %v1401 = vsel %vm1320, %v1399, %v1400
      %v1402 = vrot.slane %v1400, 4
      %v1403 = vrot.slane %v274, 5
      %v1404 = vsel %vm1320, %v1402, %v1403
      %v1405 = vrot.slane %v1282, 5
      %v1406 = vrot.slane %v1405, 4
      %v1407 = vrot.slane %v248, 5
      %v1408 = vsel %vm1320, %v1406, %v1407
      %v1409 = vrot.slane %v1407, 4
      %v1410 = vrot.slane %v275, 5
      %v1411 = vsel %vm1320, %v1409, %v1410
      %v1412 = vrot.slane %v1283, 5
      %v1413 = vrot.slane %v1412, 4
      %v1414 = vrot.slane %v250, 5
      %v1415 = vsel %vm1320, %v1413, %v1414
      %v1416 = vrot.slane %v1414, 4
      %v1417 = vrot.slane %v276, 5
      %v1418 = vsel %vm1320, %v1416, %v1417
      %v1419 = vrot.slane %v1284, 5
      %v1420 = vrot.slane %v1419, 4
      %v1421 = vrot.slane %v252, 5
      %v1422 = vsel %vm1320, %v1420, %v1421
      %v1423 = vrot.slane %v1421, 4
      %v1424 = vrot.slane %v277, 5
      %v1425 = vsel %vm1320, %v1423, %v1424
      %v1426 = vrot.slane %v1285, 5
      %v1427 = vrot.slane %v1426, 4
      %v1428 = vrot.slane %v254, 5
      %v1429 = vsel %vm1320, %v1427, %v1428
      %v1430 = vrot.slane %v1428, 4
      %v1431 = vrot.slane %v278, 5
      %v1432 = vsel %vm1320, %v1430, %v1431
      %s1433 = scalar_lea.vmem %s210, 64
      %v1434 = vld [vmem:[%s1433] sm:$0xf]
      %v1435 = vld [vmem:[%s1433 + $0x4] sm:$0xf]
      %v1436 = vld [vmem:[%s1433 + $0x8] sm:$0xf]
      %v1437 = vld [vmem:[%s1433 + $0xc] sm:$0xf]
      %v1438 = vld [vmem:[%s1433 + $0x10] sm:$0xf]
      %v1439 = vld [vmem:[%s1433 + $0x14] sm:$0xf]
      %v1440 = vld [vmem:[%s1433 + $0x18] sm:$0xf]
      %v1441 = vld [vmem:[%s1433 + $0x1c] sm:$0xf]
      %v1442 = vunpack.c.l.b16 %v1324
      %v1443 = vunpack.c.l.b16 %v1327
      %v1444 = vunpack.c.l.b16 %v1331
      %v1445 = vunpack.c.l.b16 %v1334
      %v1446 = vunpack.c.l.b16 %v1338
      %v1447 = vunpack.c.l.b16 %v1341
      %v1448 = vunpack.c.l.b16 %v1345
      %v1449 = vunpack.c.l.b16 %v1348
      %v1450 = vunpack.c.l.b16 %v1352
      %v1451 = vunpack.c.l.b16 %v1355
      %v1452 = vunpack.c.l.b16 %v1359
      %v1453 = vunpack.c.l.b16 %v1362
      %v1454 = vunpack.c.l.b16 %v1366
      %v1455 = vunpack.c.l.b16 %v1369
      %v1456 = vunpack.c.l.b16 %v1373
      %v1457 = vunpack.c.l.b16 %v1376
      %v1458 = vunpack.c.l.b16 %v1380
      %v1459 = vunpack.c.l.b16 %v1383
      %v1460 = vunpack.c.l.b16 %v1387
      %v1461 = vunpack.c.l.b16 %v1390
      %v1462 = vunpack.c.l.b16 %v1394
      %v1463 = vunpack.c.l.b16 %v1397
      %v1464 = vunpack.c.l.b16 %v1401
      %v1465 = vunpack.c.l.b16 %v1404
      %v1466 = vunpack.c.l.b16 %v1408
      %v1467 = vunpack.c.l.b16 %v1411
      %v1468 = vunpack.c.l.b16 %v1415
      %v1469 = vunpack.c.l.b16 %v1418
      %v1470 = vunpack.c.l.b16 %v1422
      %v1471 = vunpack.c.l.b16 %v1425
      %v1472 = vunpack.c.l.b16 %v1429
      %v1473 = vunpack.c.l.b16 %v1432
      %v1474 = vpack.c.b16 %v1443, %v1442
      %v1475 = vpack.c.b16 %v1445, %v1444
      %v1476 = vpack.c.b16 %v1447, %v1446
      %v1477 = vpack.c.b16 %v1449, %v1448
      %v1478 = vpack.c.b16 %v1451, %v1450
      %v1479 = vpack.c.b16 %v1453, %v1452
      %v1480 = vpack.c.b16 %v1455, %v1454
      %v1481 = vpack.c.b16 %v1457, %v1456
      %v1482 = vpack.c.b16 %v1459, %v1458
      %v1483 = vpack.c.b16 %v1461, %v1460
      %v1484 = vpack.c.b16 %v1463, %v1462
      %v1485 = vpack.c.b16 %v1465, %v1464
      %v1486 = vpack.c.b16 %v1467, %v1466
      %v1487 = vpack.c.b16 %v1469, %v1468
      %v1488 = vpack.c.b16 %v1471, %v1470
      %v1489 = vpack.c.b16 %v1473, %v1472
      %v1498 = vunpack.c.l.b16 %v1434
      %v1499 = vunpack.c.l.b16 %v1435
      %v1500 = vunpack.c.l.b16 %v1436
      %v1501 = vunpack.c.l.b16 %v1437
      %v1502 = vunpack.c.l.b16 %v1438
      %v1503 = vunpack.c.l.b16 %v1439
      %v1504 = vunpack.c.l.b16 %v1440
      %v1505 = vunpack.c.l.b16 %v1441
      %v1506 = vpack.c.b16 %v1499, %v1498
      %v1507 = vpack.c.b16 %v1501, %v1500
      %v1508 = vpack.c.b16 %v1503, %v1502
      %v1509 = vpack.c.b16 %v1505, %v1504
      %v1515 = vsel %vm747, %v1474, 0
      %v1518 = vsel %vm747, %v1475, 0
      %v1521 = vsel %vm747, %v1476, 0
      %v1524 = vsel %vm747, %v1477, 0
      %v1527 = vsel %vm747, %v1478, 0
      %v1530 = vsel %vm747, %v1479, 0
      %v1533 = vsel %vm747, %v1480, 0
      %v1536 = vsel %vm747, %v1481, 0
      %v1539 = vsel %vm747, %v1482, 0
      %v1542 = vsel %vm747, %v1483, 0
      %v1545 = vsel %vm747, %v1484, 0
      %v1548 = vsel %vm747, %v1485, 0
      %v1551 = vsel %vm747, %v1486, 0
      %v1554 = vsel %vm747, %v1487, 0
      %v1557 = vsel %vm747, %v1488, 0
      %v1560 = vsel %vm747, %v1489, 0
      %1562 = vmatprep.subr.bf16.mxu0 0
      %1563 = vmatpush1.bf16.msra.mxu0 %v1506
      %1564 = vmatprep.subr.bf16.mxu0 0
      %1565 = vmatpush1.bf16.msra.mxu0 %v1507
      %1566 = vmatprep.subr.bf16.mxu0 0
      %1567 = vmatpush1.bf16.msra.mxu0 %v1508
      %1568 = vmatprep.subr.bf16.mxu0 0
      %1569 = vmatpush1.bf16.msra.mxu0 %v1509
      %1570 = vmatprep.subr.bf16.mxu0 0
      %1571 = vmatpush1.bf16.msra.mxu0 0
      %1572 = vmatprep.subr.bf16.mxu0 0
      %1573 = vmatpush1.bf16.msra.mxu0 0
      %1574 = vmatprep.subr.bf16.mxu0 0
      %1575 = vmatpush1.bf16.msra.mxu0 0
      %1576 = vmatprep.subr.bf16.mxu0 0
      %1577 = vmatpush1.bf16.msra.mxu0 0
      %1578 = vmatprep.subr.bf16.mxu0 0
      %1579 = vmatpush1.bf16.msra.mxu0 0
      %1580 = vmatprep.subr.bf16.mxu0 0
      %1581 = vmatpush1.bf16.msra.mxu0 0
      %1582 = vmatprep.subr.bf16.mxu0 0
      %1583 = vmatpush1.bf16.msra.mxu0 0
      %1584 = vmatprep.subr.bf16.mxu0 0
      %1585 = vmatpush1.bf16.msra.mxu0 0
      %1586 = vmatprep.subr.bf16.mxu0 0
      %1587 = vmatpush1.bf16.msra.mxu0 0
      %1588 = vmatprep.subr.bf16.mxu0 0
      %1589 = vmatpush1.bf16.msra.mxu0 0
      %1590 = vmatprep.subr.bf16.mxu0 0
      %1591 = vmatpush1.bf16.msra.mxu0 0
      %1592 = vmatprep.subr.bf16.mxu0 0
      %1593 = vmatpush1.bf16.msra.mxu0 0
      %1594 = vmatprep.mubr.bf16.mxu0 0
      %1595 = vmatmul.mubr.bf16.gmra.mrb[0].mxu0 %v1515
      %v1596 = vpop.f32.mrb[0].mxu0
      %v1597 = vadd.f32 0.0, %v1596
      %v1598 = vpop.f32.mrb[0].mxu0
      %v1599 = vpop.f32.mrb[0].mxu0
      %v1600 = vadd.f32 0.0, %v1599
      %v1601 = vpop.f32.mrb[0].mxu0
      %1602 = vmatprep.mubr.bf16.mxu0 0
      %1603 = vmatmul.mubr.bf16.gmra.mrb[0].mxu0 %v1518
      %v1604 = vpop.f32.mrb[0].mxu0
      %v1605 = vadd.f32 0.0, %v1604
      %v1606 = vpop.f32.mrb[0].mxu0
      %v1607 = vpop.f32.mrb[0].mxu0
      %v1608 = vadd.f32 0.0, %v1607
      %v1609 = vpop.f32.mrb[0].mxu0
      %1610 = vmatprep.mubr.bf16.mxu0 0
      %1611 = vmatmul.mubr.bf16.gmra.mrb[0].mxu0 %v1521
      %v1612 = vpop.f32.mrb[0].mxu0
      %v1613 = vadd.f32 0.0, %v1612
      %v1614 = vpop.f32.mrb[0].mxu0
      %v1615 = vpop.f32.mrb[0].mxu0
      %v1616 = vadd.f32 0.0, %v1615
      %v1617 = vpop.f32.mrb[0].mxu0
      %1618 = vmatprep.mubr.bf16.mxu0 0
      %1619 = vmatmul.mubr.bf16.gmra.mrb[0].mxu0 %v1524
      %v1620 = vpop.f32.mrb[0].mxu0
      %v1621 = vadd.f32 0.0, %v1620
      %v1622 = vpop.f32.mrb[0].mxu0
      %v1623 = vpop.f32.mrb[0].mxu0
      %v1624 = vadd.f32 0.0, %v1623
      %v1625 = vpop.f32.mrb[0].mxu0
      %1626 = vmatprep.mubr.bf16.mxu0 0
      %1627 = vmatmul.mubr.bf16.gmra.mrb[0].mxu0 %v1527
      %v1628 = vpop.f32.mrb[0].mxu0
      %v1629 = vadd.f32 0.0, %v1628
      %v1630 = vpop.f32.mrb[0].mxu0
      %v1631 = vpop.f32.mrb[0].mxu0
      %v1632 = vadd.f32 0.0, %v1631
      %v1633 = vpop.f32.mrb[0].mxu0
      %1634 = vmatprep.mubr.bf16.mxu0 0
      %1635 = vmatmul.mubr.bf16.gmra.mrb[0].mxu0 %v1530
      %v1636 = vpop.f32.mrb[0].mxu0
      %v1637 = vadd.f32 0.0, %v1636
      %v1638 = vpop.f32.mrb[0].mxu0
      %v1639 = vpop.f32.mrb[0].mxu0
      %v1640 = vadd.f32 0.0, %v1639
      %v1641 = vpop.f32.mrb[0].mxu0
      %1642 = vmatprep.mubr.bf16.mxu0 0
      %1643 = vmatmul.mubr.bf16.gmra.mrb[0].mxu0 %v1533
      %v1644 = vpop.f32.mrb[0].mxu0
      %v1645 = vadd.f32 0.0, %v1644
      %v1646 = vpop.f32.mrb[0].mxu0
      %v1647 = vpop.f32.mrb[0].mxu0
      %v1648 = vadd.f32 0.0, %v1647
      %v1649 = vpop.f32.mrb[0].mxu0
      %1650 = vmatprep.mubr.bf16.mxu0 0
      %1651 = vmatmul.mubr.bf16.gmra.mrb[0].mxu0 %v1536
      %v1652 = vpop.f32.mrb[0].mxu0
      %v1653 = vadd.f32 0.0, %v1652
      %v1654 = vpop.f32.mrb[0].mxu0
      %v1655 = vpop.f32.mrb[0].mxu0
      %v1656 = vadd.f32 0.0, %v1655
      %v1657 = vpop.f32.mrb[0].mxu0
      %1658 = vmatprep.mubr.bf16.mxu0 0
      %1659 = vmatmul.mubr.bf16.gmra.mrb[0].mxu0 %v1539
      %v1660 = vpop.f32.mrb[0].mxu0
      %v1661 = vadd.f32 0.0, %v1660
      %v1662 = vpop.f32.mrb[0].mxu0
      %v1663 = vpop.f32.mrb[0].mxu0
      %v1664 = vadd.f32 0.0, %v1663
      %v1665 = vpop.f32.mrb[0].mxu0
      %1666 = vmatprep.mubr.bf16.mxu0 0
      %1667 = vmatmul.mubr.bf16.gmra.mrb[0].mxu0 %v1542
      %v1668 = vpop.f32.mrb[0].mxu0
      %v1669 = vadd.f32 0.0, %v1668
      %v1670 = vpop.f32.mrb[0].mxu0
      %v1671 = vpop.f32.mrb[0].mxu0
      %v1672 = vadd.f32 0.0, %v1671
      %v1673 = vpop.f32.mrb[0].mxu0
      %1674 = vmatprep.mubr.bf16.mxu0 0
      %1675 = vmatmul.mubr.bf16.gmra.mrb[0].mxu0 %v1545
      %v1676 = vpop.f32.mrb[0].mxu0
      %v1677 = vadd.f32 0.0, %v1676
      %v1678 = vpop.f32.mrb[0].mxu0
      %v1679 = vpop.f32.mrb[0].mxu0
      %v1680 = vadd.f32 0.0, %v1679
      %v1681 = vpop.f32.mrb[0].mxu0
      %1682 = vmatprep.mubr.bf16.mxu0 0
      %1683 = vmatmul.mubr.bf16.gmra.mrb[0].mxu0 %v1548
      %v1684 = vpop.f32.mrb[0].mxu0
      %v1685 = vadd.f32 0.0, %v1684
      %v1686 = vpop.f32.mrb[0].mxu0
      %v1687 = vpop.f32.mrb[0].mxu0
      %v1688 = vadd.f32 0.0, %v1687
      %v1689 = vpop.f32.mrb[0].mxu0
      %1690 = vmatprep.mubr.bf16.mxu0 0
      %1691 = vmatmul.mubr.bf16.gmra.mrb[0].mxu0 %v1551
      %v1692 = vpop.f32.mrb[0].mxu0
      %v1693 = vadd.f32 0.0, %v1692
      %v1694 = vpop.f32.mrb[0].mxu0
      %v1695 = vpop.f32.mrb[0].mxu0
      %v1696 = vadd.f32 0.0, %v1695
      %v1697 = vpop.f32.mrb[0].mxu0
      %1698 = vmatprep.mubr.bf16.mxu0 0
      %1699 = vmatmul.mubr.bf16.gmra.mrb[0].mxu0 %v1554
      %v1700 = vpop.f32.mrb[0].mxu0
      %v1701 = vadd.f32 0.0, %v1700
      %v1702 = vpop.f32.mrb[0].mxu0
      %v1703 = vpop.f32.mrb[0].mxu0
      %v1704 = vadd.f32 0.0, %v1703
      %v1705 = vpop.f32.mrb[0].mxu0
      %1706 = vmatprep.mubr.bf16.mxu0 0
      %1707 = vmatmul.mubr.bf16.gmra.mrb[0].mxu0 %v1557
      %v1708 = vpop.f32.mrb[0].mxu0
      %v1709 = vadd.f32 0.0, %v1708
      %v1710 = vpop.f32.mrb[0].mxu0
      %v1711 = vpop.f32.mrb[0].mxu0
      %v1712 = vadd.f32 0.0, %v1711
      %v1713 = vpop.f32.mrb[0].mxu0
      %1714 = vmatprep.mubr.bf16.mxu0 0
      %1715 = vmatmul.mubr.bf16.gmra.mrb[0].mxu0 %v1560
      %v1716 = vpop.f32.mrb[0].mxu0
      %v1717 = vadd.f32 0.0, %v1716
      %v1718 = vpop.f32.mrb[0].mxu0
      %v1719 = vpop.f32.mrb[0].mxu0
      %v1720 = vadd.f32 0.0, %v1719
      %v1721 = vpop.f32.mrb[0].mxu0
      %1722 = vdwg.mxu0
      %v1723 = vadd.f32 %v1144, %v1597
      %v1724 = vadd.f32 %v1147, %v1600
      %v1725 = vadd.f32 %v1152, %v1605
      %v1726 = vadd.f32 %v1155, %v1608
      %v1727 = vadd.f32 %v1160, %v1613
      %v1728 = vadd.f32 %v1163, %v1616
      %v1729 = vadd.f32 %v1168, %v1621
      %v1730 = vadd.f32 %v1171, %v1624
      %v1731 = vadd.f32 %v1176, %v1629
      %v1732 = vadd.f32 %v1179, %v1632
      %v1733 = vadd.f32 %v1184, %v1637
      %v1734 = vadd.f32 %v1187, %v1640
      %v1735 = vadd.f32 %v1192, %v1645
      %v1736 = vadd.f32 %v1195, %v1648
      %v1737 = vadd.f32 %v1200, %v1653
      %v1738 = vadd.f32 %v1203, %v1656
      %v1739 = vadd.f32 %v1208, %v1661
      %v1740 = vadd.f32 %v1211, %v1664
      %v1741 = vadd.f32 %v1216, %v1669
      %v1742 = vadd.f32 %v1219, %v1672
      %v1743 = vadd.f32 %v1224, %v1677
      %v1744 = vadd.f32 %v1227, %v1680
      %v1745 = vadd.f32 %v1232, %v1685
      %v1746 = vadd.f32 %v1235, %v1688
      %v1747 = vadd.f32 %v1240, %v1693
      %v1748 = vadd.f32 %v1243, %v1696
      %v1749 = vadd.f32 %v1248, %v1701
      %v1750 = vadd.f32 %v1251, %v1704
      %v1751 = vadd.f32 %v1256, %v1709
      %v1752 = vadd.f32 %v1259, %v1712
      %v1753 = vadd.f32 %v1264, %v1717
      %v1754 = vadd.f32 %v1267, %v1720
      %s1755 = scalar_lea.vmem %s206, 12
      %v1756 = vld [vmem:[%s1755] sm:$0xf]
      %v1757 = vld [vmem:[%s1755 + $0x4] sm:$0xf]
      %v1758 = vld [vmem:[%s1755 + $0xc] sm:$0xf]
      %v1759 = vld [vmem:[%s1755 + $0x10] sm:$0xf]
      %v1760 = vld [vmem:[%s1755 + $0x18] sm:$0xf]
      %v1761 = vld [vmem:[%s1755 + $0x1c] sm:$0xf]
      %v1762 = vld [vmem:[%s1755 + $0x24] sm:$0xf]
      %v1763 = vld [vmem:[%s1755 + $0x28] sm:$0xf]
      %v1764 = vld [vmem:[%s1755 + $0x30] sm:$0xf]
      %v1765 = vld [vmem:[%s1755 + $0x34] sm:$0xf]
      %v1766 = vld [vmem:[%s1755 + $0x3c] sm:$0xf]
      %v1767 = vld [vmem:[%s1755 + $0x40] sm:$0xf]
      %v1768 = vld [vmem:[%s1755 + $0x48] sm:$0xf]
      %v1769 = vld [vmem:[%s1755 + $0x4c] sm:$0xf]
      %v1770 = vld [vmem:[%s1755 + $0x54] sm:$0xf]
      %v1771 = vld [vmem:[%s1755 + $0x58] sm:$0xf]
      %v1772 = vld [vmem:[%s1755 + $0x60] sm:$0xf]
      %v1773 = vld [vmem:[%s1755 + $0x64] sm:$0xf]
      %v1774 = vld [vmem:[%s1755 + $0x6c] sm:$0xf]
      %v1775 = vld [vmem:[%s1755 + $0x70] sm:$0xf]
      %v1776 = vld [vmem:[%s1755 + $0x78] sm:$0xf]
      %v1777 = vld [vmem:[%s1755 + $0x7c] sm:$0xf]
      %v1778 = vld [vmem:[%s1755 + $0x84] sm:$0xf]
      %v1779 = vld [vmem:[%s1755 + $0x88] sm:$0xf]
      %v1780 = vld [vmem:[%s1755 + $0x90] sm:$0xf]
      %v1781 = vld [vmem:[%s1755 + $0x94] sm:$0xf]
      %v1782 = vld [vmem:[%s1755 + $0x9c] sm:$0xf]
      %v1783 = vld [vmem:[%s1755 + $0xa0] sm:$0xf]
      %v1784 = vld [vmem:[%s1755 + $0xa8] sm:$0xf]
      %v1785 = vld [vmem:[%s1755 + $0xac] sm:$0xf]
      %v1786 = vld [vmem:[%s1755 + $0xb4] sm:$0xf]
      %v1787 = vld [vmem:[%s1755 + $0xb8] sm:$0xf]
      %s1788 = scalar_lea.vmem %s210, 96
      %v1789 = vld [vmem:[%s1788] sm:$0xf]
      %v1790 = vld [vmem:[%s1788 + $0x4] sm:$0xf]
      %v1791 = vld [vmem:[%s1788 + $0x8] sm:$0xf]
      %v1792 = vld [vmem:[%s1788 + $0xc] sm:$0xf]
      %v1793 = vld [vmem:[%s1788 + $0x10] sm:$0xf]
      %v1794 = vld [vmem:[%s1788 + $0x14] sm:$0xf]
      %v1795 = vld [vmem:[%s1788 + $0x18] sm:$0xf]
      %v1796 = vld [vmem:[%s1788 + $0x1c] sm:$0xf]
      %v1829 = vunpack.c.l.b16 %v1756
      %v1830 = vunpack.c.l.b16 %v1757
      %v1831 = vunpack.c.l.b16 %v1758
      %v1832 = vunpack.c.l.b16 %v1759
      %v1833 = vunpack.c.l.b16 %v1760
      %v1834 = vunpack.c.l.b16 %v1761
      %v1835 = vunpack.c.l.b16 %v1762
      %v1836 = vunpack.c.l.b16 %v1763
      %v1837 = vunpack.c.l.b16 %v1764
      %v1838 = vunpack.c.l.b16 %v1765
      %v1839 = vunpack.c.l.b16 %v1766
      %v1840 = vunpack.c.l.b16 %v1767
      %v1841 = vunpack.c.l.b16 %v1768
      %v1842 = vunpack.c.l.b16 %v1769
      %v1843 = vunpack.c.l.b16 %v1770
      %v1844 = vunpack.c.l.b16 %v1771
      %v1845 = vunpack.c.l.b16 %v1772
      %v1846 = vunpack.c.l.b16 %v1773
      %v1847 = vunpack.c.l.b16 %v1774
      %v1848 = vunpack.c.l.b16 %v1775
      %v1849 = vunpack.c.l.b16 %v1776
      %v1850 = vunpack.c.l.b16 %v1777
      %v1851 = vunpack.c.l.b16 %v1778
      %v1852 = vunpack.c.l.b16 %v1779
      %v1853 = vunpack.c.l.b16 %v1780
      %v1854 = vunpack.c.l.b16 %v1781
      %v1855 = vunpack.c.l.b16 %v1782
      %v1856 = vunpack.c.l.b16 %v1783
      %v1857 = vunpack.c.l.b16 %v1784
      %v1858 = vunpack.c.l.b16 %v1785
      %v1859 = vunpack.c.l.b16 %v1786
      %v1860 = vunpack.c.l.b16 %v1787
      %v1861 = vpack.c.b16 %v1830, %v1829
      %v1862 = vpack.c.b16 %v1832, %v1831
      %v1863 = vpack.c.b16 %v1834, %v1833
      %v1864 = vpack.c.b16 %v1836, %v1835
      %v1865 = vpack.c.b16 %v1838, %v1837
      %v1866 = vpack.c.b16 %v1840, %v1839
      %v1867 = vpack.c.b16 %v1842, %v1841
      %v1868 = vpack.c.b16 %v1844, %v1843
      %v1869 = vpack.c.b16 %v1846, %v1845
      %v1870 = vpack.c.b16 %v1848, %v1847
      %v1871 = vpack.c.b16 %v1850, %v1849
      %v1872 = vpack.c.b16 %v1852, %v1851
      %v1873 = vpack.c.b16 %v1854, %v1853
      %v1874 = vpack.c.b16 %v1856, %v1855
      %v1875 = vpack.c.b16 %v1858, %v1857
      %v1876 = vpack.c.b16 %v1860, %v1859
      %v1885 = vunpack.c.l.b16 %v1789
      %v1886 = vunpack.c.l.b16 %v1790
      %v1887 = vunpack.c.l.b16 %v1791
      %v1888 = vunpack.c.l.b16 %v1792
      %v1889 = vunpack.c.l.b16 %v1793
      %v1890 = vunpack.c.l.b16 %v1794
      %v1891 = vunpack.c.l.b16 %v1795
      %v1892 = vunpack.c.l.b16 %v1796
      %v1893 = vpack.c.b16 %v1886, %v1885
      %v1894 = vpack.c.b16 %v1888, %v1887
      %v1895 = vpack.c.b16 %v1890, %v1889
      %v1896 = vpack.c.b16 %v1892, %v1891
      %v1902 = vsel %vm747, %v1861, 0
      %v1905 = vsel %vm747, %v1862, 0
      %v1908 = vsel %vm747, %v1863, 0
      %v1911 = vsel %vm747, %v1864, 0
      %v1914 = vsel %vm747, %v1865, 0
      %v1917 = vsel %vm747, %v1866, 0
      %v1920 = vsel %vm747, %v1867, 0
      %v1923 = vsel %vm747, %v1868, 0
      %v1926 = vsel %vm747, %v1869, 0
      %v1929 = vsel %vm747, %v1870, 0
      %v1932 = vsel %vm747, %v1871, 0
      %v1935 = vsel %vm747, %v1872, 0
      %v1938 = vsel %vm747, %v1873, 0
      %v1941 = vsel %vm747, %v1874, 0
      %v1944 = vsel %vm747, %v1875, 0
      %v1947 = vsel %vm747, %v1876, 0
      %1949 = vmatprep.subr.bf16.mxu0 0
      %1950 = vmatpush1.bf16.msra.mxu0 %v1893
      %1951 = vmatprep.subr.bf16.mxu0 0
      %1952 = vmatpush1.bf16.msra.mxu0 %v1894
      %1953 = vmatprep.subr.bf16.mxu0 0
      %1954 = vmatpush1.bf16.msra.mxu0 %v1895
      %1955 = vmatprep.subr.bf16.mxu0 0
      %1956 = vmatpush1.bf16.msra.mxu0 %v1896
      %1957 = vmatprep.subr.bf16.mxu0 0
      %1958 = vmatpush1.bf16.msra.mxu0 0
      %1959 = vmatprep.subr.bf16.mxu0 0
      %1960 = vmatpush1.bf16.msra.mxu0 0
      %1961 = vmatprep.subr.bf16.mxu0 0
      %1962 = vmatpush1.bf16.msra.mxu0 0
      %1963 = vmatprep.subr.bf16.mxu0 0
      %1964 = vmatpush1.bf16.msra.mxu0 0
      %1965 = vmatprep.subr.bf16.mxu0 0
      %1966 = vmatpush1.bf16.msra.mxu0 0
      %1967 = vmatprep.subr.bf16.mxu0 0
      %1968 = vmatpush1.bf16.msra.mxu0 0
      %1969 = vmatprep.subr.bf16.mxu0 0
      %1970 = vmatpush1.bf16.msra.mxu0 0
      %1971 = vmatprep.subr.bf16.mxu0 0
      %1972 = vmatpush1.bf16.msra.mxu0 0
      %1973 = vmatprep.subr.bf16.mxu0 0
      %1974 = vmatpush1.bf16.msra.mxu0 0
      %1975 = vmatprep.subr.bf16.mxu0 0
      %1976 = vmatpush1.bf16.msra.mxu0 0
      %1977 = vmatprep.subr.bf16.mxu0 0
      %1978 = vmatpush1.bf16.msra.mxu0 0
      %1979 = vmatprep.subr.bf16.mxu0 0
      %1980 = vmatpush1.bf16.msra.mxu0 0
      %1981 = vmatprep.mubr.bf16.mxu0 0
      %1982 = vmatmul.mubr.bf16.gmra.mrb[0].mxu0 %v1902
      %v1983 = vpop.f32.mrb[0].mxu0
      %v1984 = vadd.f32 0.0, %v1983
      %v1985 = vpop.f32.mrb[0].mxu0
      %v1986 = vpop.f32.mrb[0].mxu0
      %v1987 = vadd.f32 0.0, %v1986
      %v1988 = vpop.f32.mrb[0].mxu0
      %1989 = vmatprep.mubr.bf16.mxu0 0
      %1990 = vmatmul.mubr.bf16.gmra.mrb[0].mxu0 %v1905
      %v1991 = vpop.f32.mrb[0].mxu0
      %v1992 = vadd.f32 0.0, %v1991
      %v1993 = vpop.f32.mrb[0].mxu0
      %v1994 = vpop.f32.mrb[0].mxu0
      %v1995 = vadd.f32 0.0, %v1994
      %v1996 = vpop.f32.mrb[0].mxu0
      %1997 = vmatprep.mubr.bf16.mxu0 0
      %1998 = vmatmul.mubr.bf16.gmra.mrb[0].mxu0 %v1908
      %v1999 = vpop.f32.mrb[0].mxu0
      %v2000 = vadd.f32 0.0, %v1999
      %v2001 = vpop.f32.mrb[0].mxu0
      %v2002 = vpop.f32.mrb[0].mxu0
      %v2003 = vadd.f32 0.0, %v2002
      %v2004 = vpop.f32.mrb[0].mxu0
      %2005 = vmatprep.mubr.bf16.mxu0 0
      %2006 = vmatmul.mubr.bf16.gmra.mrb[0].mxu0 %v1911
      %v2007 = vpop.f32.mrb[0].mxu0
      %v2008 = vadd.f32 0.0, %v2007
      %v2009 = vpop.f32.mrb[0].mxu0
      %v2010 = vpop.f32.mrb[0].mxu0
      %v2011 = vadd.f32 0.0, %v2010
      %v2012 = vpop.f32.mrb[0].mxu0
      %2013 = vmatprep.mubr.bf16.mxu0 0
      %2014 = vmatmul.mubr.bf16.gmra.mrb[0].mxu0 %v1914
      %v2015 = vpop.f32.mrb[0].mxu0
      %v2016 = vadd.f32 0.0, %v2015
      %v2017 = vpop.f32.mrb[0].mxu0
      %v2018 = vpop.f32.mrb[0].mxu0
      %v2019 = vadd.f32 0.0, %v2018
      %v2020 = vpop.f32.mrb[0].mxu0
      %2021 = vmatprep.mubr.bf16.mxu0 0
      %2022 = vmatmul.mubr.bf16.gmra.mrb[0].mxu0 %v1917
      %v2023 = vpop.f32.mrb[0].mxu0
      %v2024 = vadd.f32 0.0, %v2023
      %v2025 = vpop.f32.mrb[0].mxu0
      %v2026 = vpop.f32.mrb[0].mxu0
      %v2027 = vadd.f32 0.0, %v2026
      %v2028 = vpop.f32.mrb[0].mxu0
      %2029 = vmatprep.mubr.bf16.mxu0 0
      %2030 = vmatmul.mubr.bf16.gmra.mrb[0].mxu0 %v1920
      %v2031 = vpop.f32.mrb[0].mxu0
      %v2032 = vadd.f32 0.0, %v2031
      %v2033 = vpop.f32.mrb[0].mxu0
      %v2034 = vpop.f32.mrb[0].mxu0
      %v2035 = vadd.f32 0.0, %v2034
      %v2036 = vpop.f32.mrb[0].mxu0
      %2037 = vmatprep.mubr.bf16.mxu0 0
      %2038 = vmatmul.mubr.bf16.gmra.mrb[0].mxu0 %v1923
      %v2039 = vpop.f32.mrb[0].mxu0
      %v2040 = vadd.f32 0.0, %v2039
      %v2041 = vpop.f32.mrb[0].mxu0
      %v2042 = vpop.f32.mrb[0].mxu0
      %v2043 = vadd.f32 0.0, %v2042
      %v2044 = vpop.f32.mrb[0].mxu0
      %2045 = vmatprep.mubr.bf16.mxu0 0
      %2046 = vmatmul.mubr.bf16.gmra.mrb[0].mxu0 %v1926
      %v2047 = vpop.f32.mrb[0].mxu0
      %v2048 = vadd.f32 0.0, %v2047
      %v2049 = vpop.f32.mrb[0].mxu0
      %v2050 = vpop.f32.mrb[0].mxu0
      %v2051 = vadd.f32 0.0, %v2050
      %v2052 = vpop.f32.mrb[0].mxu0
      %2053 = vmatprep.mubr.bf16.mxu0 0
      %2054 = vmatmul.mubr.bf16.gmra.mrb[0].mxu0 %v1929
      %v2055 = vpop.f32.mrb[0].mxu0
      %v2056 = vadd.f32 0.0, %v2055
      %v2057 = vpop.f32.mrb[0].mxu0
      %v2058 = vpop.f32.mrb[0].mxu0
      %v2059 = vadd.f32 0.0, %v2058
      %v2060 = vpop.f32.mrb[0].mxu0
      %2061 = vmatprep.mubr.bf16.mxu0 0
      %2062 = vmatmul.mubr.bf16.gmra.mrb[0].mxu0 %v1932
      %v2063 = vpop.f32.mrb[0].mxu0
      %v2064 = vadd.f32 0.0, %v2063
      %v2065 = vpop.f32.mrb[0].mxu0
      %v2066 = vpop.f32.mrb[0].mxu0
      %v2067 = vadd.f32 0.0, %v2066
      %v2068 = vpop.f32.mrb[0].mxu0
      %2069 = vmatprep.mubr.bf16.mxu0 0
      %2070 = vmatmul.mubr.bf16.gmra.mrb[0].mxu0 %v1935
      %v2071 = vpop.f32.mrb[0].mxu0
      %v2072 = vadd.f32 0.0, %v2071
      %v2073 = vpop.f32.mrb[0].mxu0
      %v2074 = vpop.f32.mrb[0].mxu0
      %v2075 = vadd.f32 0.0, %v2074
      %v2076 = vpop.f32.mrb[0].mxu0
      %2077 = vmatprep.mubr.bf16.mxu0 0
      %2078 = vmatmul.mubr.bf16.gmra.mrb[0].mxu0 %v1938
      %v2079 = vpop.f32.mrb[0].mxu0
      %v2080 = vadd.f32 0.0, %v2079
      %v2081 = vpop.f32.mrb[0].mxu0
      %v2082 = vpop.f32.mrb[0].mxu0
      %v2083 = vadd.f32 0.0, %v2082
      %v2084 = vpop.f32.mrb[0].mxu0
      %2085 = vmatprep.mubr.bf16.mxu0 0
      %2086 = vmatmul.mubr.bf16.gmra.mrb[0].mxu0 %v1941
      %v2087 = vpop.f32.mrb[0].mxu0
      %v2088 = vadd.f32 0.0, %v2087
      %v2089 = vpop.f32.mrb[0].mxu0
      %v2090 = vpop.f32.mrb[0].mxu0
      %v2091 = vadd.f32 0.0, %v2090
      %v2092 = vpop.f32.mrb[0].mxu0
      %2093 = vmatprep.mubr.bf16.mxu0 0
      %2094 = vmatmul.mubr.bf16.gmra.mrb[0].mxu0 %v1944
      %v2095 = vpop.f32.mrb[0].mxu0
      %v2096 = vadd.f32 0.0, %v2095
      %v2097 = vpop.f32.mrb[0].mxu0
      %v2098 = vpop.f32.mrb[0].mxu0
      %v2099 = vadd.f32 0.0, %v2098
      %v2100 = vpop.f32.mrb[0].mxu0
      %2101 = vmatprep.mubr.bf16.mxu0 0
      %2102 = vmatmul.mubr.bf16.gmra.mrb[0].mxu0 %v1947
      %v2103 = vpop.f32.mrb[0].mxu0
      %v2104 = vadd.f32 0.0, %v2103
      %v2105 = vpop.f32.mrb[0].mxu0
      %v2106 = vpop.f32.mrb[0].mxu0
      %v2107 = vadd.f32 0.0, %v2106
      %v2108 = vpop.f32.mrb[0].mxu0
      %2109 = vdwg.mxu0
      %v2110 = vadd.f32 %v1723, %v1984
      %v2111 = vadd.f32 %v1724, %v1987
      %v2112 = vadd.f32 %v1725, %v1992
      %v2113 = vadd.f32 %v1726, %v1995
      %v2114 = vadd.f32 %v1727, %v2000
      %v2115 = vadd.f32 %v1728, %v2003
      %v2116 = vadd.f32 %v1729, %v2008
      %v2117 = vadd.f32 %v1730, %v2011
      %v2118 = vadd.f32 %v1731, %v2016
      %v2119 = vadd.f32 %v1732, %v2019
      %v2120 = vadd.f32 %v1733, %v2024
      %v2121 = vadd.f32 %v1734, %v2027
      %v2122 = vadd.f32 %v1735, %v2032
      %v2123 = vadd.f32 %v1736, %v2035
      %v2124 = vadd.f32 %v1737, %v2040
      %v2125 = vadd.f32 %v1738, %v2043
      %v2126 = vadd.f32 %v1739, %v2048
      %v2127 = vadd.f32 %v1740, %v2051
      %v2128 = vadd.f32 %v1741, %v2056
      %v2129 = vadd.f32 %v1742, %v2059
      %v2130 = vadd.f32 %v1743, %v2064
      %v2131 = vadd.f32 %v1744, %v2067
      %v2132 = vadd.f32 %v1745, %v2072
      %v2133 = vadd.f32 %v1746, %v2075
      %v2134 = vadd.f32 %v1747, %v2080
      %v2135 = vadd.f32 %v1748, %v2083
      %v2136 = vadd.f32 %v1749, %v2088
      %v2137 = vadd.f32 %v1750, %v2091
      %v2138 = vadd.f32 %v1751, %v2096
      %v2139 = vadd.f32 %v1752, %v2099
      %v2140 = vadd.f32 %v1753, %v2104
      %v2141 = vadd.f32 %v1754, %v2107
      %v2142 = vld [vmem:[%s1755] sm:$0xf]
      %v2143 = vld [vmem:[%s1755 + $0x4] sm:$0xf]
      %v2144 = vld [vmem:[%s1755 + $0x8] sm:$0x1]
      %v2145 = vld [vmem:[%s1755 + $0xc] sm:$0xf]
      %v2146 = vld [vmem:[%s1755 + $0x10] sm:$0xf]
      %v2147 = vld [vmem:[%s1755 + $0x14] sm:$0x1]
      %v2148 = vld [vmem:[%s1755 + $0x18] sm:$0xf]
      %v2149 = vld [vmem:[%s1755 + $0x1c] sm:$0xf]
      %v2150 = vld [vmem:[%s1755 + $0x20] sm:$0x1]
      %v2151 = vld [vmem:[%s1755 + $0x24] sm:$0xf]
      %v2152 = vld [vmem:[%s1755 + $0x28] sm:$0xf]
      %v2153 = vld [vmem:[%s1755 + $0x2c] sm:$0x1]
      %v2154 = vld [vmem:[%s1755 + $0x30] sm:$0xf]
      %v2155 = vld [vmem:[%s1755 + $0x34] sm:$0xf]
      %v2156 = vld [vmem:[%s1755 + $0x38] sm:$0x1]
      %v2157 = vld [vmem:[%s1755 + $0x3c] sm:$0xf]
      %v2158 = vld [vmem:[%s1755 + $0x40] sm:$0xf]
      %v2159 = vld [vmem:[%s1755 + $0x44] sm:$0x1]
      %v2160 = vld [vmem:[%s1755 + $0x48] sm:$0xf]
      %v2161 = vld [vmem:[%s1755 + $0x4c] sm:$0xf]
      %v2162 = vld [vmem:[%s1755 + $0x50] sm:$0x1]
      %v2163 = vld [vmem:[%s1755 + $0x54] sm:$0xf]
      %v2164 = vld [vmem:[%s1755 + $0x58] sm:$0xf]
      %v2165 = vld [vmem:[%s1755 + $0x5c] sm:$0x1]
      %v2166 = vld [vmem:[%s1755 + $0x60] sm:$0xf]
      %v2167 = vld [vmem:[%s1755 + $0x64] sm:$0xf]
      %v2168 = vld [vmem:[%s1755 + $0x68] sm:$0x1]
      %v2169 = vld [vmem:[%s1755 + $0x6c] sm:$0xf]
      %v2170 = vld [vmem:[%s1755 + $0x70] sm:$0xf]
      %v2171 = vld [vmem:[%s1755 + $0x74] sm:$0x1]
      %v2172 = vld [vmem:[%s1755 + $0x78] sm:$0xf]
      %v2173 = vld [vmem:[%s1755 + $0x7c] sm:$0xf]
      %v2174 = vld [vmem:[%s1755 + $0x80] sm:$0x1]
      %v2175 = vld [vmem:[%s1755 + $0x84] sm:$0xf]
      %v2176 = vld [vmem:[%s1755 + $0x88] sm:$0xf]
      %v2177 = vld [vmem:[%s1755 + $0x8c] sm:$0x1]
      %v2178 = vld [vmem:[%s1755 + $0x90] sm:$0xf]
      %v2179 = vld [vmem:[%s1755 + $0x94] sm:$0xf]
      %v2180 = vld [vmem:[%s1755 + $0x98] sm:$0x1]
      %v2181 = vld [vmem:[%s1755 + $0x9c] sm:$0xf]
      %v2182 = vld [vmem:[%s1755 + $0xa0] sm:$0xf]
      %v2183 = vld [vmem:[%s1755 + $0xa4] sm:$0x1]
      %v2184 = vld [vmem:[%s1755 + $0xa8] sm:$0xf]
      %v2185 = vld [vmem:[%s1755 + $0xac] sm:$0xf]
      %v2186 = vld [vmem:[%s1755 + $0xb0] sm:$0x1]
      %v2187 = vld [vmem:[%s1755 + $0xb4] sm:$0xf]
      %v2188 = vld [vmem:[%s1755 + $0xb8] sm:$0xf]
      %v2189 = vld [vmem:[%s1755 + $0xbc] sm:$0x1]
      %v2191 = vshrl.u32 %v2142, 16
      %v2193 = vrot.slane %v2191, 4
      %v2194 = vshll.u32 %v2142, 16
      %v2196 = vrot.slane %v2194, 5
      %v2197 = vor.u32 %v2193, %v2196
      %v2198 = vrot.slane %v2197, 4
      %v2200 = vshll.u32 %v2143, 16
      %v2202 = vrot.slane %v2200, 5
      %v2203 = vsel %vm281, %v2198, %v2202
      %v2204 = vshrl.u32 %v2143, 16
      %v2206 = vrot.slane %v2204, 4
      %v2207 = vor.u32 %v2206, %v2202
      %v2208 = vrot.slane %v2207, 4
      %v2210 = vshll.u32 %v2144, 16
      %v2212 = vrot.slane %v2210, 5
      %v2213 = vsel %vm281, %v2208, %v2212
      %v2215 = vshrl.u32 %v2145, 16
      %v2217 = vrot.slane %v2215, 4
      %v2218 = vshll.u32 %v2145, 16
      %v2220 = vrot.slane %v2218, 5
      %v2221 = vor.u32 %v2217, %v2220
      %v2222 = vrot.slane %v2221, 4
      %v2224 = vshll.u32 %v2146, 16
      %v2226 = vrot.slane %v2224, 5
      %v2227 = vsel %vm281, %v2222, %v2226
      %v2228 = vshrl.u32 %v2146, 16
      %v2230 = vrot.slane %v2228, 4
      %v2231 = vor.u32 %v2230, %v2226
      %v2232 = vrot.slane %v2231, 4
      %v2234 = vshll.u32 %v2147, 16
      %v2236 = vrot.slane %v2234, 5
      %v2237 = vsel %vm281, %v2232, %v2236
      %v2239 = vshrl.u32 %v2148, 16
      %v2241 = vrot.slane %v2239, 4
      %v2242 = vshll.u32 %v2148, 16
      %v2244 = vrot.slane %v2242, 5
      %v2245 = vor.u32 %v2241, %v2244
      %v2246 = vrot.slane %v2245, 4
      %v2248 = vshll.u32 %v2149, 16
      %v2250 = vrot.slane %v2248, 5
      %v2251 = vsel %vm281, %v2246, %v2250
      %v2252 = vshrl.u32 %v2149, 16
      %v2254 = vrot.slane %v2252, 4
      %v2255 = vor.u32 %v2254, %v2250
      %v2256 = vrot.slane %v2255, 4
      %v2258 = vshll.u32 %v2150, 16
      %v2260 = vrot.slane %v2258, 5
      %v2261 = vsel %vm281, %v2256, %v2260
      %v2263 = vshrl.u32 %v2151, 16
      %v2265 = vrot.slane %v2263, 4
      %v2266 = vshll.u32 %v2151, 16
      %v2268 = vrot.slane %v2266, 5
      %v2269 = vor.u32 %v2265, %v2268
      %v2270 = vrot.slane %v2269, 4
      %v2272 = vshll.u32 %v2152, 16
      %v2274 = vrot.slane %v2272, 5
      %v2275 = vsel %vm281, %v2270, %v2274
      %v2276 = vshrl.u32 %v2152, 16
      %v2278 = vrot.slane %v2276, 4
      %v2279 = vor.u32 %v2278, %v2274
      %v2280 = vrot.slane %v2279, 4
      %v2282 = vshll.u32 %v2153, 16
      %v2284 = vrot.slane %v2282, 5
      %v2285 = vsel %vm281, %v2280, %v2284
      %v2287 = vshrl.u32 %v2154, 16
      %v2289 = vrot.slane %v2287, 4
      %v2290 = vshll.u32 %v2154, 16
      %v2292 = vrot.slane %v2290, 5
      %v2293 = vor.u32 %v2289, %v2292
      %v2294 = vrot.slane %v2293, 4
      %v2296 = vshll.u32 %v2155, 16
      %v2298 = vrot.slane %v2296, 5
      %v2299 = vsel %vm281, %v2294, %v2298
      %v2300 = vshrl.u32 %v2155, 16
      %v2302 = vrot.slane %v2300, 4
      %v2303 = vor.u32 %v2302, %v2298
      %v2304 = vrot.slane %v2303, 4
      %v2306 = vshll.u32 %v2156, 16
      %v2308 = vrot.slane %v2306, 5
      %v2309 = vsel %vm281, %v2304, %v2308
      %v2311 = vshrl.u32 %v2157, 16
      %v2313 = vrot.slane %v2311, 4
      %v2314 = vshll.u32 %v2157, 16
      %v2316 = vrot.slane %v2314, 5
      %v2317 = vor.u32 %v2313, %v2316
      %v2318 = vrot.slane %v2317, 4
      %v2320 = vshll.u32 %v2158, 16
      %v2322 = vrot.slane %v2320, 5
      %v2323 = vsel %vm281, %v2318, %v2322
      %v2324 = vshrl.u32 %v2158, 16
      %v2326 = vrot.slane %v2324, 4
      %v2327 = vor.u32 %v2326, %v2322
      %v2328 = vrot.slane %v2327, 4
      %v2330 = vshll.u32 %v2159, 16
      %v2332 = vrot.slane %v2330, 5
      %v2333 = vsel %vm281, %v2328, %v2332
      %v2335 = vshrl.u32 %v2160, 16
      %v2337 = vrot.slane %v2335, 4
      %v2338 = vshll.u32 %v2160, 16
      %v2340 = vrot.slane %v2338, 5
      %v2341 = vor.u32 %v2337, %v2340
      %v2342 = vrot.slane %v2341, 4
      %v2344 = vshll.u32 %v2161, 16
      %v2346 = vrot.slane %v2344, 5
      %v2347 = vsel %vm281, %v2342, %v2346
      %v2348 = vshrl.u32 %v2161, 16
      %v2350 = vrot.slane %v2348, 4
      %v2351 = vor.u32 %v2350, %v2346
      %v2352 = vrot.slane %v2351, 4
      %v2354 = vshll.u32 %v2162, 16
      %v2356 = vrot.slane %v2354, 5
      %v2357 = vsel %vm281, %v2352, %v2356
      %v2359 = vshrl.u32 %v2163, 16
      %v2361 = vrot.slane %v2359, 4
      %v2362 = vshll.u32 %v2163, 16
      %v2364 = vrot.slane %v2362, 5
      %v2365 = vor.u32 %v2361, %v2364
      %v2366 = vrot.slane %v2365, 4
      %v2368 = vshll.u32 %v2164, 16
      %v2370 = vrot.slane %v2368, 5
      %v2371 = vsel %vm281, %v2366, %v2370
      %v2372 = vshrl.u32 %v2164, 16
      %v2374 = vrot.slane %v2372, 4
      %v2375 = vor.u32 %v2374, %v2370
      %v2376 = vrot.slane %v2375, 4
      %v2378 = vshll.u32 %v2165, 16
      %v2380 = vrot.slane %v2378, 5
      %v2381 = vsel %vm281, %v2376, %v2380
      %v2383 = vshrl.u32 %v2166, 16
      %v2385 = vrot.slane %v2383, 4
      %v2386 = vshll.u32 %v2166, 16
      %v2388 = vrot.slane %v2386, 5
      %v2389 = vor.u32 %v2385, %v2388
      %v2390 = vrot.slane %v2389, 4
      %v2392 = vshll.u32 %v2167, 16
      %v2394 = vrot.slane %v2392, 5
      %v2395 = vsel %vm281, %v2390, %v2394
      %v2396 = vshrl.u32 %v2167, 16
      %v2398 = vrot.slane %v2396, 4
      %v2399 = vor.u32 %v2398, %v2394
      %v2400 = vrot.slane %v2399, 4
      %v2402 = vshll.u32 %v2168, 16
      %v2404 = vrot.slane %v2402, 5
      %v2405 = vsel %vm281, %v2400, %v2404
      %v2407 = vshrl.u32 %v2169, 16
      %v2409 = vrot.slane %v2407, 4
      %v2410 = vshll.u32 %v2169, 16
      %v2412 = vrot.slane %v2410, 5
      %v2413 = vor.u32 %v2409, %v2412
      %v2414 = vrot.slane %v2413, 4
      %v2416 = vshll.u32 %v2170, 16
      %v2418 = vrot.slane %v2416, 5
      %v2419 = vsel %vm281, %v2414, %v2418
      %v2420 = vshrl.u32 %v2170, 16
      %v2422 = vrot.slane %v2420, 4
      %v2423 = vor.u32 %v2422, %v2418
      %v2424 = vrot.slane %v2423, 4
      %v2426 = vshll.u32 %v2171, 16
      %v2428 = vrot.slane %v2426, 5
      %v2429 = vsel %vm281, %v2424, %v2428
      %v2431 = vshrl.u32 %v2172, 16
      %v2433 = vrot.slane %v2431, 4
      %v2434 = vshll.u32 %v2172, 16
      %v2436 = vrot.slane %v2434, 5
      %v2437 = vor.u32 %v2433, %v2436
      %v2438 = vrot.slane %v2437, 4
      %v2440 = vshll.u32 %v2173, 16
      %v2442 = vrot.slane %v2440, 5
      %v2443 = vsel %vm281, %v2438, %v2442
      %v2444 = vshrl.u32 %v2173, 16
      %v2446 = vrot.slane %v2444, 4
      %v2447 = vor.u32 %v2446, %v2442
      %v2448 = vrot.slane %v2447, 4
      %v2450 = vshll.u32 %v2174, 16
      %v2452 = vrot.slane %v2450, 5
      %v2453 = vsel %vm281, %v2448, %v2452
      %v2455 = vshrl.u32 %v2175, 16
      %v2457 = vrot.slane %v2455, 4
      %v2458 = vshll.u32 %v2175, 16
      %v2460 = vrot.slane %v2458, 5
      %v2461 = vor.u32 %v2457, %v2460
      %v2462 = vrot.slane %v2461, 4
      %v2464 = vshll.u32 %v2176, 16
      %v2466 = vrot.slane %v2464, 5
      %v2467 = vsel %vm281, %v2462, %v2466
      %v2468 = vshrl.u32 %v2176, 16
      %v2470 = vrot.slane %v2468, 4
      %v2471 = vor.u32 %v2470, %v2466
      %v2472 = vrot.slane %v2471, 4
      %v2474 = vshll.u32 %v2177, 16
      %v2476 = vrot.slane %v2474, 5
      %v2477 = vsel %vm281, %v2472, %v2476
      %v2479 = vshrl.u32 %v2178, 16
      %v2481 = vrot.slane %v2479, 4
      %v2482 = vshll.u32 %v2178, 16
      %v2484 = vrot.slane %v2482, 5
      %v2485 = vor.u32 %v2481, %v2484
      %v2486 = vrot.slane %v2485, 4
      %v2488 = vshll.u32 %v2179, 16
      %v2490 = vrot.slane %v2488, 5
      %v2491 = vsel %vm281, %v2486, %v2490
      %v2492 = vshrl.u32 %v2179, 16
      %v2494 = vrot.slane %v2492, 4
      %v2495 = vor.u32 %v2494, %v2490
      %v2496 = vrot.slane %v2495, 4
      %v2498 = vshll.u32 %v2180, 16
      %v2500 = vrot.slane %v2498, 5
      %v2501 = vsel %vm281, %v2496, %v2500
      %v2503 = vshrl.u32 %v2181, 16
      %v2505 = vrot.slane %v2503, 4
      %v2506 = vshll.u32 %v2181, 16
      %v2508 = vrot.slane %v2506, 5
      %v2509 = vor.u32 %v2505, %v2508
      %v2510 = vrot.slane %v2509, 4
      %v2512 = vshll.u32 %v2182, 16
      %v2514 = vrot.slane %v2512, 5
      %v2515 = vsel %vm281, %v2510, %v2514
      %v2516 = vshrl.u32 %v2182, 16
      %v2518 = vrot.slane %v2516, 4
      %v2519 = vor.u32 %v2518, %v2514
      %v2520 = vrot.slane %v2519, 4
      %v2522 = vshll.u32 %v2183, 16
      %v2524 = vrot.slane %v2522, 5
      %v2525 = vsel %vm281, %v2520, %v2524
      %v2527 = vshrl.u32 %v2184, 16
      %v2529 = vrot.slane %v2527, 4
      %v2530 = vshll.u32 %v2184, 16
      %v2532 = vrot.slane %v2530, 5
      %v2533 = vor.u32 %v2529, %v2532
      %v2534 = vrot.slane %v2533, 4
      %v2536 = vshll.u32 %v2185, 16
      %v2538 = vrot.slane %v2536, 5
      %v2539 = vsel %vm281, %v2534, %v2538
      %v2540 = vshrl.u32 %v2185, 16
      %v2542 = vrot.slane %v2540, 4
      %v2543 = vor.u32 %v2542, %v2538
      %v2544 = vrot.slane %v2543, 4
      %v2546 = vshll.u32 %v2186, 16
      %v2548 = vrot.slane %v2546, 5
      %v2549 = vsel %vm281, %v2544, %v2548
      %v2551 = vshrl.u32 %v2187, 16
      %v2553 = vrot.slane %v2551, 4
      %v2554 = vshll.u32 %v2187, 16
      %v2556 = vrot.slane %v2554, 5
      %v2557 = vor.u32 %v2553, %v2556
      %v2558 = vrot.slane %v2557, 4
      %v2560 = vshll.u32 %v2188, 16
      %v2562 = vrot.slane %v2560, 5
      %v2563 = vsel %vm281, %v2558, %v2562
      %v2564 = vshrl.u32 %v2188, 16
      %v2566 = vrot.slane %v2564, 4
      %v2567 = vor.u32 %v2566, %v2562
      %v2568 = vrot.slane %v2567, 4
      %v2570 = vshll.u32 %v2189, 16
      %v2572 = vrot.slane %v2570, 5
      %v2573 = vsel %vm281, %v2568, %v2572
      %s2574 = scalar_lea.vmem %s210, 128
      %v2575 = vld [vmem:[%s2574] sm:$0xf]
      %v2576 = vld [vmem:[%s2574 + $0x4] sm:$0xf]
      %v2577 = vld [vmem:[%s2574 + $0x8] sm:$0xf]
      %v2578 = vld [vmem:[%s2574 + $0xc] sm:$0xf]
      %v2579 = vld [vmem:[%s2574 + $0x10] sm:$0xf]
      %v2580 = vld [vmem:[%s2574 + $0x14] sm:$0xf]
      %v2581 = vld [vmem:[%s2574 + $0x18] sm:$0xf]
      %v2582 = vld [vmem:[%s2574 + $0x1c] sm:$0xf]
      %v2583 = vunpack.c.l.b16 %v2203
      %v2584 = vunpack.c.l.b16 %v2213
      %v2585 = vunpack.c.l.b16 %v2227
      %v2586 = vunpack.c.l.b16 %v2237
      %v2587 = vunpack.c.l.b16 %v2251
      %v2588 = vunpack.c.l.b16 %v2261
      %v2589 = vunpack.c.l.b16 %v2275
      %v2590 = vunpack.c.l.b16 %v2285
      %v2591 = vunpack.c.l.b16 %v2299
      %v2592 = vunpack.c.l.b16 %v2309
      %v2593 = vunpack.c.l.b16 %v2323
      %v2594 = vunpack.c.l.b16 %v2333
      %v2595 = vunpack.c.l.b16 %v2347
      %v2596 = vunpack.c.l.b16 %v2357
      %v2597 = vunpack.c.l.b16 %v2371
      %v2598 = vunpack.c.l.b16 %v2381
      %v2599 = vunpack.c.l.b16 %v2395
      %v2600 = vunpack.c.l.b16 %v2405
      %v2601 = vunpack.c.l.b16 %v2419
      %v2602 = vunpack.c.l.b16 %v2429
      %v2603 = vunpack.c.l.b16 %v2443
      %v2604 = vunpack.c.l.b16 %v2453
      %v2605 = vunpack.c.l.b16 %v2467
      %v2606 = vunpack.c.l.b16 %v2477
      %v2607 = vunpack.c.l.b16 %v2491
      %v2608 = vunpack.c.l.b16 %v2501
      %v2609 = vunpack.c.l.b16 %v2515
      %v2610 = vunpack.c.l.b16 %v2525
      %v2611 = vunpack.c.l.b16 %v2539
      %v2612 = vunpack.c.l.b16 %v2549
      %v2613 = vunpack.c.l.b16 %v2563
      %v2614 = vunpack.c.l.b16 %v2573
      %v2615 = vpack.c.b16 %v2584, %v2583
      %v2616 = vpack.c.b16 %v2586, %v2585
      %v2617 = vpack.c.b16 %v2588, %v2587
      %v2618 = vpack.c.b16 %v2590, %v2589
      %v2619 = vpack.c.b16 %v2592, %v2591
      %v2620 = vpack.c.b16 %v2594, %v2593
      %v2621 = vpack.c.b16 %v2596, %v2595
      %v2622 = vpack.c.b16 %v2598, %v2597
      %v2623 = vpack.c.b16 %v2600, %v2599
      %v2624 = vpack.c.b16 %v2602, %v2601
      %v2625 = vpack.c.b16 %v2604, %v2603
      %v2626 = vpack.c.b16 %v2606, %v2605
      %v2627 = vpack.c.b16 %v2608, %v2607
      %v2628 = vpack.c.b16 %v2610, %v2609
      %v2629 = vpack.c.b16 %v2612, %v2611
      %v2630 = vpack.c.b16 %v2614, %v2613
      %v2639 = vunpack.c.l.b16 %v2575
      %v2640 = vunpack.c.l.b16 %v2576
      %v2641 = vunpack.c.l.b16 %v2577
      %v2642 = vunpack.c.l.b16 %v2578
      %v2643 = vunpack.c.l.b16 %v2579
      %v2644 = vunpack.c.l.b16 %v2580
      %v2645 = vunpack.c.l.b16 %v2581
      %v2646 = vunpack.c.l.b16 %v2582
      %v2647 = vpack.c.b16 %v2640, %v2639
      %v2648 = vpack.c.b16 %v2642, %v2641
      %v2649 = vpack.c.b16 %v2644, %v2643
      %v2650 = vpack.c.b16 %v2646, %v2645
      %v2656 = vsel %vm747, %v2615, 0
      %v2659 = vsel %vm747, %v2616, 0
      %v2662 = vsel %vm747, %v2617, 0
      %v2665 = vsel %vm747, %v2618, 0
      %v2668 = vsel %vm747, %v2619, 0
      %v2671 = vsel %vm747, %v2620, 0
      %v2674 = vsel %vm747, %v2621, 0
      %v2677 = vsel %vm747, %v2622, 0
      %v2680 = vsel %vm747, %v2623, 0
      %v2683 = vsel %vm747, %v2624, 0
      %v2686 = vsel %vm747, %v2625, 0
      %v2689 = vsel %vm747, %v2626, 0
      %v2692 = vsel %vm747, %v2627, 0
      %v2695 = vsel %vm747, %v2628, 0
      %v2698 = vsel %vm747, %v2629, 0
      %v2701 = vsel %vm747, %v2630, 0
      %2703 = vmatprep.subr.bf16.mxu0 0
      %2704 = vmatpush1.bf16.msra.mxu0 %v2647
      %2705 = vmatprep.subr.bf16.mxu0 0
      %2706 = vmatpush1.bf16.msra.mxu0 %v2648
      %2707 = vmatprep.subr.bf16.mxu0 0
      %2708 = vmatpush1.bf16.msra.mxu0 %v2649
      %2709 = vmatprep.subr.bf16.mxu0 0
      %2710 = vmatpush1.bf16.msra.mxu0 %v2650
      %2711 = vmatprep.subr.bf16.mxu0 0
      %2712 = vmatpush1.bf16.msra.mxu0 0
      %2713 = vmatprep.subr.bf16.mxu0 0
      %2714 = vmatpush1.bf16.msra.mxu0 0
      %2715 = vmatprep.subr.bf16.mxu0 0
      %2716 = vmatpush1.bf16.msra.mxu0 0
      %2717 = vmatprep.subr.bf16.mxu0 0
      %2718 = vmatpush1.bf16.msra.mxu0 0
      %2719 = vmatprep.subr.bf16.mxu0 0
      %2720 = vmatpush1.bf16.msra.mxu0 0
      %2721 = vmatprep.subr.bf16.mxu0 0
      %2722 = vmatpush1.bf16.msra.mxu0 0
      %2723 = vmatprep.subr.bf16.mxu0 0
      %2724 = vmatpush1.bf16.msra.mxu0 0
      %2725 = vmatprep.subr.bf16.mxu0 0
      %2726 = vmatpush1.bf16.msra.mxu0 0
      %2727 = vmatprep.subr.bf16.mxu0 0
      %2728 = vmatpush1.bf16.msra.mxu0 0
      %2729 = vmatprep.subr.bf16.mxu0 0
      %2730 = vmatpush1.bf16.msra.mxu0 0
      %2731 = vmatprep.subr.bf16.mxu0 0
      %2732 = vmatpush1.bf16.msra.mxu0 0
      %2733 = vmatprep.subr.bf16.mxu0 0
      %2734 = vmatpush1.bf16.msra.mxu0 0
      %2735 = vmatprep.mubr.bf16.mxu0 0
      %2736 = vmatmul.mubr.bf16.gmra.mrb[0].mxu0 %v2656
      %v2737 = vpop.f32.mrb[0].mxu0
      %v2738 = vadd.f32 0.0, %v2737
      %v2739 = vpop.f32.mrb[0].mxu0
      %v2740 = vpop.f32.mrb[0].mxu0
      %v2741 = vadd.f32 0.0, %v2740
      %v2742 = vpop.f32.mrb[0].mxu0
      %2743 = vmatprep.mubr.bf16.mxu0 0
      %2744 = vmatmul.mubr.bf16.gmra.mrb[0].mxu0 %v2659
      %v2745 = vpop.f32.mrb[0].mxu0
      %v2746 = vadd.f32 0.0, %v2745
      %v2747 = vpop.f32.mrb[0].mxu0
      %v2748 = vpop.f32.mrb[0].mxu0
      %v2749 = vadd.f32 0.0, %v2748
      %v2750 = vpop.f32.mrb[0].mxu0
      %2751 = vmatprep.mubr.bf16.mxu0 0
      %2752 = vmatmul.mubr.bf16.gmra.mrb[0].mxu0 %v2662
      %v2753 = vpop.f32.mrb[0].mxu0
      %v2754 = vadd.f32 0.0, %v2753
      %v2755 = vpop.f32.mrb[0].mxu0
      %v2756 = vpop.f32.mrb[0].mxu0
      %v2757 = vadd.f32 0.0, %v2756
      %v2758 = vpop.f32.mrb[0].mxu0
      %2759 = vmatprep.mubr.bf16.mxu0 0
      %2760 = vmatmul.mubr.bf16.gmra.mrb[0].mxu0 %v2665
      %v2761 = vpop.f32.mrb[0].mxu0
      %v2762 = vadd.f32 0.0, %v2761
      %v2763 = vpop.f32.mrb[0].mxu0
      %v2764 = vpop.f32.mrb[0].mxu0
      %v2765 = vadd.f32 0.0, %v2764
      %v2766 = vpop.f32.mrb[0].mxu0
      %2767 = vmatprep.mubr.bf16.mxu0 0
      %2768 = vmatmul.mubr.bf16.gmra.mrb[0].mxu0 %v2668
      %v2769 = vpop.f32.mrb[0].mxu0
      %v2770 = vadd.f32 0.0, %v2769
      %v2771 = vpop.f32.mrb[0].mxu0
      %v2772 = vpop.f32.mrb[0].mxu0
      %v2773 = vadd.f32 0.0, %v2772
      %v2774 = vpop.f32.mrb[0].mxu0
      %2775 = vmatprep.mubr.bf16.mxu0 0
      %2776 = vmatmul.mubr.bf16.gmra.mrb[0].mxu0 %v2671
      %v2777 = vpop.f32.mrb[0].mxu0
      %v2778 = vadd.f32 0.0, %v2777
      %v2779 = vpop.f32.mrb[0].mxu0
      %v2780 = vpop.f32.mrb[0].mxu0
      %v2781 = vadd.f32 0.0, %v2780
      %v2782 = vpop.f32.mrb[0].mxu0
      %2783 = vmatprep.mubr.bf16.mxu0 0
      %2784 = vmatmul.mubr.bf16.gmra.mrb[0].mxu0 %v2674
      %v2785 = vpop.f32.mrb[0].mxu0
      %v2786 = vadd.f32 0.0, %v2785
      %v2787 = vpop.f32.mrb[0].mxu0
      %v2788 = vpop.f32.mrb[0].mxu0
      %v2789 = vadd.f32 0.0, %v2788
      %v2790 = vpop.f32.mrb[0].mxu0
      %2791 = vmatprep.mubr.bf16.mxu0 0
      %2792 = vmatmul.mubr.bf16.gmra.mrb[0].mxu0 %v2677
      %v2793 = vpop.f32.mrb[0].mxu0
      %v2794 = vadd.f32 0.0, %v2793
      %v2795 = vpop.f32.mrb[0].mxu0
      %v2796 = vpop.f32.mrb[0].mxu0
      %v2797 = vadd.f32 0.0, %v2796
      %v2798 = vpop.f32.mrb[0].mxu0
      %2799 = vmatprep.mubr.bf16.mxu0 0
      %2800 = vmatmul.mubr.bf16.gmra.mrb[0].mxu0 %v2680
      %v2801 = vpop.f32.mrb[0].mxu0
      %v2802 = vadd.f32 0.0, %v2801
      %v2803 = vpop.f32.mrb[0].mxu0
      %v2804 = vpop.f32.mrb[0].mxu0
      %v2805 = vadd.f32 0.0, %v2804
      %v2806 = vpop.f32.mrb[0].mxu0
      %2807 = vmatprep.mubr.bf16.mxu0 0
      %2808 = vmatmul.mubr.bf16.gmra.mrb[0].mxu0 %v2683
      %v2809 = vpop.f32.mrb[0].mxu0
      %v2810 = vadd.f32 0.0, %v2809
      %v2811 = vpop.f32.mrb[0].mxu0
      %v2812 = vpop.f32.mrb[0].mxu0
      %v2813 = vadd.f32 0.0, %v2812
      %v2814 = vpop.f32.mrb[0].mxu0
      %2815 = vmatprep.mubr.bf16.mxu0 0
      %2816 = vmatmul.mubr.bf16.gmra.mrb[0].mxu0 %v2686
      %v2817 = vpop.f32.mrb[0].mxu0
      %v2818 = vadd.f32 0.0, %v2817
      %v2819 = vpop.f32.mrb[0].mxu0
      %v2820 = vpop.f32.mrb[0].mxu0
      %v2821 = vadd.f32 0.0, %v2820
      %v2822 = vpop.f32.mrb[0].mxu0
      %2823 = vmatprep.mubr.bf16.mxu0 0
      %2824 = vmatmul.mubr.bf16.gmra.mrb[0].mxu0 %v2689
      %v2825 = vpop.f32.mrb[0].mxu0
      %v2826 = vadd.f32 0.0, %v2825
      %v2827 = vpop.f32.mrb[0].mxu0
      %v2828 = vpop.f32.mrb[0].mxu0
      %v2829 = vadd.f32 0.0, %v2828
      %v2830 = vpop.f32.mrb[0].mxu0
      %2831 = vmatprep.mubr.bf16.mxu0 0
      %2832 = vmatmul.mubr.bf16.gmra.mrb[0].mxu0 %v2692
      %v2833 = vpop.f32.mrb[0].mxu0
      %v2834 = vadd.f32 0.0, %v2833
      %v2835 = vpop.f32.mrb[0].mxu0
      %v2836 = vpop.f32.mrb[0].mxu0
      %v2837 = vadd.f32 0.0, %v2836
      %v2838 = vpop.f32.mrb[0].mxu0
      %2839 = vmatprep.mubr.bf16.mxu0 0
      %2840 = vmatmul.mubr.bf16.gmra.mrb[0].mxu0 %v2695
      %v2841 = vpop.f32.mrb[0].mxu0
      %v2842 = vadd.f32 0.0, %v2841
      %v2843 = vpop.f32.mrb[0].mxu0
      %v2844 = vpop.f32.mrb[0].mxu0
      %v2845 = vadd.f32 0.0, %v2844
      %v2846 = vpop.f32.mrb[0].mxu0
      %2847 = vmatprep.mubr.bf16.mxu0 0
      %2848 = vmatmul.mubr.bf16.gmra.mrb[0].mxu0 %v2698
      %v2849 = vpop.f32.mrb[0].mxu0
      %v2850 = vadd.f32 0.0, %v2849
      %v2851 = vpop.f32.mrb[0].mxu0
      %v2852 = vpop.f32.mrb[0].mxu0
      %v2853 = vadd.f32 0.0, %v2852
      %v2854 = vpop.f32.mrb[0].mxu0
      %2855 = vmatprep.mubr.bf16.mxu0 0
      %2856 = vmatmul.mubr.bf16.gmra.mrb[0].mxu0 %v2701
      %v2857 = vpop.f32.mrb[0].mxu0
      %v2858 = vadd.f32 0.0, %v2857
      %v2859 = vpop.f32.mrb[0].mxu0
      %v2860 = vpop.f32.mrb[0].mxu0
      %v2861 = vadd.f32 0.0, %v2860
      %v2862 = vpop.f32.mrb[0].mxu0
      %2863 = vdwg.mxu0
      %v2864 = vadd.f32 %v2110, %v2738
      %v2865 = vadd.f32 %v2111, %v2741
      %v2866 = vadd.f32 %v2112, %v2746
      %v2867 = vadd.f32 %v2113, %v2749
      %v2868 = vadd.f32 %v2114, %v2754
      %v2869 = vadd.f32 %v2115, %v2757
      %v2870 = vadd.f32 %v2116, %v2762
      %v2871 = vadd.f32 %v2117, %v2765
      %v2872 = vadd.f32 %v2118, %v2770
      %v2873 = vadd.f32 %v2119, %v2773
      %v2874 = vadd.f32 %v2120, %v2778
      %v2875 = vadd.f32 %v2121, %v2781
      %v2876 = vadd.f32 %v2122, %v2786
      %v2877 = vadd.f32 %v2123, %v2789
      %v2878 = vadd.f32 %v2124, %v2794
      %v2879 = vadd.f32 %v2125, %v2797
      %v2880 = vadd.f32 %v2126, %v2802
      %v2881 = vadd.f32 %v2127, %v2805
      %v2882 = vadd.f32 %v2128, %v2810
      %v2883 = vadd.f32 %v2129, %v2813
      %v2884 = vadd.f32 %v2130, %v2818
      %v2885 = vadd.f32 %v2131, %v2821
      %v2886 = vadd.f32 %v2132, %v2826
      %v2887 = vadd.f32 %v2133, %v2829
      %v2888 = vadd.f32 %v2134, %v2834
      %v2889 = vadd.f32 %v2135, %v2837
      %v2890 = vadd.f32 %v2136, %v2842
      %v2891 = vadd.f32 %v2137, %v2845
      %v2892 = vadd.f32 %v2138, %v2850
      %v2893 = vadd.f32 %v2139, %v2853
      %v2894 = vadd.f32 %v2140, %v2858
      %v2895 = vadd.f32 %v2141, %v2861
      %v2896 = vld [vmem:[%s1755] sm:$0xe]
      %v2897 = vld [vmem:[%s1755 + $0xc] sm:$0xe]
      %v2898 = vld [vmem:[%s1755 + $0x18] sm:$0xe]
      %v2899 = vld [vmem:[%s1755 + $0x24] sm:$0xe]
      %v2900 = vld [vmem:[%s1755 + $0x30] sm:$0xe]
      %v2901 = vld [vmem:[%s1755 + $0x3c] sm:$0xe]
      %v2902 = vld [vmem:[%s1755 + $0x48] sm:$0xe]
      %v2903 = vld [vmem:[%s1755 + $0x54] sm:$0xe]
      %v2904 = vld [vmem:[%s1755 + $0x60] sm:$0xe]
      %v2905 = vld [vmem:[%s1755 + $0x6c] sm:$0xe]
      %v2906 = vld [vmem:[%s1755 + $0x78] sm:$0xe]
      %v2907 = vld [vmem:[%s1755 + $0x84] sm:$0xe]
      %v2908 = vld [vmem:[%s1755 + $0x90] sm:$0xe]
      %v2909 = vld [vmem:[%s1755 + $0x9c] sm:$0xe]
      %v2910 = vld [vmem:[%s1755 + $0xa8] sm:$0xe]
      %v2911 = vld [vmem:[%s1755 + $0xb4] sm:$0xe]
      %v2960 = vrot.slane %v2896, 5
      %v2961 = vrot.slane %v2960, 4
      %v2962 = vrot.slane %v2143, 5
      %v2963 = vsel %vm1320, %v2961, %v2962
      %v2964 = vrot.slane %v2962, 4
      %v2965 = vrot.slane %v2144, 5
      %v2966 = vsel %vm1320, %v2964, %v2965
      %v2967 = vrot.slane %v2897, 5
      %v2968 = vrot.slane %v2967, 4
      %v2969 = vrot.slane %v2146, 5
      %v2970 = vsel %vm1320, %v2968, %v2969
      %v2971 = vrot.slane %v2969, 4
      %v2972 = vrot.slane %v2147, 5
      %v2973 = vsel %vm1320, %v2971, %v2972
      %v2974 = vrot.slane %v2898, 5
      %v2975 = vrot.slane %v2974, 4
      %v2976 = vrot.slane %v2149, 5
      %v2977 = vsel %vm1320, %v2975, %v2976
      %v2978 = vrot.slane %v2976, 4
      %v2979 = vrot.slane %v2150, 5
      %v2980 = vsel %vm1320, %v2978, %v2979
      %v2981 = vrot.slane %v2899, 5
      %v2982 = vrot.slane %v2981, 4
      %v2983 = vrot.slane %v2152, 5
      %v2984 = vsel %vm1320, %v2982, %v2983
      %v2985 = vrot.slane %v2983, 4
      %v2986 = vrot.slane %v2153, 5
      %v2987 = vsel %vm1320, %v2985, %v2986
      %v2988 = vrot.slane %v2900, 5
      %v2989 = vrot.slane %v2988, 4
      %v2990 = vrot.slane %v2155, 5
      %v2991 = vsel %vm1320, %v2989, %v2990
      %v2992 = vrot.slane %v2990, 4
      %v2993 = vrot.slane %v2156, 5
      %v2994 = vsel %vm1320, %v2992, %v2993
      %v2995 = vrot.slane %v2901, 5
      %v2996 = vrot.slane %v2995, 4
      %v2997 = vrot.slane %v2158, 5
      %v2998 = vsel %vm1320, %v2996, %v2997
      %v2999 = vrot.slane %v2997, 4
      %v3000 = vrot.slane %v2159, 5
      %v3001 = vsel %vm1320, %v2999, %v3000
      %v3002 = vrot.slane %v2902, 5
      %v3003 = vrot.slane %v3002, 4
      %v3004 = vrot.slane %v2161, 5
      %v3005 = vsel %vm1320, %v3003, %v3004
      %v3006 = vrot.slane %v3004, 4
      %v3007 = vrot.slane %v2162, 5
      %v3008 = vsel %vm1320, %v3006, %v3007
      %v3009 = vrot.slane %v2903, 5
      %v3010 = vrot.slane %v3009, 4
      %v3011 = vrot.slane %v2164, 5
      %v3012 = vsel %vm1320, %v3010, %v3011
      %v3013 = vrot.slane %v3011, 4
      %v3014 = vrot.slane %v2165, 5
      %v3015 = vsel %vm1320, %v3013, %v3014
      %v3016 = vrot.slane %v2904, 5
      %v3017 = vrot.slane %v3016, 4
      %v3018 = vrot.slane %v2167, 5
      %v3019 = vsel %vm1320, %v3017, %v3018
      %v3020 = vrot.slane %v3018, 4
      %v3021 = vrot.slane %v2168, 5
      %v3022 = vsel %vm1320, %v3020, %v3021
      %v3023 = vrot.slane %v2905, 5
      %v3024 = vrot.slane %v3023, 4
      %v3025 = vrot.slane %v2170, 5
      %v3026 = vsel %vm1320, %v3024, %v3025
      %v3027 = vrot.slane %v3025, 4
      %v3028 = vrot.slane %v2171, 5
      %v3029 = vsel %vm1320, %v3027, %v3028
      %v3030 = vrot.slane %v2906, 5
      %v3031 = vrot.slane %v3030, 4
      %v3032 = vrot.slane %v2173, 5
      %v3033 = vsel %vm1320, %v3031, %v3032
      %v3034 = vrot.slane %v3032, 4
      %v3035 = vrot.slane %v2174, 5
      %v3036 = vsel %vm1320, %v3034, %v3035
      %v3037 = vrot.slane %v2907, 5
      %v3038 = vrot.slane %v3037, 4
      %v3039 = vrot.slane %v2176, 5
      %v3040 = vsel %vm1320, %v3038, %v3039
      %v3041 = vrot.slane %v3039, 4
      %v3042 = vrot.slane %v2177, 5
      %v3043 = vsel %vm1320, %v3041, %v3042
      %v3044 = vrot.slane %v2908, 5
      %v3045 = vrot.slane %v3044, 4
      %v3046 = vrot.slane %v2179, 5
      %v3047 = vsel %vm1320, %v3045, %v3046
      %v3048 = vrot.slane %v3046, 4
      %v3049 = vrot.slane %v2180, 5
      %v3050 = vsel %vm1320, %v3048, %v3049
      %v3051 = vrot.slane %v2909, 5
      %v3052 = vrot.slane %v3051, 4
      %v3053 = vrot.slane %v2182, 5
      %v3054 = vsel %vm1320, %v3052, %v3053
      %v3055 = vrot.slane %v3053, 4
      %v3056 = vrot.slane %v2183, 5
      %v3057 = vsel %vm1320, %v3055, %v3056
      %v3058 = vrot.slane %v2910, 5
      %v3059 = vrot.slane %v3058, 4
      %v3060 = vrot.slane %v2185, 5
      %v3061 = vsel %vm1320, %v3059, %v3060
      %v3062 = vrot.slane %v3060, 4
      %v3063 = vrot.slane %v2186, 5
      %v3064 = vsel %vm1320, %v3062, %v3063
      %v3065 = vrot.slane %v2911, 5
      %v3066 = vrot.slane %v3065, 4
      %v3067 = vrot.slane %v2188, 5
      %v3068 = vsel %vm1320, %v3066, %v3067
      %v3069 = vrot.slane %v3067, 4
      %v3070 = vrot.slane %v2189, 5
      %v3071 = vsel %vm1320, %v3069, %v3070
      %s3072 = scalar_lea.vmem %s210, 160
      %v3073 = vld [vmem:[%s3072] sm:$0xf]
      %v3074 = vld [vmem:[%s3072 + $0x4] sm:$0xf]
      %v3075 = vld [vmem:[%s3072 + $0x8] sm:$0xf]
      %v3076 = vld [vmem:[%s3072 + $0xc] sm:$0xf]
      %v3077 = vld [vmem:[%s3072 + $0x10] sm:$0xf]
      %v3078 = vld [vmem:[%s3072 + $0x14] sm:$0xf]
      %v3079 = vld [vmem:[%s3072 + $0x18] sm:$0xf]
      %v3080 = vld [vmem:[%s3072 + $0x1c] sm:$0xf]
      %v3081 = vunpack.c.l.b16 %v2963
      %v3082 = vunpack.c.l.b16 %v2966
      %v3083 = vunpack.c.l.b16 %v2970
      %v3084 = vunpack.c.l.b16 %v2973
      %v3085 = vunpack.c.l.b16 %v2977
      %v3086 = vunpack.c.l.b16 %v2980
      %v3087 = vunpack.c.l.b16 %v2984
      %v3088 = vunpack.c.l.b16 %v2987
      %v3089 = vunpack.c.l.b16 %v2991
      %v3090 = vunpack.c.l.b16 %v2994
      %v3091 = vunpack.c.l.b16 %v2998
      %v3092 = vunpack.c.l.b16 %v3001
      %v3093 = vunpack.c.l.b16 %v3005
      %v3094 = vunpack.c.l.b16 %v3008
      %v3095 = vunpack.c.l.b16 %v3012
      %v3096 = vunpack.c.l.b16 %v3015
      %v3097 = vunpack.c.l.b16 %v3019
      %v3098 = vunpack.c.l.b16 %v3022
      %v3099 = vunpack.c.l.b16 %v3026
      %v3100 = vunpack.c.l.b16 %v3029
      %v3101 = vunpack.c.l.b16 %v3033
      %v3102 = vunpack.c.l.b16 %v3036
      %v3103 = vunpack.c.l.b16 %v3040
      %v3104 = vunpack.c.l.b16 %v3043
      %v3105 = vunpack.c.l.b16 %v3047
      %v3106 = vunpack.c.l.b16 %v3050
      %v3107 = vunpack.c.l.b16 %v3054
      %v3108 = vunpack.c.l.b16 %v3057
      %v3109 = vunpack.c.l.b16 %v3061
      %v3110 = vunpack.c.l.b16 %v3064
      %v3111 = vunpack.c.l.b16 %v3068
      %v3112 = vunpack.c.l.b16 %v3071
      %v3113 = vpack.c.b16 %v3082, %v3081
      %v3114 = vpack.c.b16 %v3084, %v3083
      %v3115 = vpack.c.b16 %v3086, %v3085
      %v3116 = vpack.c.b16 %v3088, %v3087
      %v3117 = vpack.c.b16 %v3090, %v3089
      %v3118 = vpack.c.b16 %v3092, %v3091
      %v3119 = vpack.c.b16 %v3094, %v3093
      %v3120 = vpack.c.b16 %v3096, %v3095
      %v3121 = vpack.c.b16 %v3098, %v3097
      %v3122 = vpack.c.b16 %v3100, %v3099
      %v3123 = vpack.c.b16 %v3102, %v3101
      %v3124 = vpack.c.b16 %v3104, %v3103
      %v3125 = vpack.c.b16 %v3106, %v3105
      %v3126 = vpack.c.b16 %v3108, %v3107
      %v3127 = vpack.c.b16 %v3110, %v3109
      %v3128 = vpack.c.b16 %v3112, %v3111
      %v3137 = vunpack.c.l.b16 %v3073
      %v3138 = vunpack.c.l.b16 %v3074
      %v3139 = vunpack.c.l.b16 %v3075
      %v3140 = vunpack.c.l.b16 %v3076
      %v3141 = vunpack.c.l.b16 %v3077
      %v3142 = vunpack.c.l.b16 %v3078
      %v3143 = vunpack.c.l.b16 %v3079
      %v3144 = vunpack.c.l.b16 %v3080
      %v3145 = vpack.c.b16 %v3138, %v3137
      %v3146 = vpack.c.b16 %v3140, %v3139
      %v3147 = vpack.c.b16 %v3142, %v3141
      %v3148 = vpack.c.b16 %v3144, %v3143
      %v3154 = vsel %vm747, %v3113, 0
      %v3157 = vsel %vm747, %v3114, 0
      %v3160 = vsel %vm747, %v3115, 0
      %v3163 = vsel %vm747, %v3116, 0
      %v3166 = vsel %vm747, %v3117, 0
      %v3169 = vsel %vm747, %v3118, 0
      %v3172 = vsel %vm747, %v3119, 0
      %v3175 = vsel %vm747, %v3120, 0
      %v3178 = vsel %vm747, %v3121, 0
      %v3181 = vsel %vm747, %v3122, 0
      %v3184 = vsel %vm747, %v3123, 0
      %v3187 = vsel %vm747, %v3124, 0
      %v3190 = vsel %vm747, %v3125, 0
      %v3193 = vsel %vm747, %v3126, 0
      %v3196 = vsel %vm747, %v3127, 0
      %v3199 = vsel %vm747, %v3128, 0
      %3201 = vmatprep.subr.bf16.mxu0 0
      %3202 = vmatpush1.bf16.msra.mxu0 %v3145
      %3203 = vmatprep.subr.bf16.mxu0 0
      %3204 = vmatpush1.bf16.msra.mxu0 %v3146
      %3205 = vmatprep.subr.bf16.mxu0 0
      %3206 = vmatpush1.bf16.msra.mxu0 %v3147
      %3207 = vmatprep.subr.bf16.mxu0 0
      %3208 = vmatpush1.bf16.msra.mxu0 %v3148
      %3209 = vmatprep.subr.bf16.mxu0 0
      %3210 = vmatpush1.bf16.msra.mxu0 0
      %3211 = vmatprep.subr.bf16.mxu0 0
      %3212 = vmatpush1.bf16.msra.mxu0 0
      %3213 = vmatprep.subr.bf16.mxu0 0
      %3214 = vmatpush1.bf16.msra.mxu0 0
      %3215 = vmatprep.subr.bf16.mxu0 0
      %3216 = vmatpush1.bf16.msra.mxu0 0
      %3217 = vmatprep.subr.bf16.mxu0 0
      %3218 = vmatpush1.bf16.msra.mxu0 0
      %3219 = vmatprep.subr.bf16.mxu0 0
      %3220 = vmatpush1.bf16.msra.mxu0 0
      %3221 = vmatprep.subr.bf16.mxu0 0
      %3222 = vmatpush1.bf16.msra.mxu0 0
      %3223 = vmatprep.subr.bf16.mxu0 0
      %3224 = vmatpush1.bf16.msra.mxu0 0
      %3225 = vmatprep.subr.bf16.mxu0 0
      %3226 = vmatpush1.bf16.msra.mxu0 0
      %3227 = vmatprep.subr.bf16.mxu0 0
      %3228 = vmatpush1.bf16.msra.mxu0 0
      %3229 = vmatprep.subr.bf16.mxu0 0
      %3230 = vmatpush1.bf16.msra.mxu0 0
      %3231 = vmatprep.subr.bf16.mxu0 0
      %3232 = vmatpush1.bf16.msra.mxu0 0
      %3233 = vmatprep.mubr.bf16.mxu0 0
      %3234 = vmatmul.mubr.bf16.gmra.mrb[0].mxu0 %v3154
      %v3235 = vpop.f32.mrb[0].mxu0
      %v3236 = vadd.f32 0.0, %v3235
      %v3237 = vpop.f32.mrb[0].mxu0
      %v3238 = vpop.f32.mrb[0].mxu0
      %v3239 = vadd.f32 0.0, %v3238
      %v3240 = vpop.f32.mrb[0].mxu0
      %3241 = vmatprep.mubr.bf16.mxu0 0
      %3242 = vmatmul.mubr.bf16.gmra.mrb[0].mxu0 %v3157
      %v3243 = vpop.f32.mrb[0].mxu0
      %v3244 = vadd.f32 0.0, %v3243
      %v3245 = vpop.f32.mrb[0].mxu0
      %v3246 = vpop.f32.mrb[0].mxu0
      %v3247 = vadd.f32 0.0, %v3246
      %v3248 = vpop.f32.mrb[0].mxu0
      %3249 = vmatprep.mubr.bf16.mxu0 0
      %3250 = vmatmul.mubr.bf16.gmra.mrb[0].mxu0 %v3160
      %v3251 = vpop.f32.mrb[0].mxu0
      %v3252 = vadd.f32 0.0, %v3251
      %v3253 = vpop.f32.mrb[0].mxu0
      %v3254 = vpop.f32.mrb[0].mxu0
      %v3255 = vadd.f32 0.0, %v3254
      %v3256 = vpop.f32.mrb[0].mxu0
      %3257 = vmatprep.mubr.bf16.mxu0 0
      %3258 = vmatmul.mubr.bf16.gmra.mrb[0].mxu0 %v3163
      %v3259 = vpop.f32.mrb[0].mxu0
      %v3260 = vadd.f32 0.0, %v3259
      %v3261 = vpop.f32.mrb[0].mxu0
      %v3262 = vpop.f32.mrb[0].mxu0
      %v3263 = vadd.f32 0.0, %v3262
      %v3264 = vpop.f32.mrb[0].mxu0
      %3265 = vmatprep.mubr.bf16.mxu0 0
      %3266 = vmatmul.mubr.bf16.gmra.mrb[0].mxu0 %v3166
      %v3267 = vpop.f32.mrb[0].mxu0
      %v3268 = vadd.f32 0.0, %v3267
      %v3269 = vpop.f32.mrb[0].mxu0
      %v3270 = vpop.f32.mrb[0].mxu0
      %v3271 = vadd.f32 0.0, %v3270
      %v3272 = vpop.f32.mrb[0].mxu0
      %3273 = vmatprep.mubr.bf16.mxu0 0
      %3274 = vmatmul.mubr.bf16.gmra.mrb[0].mxu0 %v3169
      %v3275 = vpop.f32.mrb[0].mxu0
      %v3276 = vadd.f32 0.0, %v3275
      %v3277 = vpop.f32.mrb[0].mxu0
      %v3278 = vpop.f32.mrb[0].mxu0
      %v3279 = vadd.f32 0.0, %v3278
      %v3280 = vpop.f32.mrb[0].mxu0
      %3281 = vmatprep.mubr.bf16.mxu0 0
      %3282 = vmatmul.mubr.bf16.gmra.mrb[0].mxu0 %v3172
      %v3283 = vpop.f32.mrb[0].mxu0
      %v3284 = vadd.f32 0.0, %v3283
      %v3285 = vpop.f32.mrb[0].mxu0
      %v3286 = vpop.f32.mrb[0].mxu0
      %v3287 = vadd.f32 0.0, %v3286
      %v3288 = vpop.f32.mrb[0].mxu0
      %3289 = vmatprep.mubr.bf16.mxu0 0
      %3290 = vmatmul.mubr.bf16.gmra.mrb[0].mxu0 %v3175
      %v3291 = vpop.f32.mrb[0].mxu0
      %v3292 = vadd.f32 0.0, %v3291
      %v3293 = vpop.f32.mrb[0].mxu0
      %v3294 = vpop.f32.mrb[0].mxu0
      %v3295 = vadd.f32 0.0, %v3294
      %v3296 = vpop.f32.mrb[0].mxu0
      %3297 = vmatprep.mubr.bf16.mxu0 0
      %3298 = vmatmul.mubr.bf16.gmra.mrb[0].mxu0 %v3178
      %v3299 = vpop.f32.mrb[0].mxu0
      %v3300 = vadd.f32 0.0, %v3299
      %v3301 = vpop.f32.mrb[0].mxu0
      %v3302 = vpop.f32.mrb[0].mxu0
      %v3303 = vadd.f32 0.0, %v3302
      %v3304 = vpop.f32.mrb[0].mxu0
      %3305 = vmatprep.mubr.bf16.mxu0 0
      %3306 = vmatmul.mubr.bf16.gmra.mrb[0].mxu0 %v3181
      %v3307 = vpop.f32.mrb[0].mxu0
      %v3308 = vadd.f32 0.0, %v3307
      %v3309 = vpop.f32.mrb[0].mxu0
      %v3310 = vpop.f32.mrb[0].mxu0
      %v3311 = vadd.f32 0.0, %v3310
      %v3312 = vpop.f32.mrb[0].mxu0
      %3313 = vmatprep.mubr.bf16.mxu0 0
      %3314 = vmatmul.mubr.bf16.gmra.mrb[0].mxu0 %v3184
      %v3315 = vpop.f32.mrb[0].mxu0
      %v3316 = vadd.f32 0.0, %v3315
      %v3317 = vpop.f32.mrb[0].mxu0
      %v3318 = vpop.f32.mrb[0].mxu0
      %v3319 = vadd.f32 0.0, %v3318
      %v3320 = vpop.f32.mrb[0].mxu0
      %3321 = vmatprep.mubr.bf16.mxu0 0
      %3322 = vmatmul.mubr.bf16.gmra.mrb[0].mxu0 %v3187
      %v3323 = vpop.f32.mrb[0].mxu0
      %v3324 = vadd.f32 0.0, %v3323
      %v3325 = vpop.f32.mrb[0].mxu0
      %v3326 = vpop.f32.mrb[0].mxu0
      %v3327 = vadd.f32 0.0, %v3326
      %v3328 = vpop.f32.mrb[0].mxu0
      %3329 = vmatprep.mubr.bf16.mxu0 0
      %3330 = vmatmul.mubr.bf16.gmra.mrb[0].mxu0 %v3190
      %v3331 = vpop.f32.mrb[0].mxu0
      %v3332 = vadd.f32 0.0, %v3331
      %v3333 = vpop.f32.mrb[0].mxu0
      %v3334 = vpop.f32.mrb[0].mxu0
      %v3335 = vadd.f32 0.0, %v3334
      %v3336 = vpop.f32.mrb[0].mxu0
      %3337 = vmatprep.mubr.bf16.mxu0 0
      %3338 = vmatmul.mubr.bf16.gmra.mrb[0].mxu0 %v3193
      %v3339 = vpop.f32.mrb[0].mxu0
      %v3340 = vadd.f32 0.0, %v3339
      %v3341 = vpop.f32.mrb[0].mxu0
      %v3342 = vpop.f32.mrb[0].mxu0
      %v3343 = vadd.f32 0.0, %v3342
      %v3344 = vpop.f32.mrb[0].mxu0
      %3345 = vmatprep.mubr.bf16.mxu0 0
      %3346 = vmatmul.mubr.bf16.gmra.mrb[0].mxu0 %v3196
      %v3347 = vpop.f32.mrb[0].mxu0
      %v3348 = vadd.f32 0.0, %v3347
      %v3349 = vpop.f32.mrb[0].mxu0
      %v3350 = vpop.f32.mrb[0].mxu0
      %v3351 = vadd.f32 0.0, %v3350
      %v3352 = vpop.f32.mrb[0].mxu0
      %3353 = vmatprep.mubr.bf16.mxu0 0
      %3354 = vmatmul.mubr.bf16.gmra.mrb[0].mxu0 %v3199
      %v3355 = vpop.f32.mrb[0].mxu0
      %v3356 = vadd.f32 0.0, %v3355
      %v3357 = vpop.f32.mrb[0].mxu0
      %v3358 = vpop.f32.mrb[0].mxu0
      %v3359 = vadd.f32 0.0, %v3358
      %v3360 = vpop.f32.mrb[0].mxu0
      %3361 = vdwg.mxu0
      %v3362 = vadd.f32 %v2864, %v3236
      %v3363 = vadd.f32 %v2865, %v3239
      %v3364 = vadd.f32 %v2866, %v3244
      %v3365 = vadd.f32 %v2867, %v3247
      %v3366 = vadd.f32 %v2868, %v3252
      %v3367 = vadd.f32 %v2869, %v3255
      %v3368 = vadd.f32 %v2870, %v3260
      %v3369 = vadd.f32 %v2871, %v3263
      %v3370 = vadd.f32 %v2872, %v3268
      %v3371 = vadd.f32 %v2873, %v3271
      %v3372 = vadd.f32 %v2874, %v3276
      %v3373 = vadd.f32 %v2875, %v3279
      %v3374 = vadd.f32 %v2876, %v3284
      %v3375 = vadd.f32 %v2877, %v3287
      %v3376 = vadd.f32 %v2878, %v3292
      %v3377 = vadd.f32 %v2879, %v3295
      %v3378 = vadd.f32 %v2880, %v3300
      %v3379 = vadd.f32 %v2881, %v3303
      %v3380 = vadd.f32 %v2882, %v3308
      %v3381 = vadd.f32 %v2883, %v3311
      %v3382 = vadd.f32 %v2884, %v3316
      %v3383 = vadd.f32 %v2885, %v3319
      %v3384 = vadd.f32 %v2886, %v3324
      %v3385 = vadd.f32 %v2887, %v3327
      %v3386 = vadd.f32 %v2888, %v3332
      %v3387 = vadd.f32 %v2889, %v3335
      %v3388 = vadd.f32 %v2890, %v3340
      %v3389 = vadd.f32 %v2891, %v3343
      %v3390 = vadd.f32 %v2892, %v3348
      %v3391 = vadd.f32 %v2893, %v3351
      %v3392 = vadd.f32 %v2894, %v3356
      %v3393 = vadd.f32 %v2895, %v3359
      %s3394 = scalar_lea.vmem %s206, 24
      %v3395 = vld [vmem:[%s3394] sm:$0xf]
      %v3396 = vld [vmem:[%s3394 + $0x4] sm:$0xf]
      %v3397 = vld [vmem:[%s3394 + $0xc] sm:$0xf]
      %v3398 = vld [vmem:[%s3394 + $0x10] sm:$0xf]
      %v3399 = vld [vmem:[%s3394 + $0x18] sm:$0xf]
      %v3400 = vld [vmem:[%s3394 + $0x1c] sm:$0xf]
      %v3401 = vld [vmem:[%s3394 + $0x24] sm:$0xf]
      %v3402 = vld [vmem:[%s3394 + $0x28] sm:$0xf]
      %v3403 = vld [vmem:[%s3394 + $0x30] sm:$0xf]
      %v3404 = vld [vmem:[%s3394 + $0x34] sm:$0xf]
      %v3405 = vld [vmem:[%s3394 + $0x3c] sm:$0xf]
      %v3406 = vld [vmem:[%s3394 + $0x40] sm:$0xf]
      %v3407 = vld [vmem:[%s3394 + $0x48] sm:$0xf]
      %v3408 = vld [vmem:[%s3394 + $0x4c] sm:$0xf]
      %v3409 = vld [vmem:[%s3394 + $0x54] sm:$0xf]
      %v3410 = vld [vmem:[%s3394 + $0x58] sm:$0xf]
      %v3411 = vld [vmem:[%s3394 + $0x60] sm:$0xf]
      %v3412 = vld [vmem:[%s3394 + $0x64] sm:$0xf]
      %v3413 = vld [vmem:[%s3394 + $0x6c] sm:$0xf]
      %v3414 = vld [vmem:[%s3394 + $0x70] sm:$0xf]
      %v3415 = vld [vmem:[%s3394 + $0x78] sm:$0xf]
      %v3416 = vld [vmem:[%s3394 + $0x7c] sm:$0xf]
      %v3417 = vld [vmem:[%s3394 + $0x84] sm:$0xf]
      %v3418 = vld [vmem:[%s3394 + $0x88] sm:$0xf]
      %v3419 = vld [vmem:[%s3394 + $0x90] sm:$0xf]
      %v3420 = vld [vmem:[%s3394 + $0x94] sm:$0xf]
      %v3421 = vld [vmem:[%s3394 + $0x9c] sm:$0xf]
      %v3422 = vld [vmem:[%s3394 + $0xa0] sm:$0xf]
      %v3423 = vld [vmem:[%s3394 + $0xa8] sm:$0xf]
      %v3424 = vld [vmem:[%s3394 + $0xac] sm:$0xf]
      %v3425 = vld [vmem:[%s3394 + $0xb4] sm:$0xf]
      %v3426 = vld [vmem:[%s3394 + $0xb8] sm:$0xf]
      %s3427 = scalar_lea.vmem %s210, 192
      %v3428 = vld [vmem:[%s3427] sm:$0xf]
      %v3429 = vld [vmem:[%s3427 + $0x4] sm:$0xf]
      %v3430 = vld [vmem:[%s3427 + $0x8] sm:$0xf]
      %v3431 = vld [vmem:[%s3427 + $0xc] sm:$0xf]
      %v3432 = vld [vmem:[%s3427 + $0x10] sm:$0xf]
      %v3433 = vld [vmem:[%s3427 + $0x14] sm:$0xf]
      %v3434 = vld [vmem:[%s3427 + $0x18] sm:$0xf]
      %v3435 = vld [vmem:[%s3427 + $0x1c] sm:$0xf]
      %v3468 = vunpack.c.l.b16 %v3395
      %v3469 = vunpack.c.l.b16 %v3396
      %v3470 = vunpack.c.l.b16 %v3397
      %v3471 = vunpack.c.l.b16 %v3398
      %v3472 = vunpack.c.l.b16 %v3399
      %v3473 = vunpack.c.l.b16 %v3400
      %v3474 = vunpack.c.l.b16 %v3401
      %v3475 = vunpack.c.l.b16 %v3402
      %v3476 = vunpack.c.l.b16 %v3403
      %v3477 = vunpack.c.l.b16 %v3404
      %v3478 = vunpack.c.l.b16 %v3405
      %v3479 = vunpack.c.l.b16 %v3406
      %v3480 = vunpack.c.l.b16 %v3407
      %v3481 = vunpack.c.l.b16 %v3408
      %v3482 = vunpack.c.l.b16 %v3409
      %v3483 = vunpack.c.l.b16 %v3410
      %v3484 = vunpack.c.l.b16 %v3411
      %v3485 = vunpack.c.l.b16 %v3412
      %v3486 = vunpack.c.l.b16 %v3413
      %v3487 = vunpack.c.l.b16 %v3414
      %v3488 = vunpack.c.l.b16 %v3415
      %v3489 = vunpack.c.l.b16 %v3416
      %v3490 = vunpack.c.l.b16 %v3417
      %v3491 = vunpack.c.l.b16 %v3418
      %v3492 = vunpack.c.l.b16 %v3419
      %v3493 = vunpack.c.l.b16 %v3420
      %v3494 = vunpack.c.l.b16 %v3421
      %v3495 = vunpack.c.l.b16 %v3422
      %v3496 = vunpack.c.l.b16 %v3423
      %v3497 = vunpack.c.l.b16 %v3424
      %v3498 = vunpack.c.l.b16 %v3425
      %v3499 = vunpack.c.l.b16 %v3426
      %v3500 = vpack.c.b16 %v3469, %v3468
      %v3501 = vpack.c.b16 %v3471, %v3470
      %v3502 = vpack.c.b16 %v3473, %v3472
      %v3503 = vpack.c.b16 %v3475, %v3474
      %v3504 = vpack.c.b16 %v3477, %v3476
      %v3505 = vpack.c.b16 %v3479, %v3478
      %v3506 = vpack.c.b16 %v3481, %v3480
      %v3507 = vpack.c.b16 %v3483, %v3482
      %v3508 = vpack.c.b16 %v3485, %v3484
      %v3509 = vpack.c.b16 %v3487, %v3486
      %v3510 = vpack.c.b16 %v3489, %v3488
      %v3511 = vpack.c.b16 %v3491, %v3490
      %v3512 = vpack.c.b16 %v3493, %v3492
      %v3513 = vpack.c.b16 %v3495, %v3494
      %v3514 = vpack.c.b16 %v3497, %v3496
      %v3515 = vpack.c.b16 %v3499, %v3498
      %v3524 = vunpack.c.l.b16 %v3428
      %v3525 = vunpack.c.l.b16 %v3429
      %v3526 = vunpack.c.l.b16 %v3430
      %v3527 = vunpack.c.l.b16 %v3431
      %v3528 = vunpack.c.l.b16 %v3432
      %v3529 = vunpack.c.l.b16 %v3433
      %v3530 = vunpack.c.l.b16 %v3434
      %v3531 = vunpack.c.l.b16 %v3435
      %v3532 = vpack.c.b16 %v3525, %v3524
      %v3533 = vpack.c.b16 %v3527, %v3526
      %v3534 = vpack.c.b16 %v3529, %v3528
      %v3535 = vpack.c.b16 %v3531, %v3530
      %v3541 = vsel %vm747, %v3500, 0
      %v3544 = vsel %vm747, %v3501, 0
      %v3547 = vsel %vm747, %v3502, 0
      %v3550 = vsel %vm747, %v3503, 0
      %v3553 = vsel %vm747, %v3504, 0
      %v3556 = vsel %vm747, %v3505, 0
      %v3559 = vsel %vm747, %v3506, 0
      %v3562 = vsel %vm747, %v3507, 0
      %v3565 = vsel %vm747, %v3508, 0
      %v3568 = vsel %vm747, %v3509, 0
      %v3571 = vsel %vm747, %v3510, 0
      %v3574 = vsel %vm747, %v3511, 0
      %v3577 = vsel %vm747, %v3512, 0
      %v3580 = vsel %vm747, %v3513, 0
      %v3583 = vsel %vm747, %v3514, 0
      %v3586 = vsel %vm747, %v3515, 0
      %3588 = vmatprep.subr.bf16.mxu0 0
      %3589 = vmatpush1.bf16.msra.mxu0 %v3532
      %3590 = vmatprep.subr.bf16.mxu0 0
      %3591 = vmatpush1.bf16.msra.mxu0 %v3533
      %3592 = vmatprep.subr.bf16.mxu0 0
      %3593 = vmatpush1.bf16.msra.mxu0 %v3534
      %3594 = vmatprep.subr.bf16.mxu0 0
      %3595 = vmatpush1.bf16.msra.mxu0 %v3535
      %3596 = vmatprep.subr.bf16.mxu0 0
      %3597 = vmatpush1.bf16.msra.mxu0 0
      %3598 = vmatprep.subr.bf16.mxu0 0
      %3599 = vmatpush1.bf16.msra.mxu0 0
      %3600 = vmatprep.subr.bf16.mxu0 0
      %3601 = vmatpush1.bf16.msra.mxu0 0
      %3602 = vmatprep.subr.bf16.mxu0 0
      %3603 = vmatpush1.bf16.msra.mxu0 0
      %3604 = vmatprep.subr.bf16.mxu0 0
      %3605 = vmatpush1.bf16.msra.mxu0 0
      %3606 = vmatprep.subr.bf16.mxu0 0
      %3607 = vmatpush1.bf16.msra.mxu0 0
      %3608 = vmatprep.subr.bf16.mxu0 0
      %3609 = vmatpush1.bf16.msra.mxu0 0
      %3610 = vmatprep.subr.bf16.mxu0 0
      %3611 = vmatpush1.bf16.msra.mxu0 0
      %3612 = vmatprep.subr.bf16.mxu0 0
      %3613 = vmatpush1.bf16.msra.mxu0 0
      %3614 = vmatprep.subr.bf16.mxu0 0
      %3615 = vmatpush1.bf16.msra.mxu0 0
      %3616 = vmatprep.subr.bf16.mxu0 0
      %3617 = vmatpush1.bf16.msra.mxu0 0
      %3618 = vmatprep.subr.bf16.mxu0 0
      %3619 = vmatpush1.bf16.msra.mxu0 0
      %3620 = vmatprep.mubr.bf16.mxu0 0
      %3621 = vmatmul.mubr.bf16.gmra.mrb[0].mxu0 %v3541
      %v3622 = vpop.f32.mrb[0].mxu0
      %v3623 = vadd.f32 0.0, %v3622
      %v3624 = vpop.f32.mrb[0].mxu0
      %v3625 = vpop.f32.mrb[0].mxu0
      %v3626 = vadd.f32 0.0, %v3625
      %v3627 = vpop.f32.mrb[0].mxu0
      %3628 = vmatprep.mubr.bf16.mxu0 0
      %3629 = vmatmul.mubr.bf16.gmra.mrb[0].mxu0 %v3544
      %v3630 = vpop.f32.mrb[0].mxu0
      %v3631 = vadd.f32 0.0, %v3630
      %v3632 = vpop.f32.mrb[0].mxu0
      %v3633 = vpop.f32.mrb[0].mxu0
      %v3634 = vadd.f32 0.0, %v3633
      %v3635 = vpop.f32.mrb[0].mxu0
      %3636 = vmatprep.mubr.bf16.mxu0 0
      %3637 = vmatmul.mubr.bf16.gmra.mrb[0].mxu0 %v3547
      %v3638 = vpop.f32.mrb[0].mxu0
      %v3639 = vadd.f32 0.0, %v3638
      %v3640 = vpop.f32.mrb[0].mxu0
      %v3641 = vpop.f32.mrb[0].mxu0
      %v3642 = vadd.f32 0.0, %v3641
      %v3643 = vpop.f32.mrb[0].mxu0
      %3644 = vmatprep.mubr.bf16.mxu0 0
      %3645 = vmatmul.mubr.bf16.gmra.mrb[0].mxu0 %v3550
      %v3646 = vpop.f32.mrb[0].mxu0
      %v3647 = vadd.f32 0.0, %v3646
      %v3648 = vpop.f32.mrb[0].mxu0
      %v3649 = vpop.f32.mrb[0].mxu0
      %v3650 = vadd.f32 0.0, %v3649
      %v3651 = vpop.f32.mrb[0].mxu0
      %3652 = vmatprep.mubr.bf16.mxu0 0
      %3653 = vmatmul.mubr.bf16.gmra.mrb[0].mxu0 %v3553
      %v3654 = vpop.f32.mrb[0].mxu0
      %v3655 = vadd.f32 0.0, %v3654
      %v3656 = vpop.f32.mrb[0].mxu0
      %v3657 = vpop.f32.mrb[0].mxu0
      %v3658 = vadd.f32 0.0, %v3657
      %v3659 = vpop.f32.mrb[0].mxu0
      %3660 = vmatprep.mubr.bf16.mxu0 0
      %3661 = vmatmul.mubr.bf16.gmra.mrb[0].mxu0 %v3556
      %v3662 = vpop.f32.mrb[0].mxu0
      %v3663 = vadd.f32 0.0, %v3662
      %v3664 = vpop.f32.mrb[0].mxu0
      %v3665 = vpop.f32.mrb[0].mxu0
      %v3666 = vadd.f32 0.0, %v3665
      %v3667 = vpop.f32.mrb[0].mxu0
      %3668 = vmatprep.mubr.bf16.mxu0 0
      %3669 = vmatmul.mubr.bf16.gmra.mrb[0].mxu0 %v3559
      %v3670 = vpop.f32.mrb[0].mxu0
      %v3671 = vadd.f32 0.0, %v3670
      %v3672 = vpop.f32.mrb[0].mxu0
      %v3673 = vpop.f32.mrb[0].mxu0
      %v3674 = vadd.f32 0.0, %v3673
      %v3675 = vpop.f32.mrb[0].mxu0
      %3676 = vmatprep.mubr.bf16.mxu0 0
      %3677 = vmatmul.mubr.bf16.gmra.mrb[0].mxu0 %v3562
      %v3678 = vpop.f32.mrb[0].mxu0
      %v3679 = vadd.f32 0.0, %v3678
      %v3680 = vpop.f32.mrb[0].mxu0
      %v3681 = vpop.f32.mrb[0].mxu0
      %v3682 = vadd.f32 0.0, %v3681
      %v3683 = vpop.f32.mrb[0].mxu0
      %3684 = vmatprep.mubr.bf16.mxu0 0
      %3685 = vmatmul.mubr.bf16.gmra.mrb[0].mxu0 %v3565
      %v3686 = vpop.f32.mrb[0].mxu0
      %v3687 = vadd.f32 0.0, %v3686
      %v3688 = vpop.f32.mrb[0].mxu0
      %v3689 = vpop.f32.mrb[0].mxu0
      %v3690 = vadd.f32 0.0, %v3689
      %v3691 = vpop.f32.mrb[0].mxu0
      %3692 = vmatprep.mubr.bf16.mxu0 0
      %3693 = vmatmul.mubr.bf16.gmra.mrb[0].mxu0 %v3568
      %v3694 = vpop.f32.mrb[0].mxu0
      %v3695 = vadd.f32 0.0, %v3694
      %v3696 = vpop.f32.mrb[0].mxu0
      %v3697 = vpop.f32.mrb[0].mxu0
      %v3698 = vadd.f32 0.0, %v3697
      %v3699 = vpop.f32.mrb[0].mxu0
      %3700 = vmatprep.mubr.bf16.mxu0 0
      %3701 = vmatmul.mubr.bf16.gmra.mrb[0].mxu0 %v3571
      %v3702 = vpop.f32.mrb[0].mxu0
      %v3703 = vadd.f32 0.0, %v3702
      %v3704 = vpop.f32.mrb[0].mxu0
      %v3705 = vpop.f32.mrb[0].mxu0
      %v3706 = vadd.f32 0.0, %v3705
      %v3707 = vpop.f32.mrb[0].mxu0
      %3708 = vmatprep.mubr.bf16.mxu0 0
      %3709 = vmatmul.mubr.bf16.gmra.mrb[0].mxu0 %v3574
      %v3710 = vpop.f32.mrb[0].mxu0
      %v3711 = vadd.f32 0.0, %v3710
      %v3712 = vpop.f32.mrb[0].mxu0
      %v3713 = vpop.f32.mrb[0].mxu0
      %v3714 = vadd.f32 0.0, %v3713
      %v3715 = vpop.f32.mrb[0].mxu0
      %3716 = vmatprep.mubr.bf16.mxu0 0
      %3717 = vmatmul.mubr.bf16.gmra.mrb[0].mxu0 %v3577
      %v3718 = vpop.f32.mrb[0].mxu0
      %v3719 = vadd.f32 0.0, %v3718
      %v3720 = vpop.f32.mrb[0].mxu0
      %v3721 = vpop.f32.mrb[0].mxu0
      %v3722 = vadd.f32 0.0, %v3721
      %v3723 = vpop.f32.mrb[0].mxu0
      %3724 = vmatprep.mubr.bf16.mxu0 0
      %3725 = vmatmul.mubr.bf16.gmra.mrb[0].mxu0 %v3580
      %v3726 = vpop.f32.mrb[0].mxu0
      %v3727 = vadd.f32 0.0, %v3726
      %v3728 = vpop.f32.mrb[0].mxu0
      %v3729 = vpop.f32.mrb[0].mxu0
      %v3730 = vadd.f32 0.0, %v3729
      %v3731 = vpop.f32.mrb[0].mxu0
      %3732 = vmatprep.mubr.bf16.mxu0 0
      %3733 = vmatmul.mubr.bf16.gmra.mrb[0].mxu0 %v3583
      %v3734 = vpop.f32.mrb[0].mxu0
      %v3735 = vadd.f32 0.0, %v3734
      %v3736 = vpop.f32.mrb[0].mxu0
      %v3737 = vpop.f32.mrb[0].mxu0
      %v3738 = vadd.f32 0.0, %v3737
      %v3739 = vpop.f32.mrb[0].mxu0
      %3740 = vmatprep.mubr.bf16.mxu0 0
      %3741 = vmatmul.mubr.bf16.gmra.mrb[0].mxu0 %v3586
      %v3742 = vpop.f32.mrb[0].mxu0
      %v3743 = vadd.f32 0.0, %v3742
      %v3744 = vpop.f32.mrb[0].mxu0
      %v3745 = vpop.f32.mrb[0].mxu0
      %v3746 = vadd.f32 0.0, %v3745
      %v3747 = vpop.f32.mrb[0].mxu0
      %3748 = vdwg.mxu0
      %v3749 = vadd.f32 %v3362, %v3623
      %v3750 = vadd.f32 %v3363, %v3626
      %v3751 = vadd.f32 %v3364, %v3631
      %v3752 = vadd.f32 %v3365, %v3634
      %v3753 = vadd.f32 %v3366, %v3639
      %v3754 = vadd.f32 %v3367, %v3642
      %v3755 = vadd.f32 %v3368, %v3647
      %v3756 = vadd.f32 %v3369, %v3650
      %v3757 = vadd.f32 %v3370, %v3655
      %v3758 = vadd.f32 %v3371, %v3658
      %v3759 = vadd.f32 %v3372, %v3663
      %v3760 = vadd.f32 %v3373, %v3666
      %v3761 = vadd.f32 %v3374, %v3671
      %v3762 = vadd.f32 %v3375, %v3674
      %v3763 = vadd.f32 %v3376, %v3679
      %v3764 = vadd.f32 %v3377, %v3682
      %v3765 = vadd.f32 %v3378, %v3687
      %v3766 = vadd.f32 %v3379, %v3690
      %v3767 = vadd.f32 %v3380, %v3695
      %v3768 = vadd.f32 %v3381, %v3698
      %v3769 = vadd.f32 %v3382, %v3703
      %v3770 = vadd.f32 %v3383, %v3706
      %v3771 = vadd.f32 %v3384, %v3711
      %v3772 = vadd.f32 %v3385, %v3714
      %v3773 = vadd.f32 %v3386, %v3719
      %v3774 = vadd.f32 %v3387, %v3722
      %v3775 = vadd.f32 %v3388, %v3727
      %v3776 = vadd.f32 %v3389, %v3730
      %v3777 = vadd.f32 %v3390, %v3735
      %v3778 = vadd.f32 %v3391, %v3738
      %v3779 = vadd.f32 %v3392, %v3743
      %v3780 = vadd.f32 %v3393, %v3746
      %v3781 = vld [vmem:[%s3394] sm:$0xf]
      %v3782 = vld [vmem:[%s3394 + $0x4] sm:$0xf]
      %v3783 = vld [vmem:[%s3394 + $0x8] sm:$0x1]
      %v3784 = vld [vmem:[%s3394 + $0xc] sm:$0xf]
      %v3785 = vld [vmem:[%s3394 + $0x10] sm:$0xf]
      %v3786 = vld [vmem:[%s3394 + $0x14] sm:$0x1]
      %v3787 = vld [vmem:[%s3394 + $0x18] sm:$0xf]
      %v3788 = vld [vmem:[%s3394 + $0x1c] sm:$0xf]
      %v3789 = vld [vmem:[%s3394 + $0x20] sm:$0x1]
      %v3790 = vld [vmem:[%s3394 + $0x24] sm:$0xf]
      %v3791 = vld [vmem:[%s3394 + $0x28] sm:$0xf]
      %v3792 = vld [vmem:[%s3394 + $0x2c] sm:$0x1]
      %v3793 = vld [vmem:[%s3394 + $0x30] sm:$0xf]
      %v3794 = vld [vmem:[%s3394 + $0x34] sm:$0xf]
      %v3795 = vld [vmem:[%s3394 + $0x38] sm:$0x1]
      %v3796 = vld [vmem:[%s3394 + $0x3c] sm:$0xf]
      %v3797 = vld [vmem:[%s3394 + $0x40] sm:$0xf]
      %v3798 = vld [vmem:[%s3394 + $0x44] sm:$0x1]
      %v3799 = vld [vmem:[%s3394 + $0x48] sm:$0xf]
      %v3800 = vld [vmem:[%s3394 + $0x4c] sm:$0xf]
      %v3801 = vld [vmem:[%s3394 + $0x50] sm:$0x1]
      %v3802 = vld [vmem:[%s3394 + $0x54] sm:$0xf]
      %v3803 = vld [vmem:[%s3394 + $0x58] sm:$0xf]
      %v3804 = vld [vmem:[%s3394 + $0x5c] sm:$0x1]
      %v3805 = vld [vmem:[%s3394 + $0x60] sm:$0xf]
      %v3806 = vld [vmem:[%s3394 + $0x64] sm:$0xf]
      %v3807 = vld [vmem:[%s3394 + $0x68] sm:$0x1]
      %v3808 = vld [vmem:[%s3394 + $0x6c] sm:$0xf]
      %v3809 = vld [vmem:[%s3394 + $0x70] sm:$0xf]
      %v3810 = vld [vmem:[%s3394 + $0x74] sm:$0x1]
      %v3811 = vld [vmem:[%s3394 + $0x78] sm:$0xf]
      %v3812 = vld [vmem:[%s3394 + $0x7c] sm:$0xf]
      %v3813 = vld [vmem:[%s3394 + $0x80] sm:$0x1]
      %v3814 = vld [vmem:[%s3394 + $0x84] sm:$0xf]
      %v3815 = vld [vmem:[%s3394 + $0x88] sm:$0xf]
      %v3816 = vld [vmem:[%s3394 + $0x8c] sm:$0x1]
      %v3817 = vld [vmem:[%s3394 + $0x90] sm:$0xf]
      %v3818 = vld [vmem:[%s3394 + $0x94] sm:$0xf]
      %v3819 = vld [vmem:[%s3394 + $0x98] sm:$0x1]
      %v3820 = vld [vmem:[%s3394 + $0x9c] sm:$0xf]
      %v3821 = vld [vmem:[%s3394 + $0xa0] sm:$0xf]
      %v3822 = vld [vmem:[%s3394 + $0xa4] sm:$0x1]
      %v3823 = vld [vmem:[%s3394 + $0xa8] sm:$0xf]
      %v3824 = vld [vmem:[%s3394 + $0xac] sm:$0xf]
      %v3825 = vld [vmem:[%s3394 + $0xb0] sm:$0x1]
      %v3826 = vld [vmem:[%s3394 + $0xb4] sm:$0xf]
      %v3827 = vld [vmem:[%s3394 + $0xb8] sm:$0xf]
      %v3828 = vld [vmem:[%s3394 + $0xbc] sm:$0x1]
      %v3830 = vshrl.u32 %v3781, 16
      %v3832 = vrot.slane %v3830, 4
      %v3833 = vshll.u32 %v3781, 16
      %v3835 = vrot.slane %v3833, 5
      %v3836 = vor.u32 %v3832, %v3835
      %v3837 = vrot.slane %v3836, 4
      %v3839 = vshll.u32 %v3782, 16
      %v3841 = vrot.slane %v3839, 5
      %v3842 = vsel %vm281, %v3837, %v3841
      %v3843 = vshrl.u32 %v3782, 16
      %v3845 = vrot.slane %v3843, 4
      %v3846 = vor.u32 %v3845, %v3841
      %v3847 = vrot.slane %v3846, 4
      %v3849 = vshll.u32 %v3783, 16
      %v3851 = vrot.slane %v3849, 5
      %v3852 = vsel %vm281, %v3847, %v3851
      %v3854 = vshrl.u32 %v3784, 16
      %v3856 = vrot.slane %v3854, 4
      %v3857 = vshll.u32 %v3784, 16
      %v3859 = vrot.slane %v3857, 5
      %v3860 = vor.u32 %v3856, %v3859
      %v3861 = vrot.slane %v3860, 4
      %v3863 = vshll.u32 %v3785, 16
      %v3865 = vrot.slane %v3863, 5
      %v3866 = vsel %vm281, %v3861, %v3865
      %v3867 = vshrl.u32 %v3785, 16
      %v3869 = vrot.slane %v3867, 4
      %v3870 = vor.u32 %v3869, %v3865
      %v3871 = vrot.slane %v3870, 4
      %v3873 = vshll.u32 %v3786, 16
      %v3875 = vrot.slane %v3873, 5
      %v3876 = vsel %vm281, %v3871, %v3875
      %v3878 = vshrl.u32 %v3787, 16
      %v3880 = vrot.slane %v3878, 4
      %v3881 = vshll.u32 %v3787, 16
      %v3883 = vrot.slane %v3881, 5
      %v3884 = vor.u32 %v3880, %v3883
      %v3885 = vrot.slane %v3884, 4
      %v3887 = vshll.u32 %v3788, 16
      %v3889 = vrot.slane %v3887, 5
      %v3890 = vsel %vm281, %v3885, %v3889
      %v3891 = vshrl.u32 %v3788, 16
      %v3893 = vrot.slane %v3891, 4
      %v3894 = vor.u32 %v3893, %v3889
      %v3895 = vrot.slane %v3894, 4
      %v3897 = vshll.u32 %v3789, 16
      %v3899 = vrot.slane %v3897, 5
      %v3900 = vsel %vm281, %v3895, %v3899
      %v3902 = vshrl.u32 %v3790, 16
      %v3904 = vrot.slane %v3902, 4
      %v3905 = vshll.u32 %v3790, 16
      %v3907 = vrot.slane %v3905, 5
      %v3908 = vor.u32 %v3904, %v3907
      %v3909 = vrot.slane %v3908, 4
      %v3911 = vshll.u32 %v3791, 16
      %v3913 = vrot.slane %v3911, 5
      %v3914 = vsel %vm281, %v3909, %v3913
      %v3915 = vshrl.u32 %v3791, 16
      %v3917 = vrot.slane %v3915, 4
      %v3918 = vor.u32 %v3917, %v3913
      %v3919 = vrot.slane %v3918, 4
      %v3921 = vshll.u32 %v3792, 16
      %v3923 = vrot.slane %v3921, 5
      %v3924 = vsel %vm281, %v3919, %v3923
      %v3926 = vshrl.u32 %v3793, 16
      %v3928 = vrot.slane %v3926, 4
      %v3929 = vshll.u32 %v3793, 16
      %v3931 = vrot.slane %v3929, 5
      %v3932 = vor.u32 %v3928, %v3931
      %v3933 = vrot.slane %v3932, 4
      %v3935 = vshll.u32 %v3794, 16
      %v3937 = vrot.slane %v3935, 5
      %v3938 = vsel %vm281, %v3933, %v3937
      %v3939 = vshrl.u32 %v3794, 16
      %v3941 = vrot.slane %v3939, 4
      %v3942 = vor.u32 %v3941, %v3937
      %v3943 = vrot.slane %v3942, 4
      %v3945 = vshll.u32 %v3795, 16
      %v3947 = vrot.slane %v3945, 5
      %v3948 = vsel %vm281, %v3943, %v3947
      %v3950 = vshrl.u32 %v3796, 16
      %v3952 = vrot.slane %v3950, 4
      %v3953 = vshll.u32 %v3796, 16
      %v3955 = vrot.slane %v3953, 5
      %v3956 = vor.u32 %v3952, %v3955
      %v3957 = vrot.slane %v3956, 4
      %v3959 = vshll.u32 %v3797, 16
      %v3961 = vrot.slane %v3959, 5
      %v3962 = vsel %vm281, %v3957, %v3961
      %v3963 = vshrl.u32 %v3797, 16
      %v3965 = vrot.slane %v3963, 4
      %v3966 = vor.u32 %v3965, %v3961
      %v3967 = vrot.slane %v3966, 4
      %v3969 = vshll.u32 %v3798, 16
      %v3971 = vrot.slane %v3969, 5
      %v3972 = vsel %vm281, %v3967, %v3971
      %v3974 = vshrl.u32 %v3799, 16
      %v3976 = vrot.slane %v3974, 4
      %v3977 = vshll.u32 %v3799, 16
      %v3979 = vrot.slane %v3977, 5
      %v3980 = vor.u32 %v3976, %v3979
      %v3981 = vrot.slane %v3980, 4
      %v3983 = vshll.u32 %v3800, 16
      %v3985 = vrot.slane %v3983, 5
      %v3986 = vsel %vm281, %v3981, %v3985
      %v3987 = vshrl.u32 %v3800, 16
      %v3989 = vrot.slane %v3987, 4
      %v3990 = vor.u32 %v3989, %v3985
      %v3991 = vrot.slane %v3990, 4
      %v3993 = vshll.u32 %v3801, 16
      %v3995 = vrot.slane %v3993, 5
      %v3996 = vsel %vm281, %v3991, %v3995
      %v3998 = vshrl.u32 %v3802, 16
      %v4000 = vrot.slane %v3998, 4
      %v4001 = vshll.u32 %v3802, 16
      %v4003 = vrot.slane %v4001, 5
      %v4004 = vor.u32 %v4000, %v4003
      %v4005 = vrot.slane %v4004, 4
      %v4007 = vshll.u32 %v3803, 16
      %v4009 = vrot.slane %v4007, 5
      %v4010 = vsel %vm281, %v4005, %v4009
      %v4011 = vshrl.u32 %v3803, 16
      %v4013 = vrot.slane %v4011, 4
      %v4014 = vor.u32 %v4013, %v4009
      %v4015 = vrot.slane %v4014, 4
      %v4017 = vshll.u32 %v3804, 16
      %v4019 = vrot.slane %v4017, 5
      %v4020 = vsel %vm281, %v4015, %v4019
      %v4022 = vshrl.u32 %v3805, 16
      %v4024 = vrot.slane %v4022, 4
      %v4025 = vshll.u32 %v3805, 16
      %v4027 = vrot.slane %v4025, 5
      %v4028 = vor.u32 %v4024, %v4027
      %v4029 = vrot.slane %v4028, 4
      %v4031 = vshll.u32 %v3806, 16
      %v4033 = vrot.slane %v4031, 5
      %v4034 = vsel %vm281, %v4029, %v4033
      %v4035 = vshrl.u32 %v3806, 16
      %v4037 = vrot.slane %v4035, 4
      %v4038 = vor.u32 %v4037, %v4033
      %v4039 = vrot.slane %v4038, 4
      %v4041 = vshll.u32 %v3807, 16
      %v4043 = vrot.slane %v4041, 5
      %v4044 = vsel %vm281, %v4039, %v4043
      %v4046 = vshrl.u32 %v3808, 16
      %v4048 = vrot.slane %v4046, 4
      %v4049 = vshll.u32 %v3808, 16
      %v4051 = vrot.slane %v4049, 5
      %v4052 = vor.u32 %v4048, %v4051
      %v4053 = vrot.slane %v4052, 4
      %v4055 = vshll.u32 %v3809, 16
      %v4057 = vrot.slane %v4055, 5
      %v4058 = vsel %vm281, %v4053, %v4057
      %v4059 = vshrl.u32 %v3809, 16
      %v4061 = vrot.slane %v4059, 4
      %v4062 = vor.u32 %v4061, %v4057
      %v4063 = vrot.slane %v4062, 4
      %v4065 = vshll.u32 %v3810, 16
      %v4067 = vrot.slane %v4065, 5
      %v4068 = vsel %vm281, %v4063, %v4067
      %v4070 = vshrl.u32 %v3811, 16
      %v4072 = vrot.slane %v4070, 4
      %v4073 = vshll.u32 %v3811, 16
      %v4075 = vrot.slane %v4073, 5
      %v4076 = vor.u32 %v4072, %v4075
      %v4077 = vrot.slane %v4076, 4
      %v4079 = vshll.u32 %v3812, 16
      %v4081 = vrot.slane %v4079, 5
      %v4082 = vsel %vm281, %v4077, %v4081
      %v4083 = vshrl.u32 %v3812, 16
      %v4085 = vrot.slane %v4083, 4
      %v4086 = vor.u32 %v4085, %v4081
      %v4087 = vrot.slane %v4086, 4
      %v4089 = vshll.u32 %v3813, 16
      %v4091 = vrot.slane %v4089, 5
      %v4092 = vsel %vm281, %v4087, %v4091
      %v4094 = vshrl.u32 %v3814, 16
      %v4096 = vrot.slane %v4094, 4
      %v4097 = vshll.u32 %v3814, 16
      %v4099 = vrot.slane %v4097, 5
      %v4100 = vor.u32 %v4096, %v4099
      %v4101 = vrot.slane %v4100, 4
      %v4103 = vshll.u32 %v3815, 16
      %v4105 = vrot.slane %v4103, 5
      %v4106 = vsel %vm281, %v4101, %v4105
      %v4107 = vshrl.u32 %v3815, 16
      %v4109 = vrot.slane %v4107, 4
      %v4110 = vor.u32 %v4109, %v4105
      %v4111 = vrot.slane %v4110, 4
      %v4113 = vshll.u32 %v3816, 16
      %v4115 = vrot.slane %v4113, 5
      %v4116 = vsel %vm281, %v4111, %v4115
      %v4118 = vshrl.u32 %v3817, 16
      %v4120 = vrot.slane %v4118, 4
      %v4121 = vshll.u32 %v3817, 16
      %v4123 = vrot.slane %v4121, 5
      %v4124 = vor.u32 %v4120, %v4123
      %v4125 = vrot.slane %v4124, 4
      %v4127 = vshll.u32 %v3818, 16
      %v4129 = vrot.slane %v4127, 5
      %v4130 = vsel %vm281, %v4125, %v4129
      %v4131 = vshrl.u32 %v3818, 16
      %v4133 = vrot.slane %v4131, 4
      %v4134 = vor.u32 %v4133, %v4129
      %v4135 = vrot.slane %v4134, 4
      %v4137 = vshll.u32 %v3819, 16
      %v4139 = vrot.slane %v4137, 5
      %v4140 = vsel %vm281, %v4135, %v4139
      %v4142 = vshrl.u32 %v3820, 16
      %v4144 = vrot.slane %v4142, 4
      %v4145 = vshll.u32 %v3820, 16
      %v4147 = vrot.slane %v4145, 5
      %v4148 = vor.u32 %v4144, %v4147
      %v4149 = vrot.slane %v4148, 4
      %v4151 = vshll.u32 %v3821, 16
      %v4153 = vrot.slane %v4151, 5
      %v4154 = vsel %vm281, %v4149, %v4153
      %v4155 = vshrl.u32 %v3821, 16
      %v4157 = vrot.slane %v4155, 4
      %v4158 = vor.u32 %v4157, %v4153
      %v4159 = vrot.slane %v4158, 4
      %v4161 = vshll.u32 %v3822, 16
      %v4163 = vrot.slane %v4161, 5
      %v4164 = vsel %vm281, %v4159, %v4163
      %v4166 = vshrl.u32 %v3823, 16
      %v4168 = vrot.slane %v4166, 4
      %v4169 = vshll.u32 %v3823, 16
      %v4171 = vrot.slane %v4169, 5
      %v4172 = vor.u32 %v4168, %v4171
      %v4173 = vrot.slane %v4172, 4
      %v4175 = vshll.u32 %v3824, 16
      %v4177 = vrot.slane %v4175, 5
      %v4178 = vsel %vm281, %v4173, %v4177
      %v4179 = vshrl.u32 %v3824, 16
      %v4181 = vrot.slane %v4179, 4
      %v4182 = vor.u32 %v4181, %v4177
      %v4183 = vrot.slane %v4182, 4
      %v4185 = vshll.u32 %v3825, 16
      %v4187 = vrot.slane %v4185, 5
      %v4188 = vsel %vm281, %v4183, %v4187
      %v4190 = vshrl.u32 %v3826, 16
      %v4192 = vrot.slane %v4190, 4
      %v4193 = vshll.u32 %v3826, 16
      %v4195 = vrot.slane %v4193, 5
      %v4196 = vor.u32 %v4192, %v4195
      %v4197 = vrot.slane %v4196, 4
      %v4199 = vshll.u32 %v3827, 16
      %v4201 = vrot.slane %v4199, 5
      %v4202 = vsel %vm281, %v4197, %v4201
      %v4203 = vshrl.u32 %v3827, 16
      %v4205 = vrot.slane %v4203, 4
      %v4206 = vor.u32 %v4205, %v4201
      %v4207 = vrot.slane %v4206, 4
      %v4209 = vshll.u32 %v3828, 16
      %v4211 = vrot.slane %v4209, 5
      %v4212 = vsel %vm281, %v4207, %v4211
      %s4213 = scalar_lea.vmem %s210, 224
      %v4214 = vld [vmem:[%s4213] sm:$0xf]
      %v4215 = vld [vmem:[%s4213 + $0x4] sm:$0xf]
      %v4216 = vld [vmem:[%s4213 + $0x8] sm:$0xf]
      %v4217 = vld [vmem:[%s4213 + $0xc] sm:$0xf]
      %v4218 = vld [vmem:[%s4213 + $0x10] sm:$0xf]
      %v4219 = vld [vmem:[%s4213 + $0x14] sm:$0xf]
      %v4220 = vld [vmem:[%s4213 + $0x18] sm:$0xf]
      %v4221 = vld [vmem:[%s4213 + $0x1c] sm:$0xf]
      %v4222 = vunpack.c.l.b16 %v3842
      %v4223 = vunpack.c.l.b16 %v3852
      %v4224 = vunpack.c.l.b16 %v3866
      %v4225 = vunpack.c.l.b16 %v3876
      %v4226 = vunpack.c.l.b16 %v3890
      %v4227 = vunpack.c.l.b16 %v3900
      %v4228 = vunpack.c.l.b16 %v3914
      %v4229 = vunpack.c.l.b16 %v3924
      %v4230 = vunpack.c.l.b16 %v3938
      %v4231 = vunpack.c.l.b16 %v3948
      %v4232 = vunpack.c.l.b16 %v3962
      %v4233 = vunpack.c.l.b16 %v3972
      %v4234 = vunpack.c.l.b16 %v3986
      %v4235 = vunpack.c.l.b16 %v3996
      %v4236 = vunpack.c.l.b16 %v4010
      %v4237 = vunpack.c.l.b16 %v4020
      %v4238 = vunpack.c.l.b16 %v4034
      %v4239 = vunpack.c.l.b16 %v4044
      %v4240 = vunpack.c.l.b16 %v4058
      %v4241 = vunpack.c.l.b16 %v4068
      %v4242 = vunpack.c.l.b16 %v4082
      %v4243 = vunpack.c.l.b16 %v4092
      %v4244 = vunpack.c.l.b16 %v4106
      %v4245 = vunpack.c.l.b16 %v4116
      %v4246 = vunpack.c.l.b16 %v4130
      %v4247 = vunpack.c.l.b16 %v4140
      %v4248 = vunpack.c.l.b16 %v4154
      %v4249 = vunpack.c.l.b16 %v4164
      %v4250 = vunpack.c.l.b16 %v4178
      %v4251 = vunpack.c.l.b16 %v4188
      %v4252 = vunpack.c.l.b16 %v4202
      %v4253 = vunpack.c.l.b16 %v4212
      %v4254 = vpack.c.b16 %v4223, %v4222
      %v4255 = vpack.c.b16 %v4225, %v4224
      %v4256 = vpack.c.b16 %v4227, %v4226
      %v4257 = vpack.c.b16 %v4229, %v4228
      %v4258 = vpack.c.b16 %v4231, %v4230
      %v4259 = vpack.c.b16 %v4233, %v4232
      %v4260 = vpack.c.b16 %v4235, %v4234
      %v4261 = vpack.c.b16 %v4237, %v4236
      %v4262 = vpack.c.b16 %v4239, %v4238
      %v4263 = vpack.c.b16 %v4241, %v4240
      %v4264 = vpack.c.b16 %v4243, %v4242
      %v4265 = vpack.c.b16 %v4245, %v4244
      %v4266 = vpack.c.b16 %v4247, %v4246
      %v4267 = vpack.c.b16 %v4249, %v4248
      %v4268 = vpack.c.b16 %v4251, %v4250
      %v4269 = vpack.c.b16 %v4253, %v4252
      %v4278 = vunpack.c.l.b16 %v4214
      %v4279 = vunpack.c.l.b16 %v4215
      %v4280 = vunpack.c.l.b16 %v4216
      %v4281 = vunpack.c.l.b16 %v4217
      %v4282 = vunpack.c.l.b16 %v4218
      %v4283 = vunpack.c.l.b16 %v4219
      %v4284 = vunpack.c.l.b16 %v4220
      %v4285 = vunpack.c.l.b16 %v4221
      %v4286 = vpack.c.b16 %v4279, %v4278
      %v4287 = vpack.c.b16 %v4281, %v4280
      %v4288 = vpack.c.b16 %v4283, %v4282
      %v4289 = vpack.c.b16 %v4285, %v4284
      %v4295 = vsel %vm747, %v4254, 0
      %v4298 = vsel %vm747, %v4255, 0
      %v4301 = vsel %vm747, %v4256, 0
      %v4304 = vsel %vm747, %v4257, 0
      %v4307 = vsel %vm747, %v4258, 0
      %v4310 = vsel %vm747, %v4259, 0
      %v4313 = vsel %vm747, %v4260, 0
      %v4316 = vsel %vm747, %v4261, 0
      %v4319 = vsel %vm747, %v4262, 0
      %v4322 = vsel %vm747, %v4263, 0
      %v4325 = vsel %vm747, %v4264, 0
      %v4328 = vsel %vm747, %v4265, 0
      %v4331 = vsel %vm747, %v4266, 0
      %v4334 = vsel %vm747, %v4267, 0
      %v4337 = vsel %vm747, %v4268, 0
      %v4340 = vsel %vm747, %v4269, 0
      %4342 = vmatprep.subr.bf16.mxu0 0
      %4343 = vmatpush1.bf16.msra.mxu0 %v4286
      %4344 = vmatprep.subr.bf16.mxu0 0
      %4345 = vmatpush1.bf16.msra.mxu0 %v4287
      %4346 = vmatprep.subr.bf16.mxu0 0
      %4347 = vmatpush1.bf16.msra.mxu0 %v4288
      %4348 = vmatprep.subr.bf16.mxu0 0
      %4349 = vmatpush1.bf16.msra.mxu0 %v4289
      %4350 = vmatprep.subr.bf16.mxu0 0
      %4351 = vmatpush1.bf16.msra.mxu0 0
      %4352 = vmatprep.subr.bf16.mxu0 0
      %4353 = vmatpush1.bf16.msra.mxu0 0
      %4354 = vmatprep.subr.bf16.mxu0 0
      %4355 = vmatpush1.bf16.msra.mxu0 0
      %4356 = vmatprep.subr.bf16.mxu0 0
      %4357 = vmatpush1.bf16.msra.mxu0 0
      %4358 = vmatprep.subr.bf16.mxu0 0
      %4359 = vmatpush1.bf16.msra.mxu0 0
      %4360 = vmatprep.subr.bf16.mxu0 0
      %4361 = vmatpush1.bf16.msra.mxu0 0
      %4362 = vmatprep.subr.bf16.mxu0 0
      %4363 = vmatpush1.bf16.msra.mxu0 0
      %4364 = vmatprep.subr.bf16.mxu0 0
      %4365 = vmatpush1.bf16.msra.mxu0 0
      %4366 = vmatprep.subr.bf16.mxu0 0
      %4367 = vmatpush1.bf16.msra.mxu0 0
      %4368 = vmatprep.subr.bf16.mxu0 0
      %4369 = vmatpush1.bf16.msra.mxu0 0
      %4370 = vmatprep.subr.bf16.mxu0 0
      %4371 = vmatpush1.bf16.msra.mxu0 0
      %4372 = vmatprep.subr.bf16.mxu0 0
      %4373 = vmatpush1.bf16.msra.mxu0 0
      %4374 = vmatprep.mubr.bf16.mxu0 0
      %4375 = vmatmul.mubr.bf16.gmra.mrb[0].mxu0 %v4295
      %v4376 = vpop.f32.mrb[0].mxu0
      %v4377 = vadd.f32 0.0, %v4376
      %v4378 = vpop.f32.mrb[0].mxu0
      %v4379 = vpop.f32.mrb[0].mxu0
      %v4380 = vadd.f32 0.0, %v4379
      %v4381 = vpop.f32.mrb[0].mxu0
      %4382 = vmatprep.mubr.bf16.mxu0 0
      %4383 = vmatmul.mubr.bf16.gmra.mrb[0].mxu0 %v4298
      %v4384 = vpop.f32.mrb[0].mxu0
      %v4385 = vadd.f32 0.0, %v4384
      %v4386 = vpop.f32.mrb[0].mxu0
      %v4387 = vpop.f32.mrb[0].mxu0
      %v4388 = vadd.f32 0.0, %v4387
      %v4389 = vpop.f32.mrb[0].mxu0
      %4390 = vmatprep.mubr.bf16.mxu0 0
      %4391 = vmatmul.mubr.bf16.gmra.mrb[0].mxu0 %v4301
      %v4392 = vpop.f32.mrb[0].mxu0
      %v4393 = vadd.f32 0.0, %v4392
      %v4394 = vpop.f32.mrb[0].mxu0
      %v4395 = vpop.f32.mrb[0].mxu0
      %v4396 = vadd.f32 0.0, %v4395
      %v4397 = vpop.f32.mrb[0].mxu0
      %4398 = vmatprep.mubr.bf16.mxu0 0
      %4399 = vmatmul.mubr.bf16.gmra.mrb[0].mxu0 %v4304
      %v4400 = vpop.f32.mrb[0].mxu0
      %v4401 = vadd.f32 0.0, %v4400
      %v4402 = vpop.f32.mrb[0].mxu0
      %v4403 = vpop.f32.mrb[0].mxu0
      %v4404 = vadd.f32 0.0, %v4403
      %v4405 = vpop.f32.mrb[0].mxu0
      %4406 = vmatprep.mubr.bf16.mxu0 0
      %4407 = vmatmul.mubr.bf16.gmra.mrb[0].mxu0 %v4307
      %v4408 = vpop.f32.mrb[0].mxu0
      %v4409 = vadd.f32 0.0, %v4408
      %v4410 = vpop.f32.mrb[0].mxu0
      %v4411 = vpop.f32.mrb[0].mxu0
      %v4412 = vadd.f32 0.0, %v4411
      %v4413 = vpop.f32.mrb[0].mxu0
      %4414 = vmatprep.mubr.bf16.mxu0 0
      %4415 = vmatmul.mubr.bf16.gmra.mrb[0].mxu0 %v4310
      %v4416 = vpop.f32.mrb[0].mxu0
      %v4417 = vadd.f32 0.0, %v4416
      %v4418 = vpop.f32.mrb[0].mxu0
      %v4419 = vpop.f32.mrb[0].mxu0
      %v4420 = vadd.f32 0.0, %v4419
      %v4421 = vpop.f32.mrb[0].mxu0
      %4422 = vmatprep.mubr.bf16.mxu0 0
      %4423 = vmatmul.mubr.bf16.gmra.mrb[0].mxu0 %v4313
      %v4424 = vpop.f32.mrb[0].mxu0
      %v4425 = vadd.f32 0.0, %v4424
      %v4426 = vpop.f32.mrb[0].mxu0
      %v4427 = vpop.f32.mrb[0].mxu0
      %v4428 = vadd.f32 0.0, %v4427
      %v4429 = vpop.f32.mrb[0].mxu0
      %4430 = vmatprep.mubr.bf16.mxu0 0
      %4431 = vmatmul.mubr.bf16.gmra.mrb[0].mxu0 %v4316
      %v4432 = vpop.f32.mrb[0].mxu0
      %v4433 = vadd.f32 0.0, %v4432
      %v4434 = vpop.f32.mrb[0].mxu0
      %v4435 = vpop.f32.mrb[0].mxu0
      %v4436 = vadd.f32 0.0, %v4435
      %v4437 = vpop.f32.mrb[0].mxu0
      %4438 = vmatprep.mubr.bf16.mxu0 0
      %4439 = vmatmul.mubr.bf16.gmra.mrb[0].mxu0 %v4319
      %v4440 = vpop.f32.mrb[0].mxu0
      %v4441 = vadd.f32 0.0, %v4440
      %v4442 = vpop.f32.mrb[0].mxu0
      %v4443 = vpop.f32.mrb[0].mxu0
      %v4444 = vadd.f32 0.0, %v4443
      %v4445 = vpop.f32.mrb[0].mxu0
      %4446 = vmatprep.mubr.bf16.mxu0 0
      %4447 = vmatmul.mubr.bf16.gmra.mrb[0].mxu0 %v4322
      %v4448 = vpop.f32.mrb[0].mxu0
      %v4449 = vadd.f32 0.0, %v4448
      %v4450 = vpop.f32.mrb[0].mxu0
      %v4451 = vpop.f32.mrb[0].mxu0
      %v4452 = vadd.f32 0.0, %v4451
      %v4453 = vpop.f32.mrb[0].mxu0
      %4454 = vmatprep.mubr.bf16.mxu0 0
      %4455 = vmatmul.mubr.bf16.gmra.mrb[0].mxu0 %v4325
      %v4456 = vpop.f32.mrb[0].mxu0
      %v4457 = vadd.f32 0.0, %v4456
      %v4458 = vpop.f32.mrb[0].mxu0
      %v4459 = vpop.f32.mrb[0].mxu0
      %v4460 = vadd.f32 0.0, %v4459
      %v4461 = vpop.f32.mrb[0].mxu0
      %4462 = vmatprep.mubr.bf16.mxu0 0
      %4463 = vmatmul.mubr.bf16.gmra.mrb[0].mxu0 %v4328
      %v4464 = vpop.f32.mrb[0].mxu0
      %v4465 = vadd.f32 0.0, %v4464
      %v4466 = vpop.f32.mrb[0].mxu0
      %v4467 = vpop.f32.mrb[0].mxu0
      %v4468 = vadd.f32 0.0, %v4467
      %v4469 = vpop.f32.mrb[0].mxu0
      %4470 = vmatprep.mubr.bf16.mxu0 0
      %4471 = vmatmul.mubr.bf16.gmra.mrb[0].mxu0 %v4331
      %v4472 = vpop.f32.mrb[0].mxu0
      %v4473 = vadd.f32 0.0, %v4472
      %v4474 = vpop.f32.mrb[0].mxu0
      %v4475 = vpop.f32.mrb[0].mxu0
      %v4476 = vadd.f32 0.0, %v4475
      %v4477 = vpop.f32.mrb[0].mxu0
      %4478 = vmatprep.mubr.bf16.mxu0 0
      %4479 = vmatmul.mubr.bf16.gmra.mrb[0].mxu0 %v4334
      %v4480 = vpop.f32.mrb[0].mxu0
      %v4481 = vadd.f32 0.0, %v4480
      %v4482 = vpop.f32.mrb[0].mxu0
      %v4483 = vpop.f32.mrb[0].mxu0
      %v4484 = vadd.f32 0.0, %v4483
      %v4485 = vpop.f32.mrb[0].mxu0
      %4486 = vmatprep.mubr.bf16.mxu0 0
      %4487 = vmatmul.mubr.bf16.gmra.mrb[0].mxu0 %v4337
      %v4488 = vpop.f32.mrb[0].mxu0
      %v4489 = vadd.f32 0.0, %v4488
      %v4490 = vpop.f32.mrb[0].mxu0
      %v4491 = vpop.f32.mrb[0].mxu0
      %v4492 = vadd.f32 0.0, %v4491
      %v4493 = vpop.f32.mrb[0].mxu0
      %4494 = vmatprep.mubr.bf16.mxu0 0
      %4495 = vmatmul.mubr.bf16.gmra.mrb[0].mxu0 %v4340
      %v4496 = vpop.f32.mrb[0].mxu0
      %v4497 = vadd.f32 0.0, %v4496
      %v4498 = vpop.f32.mrb[0].mxu0
      %v4499 = vpop.f32.mrb[0].mxu0
      %v4500 = vadd.f32 0.0, %v4499
      %v4501 = vpop.f32.mrb[0].mxu0
      %4502 = vdwg.mxu0
      %v4503 = vadd.f32 %v3749, %v4377
      %v4504 = vadd.f32 %v3750, %v4380
      %v4505 = vadd.f32 %v3751, %v4385
      %v4506 = vadd.f32 %v3752, %v4388
      %v4507 = vadd.f32 %v3753, %v4393
      %v4508 = vadd.f32 %v3754, %v4396
      %v4509 = vadd.f32 %v3755, %v4401
      %v4510 = vadd.f32 %v3756, %v4404
      %v4511 = vadd.f32 %v3757, %v4409
      %v4512 = vadd.f32 %v3758, %v4412
      %v4513 = vadd.f32 %v3759, %v4417
      %v4514 = vadd.f32 %v3760, %v4420
      %v4515 = vadd.f32 %v3761, %v4425
      %v4516 = vadd.f32 %v3762, %v4428
      %v4517 = vadd.f32 %v3763, %v4433
      %v4518 = vadd.f32 %v3764, %v4436
      %v4519 = vadd.f32 %v3765, %v4441
      %v4520 = vadd.f32 %v3766, %v4444
      %v4521 = vadd.f32 %v3767, %v4449
      %v4522 = vadd.f32 %v3768, %v4452
      %v4523 = vadd.f32 %v3769, %v4457
      %v4524 = vadd.f32 %v3770, %v4460
      %v4525 = vadd.f32 %v3771, %v4465
      %v4526 = vadd.f32 %v3772, %v4468
      %v4527 = vadd.f32 %v3773, %v4473
      %v4528 = vadd.f32 %v3774, %v4476
      %v4529 = vadd.f32 %v3775, %v4481
      %v4530 = vadd.f32 %v3776, %v4484
      %v4531 = vadd.f32 %v3777, %v4489
      %v4532 = vadd.f32 %v3778, %v4492
      %v4533 = vadd.f32 %v3779, %v4497
      %v4534 = vadd.f32 %v3780, %v4500
      %v4535 = vld [vmem:[%s3394] sm:$0xe]
      %v4536 = vld [vmem:[%s3394 + $0xc] sm:$0xe]
      %v4537 = vld [vmem:[%s3394 + $0x18] sm:$0xe]
      %v4538 = vld [vmem:[%s3394 + $0x24] sm:$0xe]
      %v4539 = vld [vmem:[%s3394 + $0x30] sm:$0xe]
      %v4540 = vld [vmem:[%s3394 + $0x3c] sm:$0xe]
      %v4541 = vld [vmem:[%s3394 + $0x48] sm:$0xe]
      %v4542 = vld [vmem:[%s3394 + $0x54] sm:$0xe]
      %v4543 = vld [vmem:[%s3394 + $0x60] sm:$0xe]
      %v4544 = vld [vmem:[%s3394 + $0x6c] sm:$0xe]
      %v4545 = vld [vmem:[%s3394 + $0x78] sm:$0xe]
      %v4546 = vld [vmem:[%s3394 + $0x84] sm:$0xe]
      %v4547 = vld [vmem:[%s3394 + $0x90] sm:$0xe]
      %v4548 = vld [vmem:[%s3394 + $0x9c] sm:$0xe]
      %v4549 = vld [vmem:[%s3394 + $0xa8] sm:$0xe]
      %v4550 = vld [vmem:[%s3394 + $0xb4] sm:$0xe]
      %v4599 = vrot.slane %v4535, 5
      %v4600 = vrot.slane %v4599, 4
      %v4601 = vrot.slane %v3782, 5
      %v4602 = vsel %vm1320, %v4600, %v4601
      %v4603 = vrot.slane %v4601, 4
      %v4604 = vrot.slane %v3783, 5
      %v4605 = vsel %vm1320, %v4603, %v4604
      %v4606 = vrot.slane %v4536, 5
      %v4607 = vrot.slane %v4606, 4
      %v4608 = vrot.slane %v3785, 5
      %v4609 = vsel %vm1320, %v4607, %v4608
      %v4610 = vrot.slane %v4608, 4
      %v4611 = vrot.slane %v3786, 5
      %v4612 = vsel %vm1320, %v4610, %v4611
      %v4613 = vrot.slane %v4537, 5
      %v4614 = vrot.slane %v4613, 4
      %v4615 = vrot.slane %v3788, 5
      %v4616 = vsel %vm1320, %v4614, %v4615
      %v4617 = vrot.slane %v4615, 4
      %v4618 = vrot.slane %v3789, 5
      %v4619 = vsel %vm1320, %v4617, %v4618
      %v4620 = vrot.slane %v4538, 5
      %v4621 = vrot.slane %v4620, 4
      %v4622 = vrot.slane %v3791, 5
      %v4623 = vsel %vm1320, %v4621, %v4622
      %v4624 = vrot.slane %v4622, 4
      %v4625 = vrot.slane %v3792, 5
      %v4626 = vsel %vm1320, %v4624, %v4625
      %v4627 = vrot.slane %v4539, 5
      %v4628 = vrot.slane %v4627, 4
      %v4629 = vrot.slane %v3794, 5
      %v4630 = vsel %vm1320, %v4628, %v4629
      %v4631 = vrot.slane %v4629, 4
      %v4632 = vrot.slane %v3795, 5
      %v4633 = vsel %vm1320, %v4631, %v4632
      %v4634 = vrot.slane %v4540, 5
      %v4635 = vrot.slane %v4634, 4
      %v4636 = vrot.slane %v3797, 5
      %v4637 = vsel %vm1320, %v4635, %v4636
      %v4638 = vrot.slane %v4636, 4
      %v4639 = vrot.slane %v3798, 5
      %v4640 = vsel %vm1320, %v4638, %v4639
      %v4641 = vrot.slane %v4541, 5
      %v4642 = vrot.slane %v4641, 4
      %v4643 = vrot.slane %v3800, 5
      %v4644 = vsel %vm1320, %v4642, %v4643
      %v4645 = vrot.slane %v4643, 4
      %v4646 = vrot.slane %v3801, 5
      %v4647 = vsel %vm1320, %v4645, %v4646
      %v4648 = vrot.slane %v4542, 5
      %v4649 = vrot.slane %v4648, 4
      %v4650 = vrot.slane %v3803, 5
      %v4651 = vsel %vm1320, %v4649, %v4650
      %v4652 = vrot.slane %v4650, 4
      %v4653 = vrot.slane %v3804, 5
      %v4654 = vsel %vm1320, %v4652, %v4653
      %v4655 = vrot.slane %v4543, 5
      %v4656 = vrot.slane %v4655, 4
      %v4657 = vrot.slane %v3806, 5
      %v4658 = vsel %vm1320, %v4656, %v4657
      %v4659 = vrot.slane %v4657, 4
      %v4660 = vrot.slane %v3807, 5
      %v4661 = vsel %vm1320, %v4659, %v4660
      %v4662 = vrot.slane %v4544, 5
      %v4663 = vrot.slane %v4662, 4
      %v4664 = vrot.slane %v3809, 5
      %v4665 = vsel %vm1320, %v4663, %v4664
      %v4666 = vrot.slane %v4664, 4
      %v4667 = vrot.slane %v3810, 5
      %v4668 = vsel %vm1320, %v4666, %v4667
      %v4669 = vrot.slane %v4545, 5
      %v4670 = vrot.slane %v4669, 4
      %v4671 = vrot.slane %v3812, 5
      %v4672 = vsel %vm1320, %v4670, %v4671
      %v4673 = vrot.slane %v4671, 4
      %v4674 = vrot.slane %v3813, 5
      %v4675 = vsel %vm1320, %v4673, %v4674
      %v4676 = vrot.slane %v4546, 5
      %v4677 = vrot.slane %v4676, 4
      %v4678 = vrot.slane %v3815, 5
      %v4679 = vsel %vm1320, %v4677, %v4678
      %v4680 = vrot.slane %v4678, 4
      %v4681 = vrot.slane %v3816, 5
      %v4682 = vsel %vm1320, %v4680, %v4681
      %v4683 = vrot.slane %v4547, 5
      %v4684 = vrot.slane %v4683, 4
      %v4685 = vrot.slane %v3818, 5
      %v4686 = vsel %vm1320, %v4684, %v4685
      %v4687 = vrot.slane %v4685, 4
      %v4688 = vrot.slane %v3819, 5
      %v4689 = vsel %vm1320, %v4687, %v4688
      %v4690 = vrot.slane %v4548, 5
      %v4691 = vrot.slane %v4690, 4
      %v4692 = vrot.slane %v3821, 5
      %v4693 = vsel %vm1320, %v4691, %v4692
      %v4694 = vrot.slane %v4692, 4
      %v4695 = vrot.slane %v3822, 5
      %v4696 = vsel %vm1320, %v4694, %v4695
      %v4697 = vrot.slane %v4549, 5
      %v4698 = vrot.slane %v4697, 4
      %v4699 = vrot.slane %v3824, 5
      %v4700 = vsel %vm1320, %v4698, %v4699
      %v4701 = vrot.slane %v4699, 4
      %v4702 = vrot.slane %v3825, 5
      %v4703 = vsel %vm1320, %v4701, %v4702
      %v4704 = vrot.slane %v4550, 5
      %v4705 = vrot.slane %v4704, 4
      %v4706 = vrot.slane %v3827, 5
      %v4707 = vsel %vm1320, %v4705, %v4706
      %v4708 = vrot.slane %v4706, 4
      %v4709 = vrot.slane %v3828, 5
      %v4710 = vsel %vm1320, %v4708, %v4709
      %s4711 = scalar_lea.vmem %s210, 256
      %v4712 = vld [vmem:[%s4711] sm:$0xf]
      %v4713 = vld [vmem:[%s4711 + $0x4] sm:$0xf]
      %v4714 = vld [vmem:[%s4711 + $0x8] sm:$0xf]
      %v4715 = vld [vmem:[%s4711 + $0xc] sm:$0xf]
      %v4716 = vld [vmem:[%s4711 + $0x10] sm:$0xf]
      %v4717 = vld [vmem:[%s4711 + $0x14] sm:$0xf]
      %v4718 = vld [vmem:[%s4711 + $0x18] sm:$0xf]
      %v4719 = vld [vmem:[%s4711 + $0x1c] sm:$0xf]
      %v4720 = vunpack.c.l.b16 %v4602
      %v4721 = vunpack.c.l.b16 %v4605
      %v4722 = vunpack.c.l.b16 %v4609
      %v4723 = vunpack.c.l.b16 %v4612
      %v4724 = vunpack.c.l.b16 %v4616
      %v4725 = vunpack.c.l.b16 %v4619
      %v4726 = vunpack.c.l.b16 %v4623
      %v4727 = vunpack.c.l.b16 %v4626
      %v4728 = vunpack.c.l.b16 %v4630
      %v4729 = vunpack.c.l.b16 %v4633
      %v4730 = vunpack.c.l.b16 %v4637
      %v4731 = vunpack.c.l.b16 %v4640
      %v4732 = vunpack.c.l.b16 %v4644
      %v4733 = vunpack.c.l.b16 %v4647
      %v4734 = vunpack.c.l.b16 %v4651
      %v4735 = vunpack.c.l.b16 %v4654
      %v4736 = vunpack.c.l.b16 %v4658
      %v4737 = vunpack.c.l.b16 %v4661
      %v4738 = vunpack.c.l.b16 %v4665
      %v4739 = vunpack.c.l.b16 %v4668
      %v4740 = vunpack.c.l.b16 %v4672
      %v4741 = vunpack.c.l.b16 %v4675
      %v4742 = vunpack.c.l.b16 %v4679
      %v4743 = vunpack.c.l.b16 %v4682
      %v4744 = vunpack.c.l.b16 %v4686
      %v4745 = vunpack.c.l.b16 %v4689
      %v4746 = vunpack.c.l.b16 %v4693
      %v4747 = vunpack.c.l.b16 %v4696
      %v4748 = vunpack.c.l.b16 %v4700
      %v4749 = vunpack.c.l.b16 %v4703
      %v4750 = vunpack.c.l.b16 %v4707
      %v4751 = vunpack.c.l.b16 %v4710
      %v4752 = vpack.c.b16 %v4721, %v4720
      %v4753 = vpack.c.b16 %v4723, %v4722
      %v4754 = vpack.c.b16 %v4725, %v4724
      %v4755 = vpack.c.b16 %v4727, %v4726
      %v4756 = vpack.c.b16 %v4729, %v4728
      %v4757 = vpack.c.b16 %v4731, %v4730
      %v4758 = vpack.c.b16 %v4733, %v4732
      %v4759 = vpack.c.b16 %v4735, %v4734
      %v4760 = vpack.c.b16 %v4737, %v4736
      %v4761 = vpack.c.b16 %v4739, %v4738
      %v4762 = vpack.c.b16 %v4741, %v4740
      %v4763 = vpack.c.b16 %v4743, %v4742
      %v4764 = vpack.c.b16 %v4745, %v4744
      %v4765 = vpack.c.b16 %v4747, %v4746
      %v4766 = vpack.c.b16 %v4749, %v4748
      %v4767 = vpack.c.b16 %v4751, %v4750
      %v4776 = vunpack.c.l.b16 %v4712
      %v4777 = vunpack.c.l.b16 %v4713
      %v4778 = vunpack.c.l.b16 %v4714
      %v4779 = vunpack.c.l.b16 %v4715
      %v4780 = vunpack.c.l.b16 %v4716
      %v4781 = vunpack.c.l.b16 %v4717
      %v4782 = vunpack.c.l.b16 %v4718
      %v4783 = vunpack.c.l.b16 %v4719
      %v4784 = vpack.c.b16 %v4777, %v4776
      %v4785 = vpack.c.b16 %v4779, %v4778
      %v4786 = vpack.c.b16 %v4781, %v4780
      %v4787 = vpack.c.b16 %v4783, %v4782
      %v4793 = vsel %vm747, %v4752, 0
      %v4796 = vsel %vm747, %v4753, 0
      %v4799 = vsel %vm747, %v4754, 0
      %v4802 = vsel %vm747, %v4755, 0
      %v4805 = vsel %vm747, %v4756, 0
      %v4808 = vsel %vm747, %v4757, 0
      %v4811 = vsel %vm747, %v4758, 0
      %v4814 = vsel %vm747, %v4759, 0
      %v4817 = vsel %vm747, %v4760, 0
      %v4820 = vsel %vm747, %v4761, 0
      %v4823 = vsel %vm747, %v4762, 0
      %v4826 = vsel %vm747, %v4763, 0
      %v4829 = vsel %vm747, %v4764, 0
      %v4832 = vsel %vm747, %v4765, 0
      %v4835 = vsel %vm747, %v4766, 0
      %v4838 = vsel %vm747, %v4767, 0
      %4840 = vmatprep.subr.bf16.mxu0 0
      %4841 = vmatpush1.bf16.msra.mxu0 %v4784
      %4842 = vmatprep.subr.bf16.mxu0 0
      %4843 = vmatpush1.bf16.msra.mxu0 %v4785
      %4844 = vmatprep.subr.bf16.mxu0 0
      %4845 = vmatpush1.bf16.msra.mxu0 %v4786
      %4846 = vmatprep.subr.bf16.mxu0 0
      %4847 = vmatpush1.bf16.msra.mxu0 %v4787
      %4848 = vmatprep.subr.bf16.mxu0 0
      %4849 = vmatpush1.bf16.msra.mxu0 0
      %4850 = vmatprep.subr.bf16.mxu0 0
      %4851 = vmatpush1.bf16.msra.mxu0 0
      %4852 = vmatprep.subr.bf16.mxu0 0
      %4853 = vmatpush1.bf16.msra.mxu0 0
      %4854 = vmatprep.subr.bf16.mxu0 0
      %4855 = vmatpush1.bf16.msra.mxu0 0
      %4856 = vmatprep.subr.bf16.mxu0 0
      %4857 = vmatpush1.bf16.msra.mxu0 0
      %4858 = vmatprep.subr.bf16.mxu0 0
      %4859 = vmatpush1.bf16.msra.mxu0 0
      %4860 = vmatprep.subr.bf16.mxu0 0
      %4861 = vmatpush1.bf16.msra.mxu0 0
      %4862 = vmatprep.subr.bf16.mxu0 0
      %4863 = vmatpush1.bf16.msra.mxu0 0
      %4864 = vmatprep.subr.bf16.mxu0 0
      %4865 = vmatpush1.bf16.msra.mxu0 0
      %4866 = vmatprep.subr.bf16.mxu0 0
      %4867 = vmatpush1.bf16.msra.mxu0 0
      %4868 = vmatprep.subr.bf16.mxu0 0
      %4869 = vmatpush1.bf16.msra.mxu0 0
      %4870 = vmatprep.subr.bf16.mxu0 0
      %4871 = vmatpush1.bf16.msra.mxu0 0
      %4872 = vmatprep.mubr.bf16.mxu0 0
      %4873 = vmatmul.mubr.bf16.gmra.mrb[0].mxu0 %v4793
      %v4874 = vpop.f32.mrb[0].mxu0
      %v4875 = vadd.f32 0.0, %v4874
      %v4876 = vpop.f32.mrb[0].mxu0
      %v4877 = vpop.f32.mrb[0].mxu0
      %v4878 = vadd.f32 0.0, %v4877
      %v4879 = vpop.f32.mrb[0].mxu0
      %4880 = vmatprep.mubr.bf16.mxu0 0
      %4881 = vmatmul.mubr.bf16.gmra.mrb[0].mxu0 %v4796
      %v4882 = vpop.f32.mrb[0].mxu0
      %v4883 = vadd.f32 0.0, %v4882
      %v4884 = vpop.f32.mrb[0].mxu0
      %v4885 = vpop.f32.mrb[0].mxu0
      %v4886 = vadd.f32 0.0, %v4885
      %v4887 = vpop.f32.mrb[0].mxu0
      %4888 = vmatprep.mubr.bf16.mxu0 0
      %4889 = vmatmul.mubr.bf16.gmra.mrb[0].mxu0 %v4799
      %v4890 = vpop.f32.mrb[0].mxu0
      %v4891 = vadd.f32 0.0, %v4890
      %v4892 = vpop.f32.mrb[0].mxu0
      %v4893 = vpop.f32.mrb[0].mxu0
      %v4894 = vadd.f32 0.0, %v4893
      %v4895 = vpop.f32.mrb[0].mxu0
      %4896 = vmatprep.mubr.bf16.mxu0 0
      %4897 = vmatmul.mubr.bf16.gmra.mrb[0].mxu0 %v4802
      %v4898 = vpop.f32.mrb[0].mxu0
      %v4899 = vadd.f32 0.0, %v4898
      %v4900 = vpop.f32.mrb[0].mxu0
      %v4901 = vpop.f32.mrb[0].mxu0
      %v4902 = vadd.f32 0.0, %v4901
      %v4903 = vpop.f32.mrb[0].mxu0
      %4904 = vmatprep.mubr.bf16.mxu0 0
      %4905 = vmatmul.mubr.bf16.gmra.mrb[0].mxu0 %v4805
      %v4906 = vpop.f32.mrb[0].mxu0
      %v4907 = vadd.f32 0.0, %v4906
      %v4908 = vpop.f32.mrb[0].mxu0
      %v4909 = vpop.f32.mrb[0].mxu0
      %v4910 = vadd.f32 0.0, %v4909
      %v4911 = vpop.f32.mrb[0].mxu0
      %4912 = vmatprep.mubr.bf16.mxu0 0
      %4913 = vmatmul.mubr.bf16.gmra.mrb[0].mxu0 %v4808
      %v4914 = vpop.f32.mrb[0].mxu0
      %v4915 = vadd.f32 0.0, %v4914
      %v4916 = vpop.f32.mrb[0].mxu0
      %v4917 = vpop.f32.mrb[0].mxu0
      %v4918 = vadd.f32 0.0, %v4917
      %v4919 = vpop.f32.mrb[0].mxu0
      %4920 = vmatprep.mubr.bf16.mxu0 0
      %4921 = vmatmul.mubr.bf16.gmra.mrb[0].mxu0 %v4811
      %v4922 = vpop.f32.mrb[0].mxu0
      %v4923 = vadd.f32 0.0, %v4922
      %v4924 = vpop.f32.mrb[0].mxu0
      %v4925 = vpop.f32.mrb[0].mxu0
      %v4926 = vadd.f32 0.0, %v4925
      %v4927 = vpop.f32.mrb[0].mxu0
      %4928 = vmatprep.mubr.bf16.mxu0 0
      %4929 = vmatmul.mubr.bf16.gmra.mrb[0].mxu0 %v4814
      %v4930 = vpop.f32.mrb[0].mxu0
      %v4931 = vadd.f32 0.0, %v4930
      %v4932 = vpop.f32.mrb[0].mxu0
      %v4933 = vpop.f32.mrb[0].mxu0
      %v4934 = vadd.f32 0.0, %v4933
      %v4935 = vpop.f32.mrb[0].mxu0
      %4936 = vmatprep.mubr.bf16.mxu0 0
      %4937 = vmatmul.mubr.bf16.gmra.mrb[0].mxu0 %v4817
      %v4938 = vpop.f32.mrb[0].mxu0
      %v4939 = vadd.f32 0.0, %v4938
      %v4940 = vpop.f32.mrb[0].mxu0
      %v4941 = vpop.f32.mrb[0].mxu0
      %v4942 = vadd.f32 0.0, %v4941
      %v4943 = vpop.f32.mrb[0].mxu0
      %4944 = vmatprep.mubr.bf16.mxu0 0
      %4945 = vmatmul.mubr.bf16.gmra.mrb[0].mxu0 %v4820
      %v4946 = vpop.f32.mrb[0].mxu0
      %v4947 = vadd.f32 0.0, %v4946
      %v4948 = vpop.f32.mrb[0].mxu0
      %v4949 = vpop.f32.mrb[0].mxu0
      %v4950 = vadd.f32 0.0, %v4949
      %v4951 = vpop.f32.mrb[0].mxu0
      %4952 = vmatprep.mubr.bf16.mxu0 0
      %4953 = vmatmul.mubr.bf16.gmra.mrb[0].mxu0 %v4823
      %v4954 = vpop.f32.mrb[0].mxu0
      %v4955 = vadd.f32 0.0, %v4954
      %v4956 = vpop.f32.mrb[0].mxu0
      %v4957 = vpop.f32.mrb[0].mxu0
      %v4958 = vadd.f32 0.0, %v4957
      %v4959 = vpop.f32.mrb[0].mxu0
      %4960 = vmatprep.mubr.bf16.mxu0 0
      %4961 = vmatmul.mubr.bf16.gmra.mrb[0].mxu0 %v4826
      %v4962 = vpop.f32.mrb[0].mxu0
      %v4963 = vadd.f32 0.0, %v4962
      %v4964 = vpop.f32.mrb[0].mxu0
      %v4965 = vpop.f32.mrb[0].mxu0
      %v4966 = vadd.f32 0.0, %v4965
      %v4967 = vpop.f32.mrb[0].mxu0
      %4968 = vmatprep.mubr.bf16.mxu0 0
      %4969 = vmatmul.mubr.bf16.gmra.mrb[0].mxu0 %v4829
      %v4970 = vpop.f32.mrb[0].mxu0
      %v4971 = vadd.f32 0.0, %v4970
      %v4972 = vpop.f32.mrb[0].mxu0
      %v4973 = vpop.f32.mrb[0].mxu0
      %v4974 = vadd.f32 0.0, %v4973
      %v4975 = vpop.f32.mrb[0].mxu0
      %4976 = vmatprep.mubr.bf16.mxu0 0
      %4977 = vmatmul.mubr.bf16.gmra.mrb[0].mxu0 %v4832
      %v4978 = vpop.f32.mrb[0].mxu0
      %v4979 = vadd.f32 0.0, %v4978
      %v4980 = vpop.f32.mrb[0].mxu0
      %v4981 = vpop.f32.mrb[0].mxu0
      %v4982 = vadd.f32 0.0, %v4981
      %v4983 = vpop.f32.mrb[0].mxu0
      %4984 = vmatprep.mubr.bf16.mxu0 0
      %4985 = vmatmul.mubr.bf16.gmra.mrb[0].mxu0 %v4835
      %v4986 = vpop.f32.mrb[0].mxu0
      %v4987 = vadd.f32 0.0, %v4986
      %v4988 = vpop.f32.mrb[0].mxu0
      %v4989 = vpop.f32.mrb[0].mxu0
      %v4990 = vadd.f32 0.0, %v4989
      %v4991 = vpop.f32.mrb[0].mxu0
      %4992 = vmatprep.mubr.bf16.mxu0 0
      %4993 = vmatmul.mubr.bf16.gmra.mrb[0].mxu0 %v4838
      %v4994 = vpop.f32.mrb[0].mxu0
      %v4995 = vadd.f32 0.0, %v4994
      %v4996 = vpop.f32.mrb[0].mxu0
      %v4997 = vpop.f32.mrb[0].mxu0
      %v4998 = vadd.f32 0.0, %v4997
      %v4999 = vpop.f32.mrb[0].mxu0
      %5000 = vdwg.mxu0
      %v5001 = vadd.f32 %v4503, %v4875
      %v5002 = vadd.f32 %v4504, %v4878
      %v5003 = vadd.f32 %v4505, %v4883
      %v5004 = vadd.f32 %v4506, %v4886
      %v5005 = vadd.f32 %v4507, %v4891
      %v5006 = vadd.f32 %v4508, %v4894
      %v5007 = vadd.f32 %v4509, %v4899
      %v5008 = vadd.f32 %v4510, %v4902
      %v5009 = vadd.f32 %v4511, %v4907
      %v5010 = vadd.f32 %v4512, %v4910
      %v5011 = vadd.f32 %v4513, %v4915
      %v5012 = vadd.f32 %v4514, %v4918
      %v5013 = vadd.f32 %v4515, %v4923
      %v5014 = vadd.f32 %v4516, %v4926
      %v5015 = vadd.f32 %v4517, %v4931
      %v5016 = vadd.f32 %v4518, %v4934
      %v5017 = vadd.f32 %v4519, %v4939
      %v5018 = vadd.f32 %v4520, %v4942
      %v5019 = vadd.f32 %v4521, %v4947
      %v5020 = vadd.f32 %v4522, %v4950
      %v5021 = vadd.f32 %v4523, %v4955
      %v5022 = vadd.f32 %v4524, %v4958
      %v5023 = vadd.f32 %v4525, %v4963
      %v5024 = vadd.f32 %v4526, %v4966
      %v5025 = vadd.f32 %v4527, %v4971
      %v5026 = vadd.f32 %v4528, %v4974
      %v5027 = vadd.f32 %v4529, %v4979
      %v5028 = vadd.f32 %v4530, %v4982
      %v5029 = vadd.f32 %v4531, %v4987
      %v5030 = vadd.f32 %v4532, %v4990
      %v5031 = vadd.f32 %v4533, %v4995
      %v5032 = vadd.f32 %v4534, %v4998
      %v5033 = vld [vmem:[%s213] sm:$0x1]
      %v5035 = vlaneseq
      %v5036 = vshrl.u32 %v5035, 7
      %v5037 = vsub.s32 0, %v5036
      %v5038 = vrot.slane %v5033, %v5037
      %v5040 = vadd.f32 %v5001, %v5038
      %v5041 = vadd.f32 %v5002, %v5038
      %v5042 = vadd.f32 %v5003, %v5038
      %v5043 = vadd.f32 %v5004, %v5038
      %v5044 = vadd.f32 %v5005, %v5038
      %v5045 = vadd.f32 %v5006, %v5038
      %v5046 = vadd.f32 %v5007, %v5038
      %v5047 = vadd.f32 %v5008, %v5038
      %v5048 = vadd.f32 %v5009, %v5038
      %v5049 = vadd.f32 %v5010, %v5038
      %v5050 = vadd.f32 %v5011, %v5038
      %v5051 = vadd.f32 %v5012, %v5038
      %v5052 = vadd.f32 %v5013, %v5038
      %v5053 = vadd.f32 %v5014, %v5038
      %v5054 = vadd.f32 %v5015, %v5038
      %v5055 = vadd.f32 %v5016, %v5038
      %v5056 = vadd.f32 %v5017, %v5038
      %v5057 = vadd.f32 %v5018, %v5038
      %v5058 = vadd.f32 %v5019, %v5038
      %v5059 = vadd.f32 %v5020, %v5038
      %v5060 = vadd.f32 %v5021, %v5038
      %v5061 = vadd.f32 %v5022, %v5038
      %v5062 = vadd.f32 %v5023, %v5038
      %v5063 = vadd.f32 %v5024, %v5038
      %v5064 = vadd.f32 %v5025, %v5038
      %v5065 = vadd.f32 %v5026, %v5038
      %v5066 = vadd.f32 %v5027, %v5038
      %v5067 = vadd.f32 %v5028, %v5038
      %v5068 = vadd.f32 %v5029, %v5038
      %v5069 = vadd.f32 %v5030, %v5038
      %v5070 = vadd.f32 %v5031, %v5038
      %v5071 = vadd.f32 %v5032, %v5038
      %v5072 = vmax.f32 %v5040, 0.0
      %v5073 = vmax.f32 %v5041, 0.0
      %v5074 = vmax.f32 %v5042, 0.0
      %v5075 = vmax.f32 %v5043, 0.0
      %v5076 = vmax.f32 %v5044, 0.0
      %v5077 = vmax.f32 %v5045, 0.0
      %v5078 = vmax.f32 %v5046, 0.0
      %v5079 = vmax.f32 %v5047, 0.0
      %v5080 = vmax.f32 %v5048, 0.0
      %v5081 = vmax.f32 %v5049, 0.0
      %v5082 = vmax.f32 %v5050, 0.0
      %v5083 = vmax.f32 %v5051, 0.0
      %v5084 = vmax.f32 %v5052, 0.0
      %v5085 = vmax.f32 %v5053, 0.0
      %v5086 = vmax.f32 %v5054, 0.0
      %v5087 = vmax.f32 %v5055, 0.0
      %v5088 = vmax.f32 %v5056, 0.0
      %v5089 = vmax.f32 %v5057, 0.0
      %v5090 = vmax.f32 %v5058, 0.0
      %v5091 = vmax.f32 %v5059, 0.0
      %v5092 = vmax.f32 %v5060, 0.0
      %v5093 = vmax.f32 %v5061, 0.0
      %v5094 = vmax.f32 %v5062, 0.0
      %v5095 = vmax.f32 %v5063, 0.0
      %v5096 = vmax.f32 %v5064, 0.0
      %v5097 = vmax.f32 %v5065, 0.0
      %v5098 = vmax.f32 %v5066, 0.0
      %v5099 = vmax.f32 %v5067, 0.0
      %v5100 = vmax.f32 %v5068, 0.0
      %v5101 = vmax.f32 %v5069, 0.0
      %v5102 = vmax.f32 %v5070, 0.0
      %v5103 = vmax.f32 %v5071, 0.0
      %v5104 = vpack.c.bf16 %v5073, %v5072
      %v5105 = vpack.c.bf16 %v5075, %v5074
      %v5106 = vpack.c.bf16 %v5077, %v5076
      %v5107 = vpack.c.bf16 %v5079, %v5078
      %v5108 = vpack.c.bf16 %v5081, %v5080
      %v5109 = vpack.c.bf16 %v5083, %v5082
      %v5110 = vpack.c.bf16 %v5085, %v5084
      %v5111 = vpack.c.bf16 %v5087, %v5086
      %v5112 = vpack.c.bf16 %v5089, %v5088
      %v5113 = vpack.c.bf16 %v5091, %v5090
      %v5114 = vpack.c.bf16 %v5093, %v5092
      %v5115 = vpack.c.bf16 %v5095, %v5094
      %v5116 = vpack.c.bf16 %v5097, %v5096
      %v5117 = vpack.c.bf16 %v5099, %v5098
      %v5118 = vpack.c.bf16 %v5101, %v5100
      %v5119 = vpack.c.bf16 %v5103, %v5102
      %v5136 = vunpack.c.l.b16 %v5104
      %v5137 = vunpack.c.h.b16 %v5104
      %v5138 = vunpack.c.l.b16 %v5105
      %v5139 = vunpack.c.h.b16 %v5105
      %v5140 = vunpack.c.l.b16 %v5106
      %v5141 = vunpack.c.h.b16 %v5106
      %v5142 = vunpack.c.l.b16 %v5107
      %v5143 = vunpack.c.h.b16 %v5107
      %v5144 = vunpack.c.l.b16 %v5108
      %v5145 = vunpack.c.h.b16 %v5108
      %v5146 = vunpack.c.l.b16 %v5109
      %v5147 = vunpack.c.h.b16 %v5109
      %v5148 = vunpack.c.l.b16 %v5110
      %v5149 = vunpack.c.h.b16 %v5110
      %v5150 = vunpack.c.l.b16 %v5111
      %v5151 = vunpack.c.h.b16 %v5111
      %v5152 = vunpack.c.l.b16 %v5112
      %v5153 = vunpack.c.h.b16 %v5112
      %v5154 = vunpack.c.l.b16 %v5113
      %v5155 = vunpack.c.h.b16 %v5113
      %v5156 = vunpack.c.l.b16 %v5114
      %v5157 = vunpack.c.h.b16 %v5114
      %v5158 = vunpack.c.l.b16 %v5115
      %v5159 = vunpack.c.h.b16 %v5115
      %v5160 = vunpack.c.l.b16 %v5116
      %v5161 = vunpack.c.h.b16 %v5116
      %v5162 = vunpack.c.l.b16 %v5117
      %v5163 = vunpack.c.h.b16 %v5117
      %v5164 = vunpack.c.l.b16 %v5118
      %v5165 = vunpack.c.h.b16 %v5118
      %v5166 = vunpack.c.l.b16 %v5119
      %v5167 = vunpack.c.h.b16 %v5119
      %v5168 = vpack.c.b16 %v5136, %v5136
      %v5169 = vpack.c.b16 %v5137, %v5137
      %v5170 = vpack.c.b16 %v5138, %v5138
      %v5171 = vpack.c.b16 %v5139, %v5139
      %v5172 = vpack.c.b16 %v5140, %v5140
      %v5173 = vpack.c.b16 %v5141, %v5141
      %v5174 = vpack.c.b16 %v5142, %v5142
      %v5175 = vpack.c.b16 %v5143, %v5143
      %v5176 = vpack.c.b16 %v5144, %v5144
      %v5177 = vpack.c.b16 %v5145, %v5145
      %v5178 = vpack.c.b16 %v5146, %v5146
      %v5179 = vpack.c.b16 %v5147, %v5147
      %v5180 = vpack.c.b16 %v5148, %v5148
      %v5181 = vpack.c.b16 %v5149, %v5149
      %v5182 = vpack.c.b16 %v5150, %v5150
      %v5183 = vpack.c.b16 %v5151, %v5151
      %v5184 = vpack.c.b16 %v5152, %v5152
      %v5185 = vpack.c.b16 %v5153, %v5153
      %v5186 = vpack.c.b16 %v5154, %v5154
      %v5187 = vpack.c.b16 %v5155, %v5155
      %v5188 = vpack.c.b16 %v5156, %v5156
      %v5189 = vpack.c.b16 %v5157, %v5157
      %v5190 = vpack.c.b16 %v5158, %v5158
      %v5191 = vpack.c.b16 %v5159, %v5159
      %v5192 = vpack.c.b16 %v5160, %v5160
      %v5193 = vpack.c.b16 %v5161, %v5161
      %v5194 = vpack.c.b16 %v5162, %v5162
      %v5195 = vpack.c.b16 %v5163, %v5163
      %v5196 = vpack.c.b16 %v5164, %v5164
      %v5197 = vpack.c.b16 %v5165, %v5165
      %v5198 = vpack.c.b16 %v5166, %v5166
      %v5199 = vpack.c.b16 %v5167, %v5167
      %5232 = vst [vmem:[%s221] sm:$0xf] %v5168
      %5233 = vst [vmem:[%s221 + $0x4] sm:$0xf] %v5169
      %5234 = vst [vmem:[%s221 + $0x8] sm:$0xf] %v5170
      %5235 = vst [vmem:[%s221 + $0xc] sm:$0xf] %v5171
      %5236 = vst [vmem:[%s221 + $0x10] sm:$0xf] %v5172
      %5237 = vst [vmem:[%s221 + $0x14] sm:$0xf] %v5173
      %5238 = vst [vmem:[%s221 + $0x18] sm:$0xf] %v5174
      %5239 = vst [vmem:[%s221 + $0x1c] sm:$0xf] %v5175
      %5240 = vst [vmem:[%s221 + $0x20] sm:$0xf] %v5176
      %5241 = vst [vmem:[%s221 + $0x24] sm:$0xf] %v5177
      %5242 = vst [vmem:[%s221 + $0x28] sm:$0xf] %v5178
      %5243 = vst [vmem:[%s221 + $0x2c] sm:$0xf] %v5179
      %5244 = vst [vmem:[%s221 + $0x30] sm:$0xf] %v5180
      %5245 = vst [vmem:[%s221 + $0x34] sm:$0xf] %v5181
      %5246 = vst [vmem:[%s221 + $0x38] sm:$0xf] %v5182
      %5247 = vst [vmem:[%s221 + $0x3c] sm:$0xf] %v5183
      %5248 = vst [vmem:[%s221 + $0x40] sm:$0xf] %v5184
      %5249 = vst [vmem:[%s221 + $0x44] sm:$0xf] %v5185
      %5250 = vst [vmem:[%s221 + $0x48] sm:$0xf] %v5186
      %5251 = vst [vmem:[%s221 + $0x4c] sm:$0xf] %v5187
      %5252 = vst [vmem:[%s221 + $0x50] sm:$0xf] %v5188
      %5253 = vst [vmem:[%s221 + $0x54] sm:$0xf] %v5189
      %5254 = vst [vmem:[%s221 + $0x58] sm:$0xf] %v5190
      %5255 = vst [vmem:[%s221 + $0x5c] sm:$0xf] %v5191
      %5256 = vst [vmem:[%s221 + $0x60] sm:$0xf] %v5192
      %5257 = vst [vmem:[%s221 + $0x64] sm:$0xf] %v5193
      %5258 = vst [vmem:[%s221 + $0x68] sm:$0xf] %v5194
      %5259 = vst [vmem:[%s221 + $0x6c] sm:$0xf] %v5195
      %5260 = vst [vmem:[%s221 + $0x70] sm:$0xf] %v5196
      %5261 = vst [vmem:[%s221 + $0x74] sm:$0xf] %v5197
      %5262 = vst [vmem:[%s221 + $0x78] sm:$0xf] %v5198
      %5263 = vst [vmem:[%s221 + $0x7c] sm:$0xf] %v5199
      %p5264 = scmp.lt.s32.totalorder %s19, 1
      %s5265 = scalar_select %p5264, %s19, 1
      %p5266 = scmp.lt.s32.totalorder %s18, 0
      %s5267 = scalar_select %p5266, %s18, 0
      %s5268 = smul.addr %s5265, 32
      %s5269 = sadd.s32 %s5267, %s5268
      %s5270 = smul.addr %s5269, 4
      %s5271 = scalar_lea.vmem %s3, %s5270
      // Predicated region
      $region33: #{convseq3x3_forward.7} parent=31 // pred_check
        %p5272 = pneg %p124
      $region34: #{convseq3x3_forward.7} parent=31 // pred_check_branch
        %5274 = sbr.rel (%p5272) target = $region36
      $region35: #{convseq3x3_forward.7} parent=31 // pred_region
        _
      $region36: #{convseq3x3_forward.7} parent=31 // pred_fallthru
        _
    $region32: #{convseq3x3_forward.7} parent=5 // pred_fallthru
      _
    %p5275 = scmp.le.s32.totalorder 2, %s9
    // Predicated region
    $region37: #{convseq3x3_forward.7} parent=5 // pred_check
      %p5276 = pneg %p5275
    $region38: #{convseq3x3_forward.7} parent=5 // pred_check_branch
      %5278 = sbr.rel (%p5276) target = $region40
    $region39: #{convseq3x3_forward.7} parent=5 // pred_region
      %s5279 = ssub.s32 %s9, 2
      // Predicated region
      $region41: #{convseq3x3_forward.7} parent=39 // pred_check
        %p5280 = pneg %p130
      $region42: #{convseq3x3_forward.7} parent=39 // pred_check_branch
        %5282 = sbr.rel (%p5280) target = $region44
      $region43: #{convseq3x3_forward.7} parent=39 // pred_region
        %p5283 = scmp.lt.s32.totalorder %s21, 1
        %s5284 = scalar_select %p5283, %s21, 1
        %p5285 = scmp.lt.s32.totalorder %s20, 0
        %s5286 = scalar_select %p5285, %s20, 0
        %s5287 = smul.addr %s5284, 32
        %s5288 = sadd.s32 %s5286, %s5287
        %s5289 = smul.addr %s5288, 4
        %s5290 = scalar_lea.vmem %s3, %s5289
      $region44: #{convseq3x3_forward.7} parent=39 // pred_fallthru
        _
    $region40: #{convseq3x3_forward.7} parent=5 // pred_fallthru
      _
  $region6: #{convseq3x3_forward.7} parent=0 // loop_footer
    %s13 = sadd.s32 1, %s9
  $region7: #{convseq3x3_forward.7} parent=0 // loop_footer_branch
    %8 = sbr.rel target = $region3
  $region8: #{convseq3x3_forward.7} parent=0 // loop_exit
    _

</llo_original>
